<compile_context>
chip_gen: v5e
topology: v5e:2x2
jax: 0.10.0
libtpu: 0.0.40
codegen_flags: <defaults>
</compile_context>

<pallas_src>
import jax
import jax.numpy as jnp
from jax import lax
from jax.experimental import pallas as pl
from jax.experimental.pallas import tpu as pltpu


FEAT_DIM = 384                  # per-encoder feature dim -> concat = 768
INPUT_DIM = 2 * FEAT_DIM        # = 768, matches CLIPMODEL default
VOCAB = 32
HEAD_PAD = 128                  # lane-dense padded width for the (.., 1) head
BN_EPS = 1e-5


# ----------------------------------------------------------------------------
# Fused Pallas kernel: the entire forward for one batch tile
# ----------------------------------------------------------------------------

def _fused_clip_kernel(*refs):
    """refs layout:
      [0]  img_flat (BB, C*H*W) f32
      [1]  txt      (BB, T)     int32 token ids
      [2]  img_w bf16   [3] img_b f32
      [4]  emb   bf16 (VOCAB, FEAT)   [5] txt_w bf16   [6] txt_b f32
      [7:31]  4 residual blocks x (w1, b1, w2, b2, ws, bs)  (BN pre-folded)
      [31] head_w bf16 (64, HEAD_PAD, zero-padded)  [32] head_b f32 (1, HEAD_PAD)
      [33] out (BB, HEAD_PAD) f32
    """
    f32, bf16 = jnp.float32, jnp.bfloat16
    img_ref, txt_ref = refs[0], refs[1]
    img_w, img_b, emb_w, txt_w, txt_b = refs[2:7]
    blk = refs[7:31]
    head_w, head_b = refs[31], refs[32]
    o_ref = refs[33]

    # --- image encoder stand-in: flatten -> Linear(C*H*W, 384) ---
    imgf = (jnp.dot(img_ref[...].astype(bf16), img_w[...],
                    preferred_element_type=f32) + img_b[...])

    # --- text encoder stand-in: Embedding mean-pool (one-hot matmul) -> Linear ---
    tok = txt_ref[...]                                   # (BB, T) int32
    BB, T = tok.shape
    vocab = emb_w.shape[0]
    vocab_iota = lax.broadcasted_iota(jnp.int32, (BB, vocab), 1)
    pooled = jnp.zeros((BB, vocab), f32)
    for t in range(T):                                   # small static loop: unrolled
        pooled = pooled + (tok[:, t:t + 1] == vocab_iota).astype(f32)
    pooled = pooled * (1.0 / T)                          # == mean of one-hot rows
    tokf = jnp.dot(pooled.astype(bf16), emb_w[...], preferred_element_type=f32)
    txtf = (jnp.dot(tokf.astype(bf16), txt_w[...],
                    preferred_element_type=f32) + txt_b[...])

    # --- L2 normalize (no eps: matches torch .norm()) + concat ---
    img_n = imgf * lax.rsqrt(jnp.sum(imgf * imgf, axis=-1, keepdims=True))
    txt_n = txtf * lax.rsqrt(jnp.sum(txtf * txtf, axis=-1, keepdims=True))
    x = jnp.concatenate([img_n, txt_n], axis=-1)         # (BB, 768) f32

    # --- 4 residual blocks: relu(lin)->relu(lin) + shortcut (BN folded) ---
    for i in range(4):
        w1, b1, w2, b2, ws, bs = blk[6 * i:6 * i + 6]
        xb = x.astype(bf16)
        h = jnp.dot(xb, w1[...], preferred_element_type=f32) + b1[...]
        h = jnp.maximum(h, 0.0)
        h = jnp.dot(h.astype(bf16), w2[...], preferred_element_type=f32) + b2[...]
        h = jnp.maximum(h, 0.0)
        s = jnp.dot(xb, ws[...], preferred_element_type=f32) + bs[...]
        x = h + s

    # --- final Linear(64, 1), lane-padded to HEAD_PAD (real result in col 0) ---
    o_ref[...] = (jnp.dot(x.astype(bf16), head_w[...],
                          preferred_element_type=f32) + head_b[...])


# ----------------------------------------------------------------------------
# Deterministic parameter initialization (raw, f32, PyTorch-shaped)
# ----------------------------------------------------------------------------

def init_linear(key, fin, fout):
    kw, kb = jax.random.split(key)
    w = jax.random.normal(kw, (fin, fout), jnp.float32) * (1.0 / jnp.sqrt(fin))
    b = jax.random.normal(kb, (1, fout), jnp.float32) * 0.01
    return w, b


def init_bn(key, f):
    k1, k2, k3, k4 = jax.random.split(key, 4)
    gamma = 1.0 + 0.1 * jax.random.normal(k1, (1, f), jnp.float32)
    beta = 0.05 * jax.random.normal(k2, (1, f), jnp.float32)
    rmean = 0.1 * jax.random.normal(k3, (1, f), jnp.float32)
    rvar = 1.0 + 0.1 * jnp.abs(jax.random.normal(k4, (1, f), jnp.float32))
    return gamma, beta, rmean, rvar


def init_resblock(key, fin, fout):
    k1, k2, k3, k4, k5 = jax.random.split(key, 5)
    w1, b1 = init_linear(k1, fin, fout)
    g1, be1, m1, v1 = init_bn(k2, fout)
    w2, b2 = init_linear(k3, fout, fout)
    g2, be2, m2, v2 = init_bn(k4, fout)
    ws, bs = init_linear(k5, fin, fout)
    return (w1, b1, g1, be1, m1, v1, w2, b2, g2, be2, m2, v2, ws, bs)


def init_raw_params(key):
    keys = jax.random.split(key, 9)
    params = {}
    params["img_w"], params["img_b"] = init_linear(keys[0], 4 * 16 * 16, FEAT_DIM)
    params["txt_emb"] = jax.random.normal(keys[1], (VOCAB, FEAT_DIM), jnp.float32) * 0.02
    params["txt_w"], params["txt_b"] = init_linear(keys[2], FEAT_DIM, FEAT_DIM)
    dims = [(INPUT_DIM, 512), (512, 256), (256, 128), (128, 64)]
    params["blocks"] = [init_resblock(keys[3 + i], fi, fo) for i, (fi, fo) in enumerate(dims)]
    params["head_w"], params["head_b"] = init_linear(keys[7], 64, 1)
    return params


# ----------------------------------------------------------------------------
# BN folding + bf16 packing (host-side, done once)
# ----------------------------------------------------------------------------

def _fold_bn(w, b, gamma, beta, rmean, rvar, eps=BN_EPS):
    s = gamma * lax.rsqrt(rvar + eps)          # (1, fout)
    return w * s, (b - rmean) * s + beta


def pack_params(raw):
    bf16 = jnp.bfloat16
    p = {
        "img_w": raw["img_w"].astype(bf16), "img_b": raw["img_b"],
        "emb": raw["txt_emb"].astype(bf16),
        "txt_w": raw["txt_w"].astype(bf16), "txt_b": raw["txt_b"],
    }
    blocks = []
    for (w1, b1, g1, be1, m1, v1, w2, b2, g2, be2, m2, v2, ws, bs) in raw["blocks"]:
        w1f, b1f = _fold_bn(w1, b1, g1, be1, m1, v1)
        w2f, b2f = _fold_bn(w2, b2, g2, be2, m2, v2)
        blocks.append((w1f.astype(bf16), b1f, w2f.astype(bf16), b2f,
                       ws.astype(bf16), bs))
    p["blocks"] = blocks
    # Pad the (64, 1) head to (64, HEAD_PAD) for lane-dense output stores.
    hw = jnp.zeros((64, HEAD_PAD), jnp.float32).at[:, :1].set(raw["head_w"])
    hb = jnp.zeros((1, HEAD_PAD), jnp.float32).at[:, :1].set(raw["head_b"])
    p["head_w"] = hw.astype(bf16)
    p["head_b"] = hb
    return p


# ----------------------------------------------------------------------------
# Forward: one fused pallas_call, batch-tiled over a 'parallel' grid axis
# ----------------------------------------------------------------------------

def clipmodel_forward(params, img, txt):
    B = img.shape[0]
    img_flat = img.reshape(B, -1).astype(jnp.float32)      # glue: NCHW flatten
    D_img = img_flat.shape[1]
    T = txt.shape[1]

    # Pad batch to a sublane multiple (>=8); tile at up to 128 rows per grid step.
    BB = 128 if B >= 128 else max(8, ((B + 7) // 8) * 8)
    B_pad = ((B + BB - 1) // BB) * BB
    if B_pad != B:
        img_flat = jnp.pad(img_flat, ((0, B_pad - B), (0, 0)))
        txt = jnp.pad(txt, ((0, B_pad - B), (0, 0)))

    weights = [params["img_w"], params["img_b"], params["emb"],
               params["txt_w"], params["txt_b"]]
    for blk in params["blocks"]:
        weights += list(blk)
    weights += [params["head_w"], params["head_b"]]

    grid = (B_pad // BB,)
    in_specs = [pl.BlockSpec((BB, D_img), lambda i: (i, 0)),
                pl.BlockSpec((BB, T), lambda i: (i, 0))]
    # Weights: constant block index -> stay VMEM-resident across batch tiles.
    in_specs += [pl.BlockSpec(w.shape, lambda i: (0, 0)) for w in weights]

    out = pl.pallas_call(
        _fused_clip_kernel,
        grid=grid,
        in_specs=in_specs,
        out_specs=pl.BlockSpec((BB, HEAD_PAD), lambda i: (i, 0)),
        out_shape=jax.ShapeDtypeStruct((B_pad, HEAD_PAD), jnp.float32),
        compiler_params=pltpu.CompilerParams(
            dimension_semantics=("parallel",),             # batch tiles: both v7x TCs
            vmem_limit_bytes=32 * 1024 * 1024),            # actual need ~10 MB (bf16 weights)
    )(img_flat, txt, *weights)
    return out[:B, :1]


# ----------------------------------------------------------------------------
# main
# ----------------------------------------------------------------------------

if __name__ == "__main__":
    key = jax.random.PRNGKey(0)
    kp, ki, kt = jax.random.split(key, 3)

    raw = init_raw_params(kp)
    params = pack_params(raw)

    # small example inputs (PyTorch-style layouts)
    img = jax.random.normal(ki, (2, 4, 16, 16), jnp.float32)    # NCHW
    txt = jax.random.randint(kt, (2, 8), 0, VOCAB, jnp.int32)   # token ids

    out = clipmodel_forward(params, img, txt)
    out = jax.block_until_ready(out)

    assert out.shape == (2, 1) and out.dtype == jnp.float32
    assert bool(jnp.all(jnp.isfinite(out)))
    print("KERNEL_OK")
</pallas_src>

<mosaic_0001>
module attributes {stable_mosaic.version = 11 : i64} {
  func.func @_fused_clip_kernel(%arg0: i32, %arg1: memref<8x1024xf32, #tpu.memory_space<vmem>>, %arg2: memref<8x8xi32, #tpu.memory_space<vmem>>, %arg3: memref<1024x384xbf16, #tpu.memory_space<vmem>>, %arg4: memref<1x384xf32, #tpu.memory_space<vmem>>, %arg5: memref<32x384xbf16, #tpu.memory_space<vmem>>, %arg6: memref<384x384xbf16, #tpu.memory_space<vmem>>, %arg7: memref<1x384xf32, #tpu.memory_space<vmem>>, %arg8: memref<768x512xbf16, #tpu.memory_space<vmem>>, %arg9: memref<1x512xf32, #tpu.memory_space<vmem>>, %arg10: memref<512x512xbf16, #tpu.memory_space<vmem>>, %arg11: memref<1x512xf32, #tpu.memory_space<vmem>>, %arg12: memref<768x512xbf16, #tpu.memory_space<vmem>>, %arg13: memref<1x512xf32, #tpu.memory_space<vmem>>, %arg14: memref<512x256xbf16, #tpu.memory_space<vmem>>, %arg15: memref<1x256xf32, #tpu.memory_space<vmem>>, %arg16: memref<256x256xbf16, #tpu.memory_space<vmem>>, %arg17: memref<1x256xf32, #tpu.memory_space<vmem>>, %arg18: memref<512x256xbf16, #tpu.memory_space<vmem>>, %arg19: memref<1x256xf32, #tpu.memory_space<vmem>>, %arg20: memref<256x128xbf16, #tpu.memory_space<vmem>>, %arg21: memref<1x128xf32, #tpu.memory_space<vmem>>, %arg22: memref<128x128xbf16, #tpu.memory_space<vmem>>, %arg23: memref<1x128xf32, #tpu.memory_space<vmem>>, %arg24: memref<256x128xbf16, #tpu.memory_space<vmem>>, %arg25: memref<1x128xf32, #tpu.memory_space<vmem>>, %arg26: memref<128x64xbf16, #tpu.memory_space<vmem>>, %arg27: memref<1x64xf32, #tpu.memory_space<vmem>>, %arg28: memref<64x64xbf16, #tpu.memory_space<vmem>>, %arg29: memref<1x64xf32, #tpu.memory_space<vmem>>, %arg30: memref<128x64xbf16, #tpu.memory_space<vmem>>, %arg31: memref<1x64xf32, #tpu.memory_space<vmem>>, %arg32: memref<64x128xbf16, #tpu.memory_space<vmem>>, %arg33: memref<1x128xf32, #tpu.memory_space<vmem>>, %arg34: memref<8x128xf32, #tpu.memory_space<vmem>>) attributes {dimension_semantics = [#tpu.dimension_semantics<parallel>], iteration_bounds = array<i64: 1>, scalar_prefetch = 0 : i64, scratch_operands = 0 : i64, tpu.core_type = #tpu.core_type<tc>, window_params = [{transform_indices = @transform_0, window_bounds = array<i64: 8, 1024>}, {transform_indices = @transform_1, window_bounds = array<i64: 8, 8>}, {pipeline_mode = #tpu.pipeline_mode<synchronous>, transform_indices = @transform_2, window_bounds = array<i64: 1024, 384>}, {pipeline_mode = #tpu.pipeline_mode<synchronous>, transform_indices = @transform_3, window_bounds = array<i64: 1, 384>}, {pipeline_mode = #tpu.pipeline_mode<synchronous>, transform_indices = @transform_4, window_bounds = array<i64: 32, 384>}, {pipeline_mode = #tpu.pipeline_mode<synchronous>, transform_indices = @transform_5, window_bounds = array<i64: 384, 384>}, {pipeline_mode = #tpu.pipeline_mode<synchronous>, transform_indices = @transform_6, window_bounds = array<i64: 1, 384>}, {pipeline_mode = #tpu.pipeline_mode<synchronous>, transform_indices = @transform_7, window_bounds = array<i64: 768, 512>}, {pipeline_mode = #tpu.pipeline_mode<synchronous>, transform_indices = @transform_8, window_bounds = array<i64: 1, 512>}, {pipeline_mode = #tpu.pipeline_mode<synchronous>, transform_indices = @transform_9, window_bounds = array<i64: 512, 512>}, {pipeline_mode = #tpu.pipeline_mode<synchronous>, transform_indices = @transform_10, window_bounds = array<i64: 1, 512>}, {pipeline_mode = #tpu.pipeline_mode<synchronous>, transform_indices = @transform_11, window_bounds = array<i64: 768, 512>}, {pipeline_mode = #tpu.pipeline_mode<synchronous>, transform_indices = @transform_12, window_bounds = array<i64: 1, 512>}, {pipeline_mode = #tpu.pipeline_mode<synchronous>, transform_indices = @transform_13, window_bounds = array<i64: 512, 256>}, {pipeline_mode = #tpu.pipeline_mode<synchronous>, transform_indices = @transform_14, window_bounds = array<i64: 1, 256>}, {pipeline_mode = #tpu.pipeline_mode<synchronous>, transform_indices = @transform_15, window_bounds = array<i64: 256, 256>}, {pipeline_mode = #tpu.pipeline_mode<synchronous>, transform_indices = @transform_16, window_bounds = array<i64: 1, 256>}, {pipeline_mode = #tpu.pipeline_mode<synchronous>, transform_indices = @transform_17, window_bounds = array<i64: 512, 256>}, {pipeline_mode = #tpu.pipeline_mode<synchronous>, transform_indices = @transform_18, window_bounds = array<i64: 1, 256>}, {pipeline_mode = #tpu.pipeline_mode<synchronous>, transform_indices = @transform_19, window_bounds = array<i64: 256, 128>}, {pipeline_mode = #tpu.pipeline_mode<synchronous>, transform_indices = @transform_20, window_bounds = array<i64: 1, 128>}, {pipeline_mode = #tpu.pipeline_mode<synchronous>, transform_indices = @transform_21, window_bounds = array<i64: 128, 128>}, {pipeline_mode = #tpu.pipeline_mode<synchronous>, transform_indices = @transform_22, window_bounds = array<i64: 1, 128>}, {pipeline_mode = #tpu.pipeline_mode<synchronous>, transform_indices = @transform_23, window_bounds = array<i64: 256, 128>}, {pipeline_mode = #tpu.pipeline_mode<synchronous>, transform_indices = @transform_24, window_bounds = array<i64: 1, 128>}, {pipeline_mode = #tpu.pipeline_mode<synchronous>, transform_indices = @transform_25, window_bounds = array<i64: 128, 64>}, {pipeline_mode = #tpu.pipeline_mode<synchronous>, transform_indices = @transform_26, window_bounds = array<i64: 1, 64>}, {pipeline_mode = #tpu.pipeline_mode<synchronous>, transform_indices = @transform_27, window_bounds = array<i64: 64, 64>}, {pipeline_mode = #tpu.pipeline_mode<synchronous>, transform_indices = @transform_28, window_bounds = array<i64: 1, 64>}, {pipeline_mode = #tpu.pipeline_mode<synchronous>, transform_indices = @transform_29, window_bounds = array<i64: 128, 64>}, {pipeline_mode = #tpu.pipeline_mode<synchronous>, transform_indices = @transform_30, window_bounds = array<i64: 1, 64>}, {pipeline_mode = #tpu.pipeline_mode<synchronous>, transform_indices = @transform_31, window_bounds = array<i64: 64, 128>}, {pipeline_mode = #tpu.pipeline_mode<synchronous>, transform_indices = @transform_32, window_bounds = array<i64: 1, 128>}, {transform_indices = @transform_33, window_bounds = array<i64: 8, 128>}]} {
    %c0 = arith.constant 0 : index
    %c0_0 = arith.constant 0 : index
    %0 = vector.load %arg1[%c0, %c0_0] : memref<8x1024xf32, #tpu.memory_space<vmem>>, vector<8x1024xf32>
    %1 = arith.truncf %0 : vector<8x1024xf32> to vector<8x1024xbf16>
    %c0_1 = arith.constant 0 : index
    %c0_2 = arith.constant 0 : index
    %2 = vector.load %arg3[%c0_1, %c0_2] : memref<1024x384xbf16, #tpu.memory_space<vmem>>, vector<1024x384xbf16>
    %cst = arith.constant dense<0.000000e+00> : vector<8x384xf32>
    %3 = tpu.matmul %1, %2, %cst {dimension_numbers = #tpu.dot_dimension_numbers<[1], [0], [0], [1], [0, 0, 1, 1], [], []>} : vector<8x1024xbf16>, vector<1024x384xbf16>, vector<8x384xf32> -> vector<8x384xf32>
    %c0_3 = arith.constant 0 : index
    %c0_4 = arith.constant 0 : index
    %4 = vector.load %arg4[%c0_3, %c0_4] : memref<1x384xf32, #tpu.memory_space<vmem>>, vector<1x384xf32>
    %5 = vector.broadcast %4 : vector<1x384xf32> to vector<8x384xf32>
    %6 = arith.addf %3, %5 : vector<8x384xf32>
    %c0_5 = arith.constant 0 : index
    %c0_6 = arith.constant 0 : index
    %7 = vector.load %arg2[%c0_5, %c0_6] : memref<8x8xi32, #tpu.memory_space<vmem>>, vector<8x8xi32>
    %8 = tpu.iota {dimensions = array<i32: 1>} : vector<8x32xi32>
    %cst_7 = arith.constant 0.000000e+00 : f32
    %9 = vector.broadcast %cst_7 : f32 to vector<8x32xf32>
    %10 = vector.extract_strided_slice %7 {offsets = [0, 0], sizes = [8, 1], strides = [1, 1]} : vector<8x8xi32> to vector<8x1xi32>
    %11 = vector.broadcast %10 : vector<8x1xi32> to vector<8x32xi32>
    %12 = arith.cmpi eq, %11, %8 : vector<8x32xi32>
    %13 = arith.extui %12 : vector<8x32xi1> to vector<8x32xi32>
    %14 = arith.sitofp %13 : vector<8x32xi32> to vector<8x32xf32>
    %15 = arith.addf %9, %14 : vector<8x32xf32>
    %16 = vector.extract_strided_slice %7 {offsets = [0, 1], sizes = [8, 1], strides = [1, 1]} : vector<8x8xi32> to vector<8x1xi32>
    %17 = vector.broadcast %16 : vector<8x1xi32> to vector<8x32xi32>
    %18 = arith.cmpi eq, %17, %8 : vector<8x32xi32>
    %19 = arith.extui %18 : vector<8x32xi1> to vector<8x32xi32>
    %20 = arith.sitofp %19 : vector<8x32xi32> to vector<8x32xf32>
    %21 = arith.addf %15, %20 : vector<8x32xf32>
    %22 = vector.extract_strided_slice %7 {offsets = [0, 2], sizes = [8, 1], strides = [1, 1]} : vector<8x8xi32> to vector<8x1xi32>
    %23 = vector.broadcast %22 : vector<8x1xi32> to vector<8x32xi32>
    %24 = arith.cmpi eq, %23, %8 : vector<8x32xi32>
    %25 = arith.extui %24 : vector<8x32xi1> to vector<8x32xi32>
    %26 = arith.sitofp %25 : vector<8x32xi32> to vector<8x32xf32>
    %27 = arith.addf %21, %26 : vector<8x32xf32>
    %28 = vector.extract_strided_slice %7 {offsets = [0, 3], sizes = [8, 1], strides = [1, 1]} : vector<8x8xi32> to vector<8x1xi32>
    %29 = vector.broadcast %28 : vector<8x1xi32> to vector<8x32xi32>
    %30 = arith.cmpi eq, %29, %8 : vector<8x32xi32>
    %31 = arith.extui %30 : vector<8x32xi1> to vector<8x32xi32>
    %32 = arith.sitofp %31 : vector<8x32xi32> to vector<8x32xf32>
    %33 = arith.addf %27, %32 : vector<8x32xf32>
    %34 = vector.extract_strided_slice %7 {offsets = [0, 4], sizes = [8, 1], strides = [1, 1]} : vector<8x8xi32> to vector<8x1xi32>
    %35 = vector.broadcast %34 : vector<8x1xi32> to vector<8x32xi32>
    %36 = arith.cmpi eq, %35, %8 : vector<8x32xi32>
    %37 = arith.extui %36 : vector<8x32xi1> to vector<8x32xi32>
    %38 = arith.sitofp %37 : vector<8x32xi32> to vector<8x32xf32>
    %39 = arith.addf %33, %38 : vector<8x32xf32>
    %40 = vector.extract_strided_slice %7 {offsets = [0, 5], sizes = [8, 1], strides = [1, 1]} : vector<8x8xi32> to vector<8x1xi32>
    %41 = vector.broadcast %40 : vector<8x1xi32> to vector<8x32xi32>
    %42 = arith.cmpi eq, %41, %8 : vector<8x32xi32>
    %43 = arith.extui %42 : vector<8x32xi1> to vector<8x32xi32>
    %44 = arith.sitofp %43 : vector<8x32xi32> to vector<8x32xf32>
    %45 = arith.addf %39, %44 : vector<8x32xf32>
    %46 = vector.extract_strided_slice %7 {offsets = [0, 6], sizes = [8, 1], strides = [1, 1]} : vector<8x8xi32> to vector<8x1xi32>
    %47 = vector.broadcast %46 : vector<8x1xi32> to vector<8x32xi32>
    %48 = arith.cmpi eq, %47, %8 : vector<8x32xi32>
    %49 = arith.extui %48 : vector<8x32xi1> to vector<8x32xi32>
    %50 = arith.sitofp %49 : vector<8x32xi32> to vector<8x32xf32>
    %51 = arith.addf %45, %50 : vector<8x32xf32>
    %52 = vector.extract_strided_slice %7 {offsets = [0, 7], sizes = [8, 1], strides = [1, 1]} : vector<8x8xi32> to vector<8x1xi32>
    %53 = vector.broadcast %52 : vector<8x1xi32> to vector<8x32xi32>
    %54 = arith.cmpi eq, %53, %8 : vector<8x32xi32>
    %55 = arith.extui %54 : vector<8x32xi1> to vector<8x32xi32>
    %56 = arith.sitofp %55 : vector<8x32xi32> to vector<8x32xf32>
    %57 = arith.addf %51, %56 : vector<8x32xf32>
    %cst_8 = arith.constant 1.250000e-01 : f32
    %58 = vector.broadcast %cst_8 : f32 to vector<8x32xf32>
    %59 = arith.mulf %57, %58 : vector<8x32xf32>
    %60 = arith.truncf %59 : vector<8x32xf32> to vector<8x32xbf16>
    %c0_9 = arith.constant 0 : index
    %c0_10 = arith.constant 0 : index
    %61 = vector.load %arg5[%c0_9, %c0_10] : memref<32x384xbf16, #tpu.memory_space<vmem>>, vector<32x384xbf16>
    %cst_11 = arith.constant dense<0.000000e+00> : vector<8x384xf32>
    %62 = tpu.matmul %60, %61, %cst_11 {dimension_numbers = #tpu.dot_dimension_numbers<[1], [0], [0], [1], [0, 0, 1, 1], [], []>} : vector<8x32xbf16>, vector<32x384xbf16>, vector<8x384xf32> -> vector<8x384xf32>
    %63 = arith.truncf %62 : vector<8x384xf32> to vector<8x384xbf16>
    %c0_12 = arith.constant 0 : index
    %c0_13 = arith.constant 0 : index
    %64 = vector.load %arg6[%c0_12, %c0_13] : memref<384x384xbf16, #tpu.memory_space<vmem>>, vector<384x384xbf16>
    %cst_14 = arith.constant dense<0.000000e+00> : vector<8x384xf32>
    %65 = tpu.matmul %63, %64, %cst_14 {dimension_numbers = #tpu.dot_dimension_numbers<[1], [0], [0], [1], [0, 0, 1, 1], [], []>} : vector<8x384xbf16>, vector<384x384xbf16>, vector<8x384xf32> -> vector<8x384xf32>
    %c0_15 = arith.constant 0 : index
    %c0_16 = arith.constant 0 : index
    %66 = vector.load %arg7[%c0_15, %c0_16] : memref<1x384xf32, #tpu.memory_space<vmem>>, vector<1x384xf32>
    %67 = vector.broadcast %66 : vector<1x384xf32> to vector<8x384xf32>
    %68 = arith.addf %65, %67 : vector<8x384xf32>
    %69 = arith.mulf %6, %6 : vector<8x384xf32>
    %cst_17 = arith.constant dense<0.000000e+00> : vector<8xf32>
    %70 = vector.multi_reduction <add>, %69, %cst_17 [1] : vector<8x384xf32> to vector<8xf32>
    %71 = vector.shape_cast %70 : vector<8xf32> to vector<8x1xf32>
    %72 = math.rsqrt %71 : vector<8x1xf32>
    %73 = vector.broadcast %72 : vector<8x1xf32> to vector<8x384xf32>
    %74 = arith.mulf %6, %73 : vector<8x384xf32>
    %75 = arith.mulf %68, %68 : vector<8x384xf32>
    %cst_18 = arith.constant dense<0.000000e+00> : vector<8xf32>
    %76 = vector.multi_reduction <add>, %75, %cst_18 [1] : vector<8x384xf32> to vector<8xf32>
    %77 = vector.shape_cast %76 : vector<8xf32> to vector<8x1xf32>
    %78 = math.rsqrt %77 : vector<8x1xf32>
    %79 = vector.broadcast %78 : vector<8x1xf32> to vector<8x384xf32>
    %80 = arith.mulf %68, %79 : vector<8x384xf32>
    %81 = tpu.concatenate %74, %80 in 1 : vector<8x384xf32>, vector<8x384xf32> -> vector<8x768xf32>
    %82 = arith.truncf %81 : vector<8x768xf32> to vector<8x768xbf16>
    %c0_19 = arith.constant 0 : index
    %c0_20 = arith.constant 0 : index
    %83 = vector.load %arg8[%c0_19, %c0_20] : memref<768x512xbf16, #tpu.memory_space<vmem>>, vector<768x512xbf16>
    %cst_21 = arith.constant dense<0.000000e+00> : vector<8x512xf32>
    %84 = tpu.matmul %82, %83, %cst_21 {dimension_numbers = #tpu.dot_dimension_numbers<[1], [0], [0], [1], [0, 0, 1, 1], [], []>} : vector<8x768xbf16>, vector<768x512xbf16>, vector<8x512xf32> -> vector<8x512xf32>
    %c0_22 = arith.constant 0 : index
    %c0_23 = arith.constant 0 : index
    %85 = vector.load %arg9[%c0_22, %c0_23] : memref<1x512xf32, #tpu.memory_space<vmem>>, vector<1x512xf32>
    %86 = vector.broadcast %85 : vector<1x512xf32> to vector<8x512xf32>
    %87 = arith.addf %84, %86 : vector<8x512xf32>
    %cst_24 = arith.constant 0.000000e+00 : f32
    %88 = vector.broadcast %cst_24 : f32 to vector<8x512xf32>
    %89 = arith.maximumf %87, %88 : vector<8x512xf32>
    %90 = arith.truncf %89 : vector<8x512xf32> to vector<8x512xbf16>
    %c0_25 = arith.constant 0 : index
    %c0_26 = arith.constant 0 : index
    %91 = vector.load %arg10[%c0_25, %c0_26] : memref<512x512xbf16, #tpu.memory_space<vmem>>, vector<512x512xbf16>
    %cst_27 = arith.constant dense<0.000000e+00> : vector<8x512xf32>
    %92 = tpu.matmul %90, %91, %cst_27 {dimension_numbers = #tpu.dot_dimension_numbers<[1], [0], [0], [1], [0, 0, 1, 1], [], []>} : vector<8x512xbf16>, vector<512x512xbf16>, vector<8x512xf32> -> vector<8x512xf32>
    %c0_28 = arith.constant 0 : index
    %c0_29 = arith.constant 0 : index
    %93 = vector.load %arg11[%c0_28, %c0_29] : memref<1x512xf32, #tpu.memory_space<vmem>>, vector<1x512xf32>
    %94 = vector.broadcast %93 : vector<1x512xf32> to vector<8x512xf32>
    %95 = arith.addf %92, %94 : vector<8x512xf32>
    %cst_30 = arith.constant 0.000000e+00 : f32
    %96 = vector.broadcast %cst_30 : f32 to vector<8x512xf32>
    %97 = arith.maximumf %95, %96 : vector<8x512xf32>
    %c0_31 = arith.constant 0 : index
    %c0_32 = arith.constant 0 : index
    %98 = vector.load %arg12[%c0_31, %c0_32] : memref<768x512xbf16, #tpu.memory_space<vmem>>, vector<768x512xbf16>
    %cst_33 = arith.constant dense<0.000000e+00> : vector<8x512xf32>
    %99 = tpu.matmul %82, %98, %cst_33 {dimension_numbers = #tpu.dot_dimension_numbers<[1], [0], [0], [1], [0, 0, 1, 1], [], []>} : vector<8x768xbf16>, vector<768x512xbf16>, vector<8x512xf32> -> vector<8x512xf32>
    %c0_34 = arith.constant 0 : index
    %c0_35 = arith.constant 0 : index
    %100 = vector.load %arg13[%c0_34, %c0_35] : memref<1x512xf32, #tpu.memory_space<vmem>>, vector<1x512xf32>
    %101 = vector.broadcast %100 : vector<1x512xf32> to vector<8x512xf32>
    %102 = arith.addf %99, %101 : vector<8x512xf32>
    %103 = arith.addf %97, %102 : vector<8x512xf32>
    %104 = arith.truncf %103 : vector<8x512xf32> to vector<8x512xbf16>
    %c0_36 = arith.constant 0 : index
    %c0_37 = arith.constant 0 : index
    %105 = vector.load %arg14[%c0_36, %c0_37] : memref<512x256xbf16, #tpu.memory_space<vmem>>, vector<512x256xbf16>
    %cst_38 = arith.constant dense<0.000000e+00> : vector<8x256xf32>
    %106 = tpu.matmul %104, %105, %cst_38 {dimension_numbers = #tpu.dot_dimension_numbers<[1], [0], [0], [1], [0, 0, 1, 1], [], []>} : vector<8x512xbf16>, vector<512x256xbf16>, vector<8x256xf32> -> vector<8x256xf32>
    %c0_39 = arith.constant 0 : index
    %c0_40 = arith.constant 0 : index
    %107 = vector.load %arg15[%c0_39, %c0_40] : memref<1x256xf32, #tpu.memory_space<vmem>>, vector<1x256xf32>
    %108 = vector.broadcast %107 : vector<1x256xf32> to vector<8x256xf32>
    %109 = arith.addf %106, %108 : vector<8x256xf32>
    %cst_41 = arith.constant 0.000000e+00 : f32
    %110 = vector.broadcast %cst_41 : f32 to vector<8x256xf32>
    %111 = arith.maximumf %109, %110 : vector<8x256xf32>
    %112 = arith.truncf %111 : vector<8x256xf32> to vector<8x256xbf16>
    %c0_42 = arith.constant 0 : index
    %c0_43 = arith.constant 0 : index
    %113 = vector.load %arg16[%c0_42, %c0_43] : memref<256x256xbf16, #tpu.memory_space<vmem>>, vector<256x256xbf16>
    %cst_44 = arith.constant dense<0.000000e+00> : vector<8x256xf32>
    %114 = tpu.matmul %112, %113, %cst_44 {dimension_numbers = #tpu.dot_dimension_numbers<[1], [0], [0], [1], [0, 0, 1, 1], [], []>} : vector<8x256xbf16>, vector<256x256xbf16>, vector<8x256xf32> -> vector<8x256xf32>
    %c0_45 = arith.constant 0 : index
    %c0_46 = arith.constant 0 : index
    %115 = vector.load %arg17[%c0_45, %c0_46] : memref<1x256xf32, #tpu.memory_space<vmem>>, vector<1x256xf32>
    %116 = vector.broadcast %115 : vector<1x256xf32> to vector<8x256xf32>
    %117 = arith.addf %114, %116 : vector<8x256xf32>
    %cst_47 = arith.constant 0.000000e+00 : f32
    %118 = vector.broadcast %cst_47 : f32 to vector<8x256xf32>
    %119 = arith.maximumf %117, %118 : vector<8x256xf32>
    %c0_48 = arith.constant 0 : index
    %c0_49 = arith.constant 0 : index
    %120 = vector.load %arg18[%c0_48, %c0_49] : memref<512x256xbf16, #tpu.memory_space<vmem>>, vector<512x256xbf16>
    %cst_50 = arith.constant dense<0.000000e+00> : vector<8x256xf32>
    %121 = tpu.matmul %104, %120, %cst_50 {dimension_numbers = #tpu.dot_dimension_numbers<[1], [0], [0], [1], [0, 0, 1, 1], [], []>} : vector<8x512xbf16>, vector<512x256xbf16>, vector<8x256xf32> -> vector<8x256xf32>
    %c0_51 = arith.constant 0 : index
    %c0_52 = arith.constant 0 : index
    %122 = vector.load %arg19[%c0_51, %c0_52] : memref<1x256xf32, #tpu.memory_space<vmem>>, vector<1x256xf32>
    %123 = vector.broadcast %122 : vector<1x256xf32> to vector<8x256xf32>
    %124 = arith.addf %121, %123 : vector<8x256xf32>
    %125 = arith.addf %119, %124 : vector<8x256xf32>
    %126 = arith.truncf %125 : vector<8x256xf32> to vector<8x256xbf16>
    %c0_53 = arith.constant 0 : index
    %c0_54 = arith.constant 0 : index
    %127 = vector.load %arg20[%c0_53, %c0_54] : memref<256x128xbf16, #tpu.memory_space<vmem>>, vector<256x128xbf16>
    %cst_55 = arith.constant dense<0.000000e+00> : vector<8x128xf32>
    %128 = tpu.matmul %126, %127, %cst_55 {dimension_numbers = #tpu.dot_dimension_numbers<[1], [0], [0], [1], [0, 0, 1, 1], [], []>} : vector<8x256xbf16>, vector<256x128xbf16>, vector<8x128xf32> -> vector<8x128xf32>
    %c0_56 = arith.constant 0 : index
    %c0_57 = arith.constant 0 : index
    %129 = vector.load %arg21[%c0_56, %c0_57] : memref<1x128xf32, #tpu.memory_space<vmem>>, vector<1x128xf32>
    %130 = vector.broadcast %129 : vector<1x128xf32> to vector<8x128xf32>
    %131 = arith.addf %128, %130 : vector<8x128xf32>
    %cst_58 = arith.constant 0.000000e+00 : f32
    %132 = vector.broadcast %cst_58 : f32 to vector<8x128xf32>
    %133 = arith.maximumf %131, %132 : vector<8x128xf32>
    %134 = arith.truncf %133 : vector<8x128xf32> to vector<8x128xbf16>
    %c0_59 = arith.constant 0 : index
    %c0_60 = arith.constant 0 : index
    %135 = vector.load %arg22[%c0_59, %c0_60] : memref<128x128xbf16, #tpu.memory_space<vmem>>, vector<128x128xbf16>
    %cst_61 = arith.constant dense<0.000000e+00> : vector<8x128xf32>
    %136 = tpu.matmul %134, %135, %cst_61 {dimension_numbers = #tpu.dot_dimension_numbers<[1], [0], [0], [1], [0, 0, 1, 1], [], []>} : vector<8x128xbf16>, vector<128x128xbf16>, vector<8x128xf32> -> vector<8x128xf32>
    %c0_62 = arith.constant 0 : index
    %c0_63 = arith.constant 0 : index
    %137 = vector.load %arg23[%c0_62, %c0_63] : memref<1x128xf32, #tpu.memory_space<vmem>>, vector<1x128xf32>
    %138 = vector.broadcast %137 : vector<1x128xf32> to vector<8x128xf32>
    %139 = arith.addf %136, %138 : vector<8x128xf32>
    %cst_64 = arith.constant 0.000000e+00 : f32
    %140 = vector.broadcast %cst_64 : f32 to vector<8x128xf32>
    %141 = arith.maximumf %139, %140 : vector<8x128xf32>
    %c0_65 = arith.constant 0 : index
    %c0_66 = arith.constant 0 : index
    %142 = vector.load %arg24[%c0_65, %c0_66] : memref<256x128xbf16, #tpu.memory_space<vmem>>, vector<256x128xbf16>
    %cst_67 = arith.constant dense<0.000000e+00> : vector<8x128xf32>
    %143 = tpu.matmul %126, %142, %cst_67 {dimension_numbers = #tpu.dot_dimension_numbers<[1], [0], [0], [1], [0, 0, 1, 1], [], []>} : vector<8x256xbf16>, vector<256x128xbf16>, vector<8x128xf32> -> vector<8x128xf32>
    %c0_68 = arith.constant 0 : index
    %c0_69 = arith.constant 0 : index
    %144 = vector.load %arg25[%c0_68, %c0_69] : memref<1x128xf32, #tpu.memory_space<vmem>>, vector<1x128xf32>
    %145 = vector.broadcast %144 : vector<1x128xf32> to vector<8x128xf32>
    %146 = arith.addf %143, %145 : vector<8x128xf32>
    %147 = arith.addf %141, %146 : vector<8x128xf32>
    %148 = arith.truncf %147 : vector<8x128xf32> to vector<8x128xbf16>
    %c0_70 = arith.constant 0 : index
    %c0_71 = arith.constant 0 : index
    %149 = vector.load %arg26[%c0_70, %c0_71] : memref<128x64xbf16, #tpu.memory_space<vmem>>, vector<128x64xbf16>
    %cst_72 = arith.constant dense<0.000000e+00> : vector<8x64xf32>
    %150 = tpu.matmul %148, %149, %cst_72 {dimension_numbers = #tpu.dot_dimension_numbers<[1], [0], [0], [1], [0, 0, 1, 1], [], []>} : vector<8x128xbf16>, vector<128x64xbf16>, vector<8x64xf32> -> vector<8x64xf32>
    %c0_73 = arith.constant 0 : index
    %c0_74 = arith.constant 0 : index
    %151 = vector.load %arg27[%c0_73, %c0_74] : memref<1x64xf32, #tpu.memory_space<vmem>>, vector<1x64xf32>
    %152 = vector.broadcast %151 : vector<1x64xf32> to vector<8x64xf32>
    %153 = arith.addf %150, %152 : vector<8x64xf32>
    %cst_75 = arith.constant 0.000000e+00 : f32
    %154 = vector.broadcast %cst_75 : f32 to vector<8x64xf32>
    %155 = arith.maximumf %153, %154 : vector<8x64xf32>
    %156 = arith.truncf %155 : vector<8x64xf32> to vector<8x64xbf16>
    %c0_76 = arith.constant 0 : index
    %c0_77 = arith.constant 0 : index
    %157 = vector.load %arg28[%c0_76, %c0_77] : memref<64x64xbf16, #tpu.memory_space<vmem>>, vector<64x64xbf16>
    %cst_78 = arith.constant dense<0.000000e+00> : vector<8x64xf32>
    %158 = tpu.matmul %156, %157, %cst_78 {dimension_numbers = #tpu.dot_dimension_numbers<[1], [0], [0], [1], [0, 0, 1, 1], [], []>} : vector<8x64xbf16>, vector<64x64xbf16>, vector<8x64xf32> -> vector<8x64xf32>
    %c0_79 = arith.constant 0 : index
    %c0_80 = arith.constant 0 : index
    %159 = vector.load %arg29[%c0_79, %c0_80] : memref<1x64xf32, #tpu.memory_space<vmem>>, vector<1x64xf32>
    %160 = vector.broadcast %159 : vector<1x64xf32> to vector<8x64xf32>
    %161 = arith.addf %158, %160 : vector<8x64xf32>
    %cst_81 = arith.constant 0.000000e+00 : f32
    %162 = vector.broadcast %cst_81 : f32 to vector<8x64xf32>
    %163 = arith.maximumf %161, %162 : vector<8x64xf32>
    %c0_82 = arith.constant 0 : index
    %c0_83 = arith.constant 0 : index
    %164 = vector.load %arg30[%c0_82, %c0_83] : memref<128x64xbf16, #tpu.memory_space<vmem>>, vector<128x64xbf16>
    %cst_84 = arith.constant dense<0.000000e+00> : vector<8x64xf32>
    %165 = tpu.matmul %148, %164, %cst_84 {dimension_numbers = #tpu.dot_dimension_numbers<[1], [0], [0], [1], [0, 0, 1, 1], [], []>} : vector<8x128xbf16>, vector<128x64xbf16>, vector<8x64xf32> -> vector<8x64xf32>
    %c0_85 = arith.constant 0 : index
    %c0_86 = arith.constant 0 : index
    %166 = vector.load %arg31[%c0_85, %c0_86] : memref<1x64xf32, #tpu.memory_space<vmem>>, vector<1x64xf32>
    %167 = vector.broadcast %166 : vector<1x64xf32> to vector<8x64xf32>
    %168 = arith.addf %165, %167 : vector<8x64xf32>
    %169 = arith.addf %163, %168 : vector<8x64xf32>
    %170 = arith.truncf %169 : vector<8x64xf32> to vector<8x64xbf16>
    %c0_87 = arith.constant 0 : index
    %c0_88 = arith.constant 0 : index
    %171 = vector.load %arg32[%c0_87, %c0_88] : memref<64x128xbf16, #tpu.memory_space<vmem>>, vector<64x128xbf16>
    %cst_89 = arith.constant dense<0.000000e+00> : vector<8x128xf32>
    %172 = tpu.matmul %170, %171, %cst_89 {dimension_numbers = #tpu.dot_dimension_numbers<[1], [0], [0], [1], [0, 0, 1, 1], [], []>} : vector<8x64xbf16>, vector<64x128xbf16>, vector<8x128xf32> -> vector<8x128xf32>
    %c0_90 = arith.constant 0 : index
    %c0_91 = arith.constant 0 : index
    %173 = vector.load %arg33[%c0_90, %c0_91] : memref<1x128xf32, #tpu.memory_space<vmem>>, vector<1x128xf32>
    %174 = vector.broadcast %173 : vector<1x128xf32> to vector<8x128xf32>
    %175 = arith.addf %172, %174 : vector<8x128xf32>
    %c0_92 = arith.constant 0 : index
    %c0_93 = arith.constant 0 : index
    %176 = vector.load %arg34[%c0_92, %c0_93] : memref<8x128xf32, #tpu.memory_space<vmem>>, vector<8x128xf32>
    tpu.vector_store %arg34[%c0_92, %c0_93], %175 {strides = array<i32>} : memref<8x128xf32, #tpu.memory_space<vmem>>, vector<8x128xf32>,
    return
  }
  func.func @transform_0(%arg0: i32) -> (i32, i32) {
    %c0_i32 = arith.constant 0 : i32
    %c0_i32_0 = arith.constant 0 : i32
    return %arg0, %c0_i32 : i32, i32
  }
  func.func @transform_1(%arg0: i32) -> (i32, i32) {
    %c0_i32 = arith.constant 0 : i32
    %c0_i32_0 = arith.constant 0 : i32
    return %arg0, %c0_i32 : i32, i32
  }
  func.func @transform_2(%arg0: i32) -> (i32, i32) {
    %c0_i32 = arith.constant 0 : i32
    %c0_i32_0 = arith.constant 0 : i32
    %c0_i32_1 = arith.constant 0 : i32
    return %c0_i32, %c0_i32_0 : i32, i32
  }
  func.func @transform_3(%arg0: i32) -> (i32, i32) {
    %c0_i32 = arith.constant 0 : i32
    %c0_i32_0 = arith.constant 0 : i32
    %c0_i32_1 = arith.constant 0 : i32
    return %c0_i32, %c0_i32_0 : i32, i32
  }
  func.func @transform_4(%arg0: i32) -> (i32, i32) {
    %c0_i32 = arith.constant 0 : i32
    %c0_i32_0 = arith.constant 0 : i32
    %c0_i32_1 = arith.constant 0 : i32
    return %c0_i32, %c0_i32_0 : i32, i32
  }
  func.func @transform_5(%arg0: i32) -> (i32, i32) {
    %c0_i32 = arith.constant 0 : i32
    %c0_i32_0 = arith.constant 0 : i32
    %c0_i32_1 = arith.constant 0 : i32
    return %c0_i32, %c0_i32_0 : i32, i32
  }
  func.func @transform_6(%arg0: i32) -> (i32, i32) {
    %c0_i32 = arith.constant 0 : i32
    %c0_i32_0 = arith.constant 0 : i32
    %c0_i32_1 = arith.constant 0 : i32
    return %c0_i32, %c0_i32_0 : i32, i32
  }
  func.func @transform_7(%arg0: i32) -> (i32, i32) {
    %c0_i32 = arith.constant 0 : i32
    %c0_i32_0 = arith.constant 0 : i32
    %c0_i32_1 = arith.constant 0 : i32
    return %c0_i32, %c0_i32_0 : i32, i32
  }
  func.func @transform_8(%arg0: i32) -> (i32, i32) {
    %c0_i32 = arith.constant 0 : i32
    %c0_i32_0 = arith.constant 0 : i32
    %c0_i32_1 = arith.constant 0 : i32
    return %c0_i32, %c0_i32_0 : i32, i32
  }
  func.func @transform_9(%arg0: i32) -> (i32, i32) {
    %c0_i32 = arith.constant 0 : i32
    %c0_i32_0 = arith.constant 0 : i32
    %c0_i32_1 = arith.constant 0 : i32
    return %c0_i32, %c0_i32_0 : i32, i32
  }
  func.func @transform_10(%arg0: i32) -> (i32, i32) {
    %c0_i32 = arith.constant 0 : i32
    %c0_i32_0 = arith.constant 0 : i32
    %c0_i32_1 = arith.constant 0 : i32
    return %c0_i32, %c0_i32_0 : i32, i32
  }
  func.func @transform_11(%arg0: i32) -> (i32, i32) {
    %c0_i32 = arith.constant 0 : i32
    %c0_i32_0 = arith.constant 0 : i32
    %c0_i32_1 = arith.constant 0 : i32
    return %c0_i32, %c0_i32_0 : i32, i32
  }
  func.func @transform_12(%arg0: i32) -> (i32, i32) {
    %c0_i32 = arith.constant 0 : i32
    %c0_i32_0 = arith.constant 0 : i32
    %c0_i32_1 = arith.constant 0 : i32
    return %c0_i32, %c0_i32_0 : i32, i32
  }
  func.func @transform_13(%arg0: i32) -> (i32, i32) {
    %c0_i32 = arith.constant 0 : i32
    %c0_i32_0 = arith.constant 0 : i32
    %c0_i32_1 = arith.constant 0 : i32
    return %c0_i32, %c0_i32_0 : i32, i32
  }
  func.func @transform_14(%arg0: i32) -> (i32, i32) {
    %c0_i32 = arith.constant 0 : i32
    %c0_i32_0 = arith.constant 0 : i32
    %c0_i32_1 = arith.constant 0 : i32
    return %c0_i32, %c0_i32_0 : i32, i32
  }
  func.func @transform_15(%arg0: i32) -> (i32, i32) {
    %c0_i32 = arith.constant 0 : i32
    %c0_i32_0 = arith.constant 0 : i32
    %c0_i32_1 = arith.constant 0 : i32
    return %c0_i32, %c0_i32_0 : i32, i32
  }
  func.func @transform_16(%arg0: i32) -> (i32, i32) {
    %c0_i32 = arith.constant 0 : i32
    %c0_i32_0 = arith.constant 0 : i32
    %c0_i32_1 = arith.constant 0 : i32
    return %c0_i32, %c0_i32_0 : i32, i32
  }
  func.func @transform_17(%arg0: i32) -> (i32, i32) {
    %c0_i32 = arith.constant 0 : i32
    %c0_i32_0 = arith.constant 0 : i32
    %c0_i32_1 = arith.constant 0 : i32
    return %c0_i32, %c0_i32_0 : i32, i32
  }
  func.func @transform_18(%arg0: i32) -> (i32, i32) {
    %c0_i32 = arith.constant 0 : i32
    %c0_i32_0 = arith.constant 0 : i32
    %c0_i32_1 = arith.constant 0 : i32
    return %c0_i32, %c0_i32_0 : i32, i32
  }
  func.func @transform_19(%arg0: i32) -> (i32, i32) {
    %c0_i32 = arith.constant 0 : i32
    %c0_i32_0 = arith.constant 0 : i32
    %c0_i32_1 = arith.constant 0 : i32
    return %c0_i32, %c0_i32_0 : i32, i32
  }
  func.func @transform_20(%arg0: i32) -> (i32, i32) {
    %c0_i32 = arith.constant 0 : i32
    %c0_i32_0 = arith.constant 0 : i32
    %c0_i32_1 = arith.constant 0 : i32
    return %c0_i32, %c0_i32_0 : i32, i32
  }
  func.func @transform_21(%arg0: i32) -> (i32, i32) {
    %c0_i32 = arith.constant 0 : i32
    %c0_i32_0 = arith.constant 0 : i32
    %c0_i32_1 = arith.constant 0 : i32
    return %c0_i32, %c0_i32_0 : i32, i32
  }
  func.func @transform_22(%arg0: i32) -> (i32, i32) {
    %c0_i32 = arith.constant 0 : i32
    %c0_i32_0 = arith.constant 0 : i32
    %c0_i32_1 = arith.constant 0 : i32
    return %c0_i32, %c0_i32_0 : i32, i32
  }
  func.func @transform_23(%arg0: i32) -> (i32, i32) {
    %c0_i32 = arith.constant 0 : i32
    %c0_i32_0 = arith.constant 0 : i32
    %c0_i32_1 = arith.constant 0 : i32
    return %c0_i32, %c0_i32_0 : i32, i32
  }
  func.func @transform_24(%arg0: i32) -> (i32, i32) {
    %c0_i32 = arith.constant 0 : i32
    %c0_i32_0 = arith.constant 0 : i32
    %c0_i32_1 = arith.constant 0 : i32
    return %c0_i32, %c0_i32_0 : i32, i32
  }
  func.func @transform_25(%arg0: i32) -> (i32, i32) {
    %c0_i32 = arith.constant 0 : i32
    %c0_i32_0 = arith.constant 0 : i32
    %c0_i32_1 = arith.constant 0 : i32
    return %c0_i32, %c0_i32_0 : i32, i32
  }
  func.func @transform_26(%arg0: i32) -> (i32, i32) {
    %c0_i32 = arith.constant 0 : i32
    %c0_i32_0 = arith.constant 0 : i32
    %c0_i32_1 = arith.constant 0 : i32
    return %c0_i32, %c0_i32_0 : i32, i32
  }
  func.func @transform_27(%arg0: i32) -> (i32, i32) {
    %c0_i32 = arith.constant 0 : i32
    %c0_i32_0 = arith.constant 0 : i32
    %c0_i32_1 = arith.constant 0 : i32
    return %c0_i32, %c0_i32_0 : i32, i32
  }
  func.func @transform_28(%arg0: i32) -> (i32, i32) {
    %c0_i32 = arith.constant 0 : i32
    %c0_i32_0 = arith.constant 0 : i32
    %c0_i32_1 = arith.constant 0 : i32
    return %c0_i32, %c0_i32_0 : i32, i32
  }
  func.func @transform_29(%arg0: i32) -> (i32, i32) {
    %c0_i32 = arith.constant 0 : i32
    %c0_i32_0 = arith.constant 0 : i32
    %c0_i32_1 = arith.constant 0 : i32
    return %c0_i32, %c0_i32_0 : i32, i32
  }
  func.func @transform_30(%arg0: i32) -> (i32, i32) {
    %c0_i32 = arith.constant 0 : i32
    %c0_i32_0 = arith.constant 0 : i32
    %c0_i32_1 = arith.constant 0 : i32
    return %c0_i32, %c0_i32_0 : i32, i32
  }
  func.func @transform_31(%arg0: i32) -> (i32, i32) {
    %c0_i32 = arith.constant 0 : i32
    %c0_i32_0 = arith.constant 0 : i32
    %c0_i32_1 = arith.constant 0 : i32
    return %c0_i32, %c0_i32_0 : i32, i32
  }
  func.func @transform_32(%arg0: i32) -> (i32, i32) {
    %c0_i32 = arith.constant 0 : i32
    %c0_i32_0 = arith.constant 0 : i32
    %c0_i32_1 = arith.constant 0 : i32
    return %c0_i32, %c0_i32_0 : i32, i32
  }
  func.func @transform_33(%arg0: i32) -> (i32, i32) {
    %c0_i32 = arith.constant 0 : i32
    %c0_i32_0 = arith.constant 0 : i32
    return %arg0, %c0_i32 : i32, i32
  }
}

</mosaic_0001>

<llo_original>
// kernel: tpu_custom_call.1
$region0: #{tpu_custom_call.1}
  #allocation0 [shape = 'u32[]', space=smem, size = 0x4, offset = 0x4, fixed_abs, tag = 'smem constant byte address 0x4 - core index']
  #allocation1 [shape = 'u32[72,128]{1,0:T(1,128)}', space=vmem, size = 0x9000, scoped, tag = 'internal scratch']
  %s0 = inlined_call_operand.smem [shape: u32[34], index: -1, kind: input, shape index: {}]
  %s1 = sld [smem:[%s0]]
  %s2 = scalar_lea.smem %s0, 1
  %s3 = sld [smem:[%s2]]
  %s4 = scalar_lea.smem %s0, 2
  %s5 = sld [smem:[%s4]]
  %s6 = scalar_lea.smem %s0, 3
  %s7 = sld [smem:[%s6]]
  %s8 = scalar_lea.smem %s0, 4
  %s9 = sld [smem:[%s8]]
  %s10 = scalar_lea.smem %s0, 5
  %s11 = sld [smem:[%s10]]
  %s12 = scalar_lea.smem %s0, 6
  %s13 = sld [smem:[%s12]]
  %s14 = scalar_lea.smem %s0, 7
  %s15 = sld [smem:[%s14]]
  %s16 = scalar_lea.smem %s0, 8
  %s17 = sld [smem:[%s16]]
  %s18 = scalar_lea.smem %s0, 9
  %s19 = sld [smem:[%s18]]
  %s20 = scalar_lea.smem %s0, 10
  %s21 = sld [smem:[%s20]]
  %s22 = scalar_lea.smem %s0, 11
  %s23 = sld [smem:[%s22]]
  %s24 = scalar_lea.smem %s0, 12
  %s25 = sld [smem:[%s24]]
  %s26 = scalar_lea.smem %s0, 13
  %s27 = sld [smem:[%s26]]
  %s28 = scalar_lea.smem %s0, 14
  %s29 = sld [smem:[%s28]]
  %s30 = scalar_lea.smem %s0, 15
  %s31 = sld [smem:[%s30]]
  %s32 = scalar_lea.smem %s0, 16
  %s33 = sld [smem:[%s32]]
  %s34 = scalar_lea.smem %s0, 17
  %s35 = sld [smem:[%s34]]
  %s36 = scalar_lea.smem %s0, 18
  %s37 = sld [smem:[%s36]]
  %s38 = scalar_lea.smem %s0, 19
  %s39 = sld [smem:[%s38]]
  %s40 = scalar_lea.smem %s0, 20
  %s41 = sld [smem:[%s40]]
  %s42 = scalar_lea.smem %s0, 21
  %s43 = sld [smem:[%s42]]
  %s44 = scalar_lea.smem %s0, 22
  %s45 = sld [smem:[%s44]]
  %s46 = scalar_lea.smem %s0, 23
  %s47 = sld [smem:[%s46]]
  %s48 = scalar_lea.smem %s0, 24
  %s49 = sld [smem:[%s48]]
  %s50 = scalar_lea.smem %s0, 25
  %s51 = sld [smem:[%s50]]
  %s52 = scalar_lea.smem %s0, 26
  %s53 = sld [smem:[%s52]]
  %s54 = scalar_lea.smem %s0, 27
  %s55 = sld [smem:[%s54]]
  %s56 = scalar_lea.smem %s0, 28
  %s57 = sld [smem:[%s56]]
  %s58 = scalar_lea.smem %s0, 29
  %s59 = sld [smem:[%s58]]
  %s60 = scalar_lea.smem %s0, 30
  %s61 = sld [smem:[%s60]]
  %s62 = scalar_lea.smem %s0, 31
  %s63 = sld [smem:[%s62]]
  %s64 = scalar_lea.smem %s0, 32
  %s65 = sld [smem:[%s64]]
  %s66 = scalar_lea.smem %s0, 33
  %s67 = sld [smem:[%s66]]
  %s68 = sld [smem:[#allocation0]]
  $region210: #{tpu_custom_call.1} parent=0
    _
  %s70 = ssub.s32 1, %s68
  %s71 = scalar_select 0, %s70, %s68
  $region1: #{tpu_custom_call.1} parent=0
    #allocation2 [shape = 'u8[32768]{0}', space=vmem, size = 0x8000, scoped, tag = 'input window, operand 0, single buffered']
    #allocation3 [shape = 's32[1]{0}', space=sflag, size = 0x4, scoped, tag = 'scoped memory for tpu_custom_call.1']
    #allocation4 [shape = 's32[1]{0}', space=sflag, size = 0x4, scoped, tag = 'scoped memory for tpu_custom_call.1']
    #allocation5 [shape = 'u8[4096]{0}', space=vmem, size = 0x1000, scoped, tag = 'input window, operand 1, single buffered']
    #allocation6 [shape = 's32[1]{0}', space=sflag, size = 0x4, scoped, tag = 'scoped memory for tpu_custom_call.1']
    #allocation7 [shape = 'u8[786432]{0}', space=vmem, size = 0xc0000, scoped, tag = 'input window, operand 2, single buffered']
    #allocation8 [shape = 'u8[1536]{0}', space=vmem, size = 0x800, scoped, tag = 'input window, operand 3, single buffered']
    #allocation9 [shape = 's32[1]{0}', space=sflag, size = 0x4, scoped, tag = 'scoped memory for tpu_custom_call.1']
    #allocation10 [shape = 'u8[24576]{0}', space=vmem, size = 0x6000, scoped, tag = 'input window, operand 4, single buffered']
    #allocation11 [shape = 'u8[294912]{0}', space=vmem, size = 0x48000, scoped, tag = 'input window, operand 5, single buffered']
    #allocation12 [shape = 's32[1]{0}', space=sflag, size = 0x4, scoped, tag = 'scoped memory for tpu_custom_call.1']
    #allocation13 [shape = 'u8[1536]{0}', space=vmem, size = 0x800, scoped, tag = 'input window, operand 6, single buffered']
    #allocation14 [shape = 'u8[786432]{0}', space=vmem, size = 0xc0000, scoped, tag = 'input window, operand 7, single buffered']
    #allocation15 [shape = 's32[1]{0}', space=sflag, size = 0x4, scoped, tag = 'scoped memory for tpu_custom_call.1']
    #allocation16 [shape = 'u8[524288]{0}', space=vmem, size = 0x80000, scoped, tag = 'input window, operand 9, single buffered']
    #allocation17 [shape = 'u8[786432]{0}', space=vmem, size = 0xc0000, scoped, tag = 'input window, operand 11, single buffered']
    #allocation18 [shape = 's32[1]{0}', space=sflag, size = 0x4, scoped, tag = 'scoped memory for tpu_custom_call.1']
    #allocation19 [shape = 'u8[2048]{0}', space=vmem, size = 0x800, scoped, tag = 'input window, operand 12, single buffered']
    #allocation20 [shape = 'u8[262144]{0}', space=vmem, size = 0x40000, scoped, tag = 'input window, operand 13, single buffered']
    #allocation21 [shape = 's32[1]{0}', space=sflag, size = 0x4, scoped, tag = 'scoped memory for tpu_custom_call.1']
    #allocation22 [shape = 'u8[131072]{0}', space=vmem, size = 0x20000, scoped, tag = 'input window, operand 15, single buffered']
    #allocation23 [shape = 'u8[262144]{0}', space=vmem, size = 0x40000, scoped, tag = 'input window, operand 17, single buffered']
    #allocation24 [shape = 's32[1]{0}', space=sflag, size = 0x4, scoped, tag = 'scoped memory for tpu_custom_call.1']
    #allocation25 [shape = 'u8[32768]{0}', space=vmem, size = 0x8000, scoped, tag = 'input window, operand 21, single buffered']
    #allocation26 [shape = 'u8[65536]{0}', space=vmem, size = 0x10000, scoped, tag = 'input window, operand 23, single buffered']
    #allocation27 [shape = 's32[1]{0}', space=sflag, size = 0x4, scoped, tag = 'scoped memory for tpu_custom_call.1']
    #allocation28 [shape = 'u8[16384]{0}', space=vmem, size = 0x4000, scoped, tag = 'input window, operand 31, single buffered']
    #allocation29 [shape = 'u8[4096]{0}', space=vmem, size = 0x1000, scoped, tag = 'output window, operand 0, single buffered']
    %72 = vsyncpa [#allocation3], 0
    %73 = vsyncpa [#allocation6], 0
    %74 = vsyncpa [#allocation9], 0
    %75 = vsyncpa [#allocation12], 0
    %76 = vsyncpa [#allocation15], 0
    %77 = vsyncpa [#allocation18], 0
    %78 = vsyncpa [#allocation21], 0
    %79 = vsyncpa [#allocation24], 0
    %80 = vsyncpa [#allocation27], 0
    %81 = vsyncpa [#allocation4], 0
    // Predicated region
    $region2: #{tpu_custom_call.1} parent=1 // pred_check
      _
    $region3: #{tpu_custom_call.1} parent=1 // pred_check_branch
      %83 = sbr.rel (0) target = $region5
    $region4: #{tpu_custom_call.1} parent=1 // pred_region
      %85 = vsyncadd [#allocation3], 0
      %s87 = sshll.u32 %s1, 4
      %s88 = int_to_ptr.hbm [resolvable:$true] %s87
      %s89 = sshll.u32 [#allocation2], 4
      %s90 = int_to_ptr.vmem [resolvable:$true] %s89
      %92 = dma.hbm_to_vmem [thread:$0]  %s88, 1024, %s90, [#allocation3]
    $region5: #{tpu_custom_call.1} parent=1 // pred_fallthru
      _
    // Predicated region
    $region6: #{tpu_custom_call.1} parent=1 // pred_check
      _
    $region7: #{tpu_custom_call.1} parent=1 // pred_check_branch
      %94 = sbr.rel (0) target = $region9
    $region8: #{tpu_custom_call.1} parent=1 // pred_region
      %96 = vsyncadd [#allocation6], 0
      %s98 = sshll.u32 %s3, 4
      %s99 = int_to_ptr.hbm [resolvable:$true] %s98
      %s100 = sshll.u32 [#allocation5], 4
      %s101 = int_to_ptr.vmem [resolvable:$true] %s100
      %103 = dma.hbm_to_vmem [thread:$0]  %s99, 128, %s101, [#allocation6]
    $region9: #{tpu_custom_call.1} parent=1 // pred_fallthru
      _
    // Predicated region
    $region10: #{tpu_custom_call.1} parent=1 // pred_check
      _
    $region11: #{tpu_custom_call.1} parent=1 // pred_check_branch
      %105 = sbr.rel (0) target = $region13
    $region12: #{tpu_custom_call.1} parent=1 // pred_region
      %107 = vsyncadd [#allocation6], 0
      %s108 = sshll.u32 %s5, 4
      %s109 = int_to_ptr.hbm [resolvable:$true] %s108
      %s110 = sshll.u32 [#allocation7], 4
      %s111 = int_to_ptr.vmem [resolvable:$true] %s110
      %116 = dma.hbm_to_vmem [thread:$0]  %s109, 24576, %s111, [#allocation6], 192, 192, 12
    $region13: #{tpu_custom_call.1} parent=1 // pred_fallthru
      _
    // Predicated region
    $region14: #{tpu_custom_call.1} parent=1 // pred_check
      _
    $region15: #{tpu_custom_call.1} parent=1 // pred_check_branch
      %118 = sbr.rel (0) target = $region17
    $region16: #{tpu_custom_call.1} parent=1 // pred_region
      %120 = vsyncadd [#allocation9], 0
      %s122 = sshll.u32 %s7, 4
      %s123 = int_to_ptr.hbm [resolvable:$true] %s122
      %s124 = sshll.u32 [#allocation8], 4
      %s125 = int_to_ptr.vmem [resolvable:$true] %s124
      %127 = dma.hbm_to_vmem [thread:$0]  %s123, 48, %s125, [#allocation9]
    $region17: #{tpu_custom_call.1} parent=1 // pred_fallthru
      _
    // Predicated region
    $region18: #{tpu_custom_call.1} parent=1 // pred_check
      _
    $region19: #{tpu_custom_call.1} parent=1 // pred_check_branch
      %129 = sbr.rel (0) target = $region21
    $region20: #{tpu_custom_call.1} parent=1 // pred_region
      %131 = vsyncadd [#allocation9], 0
      %s132 = sshll.u32 %s9, 4
      %s133 = int_to_ptr.hbm [resolvable:$true] %s132
      %s134 = sshll.u32 [#allocation10], 4
      %s135 = int_to_ptr.vmem [resolvable:$true] %s134
      %140 = dma.hbm_to_vmem [thread:$0]  %s133, 768, %s135, [#allocation9], 192, 192, 12
    $region21: #{tpu_custom_call.1} parent=1 // pred_fallthru
      _
    // Predicated region
    $region22: #{tpu_custom_call.1} parent=1 // pred_check
      _
    $region23: #{tpu_custom_call.1} parent=1 // pred_check_branch
      %142 = sbr.rel (0) target = $region25
    $region24: #{tpu_custom_call.1} parent=1 // pred_region
      %144 = vsyncadd [#allocation12], 0
      %s145 = sshll.u32 %s11, 4
      %s146 = int_to_ptr.hbm [resolvable:$true] %s145
      %s147 = sshll.u32 [#allocation11], 4
      %s148 = int_to_ptr.vmem [resolvable:$true] %s147
      %153 = dma.hbm_to_vmem [thread:$0]  %s146, 9216, %s148, [#allocation12], 192, 192, 12
    $region25: #{tpu_custom_call.1} parent=1 // pred_fallthru
      _
    // Predicated region
    $region26: #{tpu_custom_call.1} parent=1 // pred_check
      _
    $region27: #{tpu_custom_call.1} parent=1 // pred_check_branch
      %155 = sbr.rel (0) target = $region29
    $region28: #{tpu_custom_call.1} parent=1 // pred_region
      %157 = vsyncadd [#allocation12], 0
      %s159 = sshll.u32 %s13, 4
      %s160 = int_to_ptr.hbm [resolvable:$true] %s159
      %s161 = sshll.u32 [#allocation13], 4
      %s162 = int_to_ptr.vmem [resolvable:$true] %s161
      %164 = dma.hbm_to_vmem [thread:$0]  %s160, 48, %s162, [#allocation12]
    $region29: #{tpu_custom_call.1} parent=1 // pred_fallthru
      _
    // Predicated region
    $region30: #{tpu_custom_call.1} parent=1 // pred_check
      _
    $region31: #{tpu_custom_call.1} parent=1 // pred_check_branch
      %166 = sbr.rel (0) target = $region33
    $region32: #{tpu_custom_call.1} parent=1 // pred_region
      %168 = vsyncadd [#allocation15], 0
      %s169 = sshll.u32 %s15, 4
      %s170 = int_to_ptr.hbm [resolvable:$true] %s169
      %s171 = sshll.u32 [#allocation14], 4
      %s172 = int_to_ptr.vmem [resolvable:$true] %s171
      %177 = dma.hbm_to_vmem [thread:$0]  %s170, 24576, %s172, [#allocation15], 256, 256, 16
    $region33: #{tpu_custom_call.1} parent=1 // pred_fallthru
      _
    // Predicated region
    $region34: #{tpu_custom_call.1} parent=1 // pred_check
      _
    $region35: #{tpu_custom_call.1} parent=1 // pred_check_branch
      %179 = sbr.rel (0) target = $region37
    $region36: #{tpu_custom_call.1} parent=1 // pred_region
      _
    $region37: #{tpu_custom_call.1} parent=1 // pred_fallthru
      _
    // Predicated region
    $region38: #{tpu_custom_call.1} parent=1 // pred_check
      _
    $region39: #{tpu_custom_call.1} parent=1 // pred_check_branch
      %181 = sbr.rel (0) target = $region41
    $region40: #{tpu_custom_call.1} parent=1 // pred_region
      %183 = vsyncadd [#allocation15], 0
      %s184 = sshll.u32 %s19, 4
      %s185 = int_to_ptr.hbm [resolvable:$true] %s184
      %s186 = sshll.u32 [#allocation16], 4
      %s187 = int_to_ptr.vmem [resolvable:$true] %s186
      %192 = dma.hbm_to_vmem [thread:$0]  %s185, 16384, %s187, [#allocation15], 256, 256, 16
    $region41: #{tpu_custom_call.1} parent=1 // pred_fallthru
      _
    // Predicated region
    $region42: #{tpu_custom_call.1} parent=1 // pred_check
      _
    $region43: #{tpu_custom_call.1} parent=1 // pred_check_branch
      %194 = sbr.rel (0) target = $region45
    $region44: #{tpu_custom_call.1} parent=1 // pred_region
      _
    $region45: #{tpu_custom_call.1} parent=1 // pred_fallthru
      _
    // Predicated region
    $region46: #{tpu_custom_call.1} parent=1 // pred_check
      _
    $region47: #{tpu_custom_call.1} parent=1 // pred_check_branch
      %196 = sbr.rel (0) target = $region49
    $region48: #{tpu_custom_call.1} parent=1 // pred_region
      %198 = vsyncadd [#allocation18], 0
      %s199 = sshll.u32 %s23, 4
      %s200 = int_to_ptr.hbm [resolvable:$true] %s199
      %s201 = sshll.u32 [#allocation17], 4
      %s202 = int_to_ptr.vmem [resolvable:$true] %s201
      %207 = dma.hbm_to_vmem [thread:$0]  %s200, 24576, %s202, [#allocation18], 256, 256, 16
    $region49: #{tpu_custom_call.1} parent=1 // pred_fallthru
      _
    // Predicated region
    $region50: #{tpu_custom_call.1} parent=1 // pred_check
      _
    $region51: #{tpu_custom_call.1} parent=1 // pred_check_branch
      %209 = sbr.rel (0) target = $region53
    $region52: #{tpu_custom_call.1} parent=1 // pred_region
      %211 = vsyncadd [#allocation18], 0
      %s213 = sshll.u32 %s25, 4
      %s214 = int_to_ptr.hbm [resolvable:$true] %s213
      %s215 = sshll.u32 [#allocation19], 4
      %s216 = int_to_ptr.vmem [resolvable:$true] %s215
      %218 = dma.hbm_to_vmem [thread:$0]  %s214, 64, %s216, [#allocation18]
    $region53: #{tpu_custom_call.1} parent=1 // pred_fallthru
      _
    // Predicated region
    $region54: #{tpu_custom_call.1} parent=1 // pred_check
      _
    $region55: #{tpu_custom_call.1} parent=1 // pred_check_branch
      %220 = sbr.rel (0) target = $region57
    $region56: #{tpu_custom_call.1} parent=1 // pred_region
      %222 = vsyncadd [#allocation21], 0
      %s223 = sshll.u32 %s27, 4
      %s224 = int_to_ptr.hbm [resolvable:$true] %s223
      %s225 = sshll.u32 [#allocation20], 4
      %s226 = int_to_ptr.vmem [resolvable:$true] %s225
      %231 = dma.hbm_to_vmem [thread:$0]  %s224, 8192, %s226, [#allocation21], 128, 128, 8
    $region57: #{tpu_custom_call.1} parent=1 // pred_fallthru
      _
    // Predicated region
    $region58: #{tpu_custom_call.1} parent=1 // pred_check
      _
    $region59: #{tpu_custom_call.1} parent=1 // pred_check_branch
      %233 = sbr.rel (0) target = $region61
    $region60: #{tpu_custom_call.1} parent=1 // pred_region
      _
    $region61: #{tpu_custom_call.1} parent=1 // pred_fallthru
      _
    // Predicated region
    $region62: #{tpu_custom_call.1} parent=1 // pred_check
      _
    $region63: #{tpu_custom_call.1} parent=1 // pred_check_branch
      %235 = sbr.rel (0) target = $region65
    $region64: #{tpu_custom_call.1} parent=1 // pred_region
      %237 = vsyncadd [#allocation21], 0
      %s238 = sshll.u32 %s31, 4
      %s239 = int_to_ptr.hbm [resolvable:$true] %s238
      %s240 = sshll.u32 [#allocation22], 4
      %s241 = int_to_ptr.vmem [resolvable:$true] %s240
      %246 = dma.hbm_to_vmem [thread:$0]  %s239, 4096, %s241, [#allocation21], 128, 128, 8
    $region65: #{tpu_custom_call.1} parent=1 // pred_fallthru
      _
    // Predicated region
    $region66: #{tpu_custom_call.1} parent=1 // pred_check
      _
    $region67: #{tpu_custom_call.1} parent=1 // pred_check_branch
      %248 = sbr.rel (0) target = $region69
    $region68: #{tpu_custom_call.1} parent=1 // pred_region
      _
    $region69: #{tpu_custom_call.1} parent=1 // pred_fallthru
      _
    // Predicated region
    $region70: #{tpu_custom_call.1} parent=1 // pred_check
      _
    $region71: #{tpu_custom_call.1} parent=1 // pred_check_branch
      %250 = sbr.rel (0) target = $region73
    $region72: #{tpu_custom_call.1} parent=1 // pred_region
      %252 = vsyncadd [#allocation24], 0
      %s253 = sshll.u32 %s35, 4
      %s254 = int_to_ptr.hbm [resolvable:$true] %s253
      %s255 = sshll.u32 [#allocation23], 4
      %s256 = int_to_ptr.vmem [resolvable:$true] %s255
      %261 = dma.hbm_to_vmem [thread:$0]  %s254, 8192, %s256, [#allocation24], 128, 128, 8
    $region73: #{tpu_custom_call.1} parent=1 // pred_fallthru
      _
    // Predicated region
    $region74: #{tpu_custom_call.1} parent=1 // pred_check
      _
    $region75: #{tpu_custom_call.1} parent=1 // pred_check_branch
      %263 = sbr.rel (0) target = $region77
    $region76: #{tpu_custom_call.1} parent=1 // pred_region
      _
    $region77: #{tpu_custom_call.1} parent=1 // pred_fallthru
      _
    // Predicated region
    $region78: #{tpu_custom_call.1} parent=1 // pred_check
      _
    $region79: #{tpu_custom_call.1} parent=1 // pred_check_branch
      %265 = sbr.rel (0) target = $region81
    $region80: #{tpu_custom_call.1} parent=1 // pred_region
      _
    $region81: #{tpu_custom_call.1} parent=1 // pred_fallthru
      _
    // Predicated region
    $region82: #{tpu_custom_call.1} parent=1 // pred_check
      _
    $region83: #{tpu_custom_call.1} parent=1 // pred_check_branch
      %267 = sbr.rel (0) target = $region85
    $region84: #{tpu_custom_call.1} parent=1 // pred_region
      _
    $region85: #{tpu_custom_call.1} parent=1 // pred_fallthru
      _
    // Predicated region
    $region86: #{tpu_custom_call.1} parent=1 // pred_check
      _
    $region87: #{tpu_custom_call.1} parent=1 // pred_check_branch
      %269 = sbr.rel (0) target = $region89
    $region88: #{tpu_custom_call.1} parent=1 // pred_region
      %271 = vsyncadd [#allocation24], 0
      %s272 = sshll.u32 %s43, 4
      %s273 = int_to_ptr.hbm [resolvable:$true] %s272
      %s274 = sshll.u32 [#allocation25], 4
      %s275 = int_to_ptr.vmem [resolvable:$true] %s274
      %280 = dma.hbm_to_vmem [thread:$0]  %s273, 1024, %s275, [#allocation24], 64, 64, 4
    $region89: #{tpu_custom_call.1} parent=1 // pred_fallthru
      _
    // Predicated region
    $region90: #{tpu_custom_call.1} parent=1 // pred_check
      _
    $region91: #{tpu_custom_call.1} parent=1 // pred_check_branch
      %282 = sbr.rel (0) target = $region93
    $region92: #{tpu_custom_call.1} parent=1 // pred_region
      _
    $region93: #{tpu_custom_call.1} parent=1 // pred_fallthru
      _
    // Predicated region
    $region94: #{tpu_custom_call.1} parent=1 // pred_check
      _
    $region95: #{tpu_custom_call.1} parent=1 // pred_check_branch
      %284 = sbr.rel (0) target = $region97
    $region96: #{tpu_custom_call.1} parent=1 // pred_region
      %286 = vsyncadd [#allocation27], 0
      %s287 = sshll.u32 %s47, 4
      %s288 = int_to_ptr.hbm [resolvable:$true] %s287
      %s289 = sshll.u32 [#allocation26], 4
      %s290 = int_to_ptr.vmem [resolvable:$true] %s289
      %295 = dma.hbm_to_vmem [thread:$0]  %s288, 2048, %s290, [#allocation27], 64, 64, 4
    $region97: #{tpu_custom_call.1} parent=1 // pred_fallthru
      _
    // Predicated region
    $region98: #{tpu_custom_call.1} parent=1 // pred_check
      _
    $region99: #{tpu_custom_call.1} parent=1 // pred_check_branch
      %297 = sbr.rel (0) target = $region101
    $region100: #{tpu_custom_call.1} parent=1 // pred_region
      _
    $region101: #{tpu_custom_call.1} parent=1 // pred_fallthru
      _
    // Predicated region
    $region102: #{tpu_custom_call.1} parent=1 // pred_check
      _
    $region103: #{tpu_custom_call.1} parent=1 // pred_check_branch
      %299 = sbr.rel (0) target = $region105
    $region104: #{tpu_custom_call.1} parent=1 // pred_region
      _
    $region105: #{tpu_custom_call.1} parent=1 // pred_fallthru
      _
    // Predicated region
    $region106: #{tpu_custom_call.1} parent=1 // pred_check
      _
    $region107: #{tpu_custom_call.1} parent=1 // pred_check_branch
      %301 = sbr.rel (0) target = $region109
    $region108: #{tpu_custom_call.1} parent=1 // pred_region
      _
    $region109: #{tpu_custom_call.1} parent=1 // pred_fallthru
      _
    // Predicated region
    $region110: #{tpu_custom_call.1} parent=1 // pred_check
      _
    $region111: #{tpu_custom_call.1} parent=1 // pred_check_branch
      %303 = sbr.rel (0) target = $region113
    $region112: #{tpu_custom_call.1} parent=1 // pred_region
      _
    $region113: #{tpu_custom_call.1} parent=1 // pred_fallthru
      _
    // Predicated region
    $region114: #{tpu_custom_call.1} parent=1 // pred_check
      _
    $region115: #{tpu_custom_call.1} parent=1 // pred_check_branch
      %305 = sbr.rel (0) target = $region117
    $region116: #{tpu_custom_call.1} parent=1 // pred_region
      _
    $region117: #{tpu_custom_call.1} parent=1 // pred_fallthru
      _
    // Predicated region
    $region118: #{tpu_custom_call.1} parent=1 // pred_check
      _
    $region119: #{tpu_custom_call.1} parent=1 // pred_check_branch
      %307 = sbr.rel (0) target = $region121
    $region120: #{tpu_custom_call.1} parent=1 // pred_region
      _
    $region121: #{tpu_custom_call.1} parent=1 // pred_fallthru
      _
    // Predicated region
    $region122: #{tpu_custom_call.1} parent=1 // pred_check
      _
    $region123: #{tpu_custom_call.1} parent=1 // pred_check_branch
      %309 = sbr.rel (0) target = $region125
    $region124: #{tpu_custom_call.1} parent=1 // pred_region
      _
    $region125: #{tpu_custom_call.1} parent=1 // pred_fallthru
      _
    // Predicated region
    $region126: #{tpu_custom_call.1} parent=1 // pred_check
      _
    $region127: #{tpu_custom_call.1} parent=1 // pred_check_branch
      %311 = sbr.rel (0) target = $region129
    $region128: #{tpu_custom_call.1} parent=1 // pred_region
      %313 = vsyncadd [#allocation27], 0
      %s314 = sshll.u32 %s63, 4
      %s315 = int_to_ptr.hbm [resolvable:$true] %s314
      %s316 = sshll.u32 [#allocation28], 4
      %s317 = int_to_ptr.vmem [resolvable:$true] %s316
      %322 = dma.hbm_to_vmem [thread:$0]  %s315, 512, %s317, [#allocation27], 64, 64, 4
    $region129: #{tpu_custom_call.1} parent=1 // pred_fallthru
      _
    // Predicated region
    $region130: #{tpu_custom_call.1} parent=1 // pred_check
      _
    $region131: #{tpu_custom_call.1} parent=1 // pred_check_branch
      %324 = sbr.rel (0) target = $region133
    $region132: #{tpu_custom_call.1} parent=1 // pred_region
      _
    $region133: #{tpu_custom_call.1} parent=1 // pred_fallthru
      _
    // Predicated region
    $region134: #{tpu_custom_call.1} parent=1 // pred_check
      _
    $region135: #{tpu_custom_call.1} parent=1 // pred_check_branch
      %326 = sbr.rel (0) target = $region137
    $region136: #{tpu_custom_call.1} parent=1 // pred_region
      %328 = dma.done [#allocation3], 1024
    $region137: #{tpu_custom_call.1} parent=1 // pred_fallthru
      _
    // Predicated region
    $region138: #{tpu_custom_call.1} parent=1 // pred_check
      _
    $region139: #{tpu_custom_call.1} parent=1 // pred_check_branch
      %330 = sbr.rel (0) target = $region141
    $region140: #{tpu_custom_call.1} parent=1 // pred_region
      %332 = dma.done [#allocation6], 128
    $region141: #{tpu_custom_call.1} parent=1 // pred_fallthru
      _
    // Predicated region
    $region142: #{tpu_custom_call.1} parent=1 // pred_check
      _
    $region143: #{tpu_custom_call.1} parent=1 // pred_check_branch
      %334 = sbr.rel (0) target = $region145
    $region144: #{tpu_custom_call.1} parent=1 // pred_region
      %336 = dma.done [#allocation6], 24576
    $region145: #{tpu_custom_call.1} parent=1 // pred_fallthru
      _
    // Predicated region
    $region146: #{tpu_custom_call.1} parent=1 // pred_check
      _
    $region147: #{tpu_custom_call.1} parent=1 // pred_check_branch
      %338 = sbr.rel (0) target = $region149
    $region148: #{tpu_custom_call.1} parent=1 // pred_region
      %340 = dma.done [#allocation9], 48
    $region149: #{tpu_custom_call.1} parent=1 // pred_fallthru
      _
    // Predicated region
    $region150: #{tpu_custom_call.1} parent=1 // pred_check
      _
    $region151: #{tpu_custom_call.1} parent=1 // pred_check_branch
      %342 = sbr.rel (0) target = $region153
    $region152: #{tpu_custom_call.1} parent=1 // pred_region
      %344 = dma.done [#allocation9], 768
    $region153: #{tpu_custom_call.1} parent=1 // pred_fallthru
      _
    // Predicated region
    $region154: #{tpu_custom_call.1} parent=1 // pred_check
      _
    $region155: #{tpu_custom_call.1} parent=1 // pred_check_branch
      %346 = sbr.rel (0) target = $region157
    $region156: #{tpu_custom_call.1} parent=1 // pred_region
      %348 = dma.done [#allocation12], 9216
    $region157: #{tpu_custom_call.1} parent=1 // pred_fallthru
      _
    // Predicated region
    $region158: #{tpu_custom_call.1} parent=1 // pred_check
      _
    $region159: #{tpu_custom_call.1} parent=1 // pred_check_branch
      %350 = sbr.rel (0) target = $region161
    $region160: #{tpu_custom_call.1} parent=1 // pred_region
      %352 = dma.done [#allocation12], 48
    $region161: #{tpu_custom_call.1} parent=1 // pred_fallthru
      _
    // Predicated region
    $region162: #{tpu_custom_call.1} parent=1 // pred_check
      _
    $region163: #{tpu_custom_call.1} parent=1 // pred_check_branch
      %354 = sbr.rel (0) target = $region165
    $region164: #{tpu_custom_call.1} parent=1 // pred_region
      %356 = dma.done [#allocation15], 24576
    $region165: #{tpu_custom_call.1} parent=1 // pred_fallthru
      _
    // Predicated region
    $region166: #{tpu_custom_call.1} parent=1 // pred_check
      _
    $region167: #{tpu_custom_call.1} parent=1 // pred_check_branch
      %358 = sbr.rel (0) target = $region169
    $region168: #{tpu_custom_call.1} parent=1 // pred_region
      %360 = dma.done [#allocation15], 16384
    $region169: #{tpu_custom_call.1} parent=1 // pred_fallthru
      _
    // Predicated region
    $region170: #{tpu_custom_call.1} parent=1 // pred_check
      _
    $region171: #{tpu_custom_call.1} parent=1 // pred_check_branch
      %362 = sbr.rel (0) target = $region173
    $region172: #{tpu_custom_call.1} parent=1 // pred_region
      %364 = dma.done [#allocation18], 24576
    $region173: #{tpu_custom_call.1} parent=1 // pred_fallthru
      _
    // Predicated region
    $region174: #{tpu_custom_call.1} parent=1 // pred_check
      _
    $region175: #{tpu_custom_call.1} parent=1 // pred_check_branch
      %366 = sbr.rel (0) target = $region177
    $region176: #{tpu_custom_call.1} parent=1 // pred_region
      %368 = dma.done [#allocation18], 64
    $region177: #{tpu_custom_call.1} parent=1 // pred_fallthru
      _
    // Predicated region
    $region178: #{tpu_custom_call.1} parent=1 // pred_check
      _
    $region179: #{tpu_custom_call.1} parent=1 // pred_check_branch
      %370 = sbr.rel (0) target = $region181
    $region180: #{tpu_custom_call.1} parent=1 // pred_region
      %372 = dma.done [#allocation21], 8192
    $region181: #{tpu_custom_call.1} parent=1 // pred_fallthru
      _
    // Predicated region
    $region182: #{tpu_custom_call.1} parent=1 // pred_check
      _
    $region183: #{tpu_custom_call.1} parent=1 // pred_check_branch
      %374 = sbr.rel (0) target = $region185
    $region184: #{tpu_custom_call.1} parent=1 // pred_region
      %376 = dma.done [#allocation21], 4096
    $region185: #{tpu_custom_call.1} parent=1 // pred_fallthru
      _
    // Predicated region
    $region186: #{tpu_custom_call.1} parent=1 // pred_check
      _
    $region187: #{tpu_custom_call.1} parent=1 // pred_check_branch
      %378 = sbr.rel (0) target = $region189
    $region188: #{tpu_custom_call.1} parent=1 // pred_region
      %380 = dma.done [#allocation24], 8192
    $region189: #{tpu_custom_call.1} parent=1 // pred_fallthru
      _
    // Predicated region
    $region190: #{tpu_custom_call.1} parent=1 // pred_check
      _
    $region191: #{tpu_custom_call.1} parent=1 // pred_check_branch
      %382 = sbr.rel (0) target = $region193
    $region192: #{tpu_custom_call.1} parent=1 // pred_region
      %384 = dma.done [#allocation24], 1024
    $region193: #{tpu_custom_call.1} parent=1 // pred_fallthru
      _
    // Predicated region
    $region194: #{tpu_custom_call.1} parent=1 // pred_check
      _
    $region195: #{tpu_custom_call.1} parent=1 // pred_check_branch
      %386 = sbr.rel (0) target = $region197
    $region196: #{tpu_custom_call.1} parent=1 // pred_region
      %388 = dma.done [#allocation27], 2048
    $region197: #{tpu_custom_call.1} parent=1 // pred_fallthru
      _
    // Predicated region
    $region198: #{tpu_custom_call.1} parent=1 // pred_check
      _
    $region199: #{tpu_custom_call.1} parent=1 // pred_check_branch
      %390 = sbr.rel (0) target = $region201
    $region200: #{tpu_custom_call.1} parent=1 // pred_region
      %392 = dma.done [#allocation27], 512
    $region201: #{tpu_custom_call.1} parent=1 // pred_fallthru
      _
    %v394 = vld [vmem:[#allocation2] sm:$0xff]
    %v395 = vld [vmem:[#allocation2 + $0x8] sm:$0xff]
    %v396 = vld [vmem:[#allocation2 + $0x10] sm:$0xff]
    %v397 = vld [vmem:[#allocation2 + $0x18] sm:$0xff]
    %v398 = vld [vmem:[#allocation2 + $0x20] sm:$0xff]
    %v399 = vld [vmem:[#allocation2 + $0x28] sm:$0xff]
    %v400 = vld [vmem:[#allocation2 + $0x30] sm:$0xff]
    %v401 = vld [vmem:[#allocation2 + $0x38] sm:$0xff]
    %v402 = vpack.c.bf16 %v394, %v394
    %v403 = vpack.c.bf16 %v395, %v395
    %v404 = vpack.c.bf16 %v396, %v396
    %v405 = vpack.c.bf16 %v397, %v397
    %v406 = vpack.c.bf16 %v398, %v398
    %v407 = vpack.c.bf16 %v399, %v399
    %v408 = vpack.c.bf16 %v400, %v400
    %v409 = vpack.c.bf16 %v401, %v401
    %v410 = vld [vmem:[#allocation7] sm:$0xff]
    %v411 = vld [vmem:[#allocation7 + $0x8] sm:$0xf]
    %v412 = vld [vmem:[#allocation7 + $0xc] sm:$0xff]
    %v413 = vld [vmem:[#allocation7 + $0x14] sm:$0xf]
    %v414 = vld [vmem:[#allocation7 + $0x18] sm:$0xff]
    %v415 = vld [vmem:[#allocation7 + $0x20] sm:$0xf]
    %v416 = vld [vmem:[#allocation7 + $0x24] sm:$0xff]
    %v417 = vld [vmem:[#allocation7 + $0x2c] sm:$0xf]
    %v418 = vld [vmem:[#allocation7 + $0x30] sm:$0xff]
    %v419 = vld [vmem:[#allocation7 + $0x38] sm:$0xf]
    %v420 = vld [vmem:[#allocation7 + $0x3c] sm:$0xff]
    %v421 = vld [vmem:[#allocation7 + $0x44] sm:$0xf]
    %v422 = vld [vmem:[#allocation7 + $0x48] sm:$0xff]
    %v423 = vld [vmem:[#allocation7 + $0x50] sm:$0xf]
    %v424 = vld [vmem:[#allocation7 + $0x54] sm:$0xff]
    %v425 = vld [vmem:[#allocation7 + $0x5c] sm:$0xf]
    %v426 = vld [vmem:[#allocation7 + $0x60] sm:$0xff]
    %v427 = vld [vmem:[#allocation7 + $0x68] sm:$0xf]
    %v428 = vld [vmem:[#allocation7 + $0x6c] sm:$0xff]
    %v429 = vld [vmem:[#allocation7 + $0x74] sm:$0xf]
    %v430 = vld [vmem:[#allocation7 + $0x78] sm:$0xff]
    %v431 = vld [vmem:[#allocation7 + $0x80] sm:$0xf]
    %v432 = vld [vmem:[#allocation7 + $0x84] sm:$0xff]
    %v433 = vld [vmem:[#allocation7 + $0x8c] sm:$0xf]
    %v434 = vld [vmem:[#allocation7 + $0x90] sm:$0xff]
    %v435 = vld [vmem:[#allocation7 + $0x98] sm:$0xf]
    %v436 = vld [vmem:[#allocation7 + $0x9c] sm:$0xff]
    %v437 = vld [vmem:[#allocation7 + $0xa4] sm:$0xf]
    %v438 = vld [vmem:[#allocation7 + $0xa8] sm:$0xff]
    %v439 = vld [vmem:[#allocation7 + $0xb0] sm:$0xf]
    %v440 = vld [vmem:[#allocation7 + $0xb4] sm:$0xff]
    %v441 = vld [vmem:[#allocation7 + $0xbc] sm:$0xf]
    %v442 = vld [vmem:[#allocation7 + $0xc0] sm:$0xff]
    %v443 = vld [vmem:[#allocation7 + $0xc8] sm:$0xf]
    %v444 = vld [vmem:[#allocation7 + $0xcc] sm:$0xff]
    %v445 = vld [vmem:[#allocation7 + $0xd4] sm:$0xf]
    %v446 = vld [vmem:[#allocation7 + $0xd8] sm:$0xff]
    %v447 = vld [vmem:[#allocation7 + $0xe0] sm:$0xf]
    %v448 = vld [vmem:[#allocation7 + $0xe4] sm:$0xff]
    %v449 = vld [vmem:[#allocation7 + $0xec] sm:$0xf]
    %v450 = vld [vmem:[#allocation7 + $0xf0] sm:$0xff]
    %v451 = vld [vmem:[#allocation7 + $0xf8] sm:$0xf]
    %v452 = vld [vmem:[#allocation7 + $0xfc] sm:$0xff]
    %v453 = vld [vmem:[#allocation7 + $0x104] sm:$0xf]
    %v454 = vld [vmem:[#allocation7 + $0x108] sm:$0xff]
    %v455 = vld [vmem:[#allocation7 + $0x110] sm:$0xf]
    %v456 = vld [vmem:[#allocation7 + $0x114] sm:$0xff]
    %v457 = vld [vmem:[#allocation7 + $0x11c] sm:$0xf]
    %v458 = vld [vmem:[#allocation7 + $0x120] sm:$0xff]
    %v459 = vld [vmem:[#allocation7 + $0x128] sm:$0xf]
    %v460 = vld [vmem:[#allocation7 + $0x12c] sm:$0xff]
    %v461 = vld [vmem:[#allocation7 + $0x134] sm:$0xf]
    %v462 = vld [vmem:[#allocation7 + $0x138] sm:$0xff]
    %v463 = vld [vmem:[#allocation7 + $0x140] sm:$0xf]
    %v464 = vld [vmem:[#allocation7 + $0x144] sm:$0xff]
    %v465 = vld [vmem:[#allocation7 + $0x14c] sm:$0xf]
    %v466 = vld [vmem:[#allocation7 + $0x150] sm:$0xff]
    %v467 = vld [vmem:[#allocation7 + $0x158] sm:$0xf]
    %v468 = vld [vmem:[#allocation7 + $0x15c] sm:$0xff]
    %v469 = vld [vmem:[#allocation7 + $0x164] sm:$0xf]
    %v470 = vld [vmem:[#allocation7 + $0x168] sm:$0xff]
    %v471 = vld [vmem:[#allocation7 + $0x170] sm:$0xf]
    %v472 = vld [vmem:[#allocation7 + $0x174] sm:$0xff]
    %v473 = vld [vmem:[#allocation7 + $0x17c] sm:$0xf]
    %v474 = vld [vmem:[#allocation7 + $0x180] sm:$0xff]
    %v475 = vld [vmem:[#allocation7 + $0x188] sm:$0xf]
    %v476 = vld [vmem:[#allocation7 + $0x18c] sm:$0xff]
    %v477 = vld [vmem:[#allocation7 + $0x194] sm:$0xf]
    %v478 = vld [vmem:[#allocation7 + $0x198] sm:$0xff]
    %v479 = vld [vmem:[#allocation7 + $0x1a0] sm:$0xf]
    %v480 = vld [vmem:[#allocation7 + $0x1a4] sm:$0xff]
    %v481 = vld [vmem:[#allocation7 + $0x1ac] sm:$0xf]
    %v482 = vld [vmem:[#allocation7 + $0x1b0] sm:$0xff]
    %v483 = vld [vmem:[#allocation7 + $0x1b8] sm:$0xf]
    %v484 = vld [vmem:[#allocation7 + $0x1bc] sm:$0xff]
    %v485 = vld [vmem:[#allocation7 + $0x1c4] sm:$0xf]
    %v486 = vld [vmem:[#allocation7 + $0x1c8] sm:$0xff]
    %v487 = vld [vmem:[#allocation7 + $0x1d0] sm:$0xf]
    %v488 = vld [vmem:[#allocation7 + $0x1d4] sm:$0xff]
    %v489 = vld [vmem:[#allocation7 + $0x1dc] sm:$0xf]
    %v490 = vld [vmem:[#allocation7 + $0x1e0] sm:$0xff]
    %v491 = vld [vmem:[#allocation7 + $0x1e8] sm:$0xf]
    %v492 = vld [vmem:[#allocation7 + $0x1ec] sm:$0xff]
    %v493 = vld [vmem:[#allocation7 + $0x1f4] sm:$0xf]
    %v494 = vld [vmem:[#allocation7 + $0x1f8] sm:$0xff]
    %v495 = vld [vmem:[#allocation7 + $0x200] sm:$0xf]
    %v496 = vld [vmem:[#allocation7 + $0x204] sm:$0xff]
    %v497 = vld [vmem:[#allocation7 + $0x20c] sm:$0xf]
    %v498 = vld [vmem:[#allocation7 + $0x210] sm:$0xff]
    %v499 = vld [vmem:[#allocation7 + $0x218] sm:$0xf]
    %v500 = vld [vmem:[#allocation7 + $0x21c] sm:$0xff]
    %v501 = vld [vmem:[#allocation7 + $0x224] sm:$0xf]
    %v502 = vld [vmem:[#allocation7 + $0x228] sm:$0xff]
    %v503 = vld [vmem:[#allocation7 + $0x230] sm:$0xf]
    %v504 = vld [vmem:[#allocation7 + $0x234] sm:$0xff]
    %v505 = vld [vmem:[#allocation7 + $0x23c] sm:$0xf]
    %v506 = vld [vmem:[#allocation7 + $0x240] sm:$0xff]
    %v507 = vld [vmem:[#allocation7 + $0x248] sm:$0xf]
    %v508 = vld [vmem:[#allocation7 + $0x24c] sm:$0xff]
    %v509 = vld [vmem:[#allocation7 + $0x254] sm:$0xf]
    %v510 = vld [vmem:[#allocation7 + $0x258] sm:$0xff]
    %v511 = vld [vmem:[#allocation7 + $0x260] sm:$0xf]
    %v512 = vld [vmem:[#allocation7 + $0x264] sm:$0xff]
    %v513 = vld [vmem:[#allocation7 + $0x26c] sm:$0xf]
    %v514 = vld [vmem:[#allocation7 + $0x270] sm:$0xff]
    %v515 = vld [vmem:[#allocation7 + $0x278] sm:$0xf]
    %v516 = vld [vmem:[#allocation7 + $0x27c] sm:$0xff]
    %v517 = vld [vmem:[#allocation7 + $0x284] sm:$0xf]
    %v518 = vld [vmem:[#allocation7 + $0x288] sm:$0xff]
    %v519 = vld [vmem:[#allocation7 + $0x290] sm:$0xf]
    %v520 = vld [vmem:[#allocation7 + $0x294] sm:$0xff]
    %v521 = vld [vmem:[#allocation7 + $0x29c] sm:$0xf]
    %v522 = vld [vmem:[#allocation7 + $0x2a0] sm:$0xff]
    %v523 = vld [vmem:[#allocation7 + $0x2a8] sm:$0xf]
    %v524 = vld [vmem:[#allocation7 + $0x2ac] sm:$0xff]
    %v525 = vld [vmem:[#allocation7 + $0x2b4] sm:$0xf]
    %v526 = vld [vmem:[#allocation7 + $0x2b8] sm:$0xff]
    %v527 = vld [vmem:[#allocation7 + $0x2c0] sm:$0xf]
    %v528 = vld [vmem:[#allocation7 + $0x2c4] sm:$0xff]
    %v529 = vld [vmem:[#allocation7 + $0x2cc] sm:$0xf]
    %v530 = vld [vmem:[#allocation7 + $0x2d0] sm:$0xff]
    %v531 = vld [vmem:[#allocation7 + $0x2d8] sm:$0xf]
    %v532 = vld [vmem:[#allocation7 + $0x2dc] sm:$0xff]
    %v533 = vld [vmem:[#allocation7 + $0x2e4] sm:$0xf]
    %v534 = vld [vmem:[#allocation7 + $0x2e8] sm:$0xff]
    %v535 = vld [vmem:[#allocation7 + $0x2f0] sm:$0xf]
    %v536 = vld [vmem:[#allocation7 + $0x2f4] sm:$0xff]
    %v537 = vld [vmem:[#allocation7 + $0x2fc] sm:$0xf]
    %v538 = vld [vmem:[#allocation7 + $0x300] sm:$0xff]
    %v539 = vld [vmem:[#allocation7 + $0x308] sm:$0xf]
    %v540 = vld [vmem:[#allocation7 + $0x30c] sm:$0xff]
    %v541 = vld [vmem:[#allocation7 + $0x314] sm:$0xf]
    %v542 = vld [vmem:[#allocation7 + $0x318] sm:$0xff]
    %v543 = vld [vmem:[#allocation7 + $0x320] sm:$0xf]
    %v544 = vld [vmem:[#allocation7 + $0x324] sm:$0xff]
    %v545 = vld [vmem:[#allocation7 + $0x32c] sm:$0xf]
    %v546 = vld [vmem:[#allocation7 + $0x330] sm:$0xff]
    %v547 = vld [vmem:[#allocation7 + $0x338] sm:$0xf]
    %v548 = vld [vmem:[#allocation7 + $0x33c] sm:$0xff]
    %v549 = vld [vmem:[#allocation7 + $0x344] sm:$0xf]
    %v550 = vld [vmem:[#allocation7 + $0x348] sm:$0xff]
    %v551 = vld [vmem:[#allocation7 + $0x350] sm:$0xf]
    %v552 = vld [vmem:[#allocation7 + $0x354] sm:$0xff]
    %v553 = vld [vmem:[#allocation7 + $0x35c] sm:$0xf]
    %v554 = vld [vmem:[#allocation7 + $0x360] sm:$0xff]
    %v555 = vld [vmem:[#allocation7 + $0x368] sm:$0xf]
    %v556 = vld [vmem:[#allocation7 + $0x36c] sm:$0xff]
    %v557 = vld [vmem:[#allocation7 + $0x374] sm:$0xf]
    %v558 = vld [vmem:[#allocation7 + $0x378] sm:$0xff]
    %v559 = vld [vmem:[#allocation7 + $0x380] sm:$0xf]
    %v560 = vld [vmem:[#allocation7 + $0x384] sm:$0xff]
    %v561 = vld [vmem:[#allocation7 + $0x38c] sm:$0xf]
    %v562 = vld [vmem:[#allocation7 + $0x390] sm:$0xff]
    %v563 = vld [vmem:[#allocation7 + $0x398] sm:$0xf]
    %v564 = vld [vmem:[#allocation7 + $0x39c] sm:$0xff]
    %v565 = vld [vmem:[#allocation7 + $0x3a4] sm:$0xf]
    %v566 = vld [vmem:[#allocation7 + $0x3a8] sm:$0xff]
    %v567 = vld [vmem:[#allocation7 + $0x3b0] sm:$0xf]
    %v568 = vld [vmem:[#allocation7 + $0x3b4] sm:$0xff]
    %v569 = vld [vmem:[#allocation7 + $0x3bc] sm:$0xf]
    %v570 = vld [vmem:[#allocation7 + $0x3c0] sm:$0xff]
    %v571 = vld [vmem:[#allocation7 + $0x3c8] sm:$0xf]
    %v572 = vld [vmem:[#allocation7 + $0x3cc] sm:$0xff]
    %v573 = vld [vmem:[#allocation7 + $0x3d4] sm:$0xf]
    %v574 = vld [vmem:[#allocation7 + $0x3d8] sm:$0xff]
    %v575 = vld [vmem:[#allocation7 + $0x3e0] sm:$0xf]
    %v576 = vld [vmem:[#allocation7 + $0x3e4] sm:$0xff]
    %v577 = vld [vmem:[#allocation7 + $0x3ec] sm:$0xf]
    %v578 = vld [vmem:[#allocation7 + $0x3f0] sm:$0xff]
    %v579 = vld [vmem:[#allocation7 + $0x3f8] sm:$0xf]
    %v580 = vld [vmem:[#allocation7 + $0x3fc] sm:$0xff]
    %v581 = vld [vmem:[#allocation7 + $0x404] sm:$0xf]
    %v582 = vld [vmem:[#allocation7 + $0x408] sm:$0xff]
    %v583 = vld [vmem:[#allocation7 + $0x410] sm:$0xf]
    %v584 = vld [vmem:[#allocation7 + $0x414] sm:$0xff]
    %v585 = vld [vmem:[#allocation7 + $0x41c] sm:$0xf]
    %v586 = vld [vmem:[#allocation7 + $0x420] sm:$0xff]
    %v587 = vld [vmem:[#allocation7 + $0x428] sm:$0xf]
    %v588 = vld [vmem:[#allocation7 + $0x42c] sm:$0xff]
    %v589 = vld [vmem:[#allocation7 + $0x434] sm:$0xf]
    %v590 = vld [vmem:[#allocation7 + $0x438] sm:$0xff]
    %v591 = vld [vmem:[#allocation7 + $0x440] sm:$0xf]
    %v592 = vld [vmem:[#allocation7 + $0x444] sm:$0xff]
    %v593 = vld [vmem:[#allocation7 + $0x44c] sm:$0xf]
    %v594 = vld [vmem:[#allocation7 + $0x450] sm:$0xff]
    %v595 = vld [vmem:[#allocation7 + $0x458] sm:$0xf]
    %v596 = vld [vmem:[#allocation7 + $0x45c] sm:$0xff]
    %v597 = vld [vmem:[#allocation7 + $0x464] sm:$0xf]
    %v598 = vld [vmem:[#allocation7 + $0x468] sm:$0xff]
    %v599 = vld [vmem:[#allocation7 + $0x470] sm:$0xf]
    %v600 = vld [vmem:[#allocation7 + $0x474] sm:$0xff]
    %v601 = vld [vmem:[#allocation7 + $0x47c] sm:$0xf]
    %v602 = vld [vmem:[#allocation7 + $0x480] sm:$0xff]
    %v603 = vld [vmem:[#allocation7 + $0x488] sm:$0xf]
    %v604 = vld [vmem:[#allocation7 + $0x48c] sm:$0xff]
    %v605 = vld [vmem:[#allocation7 + $0x494] sm:$0xf]
    %v606 = vld [vmem:[#allocation7 + $0x498] sm:$0xff]
    %v607 = vld [vmem:[#allocation7 + $0x4a0] sm:$0xf]
    %v608 = vld [vmem:[#allocation7 + $0x4a4] sm:$0xff]
    %v609 = vld [vmem:[#allocation7 + $0x4ac] sm:$0xf]
    %v610 = vld [vmem:[#allocation7 + $0x4b0] sm:$0xff]
    %v611 = vld [vmem:[#allocation7 + $0x4b8] sm:$0xf]
    %v612 = vld [vmem:[#allocation7 + $0x4bc] sm:$0xff]
    %v613 = vld [vmem:[#allocation7 + $0x4c4] sm:$0xf]
    %v614 = vld [vmem:[#allocation7 + $0x4c8] sm:$0xff]
    %v615 = vld [vmem:[#allocation7 + $0x4d0] sm:$0xf]
    %v616 = vld [vmem:[#allocation7 + $0x4d4] sm:$0xff]
    %v617 = vld [vmem:[#allocation7 + $0x4dc] sm:$0xf]
    %v618 = vld [vmem:[#allocation7 + $0x4e0] sm:$0xff]
    %v619 = vld [vmem:[#allocation7 + $0x4e8] sm:$0xf]
    %v620 = vld [vmem:[#allocation7 + $0x4ec] sm:$0xff]
    %v621 = vld [vmem:[#allocation7 + $0x4f4] sm:$0xf]
    %v622 = vld [vmem:[#allocation7 + $0x4f8] sm:$0xff]
    %v623 = vld [vmem:[#allocation7 + $0x500] sm:$0xf]
    %v624 = vld [vmem:[#allocation7 + $0x504] sm:$0xff]
    %v625 = vld [vmem:[#allocation7 + $0x50c] sm:$0xf]
    %v626 = vld [vmem:[#allocation7 + $0x510] sm:$0xff]
    %v627 = vld [vmem:[#allocation7 + $0x518] sm:$0xf]
    %v628 = vld [vmem:[#allocation7 + $0x51c] sm:$0xff]
    %v629 = vld [vmem:[#allocation7 + $0x524] sm:$0xf]
    %v630 = vld [vmem:[#allocation7 + $0x528] sm:$0xff]
    %v631 = vld [vmem:[#allocation7 + $0x530] sm:$0xf]
    %v632 = vld [vmem:[#allocation7 + $0x534] sm:$0xff]
    %v633 = vld [vmem:[#allocation7 + $0x53c] sm:$0xf]
    %v634 = vld [vmem:[#allocation7 + $0x540] sm:$0xff]
    %v635 = vld [vmem:[#allocation7 + $0x548] sm:$0xf]
    %v636 = vld [vmem:[#allocation7 + $0x54c] sm:$0xff]
    %v637 = vld [vmem:[#allocation7 + $0x554] sm:$0xf]
    %v638 = vld [vmem:[#allocation7 + $0x558] sm:$0xff]
    %v639 = vld [vmem:[#allocation7 + $0x560] sm:$0xf]
    %v640 = vld [vmem:[#allocation7 + $0x564] sm:$0xff]
    %v641 = vld [vmem:[#allocation7 + $0x56c] sm:$0xf]
    %v642 = vld [vmem:[#allocation7 + $0x570] sm:$0xff]
    %v643 = vld [vmem:[#allocation7 + $0x578] sm:$0xf]
    %v644 = vld [vmem:[#allocation7 + $0x57c] sm:$0xff]
    %v645 = vld [vmem:[#allocation7 + $0x584] sm:$0xf]
    %v646 = vld [vmem:[#allocation7 + $0x588] sm:$0xff]
    %v647 = vld [vmem:[#allocation7 + $0x590] sm:$0xf]
    %v648 = vld [vmem:[#allocation7 + $0x594] sm:$0xff]
    %v649 = vld [vmem:[#allocation7 + $0x59c] sm:$0xf]
    %v650 = vld [vmem:[#allocation7 + $0x5a0] sm:$0xff]
    %v651 = vld [vmem:[#allocation7 + $0x5a8] sm:$0xf]
    %v652 = vld [vmem:[#allocation7 + $0x5ac] sm:$0xff]
    %v653 = vld [vmem:[#allocation7 + $0x5b4] sm:$0xf]
    %v654 = vld [vmem:[#allocation7 + $0x5b8] sm:$0xff]
    %v655 = vld [vmem:[#allocation7 + $0x5c0] sm:$0xf]
    %v656 = vld [vmem:[#allocation7 + $0x5c4] sm:$0xff]
    %v657 = vld [vmem:[#allocation7 + $0x5cc] sm:$0xf]
    %v658 = vld [vmem:[#allocation7 + $0x5d0] sm:$0xff]
    %v659 = vld [vmem:[#allocation7 + $0x5d8] sm:$0xf]
    %v660 = vld [vmem:[#allocation7 + $0x5dc] sm:$0xff]
    %v661 = vld [vmem:[#allocation7 + $0x5e4] sm:$0xf]
    %v662 = vld [vmem:[#allocation7 + $0x5e8] sm:$0xff]
    %v663 = vld [vmem:[#allocation7 + $0x5f0] sm:$0xf]
    %v664 = vld [vmem:[#allocation7 + $0x5f4] sm:$0xff]
    %v665 = vld [vmem:[#allocation7 + $0x5fc] sm:$0xf]
    %v666 = vld [vmem:[#allocation8] sm:$0x7]
    %v668 = vperm.slane %v666, 0
    %v669 = vperm.slane %v666, 1
    %v670 = vperm.slane %v666, 2
    %v930 = vunpack.c.l.b16 %v410
    %v931 = vunpack.c.h.b16 %v410
    %v932 = vunpack.c.l.b16 %v411
    %v933 = vunpack.c.l.b16 %v412
    %v934 = vunpack.c.h.b16 %v412
    %v935 = vunpack.c.l.b16 %v413
    %v936 = vunpack.c.l.b16 %v414
    %v937 = vunpack.c.h.b16 %v414
    %v938 = vunpack.c.l.b16 %v415
    %v939 = vunpack.c.l.b16 %v416
    %v940 = vunpack.c.h.b16 %v416
    %v941 = vunpack.c.l.b16 %v417
    %v942 = vunpack.c.l.b16 %v418
    %v943 = vunpack.c.h.b16 %v418
    %v944 = vunpack.c.l.b16 %v419
    %v945 = vunpack.c.l.b16 %v420
    %v946 = vunpack.c.h.b16 %v420
    %v947 = vunpack.c.l.b16 %v421
    %v948 = vunpack.c.l.b16 %v422
    %v949 = vunpack.c.h.b16 %v422
    %v950 = vunpack.c.l.b16 %v423
    %v951 = vunpack.c.l.b16 %v424
    %v952 = vunpack.c.h.b16 %v424
    %v953 = vunpack.c.l.b16 %v425
    %v954 = vunpack.c.l.b16 %v426
    %v955 = vunpack.c.h.b16 %v426
    %v956 = vunpack.c.l.b16 %v427
    %v957 = vunpack.c.l.b16 %v428
    %v958 = vunpack.c.h.b16 %v428
    %v959 = vunpack.c.l.b16 %v429
    %v960 = vunpack.c.l.b16 %v430
    %v961 = vunpack.c.h.b16 %v430
    %v962 = vunpack.c.l.b16 %v431
    %v963 = vunpack.c.l.b16 %v432
    %v964 = vunpack.c.h.b16 %v432
    %v965 = vunpack.c.l.b16 %v433
    %v966 = vunpack.c.l.b16 %v434
    %v967 = vunpack.c.h.b16 %v434
    %v968 = vunpack.c.l.b16 %v435
    %v969 = vunpack.c.l.b16 %v436
    %v970 = vunpack.c.h.b16 %v436
    %v971 = vunpack.c.l.b16 %v437
    %v972 = vunpack.c.l.b16 %v438
    %v973 = vunpack.c.h.b16 %v438
    %v974 = vunpack.c.l.b16 %v439
    %v975 = vunpack.c.l.b16 %v440
    %v976 = vunpack.c.h.b16 %v440
    %v977 = vunpack.c.l.b16 %v441
    %v978 = vunpack.c.l.b16 %v442
    %v979 = vunpack.c.h.b16 %v442
    %v980 = vunpack.c.l.b16 %v443
    %v981 = vunpack.c.l.b16 %v444
    %v982 = vunpack.c.h.b16 %v444
    %v983 = vunpack.c.l.b16 %v445
    %v984 = vunpack.c.l.b16 %v446
    %v985 = vunpack.c.h.b16 %v446
    %v986 = vunpack.c.l.b16 %v447
    %v987 = vunpack.c.l.b16 %v448
    %v988 = vunpack.c.h.b16 %v448
    %v989 = vunpack.c.l.b16 %v449
    %v990 = vunpack.c.l.b16 %v450
    %v991 = vunpack.c.h.b16 %v450
    %v992 = vunpack.c.l.b16 %v451
    %v993 = vunpack.c.l.b16 %v452
    %v994 = vunpack.c.h.b16 %v452
    %v995 = vunpack.c.l.b16 %v453
    %v996 = vunpack.c.l.b16 %v454
    %v997 = vunpack.c.h.b16 %v454
    %v998 = vunpack.c.l.b16 %v455
    %v999 = vunpack.c.l.b16 %v456
    %v1000 = vunpack.c.h.b16 %v456
    %v1001 = vunpack.c.l.b16 %v457
    %v1002 = vunpack.c.l.b16 %v458
    %v1003 = vunpack.c.h.b16 %v458
    %v1004 = vunpack.c.l.b16 %v459
    %v1005 = vunpack.c.l.b16 %v460
    %v1006 = vunpack.c.h.b16 %v460
    %v1007 = vunpack.c.l.b16 %v461
    %v1008 = vunpack.c.l.b16 %v462
    %v1009 = vunpack.c.h.b16 %v462
    %v1010 = vunpack.c.l.b16 %v463
    %v1011 = vunpack.c.l.b16 %v464
    %v1012 = vunpack.c.h.b16 %v464
    %v1013 = vunpack.c.l.b16 %v465
    %v1014 = vunpack.c.l.b16 %v466
    %v1015 = vunpack.c.h.b16 %v466
    %v1016 = vunpack.c.l.b16 %v467
    %v1017 = vunpack.c.l.b16 %v468
    %v1018 = vunpack.c.h.b16 %v468
    %v1019 = vunpack.c.l.b16 %v469
    %v1020 = vunpack.c.l.b16 %v470
    %v1021 = vunpack.c.h.b16 %v470
    %v1022 = vunpack.c.l.b16 %v471
    %v1023 = vunpack.c.l.b16 %v472
    %v1024 = vunpack.c.h.b16 %v472
    %v1025 = vunpack.c.l.b16 %v473
    %v1026 = vunpack.c.l.b16 %v474
    %v1027 = vunpack.c.h.b16 %v474
    %v1028 = vunpack.c.l.b16 %v475
    %v1029 = vunpack.c.l.b16 %v476
    %v1030 = vunpack.c.h.b16 %v476
    %v1031 = vunpack.c.l.b16 %v477
    %v1032 = vunpack.c.l.b16 %v478
    %v1033 = vunpack.c.h.b16 %v478
    %v1034 = vunpack.c.l.b16 %v479
    %v1035 = vunpack.c.l.b16 %v480
    %v1036 = vunpack.c.h.b16 %v480
    %v1037 = vunpack.c.l.b16 %v481
    %v1038 = vunpack.c.l.b16 %v482
    %v1039 = vunpack.c.h.b16 %v482
    %v1040 = vunpack.c.l.b16 %v483
    %v1041 = vunpack.c.l.b16 %v484
    %v1042 = vunpack.c.h.b16 %v484
    %v1043 = vunpack.c.l.b16 %v485
    %v1044 = vunpack.c.l.b16 %v486
    %v1045 = vunpack.c.h.b16 %v486
    %v1046 = vunpack.c.l.b16 %v487
    %v1047 = vunpack.c.l.b16 %v488
    %v1048 = vunpack.c.h.b16 %v488
    %v1049 = vunpack.c.l.b16 %v489
    %v1050 = vunpack.c.l.b16 %v490
    %v1051 = vunpack.c.h.b16 %v490
    %v1052 = vunpack.c.l.b16 %v491
    %v1053 = vunpack.c.l.b16 %v492
    %v1054 = vunpack.c.h.b16 %v492
    %v1055 = vunpack.c.l.b16 %v493
    %v1056 = vunpack.c.l.b16 %v494
    %v1057 = vunpack.c.h.b16 %v494
    %v1058 = vunpack.c.l.b16 %v495
    %v1059 = vunpack.c.l.b16 %v496
    %v1060 = vunpack.c.h.b16 %v496
    %v1061 = vunpack.c.l.b16 %v497
    %v1062 = vunpack.c.l.b16 %v498
    %v1063 = vunpack.c.h.b16 %v498
    %v1064 = vunpack.c.l.b16 %v499
    %v1065 = vunpack.c.l.b16 %v500
    %v1066 = vunpack.c.h.b16 %v500
    %v1067 = vunpack.c.l.b16 %v501
    %v1068 = vunpack.c.l.b16 %v502
    %v1069 = vunpack.c.h.b16 %v502
    %v1070 = vunpack.c.l.b16 %v503
    %v1071 = vunpack.c.l.b16 %v504
    %v1072 = vunpack.c.h.b16 %v504
    %v1073 = vunpack.c.l.b16 %v505
    %v1074 = vunpack.c.l.b16 %v506
    %v1075 = vunpack.c.h.b16 %v506
    %v1076 = vunpack.c.l.b16 %v507
    %v1077 = vunpack.c.l.b16 %v508
    %v1078 = vunpack.c.h.b16 %v508
    %v1079 = vunpack.c.l.b16 %v509
    %v1080 = vunpack.c.l.b16 %v510
    %v1081 = vunpack.c.h.b16 %v510
    %v1082 = vunpack.c.l.b16 %v511
    %v1083 = vunpack.c.l.b16 %v512
    %v1084 = vunpack.c.h.b16 %v512
    %v1085 = vunpack.c.l.b16 %v513
    %v1086 = vunpack.c.l.b16 %v514
    %v1087 = vunpack.c.h.b16 %v514
    %v1088 = vunpack.c.l.b16 %v515
    %v1089 = vunpack.c.l.b16 %v516
    %v1090 = vunpack.c.h.b16 %v516
    %v1091 = vunpack.c.l.b16 %v517
    %v1092 = vunpack.c.l.b16 %v518
    %v1093 = vunpack.c.h.b16 %v518
    %v1094 = vunpack.c.l.b16 %v519
    %v1095 = vunpack.c.l.b16 %v520
    %v1096 = vunpack.c.h.b16 %v520
    %v1097 = vunpack.c.l.b16 %v521
    %v1098 = vunpack.c.l.b16 %v522
    %v1099 = vunpack.c.h.b16 %v522
    %v1100 = vunpack.c.l.b16 %v523
    %v1101 = vunpack.c.l.b16 %v524
    %v1102 = vunpack.c.h.b16 %v524
    %v1103 = vunpack.c.l.b16 %v525
    %v1104 = vunpack.c.l.b16 %v526
    %v1105 = vunpack.c.h.b16 %v526
    %v1106 = vunpack.c.l.b16 %v527
    %v1107 = vunpack.c.l.b16 %v528
    %v1108 = vunpack.c.h.b16 %v528
    %v1109 = vunpack.c.l.b16 %v529
    %v1110 = vunpack.c.l.b16 %v530
    %v1111 = vunpack.c.h.b16 %v530
    %v1112 = vunpack.c.l.b16 %v531
    %v1113 = vunpack.c.l.b16 %v532
    %v1114 = vunpack.c.h.b16 %v532
    %v1115 = vunpack.c.l.b16 %v533
    %v1116 = vunpack.c.l.b16 %v534
    %v1117 = vunpack.c.h.b16 %v534
    %v1118 = vunpack.c.l.b16 %v535
    %v1119 = vunpack.c.l.b16 %v536
    %v1120 = vunpack.c.h.b16 %v536
    %v1121 = vunpack.c.l.b16 %v537
    %v1122 = vunpack.c.l.b16 %v538
    %v1123 = vunpack.c.h.b16 %v538
    %v1124 = vunpack.c.l.b16 %v539
    %v1125 = vunpack.c.l.b16 %v540
    %v1126 = vunpack.c.h.b16 %v540
    %v1127 = vunpack.c.l.b16 %v541
    %v1128 = vunpack.c.l.b16 %v542
    %v1129 = vunpack.c.h.b16 %v542
    %v1130 = vunpack.c.l.b16 %v543
    %v1131 = vunpack.c.l.b16 %v544
    %v1132 = vunpack.c.h.b16 %v544
    %v1133 = vunpack.c.l.b16 %v545
    %v1134 = vunpack.c.l.b16 %v546
    %v1135 = vunpack.c.h.b16 %v546
    %v1136 = vunpack.c.l.b16 %v547
    %v1137 = vunpack.c.l.b16 %v548
    %v1138 = vunpack.c.h.b16 %v548
    %v1139 = vunpack.c.l.b16 %v549
    %v1140 = vunpack.c.l.b16 %v550
    %v1141 = vunpack.c.h.b16 %v550
    %v1142 = vunpack.c.l.b16 %v551
    %v1143 = vunpack.c.l.b16 %v552
    %v1144 = vunpack.c.h.b16 %v552
    %v1145 = vunpack.c.l.b16 %v553
    %v1146 = vunpack.c.l.b16 %v554
    %v1147 = vunpack.c.h.b16 %v554
    %v1148 = vunpack.c.l.b16 %v555
    %v1149 = vunpack.c.l.b16 %v556
    %v1150 = vunpack.c.h.b16 %v556
    %v1151 = vunpack.c.l.b16 %v557
    %v1152 = vunpack.c.l.b16 %v558
    %v1153 = vunpack.c.h.b16 %v558
    %v1154 = vunpack.c.l.b16 %v559
    %v1155 = vunpack.c.l.b16 %v560
    %v1156 = vunpack.c.h.b16 %v560
    %v1157 = vunpack.c.l.b16 %v561
    %v1158 = vunpack.c.l.b16 %v562
    %v1159 = vunpack.c.h.b16 %v562
    %v1160 = vunpack.c.l.b16 %v563
    %v1161 = vunpack.c.l.b16 %v564
    %v1162 = vunpack.c.h.b16 %v564
    %v1163 = vunpack.c.l.b16 %v565
    %v1164 = vunpack.c.l.b16 %v566
    %v1165 = vunpack.c.h.b16 %v566
    %v1166 = vunpack.c.l.b16 %v567
    %v1167 = vunpack.c.l.b16 %v568
    %v1168 = vunpack.c.h.b16 %v568
    %v1169 = vunpack.c.l.b16 %v569
    %v1170 = vunpack.c.l.b16 %v570
    %v1171 = vunpack.c.h.b16 %v570
    %v1172 = vunpack.c.l.b16 %v571
    %v1173 = vunpack.c.l.b16 %v572
    %v1174 = vunpack.c.h.b16 %v572
    %v1175 = vunpack.c.l.b16 %v573
    %v1176 = vunpack.c.l.b16 %v574
    %v1177 = vunpack.c.h.b16 %v574
    %v1178 = vunpack.c.l.b16 %v575
    %v1179 = vunpack.c.l.b16 %v576
    %v1180 = vunpack.c.h.b16 %v576
    %v1181 = vunpack.c.l.b16 %v577
    %v1182 = vunpack.c.l.b16 %v578
    %v1183 = vunpack.c.h.b16 %v578
    %v1184 = vunpack.c.l.b16 %v579
    %v1185 = vunpack.c.l.b16 %v580
    %v1186 = vunpack.c.h.b16 %v580
    %v1187 = vunpack.c.l.b16 %v581
    %v1188 = vunpack.c.l.b16 %v582
    %v1189 = vunpack.c.h.b16 %v582
    %v1190 = vunpack.c.l.b16 %v583
    %v1191 = vunpack.c.l.b16 %v584
    %v1192 = vunpack.c.h.b16 %v584
    %v1193 = vunpack.c.l.b16 %v585
    %v1194 = vunpack.c.l.b16 %v586
    %v1195 = vunpack.c.h.b16 %v586
    %v1196 = vunpack.c.l.b16 %v587
    %v1197 = vunpack.c.l.b16 %v588
    %v1198 = vunpack.c.h.b16 %v588
    %v1199 = vunpack.c.l.b16 %v589
    %v1200 = vunpack.c.l.b16 %v590
    %v1201 = vunpack.c.h.b16 %v590
    %v1202 = vunpack.c.l.b16 %v591
    %v1203 = vunpack.c.l.b16 %v592
    %v1204 = vunpack.c.h.b16 %v592
    %v1205 = vunpack.c.l.b16 %v593
    %v1206 = vunpack.c.l.b16 %v594
    %v1207 = vunpack.c.h.b16 %v594
    %v1208 = vunpack.c.l.b16 %v595
    %v1209 = vunpack.c.l.b16 %v596
    %v1210 = vunpack.c.h.b16 %v596
    %v1211 = vunpack.c.l.b16 %v597
    %v1212 = vunpack.c.l.b16 %v598
    %v1213 = vunpack.c.h.b16 %v598
    %v1214 = vunpack.c.l.b16 %v599
    %v1215 = vunpack.c.l.b16 %v600
    %v1216 = vunpack.c.h.b16 %v600
    %v1217 = vunpack.c.l.b16 %v601
    %v1218 = vunpack.c.l.b16 %v602
    %v1219 = vunpack.c.h.b16 %v602
    %v1220 = vunpack.c.l.b16 %v603
    %v1221 = vunpack.c.l.b16 %v604
    %v1222 = vunpack.c.h.b16 %v604
    %v1223 = vunpack.c.l.b16 %v605
    %v1224 = vunpack.c.l.b16 %v606
    %v1225 = vunpack.c.h.b16 %v606
    %v1226 = vunpack.c.l.b16 %v607
    %v1227 = vunpack.c.l.b16 %v608
    %v1228 = vunpack.c.h.b16 %v608
    %v1229 = vunpack.c.l.b16 %v609
    %v1230 = vunpack.c.l.b16 %v610
    %v1231 = vunpack.c.h.b16 %v610
    %v1232 = vunpack.c.l.b16 %v611
    %v1233 = vunpack.c.l.b16 %v612
    %v1234 = vunpack.c.h.b16 %v612
    %v1235 = vunpack.c.l.b16 %v613
    %v1236 = vunpack.c.l.b16 %v614
    %v1237 = vunpack.c.h.b16 %v614
    %v1238 = vunpack.c.l.b16 %v615
    %v1239 = vunpack.c.l.b16 %v616
    %v1240 = vunpack.c.h.b16 %v616
    %v1241 = vunpack.c.l.b16 %v617
    %v1242 = vunpack.c.l.b16 %v618
    %v1243 = vunpack.c.h.b16 %v618
    %v1244 = vunpack.c.l.b16 %v619
    %v1245 = vunpack.c.l.b16 %v620
    %v1246 = vunpack.c.h.b16 %v620
    %v1247 = vunpack.c.l.b16 %v621
    %v1248 = vunpack.c.l.b16 %v622
    %v1249 = vunpack.c.h.b16 %v622
    %v1250 = vunpack.c.l.b16 %v623
    %v1251 = vunpack.c.l.b16 %v624
    %v1252 = vunpack.c.h.b16 %v624
    %v1253 = vunpack.c.l.b16 %v625
    %v1254 = vunpack.c.l.b16 %v626
    %v1255 = vunpack.c.h.b16 %v626
    %v1256 = vunpack.c.l.b16 %v627
    %v1257 = vunpack.c.l.b16 %v628
    %v1258 = vunpack.c.h.b16 %v628
    %v1259 = vunpack.c.l.b16 %v629
    %v1260 = vunpack.c.l.b16 %v630
    %v1261 = vunpack.c.h.b16 %v630
    %v1262 = vunpack.c.l.b16 %v631
    %v1263 = vunpack.c.l.b16 %v632
    %v1264 = vunpack.c.h.b16 %v632
    %v1265 = vunpack.c.l.b16 %v633
    %v1266 = vunpack.c.l.b16 %v634
    %v1267 = vunpack.c.h.b16 %v634
    %v1268 = vunpack.c.l.b16 %v635
    %v1269 = vunpack.c.l.b16 %v636
    %v1270 = vunpack.c.h.b16 %v636
    %v1271 = vunpack.c.l.b16 %v637
    %v1272 = vunpack.c.l.b16 %v638
    %v1273 = vunpack.c.h.b16 %v638
    %v1274 = vunpack.c.l.b16 %v639
    %v1275 = vunpack.c.l.b16 %v640
    %v1276 = vunpack.c.h.b16 %v640
    %v1277 = vunpack.c.l.b16 %v641
    %v1278 = vunpack.c.l.b16 %v642
    %v1279 = vunpack.c.h.b16 %v642
    %v1280 = vunpack.c.l.b16 %v643
    %v1281 = vunpack.c.l.b16 %v644
    %v1282 = vunpack.c.h.b16 %v644
    %v1283 = vunpack.c.l.b16 %v645
    %v1284 = vunpack.c.l.b16 %v646
    %v1285 = vunpack.c.h.b16 %v646
    %v1286 = vunpack.c.l.b16 %v647
    %v1287 = vunpack.c.l.b16 %v648
    %v1288 = vunpack.c.h.b16 %v648
    %v1289 = vunpack.c.l.b16 %v649
    %v1290 = vunpack.c.l.b16 %v650
    %v1291 = vunpack.c.h.b16 %v650
    %v1292 = vunpack.c.l.b16 %v651
    %v1293 = vunpack.c.l.b16 %v652
    %v1294 = vunpack.c.h.b16 %v652
    %v1295 = vunpack.c.l.b16 %v653
    %v1296 = vunpack.c.l.b16 %v654
    %v1297 = vunpack.c.h.b16 %v654
    %v1298 = vunpack.c.l.b16 %v655
    %v1299 = vunpack.c.l.b16 %v656
    %v1300 = vunpack.c.h.b16 %v656
    %v1301 = vunpack.c.l.b16 %v657
    %v1302 = vunpack.c.l.b16 %v658
    %v1303 = vunpack.c.h.b16 %v658
    %v1304 = vunpack.c.l.b16 %v659
    %v1305 = vunpack.c.l.b16 %v660
    %v1306 = vunpack.c.h.b16 %v660
    %v1307 = vunpack.c.l.b16 %v661
    %v1308 = vunpack.c.l.b16 %v662
    %v1309 = vunpack.c.h.b16 %v662
    %v1310 = vunpack.c.l.b16 %v663
    %v1311 = vunpack.c.l.b16 %v664
    %v1312 = vunpack.c.h.b16 %v664
    %v1313 = vunpack.c.l.b16 %v665
    %v1314 = vpack.c.b16 %v933, %v930
    %v1315 = vpack.c.b16 %v934, %v931
    %v1316 = vpack.c.b16 %v935, %v932
    %v1317 = vpack.c.b16 %v939, %v936
    %v1318 = vpack.c.b16 %v940, %v937
    %v1319 = vpack.c.b16 %v941, %v938
    %v1320 = vpack.c.b16 %v945, %v942
    %v1321 = vpack.c.b16 %v946, %v943
    %v1322 = vpack.c.b16 %v947, %v944
    %v1323 = vpack.c.b16 %v951, %v948
    %v1324 = vpack.c.b16 %v952, %v949
    %v1325 = vpack.c.b16 %v953, %v950
    %v1326 = vpack.c.b16 %v957, %v954
    %v1327 = vpack.c.b16 %v958, %v955
    %v1328 = vpack.c.b16 %v959, %v956
    %v1329 = vpack.c.b16 %v963, %v960
    %v1330 = vpack.c.b16 %v964, %v961
    %v1331 = vpack.c.b16 %v965, %v962
    %v1332 = vpack.c.b16 %v969, %v966
    %v1333 = vpack.c.b16 %v970, %v967
    %v1334 = vpack.c.b16 %v971, %v968
    %v1335 = vpack.c.b16 %v975, %v972
    %v1336 = vpack.c.b16 %v976, %v973
    %v1337 = vpack.c.b16 %v977, %v974
    %v1338 = vpack.c.b16 %v981, %v978
    %v1339 = vpack.c.b16 %v982, %v979
    %v1340 = vpack.c.b16 %v983, %v980
    %v1341 = vpack.c.b16 %v987, %v984
    %v1342 = vpack.c.b16 %v988, %v985
    %v1343 = vpack.c.b16 %v989, %v986
    %v1344 = vpack.c.b16 %v993, %v990
    %v1345 = vpack.c.b16 %v994, %v991
    %v1346 = vpack.c.b16 %v995, %v992
    %v1347 = vpack.c.b16 %v999, %v996
    %v1348 = vpack.c.b16 %v1000, %v997
    %v1349 = vpack.c.b16 %v1001, %v998
    %v1350 = vpack.c.b16 %v1005, %v1002
    %v1351 = vpack.c.b16 %v1006, %v1003
    %v1352 = vpack.c.b16 %v1007, %v1004
    %v1353 = vpack.c.b16 %v1011, %v1008
    %v1354 = vpack.c.b16 %v1012, %v1009
    %v1355 = vpack.c.b16 %v1013, %v1010
    %v1356 = vpack.c.b16 %v1017, %v1014
    %v1357 = vpack.c.b16 %v1018, %v1015
    %v1358 = vpack.c.b16 %v1019, %v1016
    %v1359 = vpack.c.b16 %v1023, %v1020
    %v1360 = vpack.c.b16 %v1024, %v1021
    %v1361 = vpack.c.b16 %v1025, %v1022
    %v1362 = vpack.c.b16 %v1029, %v1026
    %v1363 = vpack.c.b16 %v1030, %v1027
    %v1364 = vpack.c.b16 %v1031, %v1028
    %v1365 = vpack.c.b16 %v1035, %v1032
    %v1366 = vpack.c.b16 %v1036, %v1033
    %v1367 = vpack.c.b16 %v1037, %v1034
    %v1368 = vpack.c.b16 %v1041, %v1038
    %v1369 = vpack.c.b16 %v1042, %v1039
    %v1370 = vpack.c.b16 %v1043, %v1040
    %v1371 = vpack.c.b16 %v1047, %v1044
    %v1372 = vpack.c.b16 %v1048, %v1045
    %v1373 = vpack.c.b16 %v1049, %v1046
    %v1374 = vpack.c.b16 %v1053, %v1050
    %v1375 = vpack.c.b16 %v1054, %v1051
    %v1376 = vpack.c.b16 %v1055, %v1052
    %v1377 = vpack.c.b16 %v1059, %v1056
    %v1378 = vpack.c.b16 %v1060, %v1057
    %v1379 = vpack.c.b16 %v1061, %v1058
    %v1380 = vpack.c.b16 %v1065, %v1062
    %v1381 = vpack.c.b16 %v1066, %v1063
    %v1382 = vpack.c.b16 %v1067, %v1064
    %v1383 = vpack.c.b16 %v1071, %v1068
    %v1384 = vpack.c.b16 %v1072, %v1069
    %v1385 = vpack.c.b16 %v1073, %v1070
    %v1386 = vpack.c.b16 %v1077, %v1074
    %v1387 = vpack.c.b16 %v1078, %v1075
    %v1388 = vpack.c.b16 %v1079, %v1076
    %v1389 = vpack.c.b16 %v1083, %v1080
    %v1390 = vpack.c.b16 %v1084, %v1081
    %v1391 = vpack.c.b16 %v1085, %v1082
    %v1392 = vpack.c.b16 %v1089, %v1086
    %v1393 = vpack.c.b16 %v1090, %v1087
    %v1394 = vpack.c.b16 %v1091, %v1088
    %v1395 = vpack.c.b16 %v1095, %v1092
    %v1396 = vpack.c.b16 %v1096, %v1093
    %v1397 = vpack.c.b16 %v1097, %v1094
    %v1398 = vpack.c.b16 %v1101, %v1098
    %v1399 = vpack.c.b16 %v1102, %v1099
    %v1400 = vpack.c.b16 %v1103, %v1100
    %v1401 = vpack.c.b16 %v1107, %v1104
    %v1402 = vpack.c.b16 %v1108, %v1105
    %v1403 = vpack.c.b16 %v1109, %v1106
    %v1404 = vpack.c.b16 %v1113, %v1110
    %v1405 = vpack.c.b16 %v1114, %v1111
    %v1406 = vpack.c.b16 %v1115, %v1112
    %v1407 = vpack.c.b16 %v1119, %v1116
    %v1408 = vpack.c.b16 %v1120, %v1117
    %v1409 = vpack.c.b16 %v1121, %v1118
    %v1410 = vpack.c.b16 %v1125, %v1122
    %v1411 = vpack.c.b16 %v1126, %v1123
    %v1412 = vpack.c.b16 %v1127, %v1124
    %v1413 = vpack.c.b16 %v1131, %v1128
    %v1414 = vpack.c.b16 %v1132, %v1129
    %v1415 = vpack.c.b16 %v1133, %v1130
    %v1416 = vpack.c.b16 %v1137, %v1134
    %v1417 = vpack.c.b16 %v1138, %v1135
    %v1418 = vpack.c.b16 %v1139, %v1136
    %v1419 = vpack.c.b16 %v1143, %v1140
    %v1420 = vpack.c.b16 %v1144, %v1141
    %v1421 = vpack.c.b16 %v1145, %v1142
    %v1422 = vpack.c.b16 %v1149, %v1146
    %v1423 = vpack.c.b16 %v1150, %v1147
    %v1424 = vpack.c.b16 %v1151, %v1148
    %v1425 = vpack.c.b16 %v1155, %v1152
    %v1426 = vpack.c.b16 %v1156, %v1153
    %v1427 = vpack.c.b16 %v1157, %v1154
    %v1428 = vpack.c.b16 %v1161, %v1158
    %v1429 = vpack.c.b16 %v1162, %v1159
    %v1430 = vpack.c.b16 %v1163, %v1160
    %v1431 = vpack.c.b16 %v1167, %v1164
    %v1432 = vpack.c.b16 %v1168, %v1165
    %v1433 = vpack.c.b16 %v1169, %v1166
    %v1434 = vpack.c.b16 %v1173, %v1170
    %v1435 = vpack.c.b16 %v1174, %v1171
    %v1436 = vpack.c.b16 %v1175, %v1172
    %v1437 = vpack.c.b16 %v1179, %v1176
    %v1438 = vpack.c.b16 %v1180, %v1177
    %v1439 = vpack.c.b16 %v1181, %v1178
    %v1440 = vpack.c.b16 %v1185, %v1182
    %v1441 = vpack.c.b16 %v1186, %v1183
    %v1442 = vpack.c.b16 %v1187, %v1184
    %v1443 = vpack.c.b16 %v1191, %v1188
    %v1444 = vpack.c.b16 %v1192, %v1189
    %v1445 = vpack.c.b16 %v1193, %v1190
    %v1446 = vpack.c.b16 %v1197, %v1194
    %v1447 = vpack.c.b16 %v1198, %v1195
    %v1448 = vpack.c.b16 %v1199, %v1196
    %v1449 = vpack.c.b16 %v1203, %v1200
    %v1450 = vpack.c.b16 %v1204, %v1201
    %v1451 = vpack.c.b16 %v1205, %v1202
    %v1452 = vpack.c.b16 %v1209, %v1206
    %v1453 = vpack.c.b16 %v1210, %v1207
    %v1454 = vpack.c.b16 %v1211, %v1208
    %v1455 = vpack.c.b16 %v1215, %v1212
    %v1456 = vpack.c.b16 %v1216, %v1213
    %v1457 = vpack.c.b16 %v1217, %v1214
    %v1458 = vpack.c.b16 %v1221, %v1218
    %v1459 = vpack.c.b16 %v1222, %v1219
    %v1460 = vpack.c.b16 %v1223, %v1220
    %v1461 = vpack.c.b16 %v1227, %v1224
    %v1462 = vpack.c.b16 %v1228, %v1225
    %v1463 = vpack.c.b16 %v1229, %v1226
    %v1464 = vpack.c.b16 %v1233, %v1230
    %v1465 = vpack.c.b16 %v1234, %v1231
    %v1466 = vpack.c.b16 %v1235, %v1232
    %v1467 = vpack.c.b16 %v1239, %v1236
    %v1468 = vpack.c.b16 %v1240, %v1237
    %v1469 = vpack.c.b16 %v1241, %v1238
    %v1470 = vpack.c.b16 %v1245, %v1242
    %v1471 = vpack.c.b16 %v1246, %v1243
    %v1472 = vpack.c.b16 %v1247, %v1244
    %v1473 = vpack.c.b16 %v1251, %v1248
    %v1474 = vpack.c.b16 %v1252, %v1249
    %v1475 = vpack.c.b16 %v1253, %v1250
    %v1476 = vpack.c.b16 %v1257, %v1254
    %v1477 = vpack.c.b16 %v1258, %v1255
    %v1478 = vpack.c.b16 %v1259, %v1256
    %v1479 = vpack.c.b16 %v1263, %v1260
    %v1480 = vpack.c.b16 %v1264, %v1261
    %v1481 = vpack.c.b16 %v1265, %v1262
    %v1482 = vpack.c.b16 %v1269, %v1266
    %v1483 = vpack.c.b16 %v1270, %v1267
    %v1484 = vpack.c.b16 %v1271, %v1268
    %v1485 = vpack.c.b16 %v1275, %v1272
    %v1486 = vpack.c.b16 %v1276, %v1273
    %v1487 = vpack.c.b16 %v1277, %v1274
    %v1488 = vpack.c.b16 %v1281, %v1278
    %v1489 = vpack.c.b16 %v1282, %v1279
    %v1490 = vpack.c.b16 %v1283, %v1280
    %v1491 = vpack.c.b16 %v1287, %v1284
    %v1492 = vpack.c.b16 %v1288, %v1285
    %v1493 = vpack.c.b16 %v1289, %v1286
    %v1494 = vpack.c.b16 %v1293, %v1290
    %v1495 = vpack.c.b16 %v1294, %v1291
    %v1496 = vpack.c.b16 %v1295, %v1292
    %v1497 = vpack.c.b16 %v1299, %v1296
    %v1498 = vpack.c.b16 %v1300, %v1297
    %v1499 = vpack.c.b16 %v1301, %v1298
    %v1500 = vpack.c.b16 %v1305, %v1302
    %v1501 = vpack.c.b16 %v1306, %v1303
    %v1502 = vpack.c.b16 %v1307, %v1304
    %v1503 = vpack.c.b16 %v1311, %v1308
    %v1504 = vpack.c.b16 %v1312, %v1309
    %v1505 = vpack.c.b16 %v1313, %v1310
    %1698 = vmatpush.bf16.msra.mxu0 %v1335
    %1699 = vmatpush.bf16.msra.mxu0 %v1332
    %1700 = vmatpush.bf16.msra.mxu0 %v1329
    %1701 = vmatpush.bf16.msra.mxu0 %v1326
    %1702 = vmatpush.bf16.msra.mxu0 %v1323
    %1703 = vmatpush.bf16.msra.mxu0 %v1320
    %1704 = vmatpush.bf16.msra.mxu0 %v1317
    %1705 = vmatpush.bf16.msra.mxu0 %v1314
    %1706 = vmatmul.bf16.gmra.mxu0 %v402
    %v1707 = vpop.f32.mrf.mxu0
    %v1708 = vadd.f32 %v668, %v1707
    %v1709 = vpop.f32.mrf.mxu0
    %1710 = vdwg.mxu0
    %1711 = vmatpush.bf16.msra.mxu0 %v1359
    %1712 = vmatpush.bf16.msra.mxu0 %v1356
    %1713 = vmatpush.bf16.msra.mxu0 %v1353
    %1714 = vmatpush.bf16.msra.mxu0 %v1350
    %1715 = vmatpush.bf16.msra.mxu0 %v1347
    %1716 = vmatpush.bf16.msra.mxu0 %v1344
    %1717 = vmatpush.bf16.msra.mxu0 %v1341
    %1718 = vmatpush.bf16.msra.mxu0 %v1338
    %1719 = vmatmul.bf16.gmra.mxu0 %v403
    %v1720 = vpop.f32.mrf.mxu0
    %v1721 = vadd.f32 %v1708, %v1720
    %v1722 = vpop.f32.mrf.mxu0
    %1723 = vdwg.mxu0
    %1724 = vmatpush.bf16.msra.mxu0 %v1383
    %1725 = vmatpush.bf16.msra.mxu0 %v1380
    %1726 = vmatpush.bf16.msra.mxu0 %v1377
    %1727 = vmatpush.bf16.msra.mxu0 %v1374
    %1728 = vmatpush.bf16.msra.mxu0 %v1371
    %1729 = vmatpush.bf16.msra.mxu0 %v1368
    %1730 = vmatpush.bf16.msra.mxu0 %v1365
    %1731 = vmatpush.bf16.msra.mxu0 %v1362
    %1732 = vmatmul.bf16.gmra.mxu0 %v404
    %v1733 = vpop.f32.mrf.mxu0
    %v1734 = vadd.f32 %v1721, %v1733
    %v1735 = vpop.f32.mrf.mxu0
    %1736 = vdwg.mxu0
    %1737 = vmatpush.bf16.msra.mxu0 %v1407
    %1738 = vmatpush.bf16.msra.mxu0 %v1404
    %1739 = vmatpush.bf16.msra.mxu0 %v1401
    %1740 = vmatpush.bf16.msra.mxu0 %v1398
    %1741 = vmatpush.bf16.msra.mxu0 %v1395
    %1742 = vmatpush.bf16.msra.mxu0 %v1392
    %1743 = vmatpush.bf16.msra.mxu0 %v1389
    %1744 = vmatpush.bf16.msra.mxu0 %v1386
    %1745 = vmatmul.bf16.gmra.mxu0 %v405
    %v1746 = vpop.f32.mrf.mxu0
    %v1747 = vadd.f32 %v1734, %v1746
    %v1748 = vpop.f32.mrf.mxu0
    %1749 = vdwg.mxu0
    %1750 = vmatpush.bf16.msra.mxu0 %v1431
    %1751 = vmatpush.bf16.msra.mxu0 %v1428
    %1752 = vmatpush.bf16.msra.mxu0 %v1425
    %1753 = vmatpush.bf16.msra.mxu0 %v1422
    %1754 = vmatpush.bf16.msra.mxu0 %v1419
    %1755 = vmatpush.bf16.msra.mxu0 %v1416
    %1756 = vmatpush.bf16.msra.mxu0 %v1413
    %1757 = vmatpush.bf16.msra.mxu0 %v1410
    %1758 = vmatmul.bf16.gmra.mxu0 %v406
    %v1759 = vpop.f32.mrf.mxu0
    %v1760 = vadd.f32 %v1747, %v1759
    %v1761 = vpop.f32.mrf.mxu0
    %1762 = vdwg.mxu0
    %1763 = vmatpush.bf16.msra.mxu0 %v1455
    %1764 = vmatpush.bf16.msra.mxu0 %v1452
    %1765 = vmatpush.bf16.msra.mxu0 %v1449
    %1766 = vmatpush.bf16.msra.mxu0 %v1446
    %1767 = vmatpush.bf16.msra.mxu0 %v1443
    %1768 = vmatpush.bf16.msra.mxu0 %v1440
    %1769 = vmatpush.bf16.msra.mxu0 %v1437
    %1770 = vmatpush.bf16.msra.mxu0 %v1434
    %1771 = vmatmul.bf16.gmra.mxu0 %v407
    %v1772 = vpop.f32.mrf.mxu0
    %v1773 = vadd.f32 %v1760, %v1772
    %v1774 = vpop.f32.mrf.mxu0
    %1775 = vdwg.mxu0
    %1776 = vmatpush.bf16.msra.mxu0 %v1479
    %1777 = vmatpush.bf16.msra.mxu0 %v1476
    %1778 = vmatpush.bf16.msra.mxu0 %v1473
    %1779 = vmatpush.bf16.msra.mxu0 %v1470
    %1780 = vmatpush.bf16.msra.mxu0 %v1467
    %1781 = vmatpush.bf16.msra.mxu0 %v1464
    %1782 = vmatpush.bf16.msra.mxu0 %v1461
    %1783 = vmatpush.bf16.msra.mxu0 %v1458
    %1784 = vmatmul.bf16.gmra.mxu0 %v408
    %v1785 = vpop.f32.mrf.mxu0
    %v1786 = vadd.f32 %v1773, %v1785
    %v1787 = vpop.f32.mrf.mxu0
    %1788 = vdwg.mxu0
    %1789 = vmatpush.bf16.msra.mxu0 %v1503
    %1790 = vmatpush.bf16.msra.mxu0 %v1500
    %1791 = vmatpush.bf16.msra.mxu0 %v1497
    %1792 = vmatpush.bf16.msra.mxu0 %v1494
    %1793 = vmatpush.bf16.msra.mxu0 %v1491
    %1794 = vmatpush.bf16.msra.mxu0 %v1488
    %1795 = vmatpush.bf16.msra.mxu0 %v1485
    %1796 = vmatpush.bf16.msra.mxu0 %v1482
    %1797 = vmatmul.bf16.gmra.mxu0 %v409
    %v1798 = vpop.f32.mrf.mxu0
    %v1799 = vadd.f32 %v1786, %v1798
    %v1800 = vpop.f32.mrf.mxu0
    %1801 = vdwg.mxu0
    %1802 = vmatpush.bf16.msra.mxu0 %v1336
    %1803 = vmatpush.bf16.msra.mxu0 %v1333
    %1804 = vmatpush.bf16.msra.mxu0 %v1330
    %1805 = vmatpush.bf16.msra.mxu0 %v1327
    %1806 = vmatpush.bf16.msra.mxu0 %v1324
    %1807 = vmatpush.bf16.msra.mxu0 %v1321
    %1808 = vmatpush.bf16.msra.mxu0 %v1318
    %1809 = vmatpush.bf16.msra.mxu0 %v1315
    %1810 = vmatmul.bf16.gmra.mxu0 %v402
    %v1811 = vpop.f32.mrf.mxu0
    %v1812 = vadd.f32 %v669, %v1811
    %v1813 = vpop.f32.mrf.mxu0
    %1814 = vdwg.mxu0
    %1815 = vmatpush.bf16.msra.mxu0 %v1360
    %1816 = vmatpush.bf16.msra.mxu0 %v1357
    %1817 = vmatpush.bf16.msra.mxu0 %v1354
    %1818 = vmatpush.bf16.msra.mxu0 %v1351
    %1819 = vmatpush.bf16.msra.mxu0 %v1348
    %1820 = vmatpush.bf16.msra.mxu0 %v1345
    %1821 = vmatpush.bf16.msra.mxu0 %v1342
    %1822 = vmatpush.bf16.msra.mxu0 %v1339
    %1823 = vmatmul.bf16.gmra.mxu0 %v403
    %v1824 = vpop.f32.mrf.mxu0
    %v1825 = vadd.f32 %v1812, %v1824
    %v1826 = vpop.f32.mrf.mxu0
    %1827 = vdwg.mxu0
    %1828 = vmatpush.bf16.msra.mxu0 %v1384
    %1829 = vmatpush.bf16.msra.mxu0 %v1381
    %1830 = vmatpush.bf16.msra.mxu0 %v1378
    %1831 = vmatpush.bf16.msra.mxu0 %v1375
    %1832 = vmatpush.bf16.msra.mxu0 %v1372
    %1833 = vmatpush.bf16.msra.mxu0 %v1369
    %1834 = vmatpush.bf16.msra.mxu0 %v1366
    %1835 = vmatpush.bf16.msra.mxu0 %v1363
    %1836 = vmatmul.bf16.gmra.mxu0 %v404
    %v1837 = vpop.f32.mrf.mxu0
    %v1838 = vadd.f32 %v1825, %v1837
    %v1839 = vpop.f32.mrf.mxu0
    %1840 = vdwg.mxu0
    %1841 = vmatpush.bf16.msra.mxu0 %v1408
    %1842 = vmatpush.bf16.msra.mxu0 %v1405
    %1843 = vmatpush.bf16.msra.mxu0 %v1402
    %1844 = vmatpush.bf16.msra.mxu0 %v1399
    %1845 = vmatpush.bf16.msra.mxu0 %v1396
    %1846 = vmatpush.bf16.msra.mxu0 %v1393
    %1847 = vmatpush.bf16.msra.mxu0 %v1390
    %1848 = vmatpush.bf16.msra.mxu0 %v1387
    %1849 = vmatmul.bf16.gmra.mxu0 %v405
    %v1850 = vpop.f32.mrf.mxu0
    %v1851 = vadd.f32 %v1838, %v1850
    %v1852 = vpop.f32.mrf.mxu0
    %1853 = vdwg.mxu0
    %1854 = vmatpush.bf16.msra.mxu0 %v1432
    %1855 = vmatpush.bf16.msra.mxu0 %v1429
    %1856 = vmatpush.bf16.msra.mxu0 %v1426
    %1857 = vmatpush.bf16.msra.mxu0 %v1423
    %1858 = vmatpush.bf16.msra.mxu0 %v1420
    %1859 = vmatpush.bf16.msra.mxu0 %v1417
    %1860 = vmatpush.bf16.msra.mxu0 %v1414
    %1861 = vmatpush.bf16.msra.mxu0 %v1411
    %1862 = vmatmul.bf16.gmra.mxu0 %v406
    %v1863 = vpop.f32.mrf.mxu0
    %v1864 = vadd.f32 %v1851, %v1863
    %v1865 = vpop.f32.mrf.mxu0
    %1866 = vdwg.mxu0
    %1867 = vmatpush.bf16.msra.mxu0 %v1456
    %1868 = vmatpush.bf16.msra.mxu0 %v1453
    %1869 = vmatpush.bf16.msra.mxu0 %v1450
    %1870 = vmatpush.bf16.msra.mxu0 %v1447
    %1871 = vmatpush.bf16.msra.mxu0 %v1444
    %1872 = vmatpush.bf16.msra.mxu0 %v1441
    %1873 = vmatpush.bf16.msra.mxu0 %v1438
    %1874 = vmatpush.bf16.msra.mxu0 %v1435
    %1875 = vmatmul.bf16.gmra.mxu0 %v407
    %v1876 = vpop.f32.mrf.mxu0
    %v1877 = vadd.f32 %v1864, %v1876
    %v1878 = vpop.f32.mrf.mxu0
    %1879 = vdwg.mxu0
    %1880 = vmatpush.bf16.msra.mxu0 %v1480
    %1881 = vmatpush.bf16.msra.mxu0 %v1477
    %1882 = vmatpush.bf16.msra.mxu0 %v1474
    %1883 = vmatpush.bf16.msra.mxu0 %v1471
    %1884 = vmatpush.bf16.msra.mxu0 %v1468
    %1885 = vmatpush.bf16.msra.mxu0 %v1465
    %1886 = vmatpush.bf16.msra.mxu0 %v1462
    %1887 = vmatpush.bf16.msra.mxu0 %v1459
    %1888 = vmatmul.bf16.gmra.mxu0 %v408
    %v1889 = vpop.f32.mrf.mxu0
    %v1890 = vadd.f32 %v1877, %v1889
    %v1891 = vpop.f32.mrf.mxu0
    %1892 = vdwg.mxu0
    %1893 = vmatpush.bf16.msra.mxu0 %v1504
    %1894 = vmatpush.bf16.msra.mxu0 %v1501
    %1895 = vmatpush.bf16.msra.mxu0 %v1498
    %1896 = vmatpush.bf16.msra.mxu0 %v1495
    %1897 = vmatpush.bf16.msra.mxu0 %v1492
    %1898 = vmatpush.bf16.msra.mxu0 %v1489
    %1899 = vmatpush.bf16.msra.mxu0 %v1486
    %1900 = vmatpush.bf16.msra.mxu0 %v1483
    %1901 = vmatmul.bf16.gmra.mxu0 %v409
    %v1902 = vpop.f32.mrf.mxu0
    %v1903 = vadd.f32 %v1890, %v1902
    %v1904 = vpop.f32.mrf.mxu0
    %1905 = vdwg.mxu0
    %1906 = vmatpush.bf16.msra.mxu0 %v1337
    %1907 = vmatpush.bf16.msra.mxu0 %v1334
    %1908 = vmatpush.bf16.msra.mxu0 %v1331
    %1909 = vmatpush.bf16.msra.mxu0 %v1328
    %1910 = vmatpush.bf16.msra.mxu0 %v1325
    %1911 = vmatpush.bf16.msra.mxu0 %v1322
    %1912 = vmatpush.bf16.msra.mxu0 %v1319
    %1913 = vmatpush.bf16.msra.mxu0 %v1316
    %1914 = vmatmul.bf16.gmra.mxu0 %v402
    %v1915 = vpop.f32.mrf.mxu0
    %v1916 = vadd.f32 %v670, %v1915
    %v1917 = vpop.f32.mrf.mxu0
    %1918 = vdwg.mxu0
    %1919 = vmatpush.bf16.msra.mxu0 %v1361
    %1920 = vmatpush.bf16.msra.mxu0 %v1358
    %1921 = vmatpush.bf16.msra.mxu0 %v1355
    %1922 = vmatpush.bf16.msra.mxu0 %v1352
    %1923 = vmatpush.bf16.msra.mxu0 %v1349
    %1924 = vmatpush.bf16.msra.mxu0 %v1346
    %1925 = vmatpush.bf16.msra.mxu0 %v1343
    %1926 = vmatpush.bf16.msra.mxu0 %v1340
    %1927 = vmatmul.bf16.gmra.mxu0 %v403
    %v1928 = vpop.f32.mrf.mxu0
    %v1929 = vadd.f32 %v1916, %v1928
    %v1930 = vpop.f32.mrf.mxu0
    %1931 = vdwg.mxu0
    %1932 = vmatpush.bf16.msra.mxu0 %v1385
    %1933 = vmatpush.bf16.msra.mxu0 %v1382
    %1934 = vmatpush.bf16.msra.mxu0 %v1379
    %1935 = vmatpush.bf16.msra.mxu0 %v1376
    %1936 = vmatpush.bf16.msra.mxu0 %v1373
    %1937 = vmatpush.bf16.msra.mxu0 %v1370
    %1938 = vmatpush.bf16.msra.mxu0 %v1367
    %1939 = vmatpush.bf16.msra.mxu0 %v1364
    %1940 = vmatmul.bf16.gmra.mxu0 %v404
    %v1941 = vpop.f32.mrf.mxu0
    %v1942 = vadd.f32 %v1929, %v1941
    %v1943 = vpop.f32.mrf.mxu0
    %1944 = vdwg.mxu0
    %1945 = vmatpush.bf16.msra.mxu0 %v1409
    %1946 = vmatpush.bf16.msra.mxu0 %v1406
    %1947 = vmatpush.bf16.msra.mxu0 %v1403
    %1948 = vmatpush.bf16.msra.mxu0 %v1400
    %1949 = vmatpush.bf16.msra.mxu0 %v1397
    %1950 = vmatpush.bf16.msra.mxu0 %v1394
    %1951 = vmatpush.bf16.msra.mxu0 %v1391
    %1952 = vmatpush.bf16.msra.mxu0 %v1388
    %1953 = vmatmul.bf16.gmra.mxu0 %v405
    %v1954 = vpop.f32.mrf.mxu0
    %v1955 = vadd.f32 %v1942, %v1954
    %v1956 = vpop.f32.mrf.mxu0
    %1957 = vdwg.mxu0
    %1958 = vmatpush.bf16.msra.mxu0 %v1433
    %1959 = vmatpush.bf16.msra.mxu0 %v1430
    %1960 = vmatpush.bf16.msra.mxu0 %v1427
    %1961 = vmatpush.bf16.msra.mxu0 %v1424
    %1962 = vmatpush.bf16.msra.mxu0 %v1421
    %1963 = vmatpush.bf16.msra.mxu0 %v1418
    %1964 = vmatpush.bf16.msra.mxu0 %v1415
    %1965 = vmatpush.bf16.msra.mxu0 %v1412
    %1966 = vmatmul.bf16.gmra.mxu0 %v406
    %v1967 = vpop.f32.mrf.mxu0
    %v1968 = vadd.f32 %v1955, %v1967
    %v1969 = vpop.f32.mrf.mxu0
    %1970 = vdwg.mxu0
    %1971 = vmatpush.bf16.msra.mxu0 %v1457
    %1972 = vmatpush.bf16.msra.mxu0 %v1454
    %1973 = vmatpush.bf16.msra.mxu0 %v1451
    %1974 = vmatpush.bf16.msra.mxu0 %v1448
    %1975 = vmatpush.bf16.msra.mxu0 %v1445
    %1976 = vmatpush.bf16.msra.mxu0 %v1442
    %1977 = vmatpush.bf16.msra.mxu0 %v1439
    %1978 = vmatpush.bf16.msra.mxu0 %v1436
    %1979 = vmatmul.bf16.gmra.mxu0 %v407
    %v1980 = vpop.f32.mrf.mxu0
    %v1981 = vadd.f32 %v1968, %v1980
    %v1982 = vpop.f32.mrf.mxu0
    %1983 = vdwg.mxu0
    %1984 = vmatpush.bf16.msra.mxu0 %v1481
    %1985 = vmatpush.bf16.msra.mxu0 %v1478
    %1986 = vmatpush.bf16.msra.mxu0 %v1475
    %1987 = vmatpush.bf16.msra.mxu0 %v1472
    %1988 = vmatpush.bf16.msra.mxu0 %v1469
    %1989 = vmatpush.bf16.msra.mxu0 %v1466
    %1990 = vmatpush.bf16.msra.mxu0 %v1463
    %1991 = vmatpush.bf16.msra.mxu0 %v1460
    %1992 = vmatmul.bf16.gmra.mxu0 %v408
    %v1993 = vpop.f32.mrf.mxu0
    %v1994 = vadd.f32 %v1981, %v1993
    %v1995 = vpop.f32.mrf.mxu0
    %1996 = vdwg.mxu0
    %1997 = vmatpush.bf16.msra.mxu0 %v1505
    %1998 = vmatpush.bf16.msra.mxu0 %v1502
    %1999 = vmatpush.bf16.msra.mxu0 %v1499
    %2000 = vmatpush.bf16.msra.mxu0 %v1496
    %2001 = vmatpush.bf16.msra.mxu0 %v1493
    %2002 = vmatpush.bf16.msra.mxu0 %v1490
    %2003 = vmatpush.bf16.msra.mxu0 %v1487
    %2004 = vmatpush.bf16.msra.mxu0 %v1484
    %2005 = vmatmul.bf16.gmra.mxu0 %v409
    %v2006 = vpop.f32.mrf.mxu0
    %v2007 = vadd.f32 %v1994, %v2006
    %v2008 = vpop.f32.mrf.mxu0
    %2009 = vdwg.mxu0
    %v2010 = vld [vmem:[#allocation5] sm:$0xff]
    %v2011 = vlaneseq
    %v2012 = vand.u32 %v2011, 127
    %2013 = vset.pattern.permute.xlu0 0
    %2014 = vperm.xlu0 %2013, %v2010
    %v2015 = vpop.permute.xlu0 %2014
    %vm2016 = vcmp.eq.s32.totalorder %v2015, %v2012
    %v2017 = vsel %vm2016, 1, 0
    %v2018 = vcvt.s32.f32 %v2017
    %v2019 = vadd.f32 %v2018, 0.0
    %2020 = vset.pattern.permute.xlu0 1
    %2021 = vperm.xlu0 %2020, %v2010
    %v2022 = vpop.permute.xlu0 %2021
    %vm2023 = vcmp.eq.s32.totalorder %v2022, %v2012
    %v2024 = vsel %vm2023, 1, 0
    %v2025 = vcvt.s32.f32 %v2024
    %v2026 = vadd.f32 %v2019, %v2025
    %2027 = vset.pattern.permute.xlu0 2
    %2028 = vperm.xlu0 %2027, %v2010
    %v2029 = vpop.permute.xlu0 %2028
    %vm2030 = vcmp.eq.s32.totalorder %v2029, %v2012
    %v2031 = vsel %vm2030, 1, 0
    %v2032 = vcvt.s32.f32 %v2031
    %v2033 = vadd.f32 %v2026, %v2032
    %2034 = vset.pattern.permute.xlu0 3
    %2035 = vperm.xlu0 %2034, %v2010
    %v2036 = vpop.permute.xlu0 %2035
    %vm2037 = vcmp.eq.s32.totalorder %v2036, %v2012
    %v2038 = vsel %vm2037, 1, 0
    %v2039 = vcvt.s32.f32 %v2038
    %v2040 = vadd.f32 %v2033, %v2039
    %2041 = vset.pattern.permute.xlu0 4
    %2042 = vperm.xlu0 %2041, %v2010
    %v2043 = vpop.permute.xlu0 %2042
    %vm2044 = vcmp.eq.s32.totalorder %v2043, %v2012
    %v2045 = vsel %vm2044, 1, 0
    %v2046 = vcvt.s32.f32 %v2045
    %v2047 = vadd.f32 %v2040, %v2046
    %2048 = vset.pattern.permute.xlu0 5
    %2049 = vperm.xlu0 %2048, %v2010
    %v2050 = vpop.permute.xlu0 %2049
    %vm2051 = vcmp.eq.s32.totalorder %v2050, %v2012
    %v2052 = vsel %vm2051, 1, 0
    %v2053 = vcvt.s32.f32 %v2052
    %v2054 = vadd.f32 %v2047, %v2053
    %2055 = vset.pattern.permute.xlu0 6
    %2056 = vperm.xlu0 %2055, %v2010
    %v2057 = vpop.permute.xlu0 %2056
    %vm2058 = vcmp.eq.s32.totalorder %v2057, %v2012
    %v2059 = vsel %vm2058, 1, 0
    %v2060 = vcvt.s32.f32 %v2059
    %v2061 = vadd.f32 %v2054, %v2060
    %2062 = vset.pattern.permute.xlu0 7
    %2063 = vperm.xlu0 %2062, %v2010
    %v2064 = vpop.permute.xlu0 %2063
    %vm2065 = vcmp.eq.s32.totalorder %v2064, %v2012
    %v2066 = vsel %vm2065, 1, 0
    %v2067 = vcvt.s32.f32 %v2066
    %v2068 = vadd.f32 %v2061, %v2067
    %v2069 = vmul.f32 %v2068, 0.125
    %v2070 = vpack.c.bf16 %v2069, %v2069
    %v2071 = vld [vmem:[#allocation10] sm:$0xff]
    %v2072 = vld [vmem:[#allocation10 + $0x8] sm:$0xf]
    %v2073 = vld [vmem:[#allocation10 + $0xc] sm:$0xff]
    %v2074 = vld [vmem:[#allocation10 + $0x14] sm:$0xf]
    %v2075 = vld [vmem:[#allocation10 + $0x18] sm:$0xff]
    %v2076 = vld [vmem:[#allocation10 + $0x20] sm:$0xf]
    %v2077 = vld [vmem:[#allocation10 + $0x24] sm:$0xff]
    %v2078 = vld [vmem:[#allocation10 + $0x2c] sm:$0xf]
    %v2087 = vunpack.c.l.b16 %v2071
    %v2088 = vunpack.c.h.b16 %v2071
    %v2089 = vunpack.c.l.b16 %v2072
    %v2090 = vunpack.c.l.b16 %v2073
    %v2091 = vunpack.c.h.b16 %v2073
    %v2092 = vunpack.c.l.b16 %v2074
    %v2093 = vunpack.c.l.b16 %v2075
    %v2094 = vunpack.c.h.b16 %v2075
    %v2095 = vunpack.c.l.b16 %v2076
    %v2096 = vunpack.c.l.b16 %v2077
    %v2097 = vunpack.c.h.b16 %v2077
    %v2098 = vunpack.c.l.b16 %v2078
    %v2099 = vpack.c.b16 %v2090, %v2087
    %v2100 = vpack.c.b16 %v2091, %v2088
    %v2101 = vpack.c.b16 %v2092, %v2089
    %v2102 = vpack.c.b16 %v2096, %v2093
    %v2103 = vpack.c.b16 %v2097, %v2094
    %v2104 = vpack.c.b16 %v2098, %v2095
    %vm2111 = vcmask 261120
    %v2113 = vsel %vm2111, %v2070, 0
    %2115 = vmatpush.bf16.msra.mxu0 0
    %2116 = vmatpush.bf16.msra.mxu0 0
    %2117 = vmatpush.bf16.msra.mxu0 0
    %2118 = vmatpush.bf16.msra.mxu0 0
    %2119 = vmatpush.bf16.msra.mxu0 0
    %2120 = vmatpush.bf16.msra.mxu0 0
    %2121 = vmatpush.bf16.msra.mxu0 %v2102
    %2122 = vmatpush.bf16.msra.mxu0 %v2099
    %2123 = vmatmul.bf16.gmra.mxu0 %v2113
    %v2124 = vpop.f32.mrf.mxu0
    %v2125 = vadd.f32 0.0, %v2124
    %v2126 = vpop.f32.mrf.mxu0
    %2127 = vdwg.mxu0
    %2128 = vmatpush.bf16.msra.mxu0 0
    %2129 = vmatpush.bf16.msra.mxu0 0
    %2130 = vmatpush.bf16.msra.mxu0 0
    %2131 = vmatpush.bf16.msra.mxu0 0
    %2132 = vmatpush.bf16.msra.mxu0 0
    %2133 = vmatpush.bf16.msra.mxu0 0
    %2134 = vmatpush.bf16.msra.mxu0 %v2103
    %2135 = vmatpush.bf16.msra.mxu0 %v2100
    %2136 = vmatmul.bf16.gmra.mxu0 %v2113
    %v2137 = vpop.f32.mrf.mxu0
    %v2138 = vadd.f32 0.0, %v2137
    %v2139 = vpop.f32.mrf.mxu0
    %2140 = vdwg.mxu0
    %2141 = vmatpush.bf16.msra.mxu0 0
    %2142 = vmatpush.bf16.msra.mxu0 0
    %2143 = vmatpush.bf16.msra.mxu0 0
    %2144 = vmatpush.bf16.msra.mxu0 0
    %2145 = vmatpush.bf16.msra.mxu0 0
    %2146 = vmatpush.bf16.msra.mxu0 0
    %2147 = vmatpush.bf16.msra.mxu0 %v2104
    %2148 = vmatpush.bf16.msra.mxu0 %v2101
    %2149 = vmatmul.bf16.gmra.mxu0 %v2113
    %v2150 = vpop.f32.mrf.mxu0
    %v2151 = vadd.f32 0.0, %v2150
    %v2152 = vpop.f32.mrf.mxu0
    %2153 = vdwg.mxu0
    %v2154 = vpack.c.bf16 %v2125, %v2125
    %v2155 = vpack.c.bf16 %v2138, %v2138
    %v2156 = vpack.c.bf16 %v2151, %v2151
    %v2157 = vld [vmem:[#allocation11] sm:$0xff]
    %v2158 = vld [vmem:[#allocation11 + $0x8] sm:$0xf]
    %v2159 = vld [vmem:[#allocation11 + $0xc] sm:$0xff]
    %v2160 = vld [vmem:[#allocation11 + $0x14] sm:$0xf]
    %v2161 = vld [vmem:[#allocation11 + $0x18] sm:$0xff]
    %v2162 = vld [vmem:[#allocation11 + $0x20] sm:$0xf]
    %v2163 = vld [vmem:[#allocation11 + $0x24] sm:$0xff]
    %v2164 = vld [vmem:[#allocation11 + $0x2c] sm:$0xf]
    %v2165 = vld [vmem:[#allocation11 + $0x30] sm:$0xff]
    %v2166 = vld [vmem:[#allocation11 + $0x38] sm:$0xf]
    %v2167 = vld [vmem:[#allocation11 + $0x3c] sm:$0xff]
    %v2168 = vld [vmem:[#allocation11 + $0x44] sm:$0xf]
    %v2169 = vld [vmem:[#allocation11 + $0x48] sm:$0xff]
    %v2170 = vld [vmem:[#allocation11 + $0x50] sm:$0xf]
    %v2171 = vld [vmem:[#allocation11 + $0x54] sm:$0xff]
    %v2172 = vld [vmem:[#allocation11 + $0x5c] sm:$0xf]
    %v2173 = vld [vmem:[#allocation11 + $0x60] sm:$0xff]
    %v2174 = vld [vmem:[#allocation11 + $0x68] sm:$0xf]
    %v2175 = vld [vmem:[#allocation11 + $0x6c] sm:$0xff]
    %v2176 = vld [vmem:[#allocation11 + $0x74] sm:$0xf]
    %v2177 = vld [vmem:[#allocation11 + $0x78] sm:$0xff]
    %v2178 = vld [vmem:[#allocation11 + $0x80] sm:$0xf]
    %v2179 = vld [vmem:[#allocation11 + $0x84] sm:$0xff]
    %v2180 = vld [vmem:[#allocation11 + $0x8c] sm:$0xf]
    %v2181 = vld [vmem:[#allocation11 + $0x90] sm:$0xff]
    %v2182 = vld [vmem:[#allocation11 + $0x98] sm:$0xf]
    %v2183 = vld [vmem:[#allocation11 + $0x9c] sm:$0xff]
    %v2184 = vld [vmem:[#allocation11 + $0xa4] sm:$0xf]
    %v2185 = vld [vmem:[#allocation11 + $0xa8] sm:$0xff]
    %v2186 = vld [vmem:[#allocation11 + $0xb0] sm:$0xf]
    %v2187 = vld [vmem:[#allocation11 + $0xb4] sm:$0xff]
    %v2188 = vld [vmem:[#allocation11 + $0xbc] sm:$0xf]
    %v2189 = vld [vmem:[#allocation11 + $0xc0] sm:$0xff]
    %v2190 = vld [vmem:[#allocation11 + $0xc8] sm:$0xf]
    %v2191 = vld [vmem:[#allocation11 + $0xcc] sm:$0xff]
    %v2192 = vld [vmem:[#allocation11 + $0xd4] sm:$0xf]
    %v2193 = vld [vmem:[#allocation11 + $0xd8] sm:$0xff]
    %v2194 = vld [vmem:[#allocation11 + $0xe0] sm:$0xf]
    %v2195 = vld [vmem:[#allocation11 + $0xe4] sm:$0xff]
    %v2196 = vld [vmem:[#allocation11 + $0xec] sm:$0xf]
    %v2197 = vld [vmem:[#allocation11 + $0xf0] sm:$0xff]
    %v2198 = vld [vmem:[#allocation11 + $0xf8] sm:$0xf]
    %v2199 = vld [vmem:[#allocation11 + $0xfc] sm:$0xff]
    %v2200 = vld [vmem:[#allocation11 + $0x104] sm:$0xf]
    %v2201 = vld [vmem:[#allocation11 + $0x108] sm:$0xff]
    %v2202 = vld [vmem:[#allocation11 + $0x110] sm:$0xf]
    %v2203 = vld [vmem:[#allocation11 + $0x114] sm:$0xff]
    %v2204 = vld [vmem:[#allocation11 + $0x11c] sm:$0xf]
    %v2205 = vld [vmem:[#allocation11 + $0x120] sm:$0xff]
    %v2206 = vld [vmem:[#allocation11 + $0x128] sm:$0xf]
    %v2207 = vld [vmem:[#allocation11 + $0x12c] sm:$0xff]
    %v2208 = vld [vmem:[#allocation11 + $0x134] sm:$0xf]
    %v2209 = vld [vmem:[#allocation11 + $0x138] sm:$0xff]
    %v2210 = vld [vmem:[#allocation11 + $0x140] sm:$0xf]
    %v2211 = vld [vmem:[#allocation11 + $0x144] sm:$0xff]
    %v2212 = vld [vmem:[#allocation11 + $0x14c] sm:$0xf]
    %v2213 = vld [vmem:[#allocation11 + $0x150] sm:$0xff]
    %v2214 = vld [vmem:[#allocation11 + $0x158] sm:$0xf]
    %v2215 = vld [vmem:[#allocation11 + $0x15c] sm:$0xff]
    %v2216 = vld [vmem:[#allocation11 + $0x164] sm:$0xf]
    %v2217 = vld [vmem:[#allocation11 + $0x168] sm:$0xff]
    %v2218 = vld [vmem:[#allocation11 + $0x170] sm:$0xf]
    %v2219 = vld [vmem:[#allocation11 + $0x174] sm:$0xff]
    %v2220 = vld [vmem:[#allocation11 + $0x17c] sm:$0xf]
    %v2221 = vld [vmem:[#allocation11 + $0x180] sm:$0xff]
    %v2222 = vld [vmem:[#allocation11 + $0x188] sm:$0xf]
    %v2223 = vld [vmem:[#allocation11 + $0x18c] sm:$0xff]
    %v2224 = vld [vmem:[#allocation11 + $0x194] sm:$0xf]
    %v2225 = vld [vmem:[#allocation11 + $0x198] sm:$0xff]
    %v2226 = vld [vmem:[#allocation11 + $0x1a0] sm:$0xf]
    %v2227 = vld [vmem:[#allocation11 + $0x1a4] sm:$0xff]
    %v2228 = vld [vmem:[#allocation11 + $0x1ac] sm:$0xf]
    %v2229 = vld [vmem:[#allocation11 + $0x1b0] sm:$0xff]
    %v2230 = vld [vmem:[#allocation11 + $0x1b8] sm:$0xf]
    %v2231 = vld [vmem:[#allocation11 + $0x1bc] sm:$0xff]
    %v2232 = vld [vmem:[#allocation11 + $0x1c4] sm:$0xf]
    %v2233 = vld [vmem:[#allocation11 + $0x1c8] sm:$0xff]
    %v2234 = vld [vmem:[#allocation11 + $0x1d0] sm:$0xf]
    %v2235 = vld [vmem:[#allocation11 + $0x1d4] sm:$0xff]
    %v2236 = vld [vmem:[#allocation11 + $0x1dc] sm:$0xf]
    %v2237 = vld [vmem:[#allocation11 + $0x1e0] sm:$0xff]
    %v2238 = vld [vmem:[#allocation11 + $0x1e8] sm:$0xf]
    %v2239 = vld [vmem:[#allocation11 + $0x1ec] sm:$0xff]
    %v2240 = vld [vmem:[#allocation11 + $0x1f4] sm:$0xf]
    %v2241 = vld [vmem:[#allocation11 + $0x1f8] sm:$0xff]
    %v2242 = vld [vmem:[#allocation11 + $0x200] sm:$0xf]
    %v2243 = vld [vmem:[#allocation11 + $0x204] sm:$0xff]
    %v2244 = vld [vmem:[#allocation11 + $0x20c] sm:$0xf]
    %v2245 = vld [vmem:[#allocation11 + $0x210] sm:$0xff]
    %v2246 = vld [vmem:[#allocation11 + $0x218] sm:$0xf]
    %v2247 = vld [vmem:[#allocation11 + $0x21c] sm:$0xff]
    %v2248 = vld [vmem:[#allocation11 + $0x224] sm:$0xf]
    %v2249 = vld [vmem:[#allocation11 + $0x228] sm:$0xff]
    %v2250 = vld [vmem:[#allocation11 + $0x230] sm:$0xf]
    %v2251 = vld [vmem:[#allocation11 + $0x234] sm:$0xff]
    %v2252 = vld [vmem:[#allocation11 + $0x23c] sm:$0xf]
    %v2253 = vld [vmem:[#allocation13] sm:$0x7]
    %v2255 = vperm.slane %v2253, 0
    %v2256 = vperm.slane %v2253, 1
    %v2257 = vperm.slane %v2253, 2
    %v2357 = vunpack.c.l.b16 %v2157
    %v2358 = vunpack.c.h.b16 %v2157
    %v2359 = vunpack.c.l.b16 %v2158
    %v2360 = vunpack.c.l.b16 %v2159
    %v2361 = vunpack.c.h.b16 %v2159
    %v2362 = vunpack.c.l.b16 %v2160
    %v2363 = vunpack.c.l.b16 %v2161
    %v2364 = vunpack.c.h.b16 %v2161
    %v2365 = vunpack.c.l.b16 %v2162
    %v2366 = vunpack.c.l.b16 %v2163
    %v2367 = vunpack.c.h.b16 %v2163
    %v2368 = vunpack.c.l.b16 %v2164
    %v2369 = vunpack.c.l.b16 %v2165
    %v2370 = vunpack.c.h.b16 %v2165
    %v2371 = vunpack.c.l.b16 %v2166
    %v2372 = vunpack.c.l.b16 %v2167
    %v2373 = vunpack.c.h.b16 %v2167
    %v2374 = vunpack.c.l.b16 %v2168
    %v2375 = vunpack.c.l.b16 %v2169
    %v2376 = vunpack.c.h.b16 %v2169
    %v2377 = vunpack.c.l.b16 %v2170
    %v2378 = vunpack.c.l.b16 %v2171
    %v2379 = vunpack.c.h.b16 %v2171
    %v2380 = vunpack.c.l.b16 %v2172
    %v2381 = vunpack.c.l.b16 %v2173
    %v2382 = vunpack.c.h.b16 %v2173
    %v2383 = vunpack.c.l.b16 %v2174
    %v2384 = vunpack.c.l.b16 %v2175
    %v2385 = vunpack.c.h.b16 %v2175
    %v2386 = vunpack.c.l.b16 %v2176
    %v2387 = vunpack.c.l.b16 %v2177
    %v2388 = vunpack.c.h.b16 %v2177
    %v2389 = vunpack.c.l.b16 %v2178
    %v2390 = vunpack.c.l.b16 %v2179
    %v2391 = vunpack.c.h.b16 %v2179
    %v2392 = vunpack.c.l.b16 %v2180
    %v2393 = vunpack.c.l.b16 %v2181
    %v2394 = vunpack.c.h.b16 %v2181
    %v2395 = vunpack.c.l.b16 %v2182
    %v2396 = vunpack.c.l.b16 %v2183
    %v2397 = vunpack.c.h.b16 %v2183
    %v2398 = vunpack.c.l.b16 %v2184
    %v2399 = vunpack.c.l.b16 %v2185
    %v2400 = vunpack.c.h.b16 %v2185
    %v2401 = vunpack.c.l.b16 %v2186
    %v2402 = vunpack.c.l.b16 %v2187
    %v2403 = vunpack.c.h.b16 %v2187
    %v2404 = vunpack.c.l.b16 %v2188
    %v2405 = vunpack.c.l.b16 %v2189
    %v2406 = vunpack.c.h.b16 %v2189
    %v2407 = vunpack.c.l.b16 %v2190
    %v2408 = vunpack.c.l.b16 %v2191
    %v2409 = vunpack.c.h.b16 %v2191
    %v2410 = vunpack.c.l.b16 %v2192
    %v2411 = vunpack.c.l.b16 %v2193
    %v2412 = vunpack.c.h.b16 %v2193
    %v2413 = vunpack.c.l.b16 %v2194
    %v2414 = vunpack.c.l.b16 %v2195
    %v2415 = vunpack.c.h.b16 %v2195
    %v2416 = vunpack.c.l.b16 %v2196
    %v2417 = vunpack.c.l.b16 %v2197
    %v2418 = vunpack.c.h.b16 %v2197
    %v2419 = vunpack.c.l.b16 %v2198
    %v2420 = vunpack.c.l.b16 %v2199
    %v2421 = vunpack.c.h.b16 %v2199
    %v2422 = vunpack.c.l.b16 %v2200
    %v2423 = vunpack.c.l.b16 %v2201
    %v2424 = vunpack.c.h.b16 %v2201
    %v2425 = vunpack.c.l.b16 %v2202
    %v2426 = vunpack.c.l.b16 %v2203
    %v2427 = vunpack.c.h.b16 %v2203
    %v2428 = vunpack.c.l.b16 %v2204
    %v2429 = vunpack.c.l.b16 %v2205
    %v2430 = vunpack.c.h.b16 %v2205
    %v2431 = vunpack.c.l.b16 %v2206
    %v2432 = vunpack.c.l.b16 %v2207
    %v2433 = vunpack.c.h.b16 %v2207
    %v2434 = vunpack.c.l.b16 %v2208
    %v2435 = vunpack.c.l.b16 %v2209
    %v2436 = vunpack.c.h.b16 %v2209
    %v2437 = vunpack.c.l.b16 %v2210
    %v2438 = vunpack.c.l.b16 %v2211
    %v2439 = vunpack.c.h.b16 %v2211
    %v2440 = vunpack.c.l.b16 %v2212
    %v2441 = vunpack.c.l.b16 %v2213
    %v2442 = vunpack.c.h.b16 %v2213
    %v2443 = vunpack.c.l.b16 %v2214
    %v2444 = vunpack.c.l.b16 %v2215
    %v2445 = vunpack.c.h.b16 %v2215
    %v2446 = vunpack.c.l.b16 %v2216
    %v2447 = vunpack.c.l.b16 %v2217
    %v2448 = vunpack.c.h.b16 %v2217
    %v2449 = vunpack.c.l.b16 %v2218
    %v2450 = vunpack.c.l.b16 %v2219
    %v2451 = vunpack.c.h.b16 %v2219
    %v2452 = vunpack.c.l.b16 %v2220
    %v2453 = vunpack.c.l.b16 %v2221
    %v2454 = vunpack.c.h.b16 %v2221
    %v2455 = vunpack.c.l.b16 %v2222
    %v2456 = vunpack.c.l.b16 %v2223
    %v2457 = vunpack.c.h.b16 %v2223
    %v2458 = vunpack.c.l.b16 %v2224
    %v2459 = vunpack.c.l.b16 %v2225
    %v2460 = vunpack.c.h.b16 %v2225
    %v2461 = vunpack.c.l.b16 %v2226
    %v2462 = vunpack.c.l.b16 %v2227
    %v2463 = vunpack.c.h.b16 %v2227
    %v2464 = vunpack.c.l.b16 %v2228
    %v2465 = vunpack.c.l.b16 %v2229
    %v2466 = vunpack.c.h.b16 %v2229
    %v2467 = vunpack.c.l.b16 %v2230
    %v2468 = vunpack.c.l.b16 %v2231
    %v2469 = vunpack.c.h.b16 %v2231
    %v2470 = vunpack.c.l.b16 %v2232
    %v2471 = vunpack.c.l.b16 %v2233
    %v2472 = vunpack.c.h.b16 %v2233
    %v2473 = vunpack.c.l.b16 %v2234
    %v2474 = vunpack.c.l.b16 %v2235
    %v2475 = vunpack.c.h.b16 %v2235
    %v2476 = vunpack.c.l.b16 %v2236
    %v2477 = vunpack.c.l.b16 %v2237
    %v2478 = vunpack.c.h.b16 %v2237
    %v2479 = vunpack.c.l.b16 %v2238
    %v2480 = vunpack.c.l.b16 %v2239
    %v2481 = vunpack.c.h.b16 %v2239
    %v2482 = vunpack.c.l.b16 %v2240
    %v2483 = vunpack.c.l.b16 %v2241
    %v2484 = vunpack.c.h.b16 %v2241
    %v2485 = vunpack.c.l.b16 %v2242
    %v2486 = vunpack.c.l.b16 %v2243
    %v2487 = vunpack.c.h.b16 %v2243
    %v2488 = vunpack.c.l.b16 %v2244
    %v2489 = vunpack.c.l.b16 %v2245
    %v2490 = vunpack.c.h.b16 %v2245
    %v2491 = vunpack.c.l.b16 %v2246
    %v2492 = vunpack.c.l.b16 %v2247
    %v2493 = vunpack.c.h.b16 %v2247
    %v2494 = vunpack.c.l.b16 %v2248
    %v2495 = vunpack.c.l.b16 %v2249
    %v2496 = vunpack.c.h.b16 %v2249
    %v2497 = vunpack.c.l.b16 %v2250
    %v2498 = vunpack.c.l.b16 %v2251
    %v2499 = vunpack.c.h.b16 %v2251
    %v2500 = vunpack.c.l.b16 %v2252
    %v2501 = vpack.c.b16 %v2360, %v2357
    %v2502 = vpack.c.b16 %v2361, %v2358
    %v2503 = vpack.c.b16 %v2362, %v2359
    %v2504 = vpack.c.b16 %v2366, %v2363
    %v2505 = vpack.c.b16 %v2367, %v2364
    %v2506 = vpack.c.b16 %v2368, %v2365
    %v2507 = vpack.c.b16 %v2372, %v2369
    %v2508 = vpack.c.b16 %v2373, %v2370
    %v2509 = vpack.c.b16 %v2374, %v2371
    %v2510 = vpack.c.b16 %v2378, %v2375
    %v2511 = vpack.c.b16 %v2379, %v2376
    %v2512 = vpack.c.b16 %v2380, %v2377
    %v2513 = vpack.c.b16 %v2384, %v2381
    %v2514 = vpack.c.b16 %v2385, %v2382
    %v2515 = vpack.c.b16 %v2386, %v2383
    %v2516 = vpack.c.b16 %v2390, %v2387
    %v2517 = vpack.c.b16 %v2391, %v2388
    %v2518 = vpack.c.b16 %v2392, %v2389
    %v2519 = vpack.c.b16 %v2396, %v2393
    %v2520 = vpack.c.b16 %v2397, %v2394
    %v2521 = vpack.c.b16 %v2398, %v2395
    %v2522 = vpack.c.b16 %v2402, %v2399
    %v2523 = vpack.c.b16 %v2403, %v2400
    %v2524 = vpack.c.b16 %v2404, %v2401
    %v2525 = vpack.c.b16 %v2408, %v2405
    %v2526 = vpack.c.b16 %v2409, %v2406
    %v2527 = vpack.c.b16 %v2410, %v2407
    %v2528 = vpack.c.b16 %v2414, %v2411
    %v2529 = vpack.c.b16 %v2415, %v2412
    %v2530 = vpack.c.b16 %v2416, %v2413
    %v2531 = vpack.c.b16 %v2420, %v2417
    %v2532 = vpack.c.b16 %v2421, %v2418
    %v2533 = vpack.c.b16 %v2422, %v2419
    %v2534 = vpack.c.b16 %v2426, %v2423
    %v2535 = vpack.c.b16 %v2427, %v2424
    %v2536 = vpack.c.b16 %v2428, %v2425
    %v2537 = vpack.c.b16 %v2432, %v2429
    %v2538 = vpack.c.b16 %v2433, %v2430
    %v2539 = vpack.c.b16 %v2434, %v2431
    %v2540 = vpack.c.b16 %v2438, %v2435
    %v2541 = vpack.c.b16 %v2439, %v2436
    %v2542 = vpack.c.b16 %v2440, %v2437
    %v2543 = vpack.c.b16 %v2444, %v2441
    %v2544 = vpack.c.b16 %v2445, %v2442
    %v2545 = vpack.c.b16 %v2446, %v2443
    %v2546 = vpack.c.b16 %v2450, %v2447
    %v2547 = vpack.c.b16 %v2451, %v2448
    %v2548 = vpack.c.b16 %v2452, %v2449
    %v2549 = vpack.c.b16 %v2456, %v2453
    %v2550 = vpack.c.b16 %v2457, %v2454
    %v2551 = vpack.c.b16 %v2458, %v2455
    %v2552 = vpack.c.b16 %v2462, %v2459
    %v2553 = vpack.c.b16 %v2463, %v2460
    %v2554 = vpack.c.b16 %v2464, %v2461
    %v2555 = vpack.c.b16 %v2468, %v2465
    %v2556 = vpack.c.b16 %v2469, %v2466
    %v2557 = vpack.c.b16 %v2470, %v2467
    %v2558 = vpack.c.b16 %v2474, %v2471
    %v2559 = vpack.c.b16 %v2475, %v2472
    %v2560 = vpack.c.b16 %v2476, %v2473
    %v2561 = vpack.c.b16 %v2480, %v2477
    %v2562 = vpack.c.b16 %v2481, %v2478
    %v2563 = vpack.c.b16 %v2482, %v2479
    %v2564 = vpack.c.b16 %v2486, %v2483
    %v2565 = vpack.c.b16 %v2487, %v2484
    %v2566 = vpack.c.b16 %v2488, %v2485
    %v2567 = vpack.c.b16 %v2492, %v2489
    %v2568 = vpack.c.b16 %v2493, %v2490
    %v2569 = vpack.c.b16 %v2494, %v2491
    %v2570 = vpack.c.b16 %v2498, %v2495
    %v2571 = vpack.c.b16 %v2499, %v2496
    %v2572 = vpack.c.b16 %v2500, %v2497
    %2645 = vmatpush.bf16.msra.mxu0 %v2522
    %2646 = vmatpush.bf16.msra.mxu0 %v2519
    %2647 = vmatpush.bf16.msra.mxu0 %v2516
    %2648 = vmatpush.bf16.msra.mxu0 %v2513
    %2649 = vmatpush.bf16.msra.mxu0 %v2510
    %2650 = vmatpush.bf16.msra.mxu0 %v2507
    %2651 = vmatpush.bf16.msra.mxu0 %v2504
    %2652 = vmatpush.bf16.msra.mxu0 %v2501
    %2653 = vmatmul.bf16.gmra.mxu0 %v2154
    %v2654 = vpop.f32.mrf.mxu0
    %v2655 = vadd.f32 %v2255, %v2654
    %v2656 = vpop.f32.mrf.mxu0
    %2657 = vdwg.mxu0
    %2658 = vmatpush.bf16.msra.mxu0 %v2546
    %2659 = vmatpush.bf16.msra.mxu0 %v2543
    %2660 = vmatpush.bf16.msra.mxu0 %v2540
    %2661 = vmatpush.bf16.msra.mxu0 %v2537
    %2662 = vmatpush.bf16.msra.mxu0 %v2534
    %2663 = vmatpush.bf16.msra.mxu0 %v2531
    %2664 = vmatpush.bf16.msra.mxu0 %v2528
    %2665 = vmatpush.bf16.msra.mxu0 %v2525
    %2666 = vmatmul.bf16.gmra.mxu0 %v2155
    %v2667 = vpop.f32.mrf.mxu0
    %v2668 = vadd.f32 %v2655, %v2667
    %v2669 = vpop.f32.mrf.mxu0
    %2670 = vdwg.mxu0
    %2671 = vmatpush.bf16.msra.mxu0 %v2570
    %2672 = vmatpush.bf16.msra.mxu0 %v2567
    %2673 = vmatpush.bf16.msra.mxu0 %v2564
    %2674 = vmatpush.bf16.msra.mxu0 %v2561
    %2675 = vmatpush.bf16.msra.mxu0 %v2558
    %2676 = vmatpush.bf16.msra.mxu0 %v2555
    %2677 = vmatpush.bf16.msra.mxu0 %v2552
    %2678 = vmatpush.bf16.msra.mxu0 %v2549
    %2679 = vmatmul.bf16.gmra.mxu0 %v2156
    %v2680 = vpop.f32.mrf.mxu0
    %v2681 = vadd.f32 %v2668, %v2680
    %v2682 = vpop.f32.mrf.mxu0
    %2683 = vdwg.mxu0
    %2684 = vmatpush.bf16.msra.mxu0 %v2523
    %2685 = vmatpush.bf16.msra.mxu0 %v2520
    %2686 = vmatpush.bf16.msra.mxu0 %v2517
    %2687 = vmatpush.bf16.msra.mxu0 %v2514
    %2688 = vmatpush.bf16.msra.mxu0 %v2511
    %2689 = vmatpush.bf16.msra.mxu0 %v2508
    %2690 = vmatpush.bf16.msra.mxu0 %v2505
    %2691 = vmatpush.bf16.msra.mxu0 %v2502
    %2692 = vmatmul.bf16.gmra.mxu0 %v2154
    %v2693 = vpop.f32.mrf.mxu0
    %v2694 = vadd.f32 %v2256, %v2693
    %v2695 = vpop.f32.mrf.mxu0
    %2696 = vdwg.mxu0
    %2697 = vmatpush.bf16.msra.mxu0 %v2547
    %2698 = vmatpush.bf16.msra.mxu0 %v2544
    %2699 = vmatpush.bf16.msra.mxu0 %v2541
    %2700 = vmatpush.bf16.msra.mxu0 %v2538
    %2701 = vmatpush.bf16.msra.mxu0 %v2535
    %2702 = vmatpush.bf16.msra.mxu0 %v2532
    %2703 = vmatpush.bf16.msra.mxu0 %v2529
    %2704 = vmatpush.bf16.msra.mxu0 %v2526
    %2705 = vmatmul.bf16.gmra.mxu0 %v2155
    %v2706 = vpop.f32.mrf.mxu0
    %v2707 = vadd.f32 %v2694, %v2706
    %v2708 = vpop.f32.mrf.mxu0
    %2709 = vdwg.mxu0
    %2710 = vmatpush.bf16.msra.mxu0 %v2571
    %2711 = vmatpush.bf16.msra.mxu0 %v2568
    %2712 = vmatpush.bf16.msra.mxu0 %v2565
    %2713 = vmatpush.bf16.msra.mxu0 %v2562
    %2714 = vmatpush.bf16.msra.mxu0 %v2559
    %2715 = vmatpush.bf16.msra.mxu0 %v2556
    %2716 = vmatpush.bf16.msra.mxu0 %v2553
    %2717 = vmatpush.bf16.msra.mxu0 %v2550
    %2718 = vmatmul.bf16.gmra.mxu0 %v2156
    %v2719 = vpop.f32.mrf.mxu0
    %v2720 = vadd.f32 %v2707, %v2719
    %v2721 = vpop.f32.mrf.mxu0
    %2722 = vdwg.mxu0
    %2723 = vmatpush.bf16.msra.mxu0 %v2524
    %2724 = vmatpush.bf16.msra.mxu0 %v2521
    %2725 = vmatpush.bf16.msra.mxu0 %v2518
    %2726 = vmatpush.bf16.msra.mxu0 %v2515
    %2727 = vmatpush.bf16.msra.mxu0 %v2512
    %2728 = vmatpush.bf16.msra.mxu0 %v2509
    %2729 = vmatpush.bf16.msra.mxu0 %v2506
    %2730 = vmatpush.bf16.msra.mxu0 %v2503
    %2731 = vmatmul.bf16.gmra.mxu0 %v2154
    %v2732 = vpop.f32.mrf.mxu0
    %v2733 = vadd.f32 %v2257, %v2732
    %v2734 = vpop.f32.mrf.mxu0
    %2735 = vdwg.mxu0
    %2736 = vmatpush.bf16.msra.mxu0 %v2548
    %2737 = vmatpush.bf16.msra.mxu0 %v2545
    %2738 = vmatpush.bf16.msra.mxu0 %v2542
    %2739 = vmatpush.bf16.msra.mxu0 %v2539
    %2740 = vmatpush.bf16.msra.mxu0 %v2536
    %2741 = vmatpush.bf16.msra.mxu0 %v2533
    %2742 = vmatpush.bf16.msra.mxu0 %v2530
    %2743 = vmatpush.bf16.msra.mxu0 %v2527
    %2744 = vmatmul.bf16.gmra.mxu0 %v2155
    %v2745 = vpop.f32.mrf.mxu0
    %v2746 = vadd.f32 %v2733, %v2745
    %v2747 = vpop.f32.mrf.mxu0
    %2748 = vdwg.mxu0
    %2749 = vmatpush.bf16.msra.mxu0 %v2572
    %2750 = vmatpush.bf16.msra.mxu0 %v2569
    %2751 = vmatpush.bf16.msra.mxu0 %v2566
    %2752 = vmatpush.bf16.msra.mxu0 %v2563
    %2753 = vmatpush.bf16.msra.mxu0 %v2560
    %2754 = vmatpush.bf16.msra.mxu0 %v2557
    %2755 = vmatpush.bf16.msra.mxu0 %v2554
    %2756 = vmatpush.bf16.msra.mxu0 %v2551
    %2757 = vmatmul.bf16.gmra.mxu0 %v2156
    %v2758 = vpop.f32.mrf.mxu0
    %v2759 = vadd.f32 %v2746, %v2758
    %v2760 = vpop.f32.mrf.mxu0
    %2761 = vdwg.mxu0
    %v2762 = vmul.f32 %v1799, %v1799
    %v2763 = vmul.f32 %v1903, %v1903
    %v2764 = vmul.f32 %v2007, %v2007
    %v2765 = vadd.f32 %v2762, %v2763
    %v2766 = vadd.f32 %v2765, %v2764
    %2767 = vadd.xlane.f32.xlu0 %v2766
    %v2768 = vpop.xlane.xlu0 %2767
    %v2769 = vrsqrt.pop %v2768
    %v2770 = vmul.f32 %v2769, %v2768
    %v2771 = vmul.f32 %v2770, %v2769
    %v2772 = vmul.f32 0.5, %v2771
    %v2773 = vsub.f32 1.5, %v2772
    %v2774 = vmul.f32 %v2769, %v2773
    %vm2775 = vweird.f32 %v2768
    %vm2776 = vweird.f32 %v2769
    %vm2777 = vmor %vm2775, %vm2776
    %v2778 = vsel %vm2777, %v2769, %v2774
    %v2779 = vmul.f32 %v1799, %v2778
    %v2780 = vmul.f32 %v1903, %v2778
    %v2781 = vmul.f32 %v2007, %v2778
    %v2782 = vmul.f32 %v2681, %v2681
    %v2783 = vmul.f32 %v2720, %v2720
    %v2784 = vmul.f32 %v2759, %v2759
    %v2785 = vadd.f32 %v2782, %v2783
    %v2786 = vadd.f32 %v2785, %v2784
    %2787 = vadd.xlane.f32.xlu0 %v2786
    %v2788 = vpop.xlane.xlu0 %2787
    %v2789 = vrsqrt.pop %v2788
    %v2790 = vmul.f32 %v2789, %v2788
    %v2791 = vmul.f32 %v2790, %v2789
    %v2792 = vmul.f32 0.5, %v2791
    %v2793 = vsub.f32 1.5, %v2792
    %v2794 = vmul.f32 %v2789, %v2793
    %vm2795 = vweird.f32 %v2788
    %vm2796 = vweird.f32 %v2789
    %vm2797 = vmor %vm2795, %vm2796
    %v2798 = vsel %vm2797, %v2789, %v2794
    %v2799 = vmul.f32 %v2681, %v2798
    %v2800 = vmul.f32 %v2720, %v2798
    %v2801 = vmul.f32 %v2759, %v2798
    %v2802 = vpack.c.bf16 %v2779, %v2779
    %v2803 = vpack.c.bf16 %v2780, %v2780
    %v2804 = vpack.c.bf16 %v2781, %v2781
    %v2805 = vpack.c.bf16 %v2799, %v2799
    %v2806 = vpack.c.bf16 %v2800, %v2800
    %v2807 = vpack.c.bf16 %v2801, %v2801
    %v2808 = vld [vmem:[#allocation14] sm:$0xff]
    %v2809 = vld [vmem:[#allocation14 + $0x8] sm:$0xff]
    %v2810 = vld [vmem:[#allocation14 + $0x10] sm:$0xff]
    %v2811 = vld [vmem:[#allocation14 + $0x18] sm:$0xff]
    %v2812 = vld [vmem:[#allocation14 + $0x20] sm:$0xff]
    %v2813 = vld [vmem:[#allocation14 + $0x28] sm:$0xff]
    %v2814 = vld [vmem:[#allocation14 + $0x30] sm:$0xff]
    %v2815 = vld [vmem:[#allocation14 + $0x38] sm:$0xff]
    %v2816 = vld [vmem:[#allocation14 + $0x40] sm:$0xff]
    %v2817 = vld [vmem:[#allocation14 + $0x48] sm:$0xff]
    %v2818 = vld [vmem:[#allocation14 + $0x50] sm:$0xff]
    %v2819 = vld [vmem:[#allocation14 + $0x58] sm:$0xff]
    %v2820 = vld [vmem:[#allocation14 + $0x60] sm:$0xff]
    %v2821 = vld [vmem:[#allocation14 + $0x68] sm:$0xff]
    %v2822 = vld [vmem:[#allocation14 + $0x70] sm:$0xff]
    %v2823 = vld [vmem:[#allocation14 + $0x78] sm:$0xff]
    %v2824 = vld [vmem:[#allocation14 + $0x80] sm:$0xff]
    %v2825 = vld [vmem:[#allocation14 + $0x88] sm:$0xff]
    %v2826 = vld [vmem:[#allocation14 + $0x90] sm:$0xff]
    %v2827 = vld [vmem:[#allocation14 + $0x98] sm:$0xff]
    %v2828 = vld [vmem:[#allocation14 + $0xa0] sm:$0xff]
    %v2829 = vld [vmem:[#allocation14 + $0xa8] sm:$0xff]
    %v2830 = vld [vmem:[#allocation14 + $0xb0] sm:$0xff]
    %v2831 = vld [vmem:[#allocation14 + $0xb8] sm:$0xff]
    %v2832 = vld [vmem:[#allocation14 + $0xc0] sm:$0xff]
    %v2833 = vld [vmem:[#allocation14 + $0xc8] sm:$0xff]
    %v2834 = vld [vmem:[#allocation14 + $0xd0] sm:$0xff]
    %v2835 = vld [vmem:[#allocation14 + $0xd8] sm:$0xff]
    %v2836 = vld [vmem:[#allocation14 + $0xe0] sm:$0xff]
    %v2837 = vld [vmem:[#allocation14 + $0xe8] sm:$0xff]
    %v2838 = vld [vmem:[#allocation14 + $0xf0] sm:$0xff]
    %v2839 = vld [vmem:[#allocation14 + $0xf8] sm:$0xff]
    %v2840 = vld [vmem:[#allocation14 + $0x100] sm:$0xff]
    %v2841 = vld [vmem:[#allocation14 + $0x108] sm:$0xff]
    %v2842 = vld [vmem:[#allocation14 + $0x110] sm:$0xff]
    %v2843 = vld [vmem:[#allocation14 + $0x118] sm:$0xff]
    %v2844 = vld [vmem:[#allocation14 + $0x120] sm:$0xff]
    %v2845 = vld [vmem:[#allocation14 + $0x128] sm:$0xff]
    %v2846 = vld [vmem:[#allocation14 + $0x130] sm:$0xff]
    %v2847 = vld [vmem:[#allocation14 + $0x138] sm:$0xff]
    %v2848 = vld [vmem:[#allocation14 + $0x140] sm:$0xff]
    %v2849 = vld [vmem:[#allocation14 + $0x148] sm:$0xff]
    %v2850 = vld [vmem:[#allocation14 + $0x150] sm:$0xff]
    %v2851 = vld [vmem:[#allocation14 + $0x158] sm:$0xff]
    %v2852 = vld [vmem:[#allocation14 + $0x160] sm:$0xff]
    %v2853 = vld [vmem:[#allocation14 + $0x168] sm:$0xff]
    %v2854 = vld [vmem:[#allocation14 + $0x170] sm:$0xff]
    %v2855 = vld [vmem:[#allocation14 + $0x178] sm:$0xff]
    %v2856 = vld [vmem:[#allocation14 + $0x180] sm:$0xff]
    %v2857 = vld [vmem:[#allocation14 + $0x188] sm:$0xff]
    %v2858 = vld [vmem:[#allocation14 + $0x190] sm:$0xff]
    %v2859 = vld [vmem:[#allocation14 + $0x198] sm:$0xff]
    %v2860 = vld [vmem:[#allocation14 + $0x1a0] sm:$0xff]
    %v2861 = vld [vmem:[#allocation14 + $0x1a8] sm:$0xff]
    %v2862 = vld [vmem:[#allocation14 + $0x1b0] sm:$0xff]
    %v2863 = vld [vmem:[#allocation14 + $0x1b8] sm:$0xff]
    %v2864 = vld [vmem:[#allocation14 + $0x1c0] sm:$0xff]
    %v2865 = vld [vmem:[#allocation14 + $0x1c8] sm:$0xff]
    %v2866 = vld [vmem:[#allocation14 + $0x1d0] sm:$0xff]
    %v2867 = vld [vmem:[#allocation14 + $0x1d8] sm:$0xff]
    %v2868 = vld [vmem:[#allocation14 + $0x1e0] sm:$0xff]
    %v2869 = vld [vmem:[#allocation14 + $0x1e8] sm:$0xff]
    %v2870 = vld [vmem:[#allocation14 + $0x1f0] sm:$0xff]
    %v2871 = vld [vmem:[#allocation14 + $0x1f8] sm:$0xff]
    %v2872 = vld [vmem:[#allocation14 + $0x200] sm:$0xff]
    %v2873 = vld [vmem:[#allocation14 + $0x208] sm:$0xff]
    %v2874 = vld [vmem:[#allocation14 + $0x210] sm:$0xff]
    %v2875 = vld [vmem:[#allocation14 + $0x218] sm:$0xff]
    %v2876 = vld [vmem:[#allocation14 + $0x220] sm:$0xff]
    %v2877 = vld [vmem:[#allocation14 + $0x228] sm:$0xff]
    %v2878 = vld [vmem:[#allocation14 + $0x230] sm:$0xff]
    %v2879 = vld [vmem:[#allocation14 + $0x238] sm:$0xff]
    %v2880 = vld [vmem:[#allocation14 + $0x240] sm:$0xff]
    %v2881 = vld [vmem:[#allocation14 + $0x248] sm:$0xff]
    %v2882 = vld [vmem:[#allocation14 + $0x250] sm:$0xff]
    %v2883 = vld [vmem:[#allocation14 + $0x258] sm:$0xff]
    %v2884 = vld [vmem:[#allocation14 + $0x260] sm:$0xff]
    %v2885 = vld [vmem:[#allocation14 + $0x268] sm:$0xff]
    %v2886 = vld [vmem:[#allocation14 + $0x270] sm:$0xff]
    %v2887 = vld [vmem:[#allocation14 + $0x278] sm:$0xff]
    %v2888 = vld [vmem:[#allocation14 + $0x280] sm:$0xff]
    %v2889 = vld [vmem:[#allocation14 + $0x288] sm:$0xff]
    %v2890 = vld [vmem:[#allocation14 + $0x290] sm:$0xff]
    %v2891 = vld [vmem:[#allocation14 + $0x298] sm:$0xff]
    %v2892 = vld [vmem:[#allocation14 + $0x2a0] sm:$0xff]
    %v2893 = vld [vmem:[#allocation14 + $0x2a8] sm:$0xff]
    %v2894 = vld [vmem:[#allocation14 + $0x2b0] sm:$0xff]
    %v2895 = vld [vmem:[#allocation14 + $0x2b8] sm:$0xff]
    %v2896 = vld [vmem:[#allocation14 + $0x2c0] sm:$0xff]
    %v2897 = vld [vmem:[#allocation14 + $0x2c8] sm:$0xff]
    %v2898 = vld [vmem:[#allocation14 + $0x2d0] sm:$0xff]
    %v2899 = vld [vmem:[#allocation14 + $0x2d8] sm:$0xff]
    %v2900 = vld [vmem:[#allocation14 + $0x2e0] sm:$0xff]
    %v2901 = vld [vmem:[#allocation14 + $0x2e8] sm:$0xff]
    %v2902 = vld [vmem:[#allocation14 + $0x2f0] sm:$0xff]
    %v2903 = vld [vmem:[#allocation14 + $0x2f8] sm:$0xff]
    %v2904 = vld [vmem:[#allocation14 + $0x300] sm:$0xff]
    %v2905 = vld [vmem:[#allocation14 + $0x308] sm:$0xff]
    %v2906 = vld [vmem:[#allocation14 + $0x310] sm:$0xff]
    %v2907 = vld [vmem:[#allocation14 + $0x318] sm:$0xff]
    %v2908 = vld [vmem:[#allocation14 + $0x320] sm:$0xff]
    %v2909 = vld [vmem:[#allocation14 + $0x328] sm:$0xff]
    %v2910 = vld [vmem:[#allocation14 + $0x330] sm:$0xff]
    %v2911 = vld [vmem:[#allocation14 + $0x338] sm:$0xff]
    %v2912 = vld [vmem:[#allocation14 + $0x340] sm:$0xff]
    %v2913 = vld [vmem:[#allocation14 + $0x348] sm:$0xff]
    %v2914 = vld [vmem:[#allocation14 + $0x350] sm:$0xff]
    %v2915 = vld [vmem:[#allocation14 + $0x358] sm:$0xff]
    %v2916 = vld [vmem:[#allocation14 + $0x360] sm:$0xff]
    %v2917 = vld [vmem:[#allocation14 + $0x368] sm:$0xff]
    %v2918 = vld [vmem:[#allocation14 + $0x370] sm:$0xff]
    %v2919 = vld [vmem:[#allocation14 + $0x378] sm:$0xff]
    %v2920 = vld [vmem:[#allocation14 + $0x380] sm:$0xff]
    %v2921 = vld [vmem:[#allocation14 + $0x388] sm:$0xff]
    %v2922 = vld [vmem:[#allocation14 + $0x390] sm:$0xff]
    %v2923 = vld [vmem:[#allocation14 + $0x398] sm:$0xff]
    %v2924 = vld [vmem:[#allocation14 + $0x3a0] sm:$0xff]
    %v2925 = vld [vmem:[#allocation14 + $0x3a8] sm:$0xff]
    %v2926 = vld [vmem:[#allocation14 + $0x3b0] sm:$0xff]
    %v2927 = vld [vmem:[#allocation14 + $0x3b8] sm:$0xff]
    %v2928 = vld [vmem:[#allocation14 + $0x3c0] sm:$0xff]
    %v2929 = vld [vmem:[#allocation14 + $0x3c8] sm:$0xff]
    %v2930 = vld [vmem:[#allocation14 + $0x3d0] sm:$0xff]
    %v2931 = vld [vmem:[#allocation14 + $0x3d8] sm:$0xff]
    %v2932 = vld [vmem:[#allocation14 + $0x3e0] sm:$0xff]
    %v2933 = vld [vmem:[#allocation14 + $0x3e8] sm:$0xff]
    %v2934 = vld [vmem:[#allocation14 + $0x3f0] sm:$0xff]
    %v2935 = vld [vmem:[#allocation14 + $0x3f8] sm:$0xff]
    %v2936 = vld [vmem:[#allocation14 + $0x400] sm:$0xff]
    %v2937 = vld [vmem:[#allocation14 + $0x408] sm:$0xff]
    %v2938 = vld [vmem:[#allocation14 + $0x410] sm:$0xff]
    %v2939 = vld [vmem:[#allocation14 + $0x418] sm:$0xff]
    %v2940 = vld [vmem:[#allocation14 + $0x420] sm:$0xff]
    %v2941 = vld [vmem:[#allocation14 + $0x428] sm:$0xff]
    %v2942 = vld [vmem:[#allocation14 + $0x430] sm:$0xff]
    %v2943 = vld [vmem:[#allocation14 + $0x438] sm:$0xff]
    %v2944 = vld [vmem:[#allocation14 + $0x440] sm:$0xff]
    %v2945 = vld [vmem:[#allocation14 + $0x448] sm:$0xff]
    %v2946 = vld [vmem:[#allocation14 + $0x450] sm:$0xff]
    %v2947 = vld [vmem:[#allocation14 + $0x458] sm:$0xff]
    %v2948 = vld [vmem:[#allocation14 + $0x460] sm:$0xff]
    %v2949 = vld [vmem:[#allocation14 + $0x468] sm:$0xff]
    %v2950 = vld [vmem:[#allocation14 + $0x470] sm:$0xff]
    %v2951 = vld [vmem:[#allocation14 + $0x478] sm:$0xff]
    %v2952 = vld [vmem:[#allocation14 + $0x480] sm:$0xff]
    %v2953 = vld [vmem:[#allocation14 + $0x488] sm:$0xff]
    %v2954 = vld [vmem:[#allocation14 + $0x490] sm:$0xff]
    %v2955 = vld [vmem:[#allocation14 + $0x498] sm:$0xff]
    %v2956 = vld [vmem:[#allocation14 + $0x4a0] sm:$0xff]
    %v2957 = vld [vmem:[#allocation14 + $0x4a8] sm:$0xff]
    %v2958 = vld [vmem:[#allocation14 + $0x4b0] sm:$0xff]
    %v2959 = vld [vmem:[#allocation14 + $0x4b8] sm:$0xff]
    %v2960 = vld [vmem:[#allocation14 + $0x4c0] sm:$0xff]
    %v2961 = vld [vmem:[#allocation14 + $0x4c8] sm:$0xff]
    %v2962 = vld [vmem:[#allocation14 + $0x4d0] sm:$0xff]
    %v2963 = vld [vmem:[#allocation14 + $0x4d8] sm:$0xff]
    %v2964 = vld [vmem:[#allocation14 + $0x4e0] sm:$0xff]
    %v2965 = vld [vmem:[#allocation14 + $0x4e8] sm:$0xff]
    %v2966 = vld [vmem:[#allocation14 + $0x4f0] sm:$0xff]
    %v2967 = vld [vmem:[#allocation14 + $0x4f8] sm:$0xff]
    %v2968 = vld [vmem:[#allocation14 + $0x500] sm:$0xff]
    %v2969 = vld [vmem:[#allocation14 + $0x508] sm:$0xff]
    %v2970 = vld [vmem:[#allocation14 + $0x510] sm:$0xff]
    %v2971 = vld [vmem:[#allocation14 + $0x518] sm:$0xff]
    %v2972 = vld [vmem:[#allocation14 + $0x520] sm:$0xff]
    %v2973 = vld [vmem:[#allocation14 + $0x528] sm:$0xff]
    %v2974 = vld [vmem:[#allocation14 + $0x530] sm:$0xff]
    %v2975 = vld [vmem:[#allocation14 + $0x538] sm:$0xff]
    %v2976 = vld [vmem:[#allocation14 + $0x540] sm:$0xff]
    %v2977 = vld [vmem:[#allocation14 + $0x548] sm:$0xff]
    %v2978 = vld [vmem:[#allocation14 + $0x550] sm:$0xff]
    %v2979 = vld [vmem:[#allocation14 + $0x558] sm:$0xff]
    %v2980 = vld [vmem:[#allocation14 + $0x560] sm:$0xff]
    %v2981 = vld [vmem:[#allocation14 + $0x568] sm:$0xff]
    %v2982 = vld [vmem:[#allocation14 + $0x570] sm:$0xff]
    %v2983 = vld [vmem:[#allocation14 + $0x578] sm:$0xff]
    %v2984 = vld [vmem:[#allocation14 + $0x580] sm:$0xff]
    %v2985 = vld [vmem:[#allocation14 + $0x588] sm:$0xff]
    %v2986 = vld [vmem:[#allocation14 + $0x590] sm:$0xff]
    %v2987 = vld [vmem:[#allocation14 + $0x598] sm:$0xff]
    %v2988 = vld [vmem:[#allocation14 + $0x5a0] sm:$0xff]
    %v2989 = vld [vmem:[#allocation14 + $0x5a8] sm:$0xff]
    %v2990 = vld [vmem:[#allocation14 + $0x5b0] sm:$0xff]
    %v2991 = vld [vmem:[#allocation14 + $0x5b8] sm:$0xff]
    %v2992 = vld [vmem:[#allocation14 + $0x5c0] sm:$0xff]
    %v2993 = vld [vmem:[#allocation14 + $0x5c8] sm:$0xff]
    %v2994 = vld [vmem:[#allocation14 + $0x5d0] sm:$0xff]
    %v2995 = vld [vmem:[#allocation14 + $0x5d8] sm:$0xff]
    %v2996 = vld [vmem:[#allocation14 + $0x5e0] sm:$0xff]
    %v2997 = vld [vmem:[#allocation14 + $0x5e8] sm:$0xff]
    %v2998 = vld [vmem:[#allocation14 + $0x5f0] sm:$0xff]
    %v2999 = vld [vmem:[#allocation14 + $0x5f8] sm:$0xff]
    %v3000 = vld [vmem:[%s17] sm:$0xf]
    %v3002 = vperm.slane %v3000, 0
    %v3003 = vperm.slane %v3000, 1
    %v3004 = vperm.slane %v3000, 2
    %v3005 = vperm.slane %v3000, 3
    %v3202 = vunpack.c.l.b16 %v2808
    %v3203 = vunpack.c.h.b16 %v2808
    %v3204 = vunpack.c.l.b16 %v2809
    %v3205 = vunpack.c.h.b16 %v2809
    %v3206 = vunpack.c.l.b16 %v2810
    %v3207 = vunpack.c.h.b16 %v2810
    %v3208 = vunpack.c.l.b16 %v2811
    %v3209 = vunpack.c.h.b16 %v2811
    %v3210 = vunpack.c.l.b16 %v2812
    %v3211 = vunpack.c.h.b16 %v2812
    %v3212 = vunpack.c.l.b16 %v2813
    %v3213 = vunpack.c.h.b16 %v2813
    %v3214 = vunpack.c.l.b16 %v2814
    %v3215 = vunpack.c.h.b16 %v2814
    %v3216 = vunpack.c.l.b16 %v2815
    %v3217 = vunpack.c.h.b16 %v2815
    %v3218 = vunpack.c.l.b16 %v2816
    %v3219 = vunpack.c.h.b16 %v2816
    %v3220 = vunpack.c.l.b16 %v2817
    %v3221 = vunpack.c.h.b16 %v2817
    %v3222 = vunpack.c.l.b16 %v2818
    %v3223 = vunpack.c.h.b16 %v2818
    %v3224 = vunpack.c.l.b16 %v2819
    %v3225 = vunpack.c.h.b16 %v2819
    %v3226 = vunpack.c.l.b16 %v2820
    %v3227 = vunpack.c.h.b16 %v2820
    %v3228 = vunpack.c.l.b16 %v2821
    %v3229 = vunpack.c.h.b16 %v2821
    %v3230 = vunpack.c.l.b16 %v2822
    %v3231 = vunpack.c.h.b16 %v2822
    %v3232 = vunpack.c.l.b16 %v2823
    %v3233 = vunpack.c.h.b16 %v2823
    %v3234 = vunpack.c.l.b16 %v2824
    %v3235 = vunpack.c.h.b16 %v2824
    %v3236 = vunpack.c.l.b16 %v2825
    %v3237 = vunpack.c.h.b16 %v2825
    %v3238 = vunpack.c.l.b16 %v2826
    %v3239 = vunpack.c.h.b16 %v2826
    %v3240 = vunpack.c.l.b16 %v2827
    %v3241 = vunpack.c.h.b16 %v2827
    %v3242 = vunpack.c.l.b16 %v2828
    %v3243 = vunpack.c.h.b16 %v2828
    %v3244 = vunpack.c.l.b16 %v2829
    %v3245 = vunpack.c.h.b16 %v2829
    %v3246 = vunpack.c.l.b16 %v2830
    %v3247 = vunpack.c.h.b16 %v2830
    %v3248 = vunpack.c.l.b16 %v2831
    %v3249 = vunpack.c.h.b16 %v2831
    %v3250 = vunpack.c.l.b16 %v2832
    %v3251 = vunpack.c.h.b16 %v2832
    %v3252 = vunpack.c.l.b16 %v2833
    %v3253 = vunpack.c.h.b16 %v2833
    %v3254 = vunpack.c.l.b16 %v2834
    %v3255 = vunpack.c.h.b16 %v2834
    %v3256 = vunpack.c.l.b16 %v2835
    %v3257 = vunpack.c.h.b16 %v2835
    %v3258 = vunpack.c.l.b16 %v2836
    %v3259 = vunpack.c.h.b16 %v2836
    %v3260 = vunpack.c.l.b16 %v2837
    %v3261 = vunpack.c.h.b16 %v2837
    %v3262 = vunpack.c.l.b16 %v2838
    %v3263 = vunpack.c.h.b16 %v2838
    %v3264 = vunpack.c.l.b16 %v2839
    %v3265 = vunpack.c.h.b16 %v2839
    %v3266 = vunpack.c.l.b16 %v2840
    %v3267 = vunpack.c.h.b16 %v2840
    %v3268 = vunpack.c.l.b16 %v2841
    %v3269 = vunpack.c.h.b16 %v2841
    %v3270 = vunpack.c.l.b16 %v2842
    %v3271 = vunpack.c.h.b16 %v2842
    %v3272 = vunpack.c.l.b16 %v2843
    %v3273 = vunpack.c.h.b16 %v2843
    %v3274 = vunpack.c.l.b16 %v2844
    %v3275 = vunpack.c.h.b16 %v2844
    %v3276 = vunpack.c.l.b16 %v2845
    %v3277 = vunpack.c.h.b16 %v2845
    %v3278 = vunpack.c.l.b16 %v2846
    %v3279 = vunpack.c.h.b16 %v2846
    %v3280 = vunpack.c.l.b16 %v2847
    %v3281 = vunpack.c.h.b16 %v2847
    %v3282 = vunpack.c.l.b16 %v2848
    %v3283 = vunpack.c.h.b16 %v2848
    %v3284 = vunpack.c.l.b16 %v2849
    %v3285 = vunpack.c.h.b16 %v2849
    %v3286 = vunpack.c.l.b16 %v2850
    %v3287 = vunpack.c.h.b16 %v2850
    %v3288 = vunpack.c.l.b16 %v2851
    %v3289 = vunpack.c.h.b16 %v2851
    %v3290 = vunpack.c.l.b16 %v2852
    %v3291 = vunpack.c.h.b16 %v2852
    %v3292 = vunpack.c.l.b16 %v2853
    %v3293 = vunpack.c.h.b16 %v2853
    %v3294 = vunpack.c.l.b16 %v2854
    %v3295 = vunpack.c.h.b16 %v2854
    %v3296 = vunpack.c.l.b16 %v2855
    %v3297 = vunpack.c.h.b16 %v2855
    %v3298 = vunpack.c.l.b16 %v2856
    %v3299 = vunpack.c.h.b16 %v2856
    %v3300 = vunpack.c.l.b16 %v2857
    %v3301 = vunpack.c.h.b16 %v2857
    %v3302 = vunpack.c.l.b16 %v2858
    %v3303 = vunpack.c.h.b16 %v2858
    %v3304 = vunpack.c.l.b16 %v2859
    %v3305 = vunpack.c.h.b16 %v2859
    %v3306 = vunpack.c.l.b16 %v2860
    %v3307 = vunpack.c.h.b16 %v2860
    %v3308 = vunpack.c.l.b16 %v2861
    %v3309 = vunpack.c.h.b16 %v2861
    %v3310 = vunpack.c.l.b16 %v2862
    %v3311 = vunpack.c.h.b16 %v2862
    %v3312 = vunpack.c.l.b16 %v2863
    %v3313 = vunpack.c.h.b16 %v2863
    %v3314 = vunpack.c.l.b16 %v2864
    %v3315 = vunpack.c.h.b16 %v2864
    %v3316 = vunpack.c.l.b16 %v2865
    %v3317 = vunpack.c.h.b16 %v2865
    %v3318 = vunpack.c.l.b16 %v2866
    %v3319 = vunpack.c.h.b16 %v2866
    %v3320 = vunpack.c.l.b16 %v2867
    %v3321 = vunpack.c.h.b16 %v2867
    %v3322 = vunpack.c.l.b16 %v2868
    %v3323 = vunpack.c.h.b16 %v2868
    %v3324 = vunpack.c.l.b16 %v2869
    %v3325 = vunpack.c.h.b16 %v2869
    %v3326 = vunpack.c.l.b16 %v2870
    %v3327 = vunpack.c.h.b16 %v2870
    %v3328 = vunpack.c.l.b16 %v2871
    %v3329 = vunpack.c.h.b16 %v2871
    %v3330 = vunpack.c.l.b16 %v2872
    %v3331 = vunpack.c.h.b16 %v2872
    %v3332 = vunpack.c.l.b16 %v2873
    %v3333 = vunpack.c.h.b16 %v2873
    %v3334 = vunpack.c.l.b16 %v2874
    %v3335 = vunpack.c.h.b16 %v2874
    %v3336 = vunpack.c.l.b16 %v2875
    %v3337 = vunpack.c.h.b16 %v2875
    %v3338 = vunpack.c.l.b16 %v2876
    %v3339 = vunpack.c.h.b16 %v2876
    %v3340 = vunpack.c.l.b16 %v2877
    %v3341 = vunpack.c.h.b16 %v2877
    %v3342 = vunpack.c.l.b16 %v2878
    %v3343 = vunpack.c.h.b16 %v2878
    %v3344 = vunpack.c.l.b16 %v2879
    %v3345 = vunpack.c.h.b16 %v2879
    %v3346 = vunpack.c.l.b16 %v2880
    %v3347 = vunpack.c.h.b16 %v2880
    %v3348 = vunpack.c.l.b16 %v2881
    %v3349 = vunpack.c.h.b16 %v2881
    %v3350 = vunpack.c.l.b16 %v2882
    %v3351 = vunpack.c.h.b16 %v2882
    %v3352 = vunpack.c.l.b16 %v2883
    %v3353 = vunpack.c.h.b16 %v2883
    %v3354 = vunpack.c.l.b16 %v2884
    %v3355 = vunpack.c.h.b16 %v2884
    %v3356 = vunpack.c.l.b16 %v2885
    %v3357 = vunpack.c.h.b16 %v2885
    %v3358 = vunpack.c.l.b16 %v2886
    %v3359 = vunpack.c.h.b16 %v2886
    %v3360 = vunpack.c.l.b16 %v2887
    %v3361 = vunpack.c.h.b16 %v2887
    %v3362 = vunpack.c.l.b16 %v2888
    %v3363 = vunpack.c.h.b16 %v2888
    %v3364 = vunpack.c.l.b16 %v2889
    %v3365 = vunpack.c.h.b16 %v2889
    %v3366 = vunpack.c.l.b16 %v2890
    %v3367 = vunpack.c.h.b16 %v2890
    %v3368 = vunpack.c.l.b16 %v2891
    %v3369 = vunpack.c.h.b16 %v2891
    %v3370 = vunpack.c.l.b16 %v2892
    %v3371 = vunpack.c.h.b16 %v2892
    %v3372 = vunpack.c.l.b16 %v2893
    %v3373 = vunpack.c.h.b16 %v2893
    %v3374 = vunpack.c.l.b16 %v2894
    %v3375 = vunpack.c.h.b16 %v2894
    %v3376 = vunpack.c.l.b16 %v2895
    %v3377 = vunpack.c.h.b16 %v2895
    %v3378 = vunpack.c.l.b16 %v2896
    %v3379 = vunpack.c.h.b16 %v2896
    %v3380 = vunpack.c.l.b16 %v2897
    %v3381 = vunpack.c.h.b16 %v2897
    %v3382 = vunpack.c.l.b16 %v2898
    %v3383 = vunpack.c.h.b16 %v2898
    %v3384 = vunpack.c.l.b16 %v2899
    %v3385 = vunpack.c.h.b16 %v2899
    %v3386 = vunpack.c.l.b16 %v2900
    %v3387 = vunpack.c.h.b16 %v2900
    %v3388 = vunpack.c.l.b16 %v2901
    %v3389 = vunpack.c.h.b16 %v2901
    %v3390 = vunpack.c.l.b16 %v2902
    %v3391 = vunpack.c.h.b16 %v2902
    %v3392 = vunpack.c.l.b16 %v2903
    %v3393 = vunpack.c.h.b16 %v2903
    %v3394 = vunpack.c.l.b16 %v2904
    %v3395 = vunpack.c.h.b16 %v2904
    %v3396 = vunpack.c.l.b16 %v2905
    %v3397 = vunpack.c.h.b16 %v2905
    %v3398 = vunpack.c.l.b16 %v2906
    %v3399 = vunpack.c.h.b16 %v2906
    %v3400 = vunpack.c.l.b16 %v2907
    %v3401 = vunpack.c.h.b16 %v2907
    %v3402 = vunpack.c.l.b16 %v2908
    %v3403 = vunpack.c.h.b16 %v2908
    %v3404 = vunpack.c.l.b16 %v2909
    %v3405 = vunpack.c.h.b16 %v2909
    %v3406 = vunpack.c.l.b16 %v2910
    %v3407 = vunpack.c.h.b16 %v2910
    %v3408 = vunpack.c.l.b16 %v2911
    %v3409 = vunpack.c.h.b16 %v2911
    %v3410 = vunpack.c.l.b16 %v2912
    %v3411 = vunpack.c.h.b16 %v2912
    %v3412 = vunpack.c.l.b16 %v2913
    %v3413 = vunpack.c.h.b16 %v2913
    %v3414 = vunpack.c.l.b16 %v2914
    %v3415 = vunpack.c.h.b16 %v2914
    %v3416 = vunpack.c.l.b16 %v2915
    %v3417 = vunpack.c.h.b16 %v2915
    %v3418 = vunpack.c.l.b16 %v2916
    %v3419 = vunpack.c.h.b16 %v2916
    %v3420 = vunpack.c.l.b16 %v2917
    %v3421 = vunpack.c.h.b16 %v2917
    %v3422 = vunpack.c.l.b16 %v2918
    %v3423 = vunpack.c.h.b16 %v2918
    %v3424 = vunpack.c.l.b16 %v2919
    %v3425 = vunpack.c.h.b16 %v2919
    %v3426 = vunpack.c.l.b16 %v2920
    %v3427 = vunpack.c.h.b16 %v2920
    %v3428 = vunpack.c.l.b16 %v2921
    %v3429 = vunpack.c.h.b16 %v2921
    %v3430 = vunpack.c.l.b16 %v2922
    %v3431 = vunpack.c.h.b16 %v2922
    %v3432 = vunpack.c.l.b16 %v2923
    %v3433 = vunpack.c.h.b16 %v2923
    %v3434 = vunpack.c.l.b16 %v2924
    %v3435 = vunpack.c.h.b16 %v2924
    %v3436 = vunpack.c.l.b16 %v2925
    %v3437 = vunpack.c.h.b16 %v2925
    %v3438 = vunpack.c.l.b16 %v2926
    %v3439 = vunpack.c.h.b16 %v2926
    %v3440 = vunpack.c.l.b16 %v2927
    %v3441 = vunpack.c.h.b16 %v2927
    %v3442 = vunpack.c.l.b16 %v2928
    %v3443 = vunpack.c.h.b16 %v2928
    %v3444 = vunpack.c.l.b16 %v2929
    %v3445 = vunpack.c.h.b16 %v2929
    %v3446 = vunpack.c.l.b16 %v2930
    %v3447 = vunpack.c.h.b16 %v2930
    %v3448 = vunpack.c.l.b16 %v2931
    %v3449 = vunpack.c.h.b16 %v2931
    %v3450 = vunpack.c.l.b16 %v2932
    %v3451 = vunpack.c.h.b16 %v2932
    %v3452 = vunpack.c.l.b16 %v2933
    %v3453 = vunpack.c.h.b16 %v2933
    %v3454 = vunpack.c.l.b16 %v2934
    %v3455 = vunpack.c.h.b16 %v2934
    %v3456 = vunpack.c.l.b16 %v2935
    %v3457 = vunpack.c.h.b16 %v2935
    %v3458 = vunpack.c.l.b16 %v2936
    %v3459 = vunpack.c.h.b16 %v2936
    %v3460 = vunpack.c.l.b16 %v2937
    %v3461 = vunpack.c.h.b16 %v2937
    %v3462 = vunpack.c.l.b16 %v2938
    %v3463 = vunpack.c.h.b16 %v2938
    %v3464 = vunpack.c.l.b16 %v2939
    %v3465 = vunpack.c.h.b16 %v2939
    %v3466 = vunpack.c.l.b16 %v2940
    %v3467 = vunpack.c.h.b16 %v2940
    %v3468 = vunpack.c.l.b16 %v2941
    %v3469 = vunpack.c.h.b16 %v2941
    %v3470 = vunpack.c.l.b16 %v2942
    %v3471 = vunpack.c.h.b16 %v2942
    %v3472 = vunpack.c.l.b16 %v2943
    %v3473 = vunpack.c.h.b16 %v2943
    %v3474 = vunpack.c.l.b16 %v2944
    %v3475 = vunpack.c.h.b16 %v2944
    %v3476 = vunpack.c.l.b16 %v2945
    %v3477 = vunpack.c.h.b16 %v2945
    %v3478 = vunpack.c.l.b16 %v2946
    %v3479 = vunpack.c.h.b16 %v2946
    %v3480 = vunpack.c.l.b16 %v2947
    %v3481 = vunpack.c.h.b16 %v2947
    %v3482 = vunpack.c.l.b16 %v2948
    %v3483 = vunpack.c.h.b16 %v2948
    %v3484 = vunpack.c.l.b16 %v2949
    %v3485 = vunpack.c.h.b16 %v2949
    %v3486 = vunpack.c.l.b16 %v2950
    %v3487 = vunpack.c.h.b16 %v2950
    %v3488 = vunpack.c.l.b16 %v2951
    %v3489 = vunpack.c.h.b16 %v2951
    %v3490 = vunpack.c.l.b16 %v2952
    %v3491 = vunpack.c.h.b16 %v2952
    %v3492 = vunpack.c.l.b16 %v2953
    %v3493 = vunpack.c.h.b16 %v2953
    %v3494 = vunpack.c.l.b16 %v2954
    %v3495 = vunpack.c.h.b16 %v2954
    %v3496 = vunpack.c.l.b16 %v2955
    %v3497 = vunpack.c.h.b16 %v2955
    %v3498 = vunpack.c.l.b16 %v2956
    %v3499 = vunpack.c.h.b16 %v2956
    %v3500 = vunpack.c.l.b16 %v2957
    %v3501 = vunpack.c.h.b16 %v2957
    %v3502 = vunpack.c.l.b16 %v2958
    %v3503 = vunpack.c.h.b16 %v2958
    %v3504 = vunpack.c.l.b16 %v2959
    %v3505 = vunpack.c.h.b16 %v2959
    %v3506 = vunpack.c.l.b16 %v2960
    %v3507 = vunpack.c.h.b16 %v2960
    %v3508 = vunpack.c.l.b16 %v2961
    %v3509 = vunpack.c.h.b16 %v2961
    %v3510 = vunpack.c.l.b16 %v2962
    %v3511 = vunpack.c.h.b16 %v2962
    %v3512 = vunpack.c.l.b16 %v2963
    %v3513 = vunpack.c.h.b16 %v2963
    %v3514 = vunpack.c.l.b16 %v2964
    %v3515 = vunpack.c.h.b16 %v2964
    %v3516 = vunpack.c.l.b16 %v2965
    %v3517 = vunpack.c.h.b16 %v2965
    %v3518 = vunpack.c.l.b16 %v2966
    %v3519 = vunpack.c.h.b16 %v2966
    %v3520 = vunpack.c.l.b16 %v2967
    %v3521 = vunpack.c.h.b16 %v2967
    %v3522 = vunpack.c.l.b16 %v2968
    %v3523 = vunpack.c.h.b16 %v2968
    %v3524 = vunpack.c.l.b16 %v2969
    %v3525 = vunpack.c.h.b16 %v2969
    %v3526 = vunpack.c.l.b16 %v2970
    %v3527 = vunpack.c.h.b16 %v2970
    %v3528 = vunpack.c.l.b16 %v2971
    %v3529 = vunpack.c.h.b16 %v2971
    %v3530 = vunpack.c.l.b16 %v2972
    %v3531 = vunpack.c.h.b16 %v2972
    %v3532 = vunpack.c.l.b16 %v2973
    %v3533 = vunpack.c.h.b16 %v2973
    %v3534 = vunpack.c.l.b16 %v2974
    %v3535 = vunpack.c.h.b16 %v2974
    %v3536 = vunpack.c.l.b16 %v2975
    %v3537 = vunpack.c.h.b16 %v2975
    %v3538 = vunpack.c.l.b16 %v2976
    %v3539 = vunpack.c.h.b16 %v2976
    %v3540 = vunpack.c.l.b16 %v2977
    %v3541 = vunpack.c.h.b16 %v2977
    %v3542 = vunpack.c.l.b16 %v2978
    %v3543 = vunpack.c.h.b16 %v2978
    %v3544 = vunpack.c.l.b16 %v2979
    %v3545 = vunpack.c.h.b16 %v2979
    %v3546 = vunpack.c.l.b16 %v2980
    %v3547 = vunpack.c.h.b16 %v2980
    %v3548 = vunpack.c.l.b16 %v2981
    %v3549 = vunpack.c.h.b16 %v2981
    %v3550 = vunpack.c.l.b16 %v2982
    %v3551 = vunpack.c.h.b16 %v2982
    %v3552 = vunpack.c.l.b16 %v2983
    %v3553 = vunpack.c.h.b16 %v2983
    %v3554 = vunpack.c.l.b16 %v2984
    %v3555 = vunpack.c.h.b16 %v2984
    %v3556 = vunpack.c.l.b16 %v2985
    %v3557 = vunpack.c.h.b16 %v2985
    %v3558 = vunpack.c.l.b16 %v2986
    %v3559 = vunpack.c.h.b16 %v2986
    %v3560 = vunpack.c.l.b16 %v2987
    %v3561 = vunpack.c.h.b16 %v2987
    %v3562 = vunpack.c.l.b16 %v2988
    %v3563 = vunpack.c.h.b16 %v2988
    %v3564 = vunpack.c.l.b16 %v2989
    %v3565 = vunpack.c.h.b16 %v2989
    %v3566 = vunpack.c.l.b16 %v2990
    %v3567 = vunpack.c.h.b16 %v2990
    %v3568 = vunpack.c.l.b16 %v2991
    %v3569 = vunpack.c.h.b16 %v2991
    %v3570 = vunpack.c.l.b16 %v2992
    %v3571 = vunpack.c.h.b16 %v2992
    %v3572 = vunpack.c.l.b16 %v2993
    %v3573 = vunpack.c.h.b16 %v2993
    %v3574 = vunpack.c.l.b16 %v2994
    %v3575 = vunpack.c.h.b16 %v2994
    %v3576 = vunpack.c.l.b16 %v2995
    %v3577 = vunpack.c.h.b16 %v2995
    %v3578 = vunpack.c.l.b16 %v2996
    %v3579 = vunpack.c.h.b16 %v2996
    %v3580 = vunpack.c.l.b16 %v2997
    %v3581 = vunpack.c.h.b16 %v2997
    %v3582 = vunpack.c.l.b16 %v2998
    %v3583 = vunpack.c.h.b16 %v2998
    %v3584 = vunpack.c.l.b16 %v2999
    %v3585 = vunpack.c.h.b16 %v2999
    %v3586 = vpack.c.b16 %v3206, %v3202
    %v3587 = vpack.c.b16 %v3207, %v3203
    %v3588 = vpack.c.b16 %v3208, %v3204
    %v3589 = vpack.c.b16 %v3209, %v3205
    %v3590 = vpack.c.b16 %v3214, %v3210
    %v3591 = vpack.c.b16 %v3215, %v3211
    %v3592 = vpack.c.b16 %v3216, %v3212
    %v3593 = vpack.c.b16 %v3217, %v3213
    %v3594 = vpack.c.b16 %v3222, %v3218
    %v3595 = vpack.c.b16 %v3223, %v3219
    %v3596 = vpack.c.b16 %v3224, %v3220
    %v3597 = vpack.c.b16 %v3225, %v3221
    %v3598 = vpack.c.b16 %v3230, %v3226
    %v3599 = vpack.c.b16 %v3231, %v3227
    %v3600 = vpack.c.b16 %v3232, %v3228
    %v3601 = vpack.c.b16 %v3233, %v3229
    %v3602 = vpack.c.b16 %v3238, %v3234
    %v3603 = vpack.c.b16 %v3239, %v3235
    %v3604 = vpack.c.b16 %v3240, %v3236
    %v3605 = vpack.c.b16 %v3241, %v3237
    %v3606 = vpack.c.b16 %v3246, %v3242
    %v3607 = vpack.c.b16 %v3247, %v3243
    %v3608 = vpack.c.b16 %v3248, %v3244
    %v3609 = vpack.c.b16 %v3249, %v3245
    %v3610 = vpack.c.b16 %v3254, %v3250
    %v3611 = vpack.c.b16 %v3255, %v3251
    %v3612 = vpack.c.b16 %v3256, %v3252
    %v3613 = vpack.c.b16 %v3257, %v3253
    %v3614 = vpack.c.b16 %v3262, %v3258
    %v3615 = vpack.c.b16 %v3263, %v3259
    %v3616 = vpack.c.b16 %v3264, %v3260
    %v3617 = vpack.c.b16 %v3265, %v3261
    %v3618 = vpack.c.b16 %v3270, %v3266
    %v3619 = vpack.c.b16 %v3271, %v3267
    %v3620 = vpack.c.b16 %v3272, %v3268
    %v3621 = vpack.c.b16 %v3273, %v3269
    %v3622 = vpack.c.b16 %v3278, %v3274
    %v3623 = vpack.c.b16 %v3279, %v3275
    %v3624 = vpack.c.b16 %v3280, %v3276
    %v3625 = vpack.c.b16 %v3281, %v3277
    %v3626 = vpack.c.b16 %v3286, %v3282
    %v3627 = vpack.c.b16 %v3287, %v3283
    %v3628 = vpack.c.b16 %v3288, %v3284
    %v3629 = vpack.c.b16 %v3289, %v3285
    %v3630 = vpack.c.b16 %v3294, %v3290
    %v3631 = vpack.c.b16 %v3295, %v3291
    %v3632 = vpack.c.b16 %v3296, %v3292
    %v3633 = vpack.c.b16 %v3297, %v3293
    %v3634 = vpack.c.b16 %v3302, %v3298
    %v3635 = vpack.c.b16 %v3303, %v3299
    %v3636 = vpack.c.b16 %v3304, %v3300
    %v3637 = vpack.c.b16 %v3305, %v3301
    %v3638 = vpack.c.b16 %v3310, %v3306
    %v3639 = vpack.c.b16 %v3311, %v3307
    %v3640 = vpack.c.b16 %v3312, %v3308
    %v3641 = vpack.c.b16 %v3313, %v3309
    %v3642 = vpack.c.b16 %v3318, %v3314
    %v3643 = vpack.c.b16 %v3319, %v3315
    %v3644 = vpack.c.b16 %v3320, %v3316
    %v3645 = vpack.c.b16 %v3321, %v3317
    %v3646 = vpack.c.b16 %v3326, %v3322
    %v3647 = vpack.c.b16 %v3327, %v3323
    %v3648 = vpack.c.b16 %v3328, %v3324
    %v3649 = vpack.c.b16 %v3329, %v3325
    %v3650 = vpack.c.b16 %v3334, %v3330
    %v3651 = vpack.c.b16 %v3335, %v3331
    %v3652 = vpack.c.b16 %v3336, %v3332
    %v3653 = vpack.c.b16 %v3337, %v3333
    %v3654 = vpack.c.b16 %v3342, %v3338
    %v3655 = vpack.c.b16 %v3343, %v3339
    %v3656 = vpack.c.b16 %v3344, %v3340
    %v3657 = vpack.c.b16 %v3345, %v3341
    %v3658 = vpack.c.b16 %v3350, %v3346
    %v3659 = vpack.c.b16 %v3351, %v3347
    %v3660 = vpack.c.b16 %v3352, %v3348
    %v3661 = vpack.c.b16 %v3353, %v3349
    %v3662 = vpack.c.b16 %v3358, %v3354
    %v3663 = vpack.c.b16 %v3359, %v3355
    %v3664 = vpack.c.b16 %v3360, %v3356
    %v3665 = vpack.c.b16 %v3361, %v3357
    %v3666 = vpack.c.b16 %v3366, %v3362
    %v3667 = vpack.c.b16 %v3367, %v3363
    %v3668 = vpack.c.b16 %v3368, %v3364
    %v3669 = vpack.c.b16 %v3369, %v3365
    %v3670 = vpack.c.b16 %v3374, %v3370
    %v3671 = vpack.c.b16 %v3375, %v3371
    %v3672 = vpack.c.b16 %v3376, %v3372
    %v3673 = vpack.c.b16 %v3377, %v3373
    %v3674 = vpack.c.b16 %v3382, %v3378
    %v3675 = vpack.c.b16 %v3383, %v3379
    %v3676 = vpack.c.b16 %v3384, %v3380
    %v3677 = vpack.c.b16 %v3385, %v3381
    %v3678 = vpack.c.b16 %v3390, %v3386
    %v3679 = vpack.c.b16 %v3391, %v3387
    %v3680 = vpack.c.b16 %v3392, %v3388
    %v3681 = vpack.c.b16 %v3393, %v3389
    %v3682 = vpack.c.b16 %v3398, %v3394
    %v3683 = vpack.c.b16 %v3399, %v3395
    %v3684 = vpack.c.b16 %v3400, %v3396
    %v3685 = vpack.c.b16 %v3401, %v3397
    %v3686 = vpack.c.b16 %v3406, %v3402
    %v3687 = vpack.c.b16 %v3407, %v3403
    %v3688 = vpack.c.b16 %v3408, %v3404
    %v3689 = vpack.c.b16 %v3409, %v3405
    %v3690 = vpack.c.b16 %v3414, %v3410
    %v3691 = vpack.c.b16 %v3415, %v3411
    %v3692 = vpack.c.b16 %v3416, %v3412
    %v3693 = vpack.c.b16 %v3417, %v3413
    %v3694 = vpack.c.b16 %v3422, %v3418
    %v3695 = vpack.c.b16 %v3423, %v3419
    %v3696 = vpack.c.b16 %v3424, %v3420
    %v3697 = vpack.c.b16 %v3425, %v3421
    %v3698 = vpack.c.b16 %v3430, %v3426
    %v3699 = vpack.c.b16 %v3431, %v3427
    %v3700 = vpack.c.b16 %v3432, %v3428
    %v3701 = vpack.c.b16 %v3433, %v3429
    %v3702 = vpack.c.b16 %v3438, %v3434
    %v3703 = vpack.c.b16 %v3439, %v3435
    %v3704 = vpack.c.b16 %v3440, %v3436
    %v3705 = vpack.c.b16 %v3441, %v3437
    %v3706 = vpack.c.b16 %v3446, %v3442
    %v3707 = vpack.c.b16 %v3447, %v3443
    %v3708 = vpack.c.b16 %v3448, %v3444
    %v3709 = vpack.c.b16 %v3449, %v3445
    %v3710 = vpack.c.b16 %v3454, %v3450
    %v3711 = vpack.c.b16 %v3455, %v3451
    %v3712 = vpack.c.b16 %v3456, %v3452
    %v3713 = vpack.c.b16 %v3457, %v3453
    %v3714 = vpack.c.b16 %v3462, %v3458
    %v3715 = vpack.c.b16 %v3463, %v3459
    %v3716 = vpack.c.b16 %v3464, %v3460
    %v3717 = vpack.c.b16 %v3465, %v3461
    %v3718 = vpack.c.b16 %v3470, %v3466
    %v3719 = vpack.c.b16 %v3471, %v3467
    %v3720 = vpack.c.b16 %v3472, %v3468
    %v3721 = vpack.c.b16 %v3473, %v3469
    %v3722 = vpack.c.b16 %v3478, %v3474
    %v3723 = vpack.c.b16 %v3479, %v3475
    %v3724 = vpack.c.b16 %v3480, %v3476
    %v3725 = vpack.c.b16 %v3481, %v3477
    %v3726 = vpack.c.b16 %v3486, %v3482
    %v3727 = vpack.c.b16 %v3487, %v3483
    %v3728 = vpack.c.b16 %v3488, %v3484
    %v3729 = vpack.c.b16 %v3489, %v3485
    %v3730 = vpack.c.b16 %v3494, %v3490
    %v3731 = vpack.c.b16 %v3495, %v3491
    %v3732 = vpack.c.b16 %v3496, %v3492
    %v3733 = vpack.c.b16 %v3497, %v3493
    %v3734 = vpack.c.b16 %v3502, %v3498
    %v3735 = vpack.c.b16 %v3503, %v3499
    %v3736 = vpack.c.b16 %v3504, %v3500
    %v3737 = vpack.c.b16 %v3505, %v3501
    %v3738 = vpack.c.b16 %v3510, %v3506
    %v3739 = vpack.c.b16 %v3511, %v3507
    %v3740 = vpack.c.b16 %v3512, %v3508
    %v3741 = vpack.c.b16 %v3513, %v3509
    %v3742 = vpack.c.b16 %v3518, %v3514
    %v3743 = vpack.c.b16 %v3519, %v3515
    %v3744 = vpack.c.b16 %v3520, %v3516
    %v3745 = vpack.c.b16 %v3521, %v3517
    %v3746 = vpack.c.b16 %v3526, %v3522
    %v3747 = vpack.c.b16 %v3527, %v3523
    %v3748 = vpack.c.b16 %v3528, %v3524
    %v3749 = vpack.c.b16 %v3529, %v3525
    %v3750 = vpack.c.b16 %v3534, %v3530
    %v3751 = vpack.c.b16 %v3535, %v3531
    %v3752 = vpack.c.b16 %v3536, %v3532
    %v3753 = vpack.c.b16 %v3537, %v3533
    %v3754 = vpack.c.b16 %v3542, %v3538
    %v3755 = vpack.c.b16 %v3543, %v3539
    %v3756 = vpack.c.b16 %v3544, %v3540
    %v3757 = vpack.c.b16 %v3545, %v3541
    %v3758 = vpack.c.b16 %v3550, %v3546
    %v3759 = vpack.c.b16 %v3551, %v3547
    %v3760 = vpack.c.b16 %v3552, %v3548
    %v3761 = vpack.c.b16 %v3553, %v3549
    %v3762 = vpack.c.b16 %v3558, %v3554
    %v3763 = vpack.c.b16 %v3559, %v3555
    %v3764 = vpack.c.b16 %v3560, %v3556
    %v3765 = vpack.c.b16 %v3561, %v3557
    %v3766 = vpack.c.b16 %v3566, %v3562
    %v3767 = vpack.c.b16 %v3567, %v3563
    %v3768 = vpack.c.b16 %v3568, %v3564
    %v3769 = vpack.c.b16 %v3569, %v3565
    %v3770 = vpack.c.b16 %v3574, %v3570
    %v3771 = vpack.c.b16 %v3575, %v3571
    %v3772 = vpack.c.b16 %v3576, %v3572
    %v3773 = vpack.c.b16 %v3577, %v3573
    %v3774 = vpack.c.b16 %v3582, %v3578
    %v3775 = vpack.c.b16 %v3583, %v3579
    %v3776 = vpack.c.b16 %v3584, %v3580
    %v3777 = vpack.c.b16 %v3585, %v3581
    %3970 = vmatpush.bf16.msra.mxu0 %v3614
    %3971 = vmatpush.bf16.msra.mxu0 %v3610
    %3972 = vmatpush.bf16.msra.mxu0 %v3606
    %3973 = vmatpush.bf16.msra.mxu0 %v3602
    %3974 = vmatpush.bf16.msra.mxu0 %v3598
    %3975 = vmatpush.bf16.msra.mxu0 %v3594
    %3976 = vmatpush.bf16.msra.mxu0 %v3590
    %3977 = vmatpush.bf16.msra.mxu0 %v3586
    %3978 = vmatmul.bf16.gmra.mxu0 %v2802
    %v3979 = vpop.f32.mrf.mxu0
    %v3980 = vadd.f32 %v3002, %v3979
    %v3981 = vpop.f32.mrf.mxu0
    %3982 = vdwg.mxu0
    %3983 = vmatpush.bf16.msra.mxu0 %v3646
    %3984 = vmatpush.bf16.msra.mxu0 %v3642
    %3985 = vmatpush.bf16.msra.mxu0 %v3638
    %3986 = vmatpush.bf16.msra.mxu0 %v3634
    %3987 = vmatpush.bf16.msra.mxu0 %v3630
    %3988 = vmatpush.bf16.msra.mxu0 %v3626
    %3989 = vmatpush.bf16.msra.mxu0 %v3622
    %3990 = vmatpush.bf16.msra.mxu0 %v3618
    %3991 = vmatmul.bf16.gmra.mxu0 %v2803
    %v3992 = vpop.f32.mrf.mxu0
    %v3993 = vadd.f32 %v3980, %v3992
    %v3994 = vpop.f32.mrf.mxu0
    %3995 = vdwg.mxu0
    %3996 = vmatpush.bf16.msra.mxu0 %v3678
    %3997 = vmatpush.bf16.msra.mxu0 %v3674
    %3998 = vmatpush.bf16.msra.mxu0 %v3670
    %3999 = vmatpush.bf16.msra.mxu0 %v3666
    %4000 = vmatpush.bf16.msra.mxu0 %v3662
    %4001 = vmatpush.bf16.msra.mxu0 %v3658
    %4002 = vmatpush.bf16.msra.mxu0 %v3654
    %4003 = vmatpush.bf16.msra.mxu0 %v3650
    %4004 = vmatmul.bf16.gmra.mxu0 %v2804
    %v4005 = vpop.f32.mrf.mxu0
    %v4006 = vadd.f32 %v3993, %v4005
    %v4007 = vpop.f32.mrf.mxu0
    %4008 = vdwg.mxu0
    %4009 = vmatpush.bf16.msra.mxu0 %v3710
    %4010 = vmatpush.bf16.msra.mxu0 %v3706
    %4011 = vmatpush.bf16.msra.mxu0 %v3702
    %4012 = vmatpush.bf16.msra.mxu0 %v3698
    %4013 = vmatpush.bf16.msra.mxu0 %v3694
    %4014 = vmatpush.bf16.msra.mxu0 %v3690
    %4015 = vmatpush.bf16.msra.mxu0 %v3686
    %4016 = vmatpush.bf16.msra.mxu0 %v3682
    %4017 = vmatmul.bf16.gmra.mxu0 %v2805
    %v4018 = vpop.f32.mrf.mxu0
    %v4019 = vadd.f32 %v4006, %v4018
    %v4020 = vpop.f32.mrf.mxu0
    %4021 = vdwg.mxu0
    %4022 = vmatpush.bf16.msra.mxu0 %v3742
    %4023 = vmatpush.bf16.msra.mxu0 %v3738
    %4024 = vmatpush.bf16.msra.mxu0 %v3734
    %4025 = vmatpush.bf16.msra.mxu0 %v3730
    %4026 = vmatpush.bf16.msra.mxu0 %v3726
    %4027 = vmatpush.bf16.msra.mxu0 %v3722
    %4028 = vmatpush.bf16.msra.mxu0 %v3718
    %4029 = vmatpush.bf16.msra.mxu0 %v3714
    %4030 = vmatmul.bf16.gmra.mxu0 %v2806
    %v4031 = vpop.f32.mrf.mxu0
    %v4032 = vadd.f32 %v4019, %v4031
    %v4033 = vpop.f32.mrf.mxu0
    %4034 = vdwg.mxu0
    %4035 = vmatpush.bf16.msra.mxu0 %v3774
    %4036 = vmatpush.bf16.msra.mxu0 %v3770
    %4037 = vmatpush.bf16.msra.mxu0 %v3766
    %4038 = vmatpush.bf16.msra.mxu0 %v3762
    %4039 = vmatpush.bf16.msra.mxu0 %v3758
    %4040 = vmatpush.bf16.msra.mxu0 %v3754
    %4041 = vmatpush.bf16.msra.mxu0 %v3750
    %4042 = vmatpush.bf16.msra.mxu0 %v3746
    %4043 = vmatmul.bf16.gmra.mxu0 %v2807
    %v4044 = vpop.f32.mrf.mxu0
    %v4045 = vadd.f32 %v4032, %v4044
    %v4046 = vpop.f32.mrf.mxu0
    %4047 = vdwg.mxu0
    %4048 = vmatpush.bf16.msra.mxu0 %v3615
    %4049 = vmatpush.bf16.msra.mxu0 %v3611
    %4050 = vmatpush.bf16.msra.mxu0 %v3607
    %4051 = vmatpush.bf16.msra.mxu0 %v3603
    %4052 = vmatpush.bf16.msra.mxu0 %v3599
    %4053 = vmatpush.bf16.msra.mxu0 %v3595
    %4054 = vmatpush.bf16.msra.mxu0 %v3591
    %4055 = vmatpush.bf16.msra.mxu0 %v3587
    %4056 = vmatmul.bf16.gmra.mxu0 %v2802
    %v4057 = vpop.f32.mrf.mxu0
    %v4058 = vadd.f32 %v3003, %v4057
    %v4059 = vpop.f32.mrf.mxu0
    %4060 = vdwg.mxu0
    %4061 = vmatpush.bf16.msra.mxu0 %v3647
    %4062 = vmatpush.bf16.msra.mxu0 %v3643
    %4063 = vmatpush.bf16.msra.mxu0 %v3639
    %4064 = vmatpush.bf16.msra.mxu0 %v3635
    %4065 = vmatpush.bf16.msra.mxu0 %v3631
    %4066 = vmatpush.bf16.msra.mxu0 %v3627
    %4067 = vmatpush.bf16.msra.mxu0 %v3623
    %4068 = vmatpush.bf16.msra.mxu0 %v3619
    %4069 = vmatmul.bf16.gmra.mxu0 %v2803
    %v4070 = vpop.f32.mrf.mxu0
    %v4071 = vadd.f32 %v4058, %v4070
    %v4072 = vpop.f32.mrf.mxu0
    %4073 = vdwg.mxu0
    %4074 = vmatpush.bf16.msra.mxu0 %v3679
    %4075 = vmatpush.bf16.msra.mxu0 %v3675
    %4076 = vmatpush.bf16.msra.mxu0 %v3671
    %4077 = vmatpush.bf16.msra.mxu0 %v3667
    %4078 = vmatpush.bf16.msra.mxu0 %v3663
    %4079 = vmatpush.bf16.msra.mxu0 %v3659
    %4080 = vmatpush.bf16.msra.mxu0 %v3655
    %4081 = vmatpush.bf16.msra.mxu0 %v3651
    %4082 = vmatmul.bf16.gmra.mxu0 %v2804
    %v4083 = vpop.f32.mrf.mxu0
    %v4084 = vadd.f32 %v4071, %v4083
    %v4085 = vpop.f32.mrf.mxu0
    %4086 = vdwg.mxu0
    %4087 = vmatpush.bf16.msra.mxu0 %v3711
    %4088 = vmatpush.bf16.msra.mxu0 %v3707
    %4089 = vmatpush.bf16.msra.mxu0 %v3703
    %4090 = vmatpush.bf16.msra.mxu0 %v3699
    %4091 = vmatpush.bf16.msra.mxu0 %v3695
    %4092 = vmatpush.bf16.msra.mxu0 %v3691
    %4093 = vmatpush.bf16.msra.mxu0 %v3687
    %4094 = vmatpush.bf16.msra.mxu0 %v3683
    %4095 = vmatmul.bf16.gmra.mxu0 %v2805
    %v4096 = vpop.f32.mrf.mxu0
    %v4097 = vadd.f32 %v4084, %v4096
    %v4098 = vpop.f32.mrf.mxu0
    %4099 = vdwg.mxu0
    %4100 = vmatpush.bf16.msra.mxu0 %v3743
    %4101 = vmatpush.bf16.msra.mxu0 %v3739
    %4102 = vmatpush.bf16.msra.mxu0 %v3735
    %4103 = vmatpush.bf16.msra.mxu0 %v3731
    %4104 = vmatpush.bf16.msra.mxu0 %v3727
    %4105 = vmatpush.bf16.msra.mxu0 %v3723
    %4106 = vmatpush.bf16.msra.mxu0 %v3719
    %4107 = vmatpush.bf16.msra.mxu0 %v3715
    %4108 = vmatmul.bf16.gmra.mxu0 %v2806
    %v4109 = vpop.f32.mrf.mxu0
    %v4110 = vadd.f32 %v4097, %v4109
    %v4111 = vpop.f32.mrf.mxu0
    %4112 = vdwg.mxu0
    %4113 = vmatpush.bf16.msra.mxu0 %v3775
    %4114 = vmatpush.bf16.msra.mxu0 %v3771
    %4115 = vmatpush.bf16.msra.mxu0 %v3767
    %4116 = vmatpush.bf16.msra.mxu0 %v3763
    %4117 = vmatpush.bf16.msra.mxu0 %v3759
    %4118 = vmatpush.bf16.msra.mxu0 %v3755
    %4119 = vmatpush.bf16.msra.mxu0 %v3751
    %4120 = vmatpush.bf16.msra.mxu0 %v3747
    %4121 = vmatmul.bf16.gmra.mxu0 %v2807
    %v4122 = vpop.f32.mrf.mxu0
    %v4123 = vadd.f32 %v4110, %v4122
    %v4124 = vpop.f32.mrf.mxu0
    %4125 = vdwg.mxu0
    %4126 = vmatpush.bf16.msra.mxu0 %v3616
    %4127 = vmatpush.bf16.msra.mxu0 %v3612
    %4128 = vmatpush.bf16.msra.mxu0 %v3608
    %4129 = vmatpush.bf16.msra.mxu0 %v3604
    %4130 = vmatpush.bf16.msra.mxu0 %v3600
    %4131 = vmatpush.bf16.msra.mxu0 %v3596
    %4132 = vmatpush.bf16.msra.mxu0 %v3592
    %4133 = vmatpush.bf16.msra.mxu0 %v3588
    %4134 = vmatmul.bf16.gmra.mxu0 %v2802
    %v4135 = vpop.f32.mrf.mxu0
    %v4136 = vadd.f32 %v3004, %v4135
    %v4137 = vpop.f32.mrf.mxu0
    %4138 = vdwg.mxu0
    %4139 = vmatpush.bf16.msra.mxu0 %v3648
    %4140 = vmatpush.bf16.msra.mxu0 %v3644
    %4141 = vmatpush.bf16.msra.mxu0 %v3640
    %4142 = vmatpush.bf16.msra.mxu0 %v3636
    %4143 = vmatpush.bf16.msra.mxu0 %v3632
    %4144 = vmatpush.bf16.msra.mxu0 %v3628
    %4145 = vmatpush.bf16.msra.mxu0 %v3624
    %4146 = vmatpush.bf16.msra.mxu0 %v3620
    %4147 = vmatmul.bf16.gmra.mxu0 %v2803
    %v4148 = vpop.f32.mrf.mxu0
    %v4149 = vadd.f32 %v4136, %v4148
    %v4150 = vpop.f32.mrf.mxu0
    %4151 = vdwg.mxu0
    %4152 = vmatpush.bf16.msra.mxu0 %v3680
    %4153 = vmatpush.bf16.msra.mxu0 %v3676
    %4154 = vmatpush.bf16.msra.mxu0 %v3672
    %4155 = vmatpush.bf16.msra.mxu0 %v3668
    %4156 = vmatpush.bf16.msra.mxu0 %v3664
    %4157 = vmatpush.bf16.msra.mxu0 %v3660
    %4158 = vmatpush.bf16.msra.mxu0 %v3656
    %4159 = vmatpush.bf16.msra.mxu0 %v3652
    %4160 = vmatmul.bf16.gmra.mxu0 %v2804
    %v4161 = vpop.f32.mrf.mxu0
    %v4162 = vadd.f32 %v4149, %v4161
    %v4163 = vpop.f32.mrf.mxu0
    %4164 = vdwg.mxu0
    %4165 = vmatpush.bf16.msra.mxu0 %v3712
    %4166 = vmatpush.bf16.msra.mxu0 %v3708
    %4167 = vmatpush.bf16.msra.mxu0 %v3704
    %4168 = vmatpush.bf16.msra.mxu0 %v3700
    %4169 = vmatpush.bf16.msra.mxu0 %v3696
    %4170 = vmatpush.bf16.msra.mxu0 %v3692
    %4171 = vmatpush.bf16.msra.mxu0 %v3688
    %4172 = vmatpush.bf16.msra.mxu0 %v3684
    %4173 = vmatmul.bf16.gmra.mxu0 %v2805
    %v4174 = vpop.f32.mrf.mxu0
    %v4175 = vadd.f32 %v4162, %v4174
    %v4176 = vpop.f32.mrf.mxu0
    %4177 = vdwg.mxu0
    %4178 = vmatpush.bf16.msra.mxu0 %v3744
    %4179 = vmatpush.bf16.msra.mxu0 %v3740
    %4180 = vmatpush.bf16.msra.mxu0 %v3736
    %4181 = vmatpush.bf16.msra.mxu0 %v3732
    %4182 = vmatpush.bf16.msra.mxu0 %v3728
    %4183 = vmatpush.bf16.msra.mxu0 %v3724
    %4184 = vmatpush.bf16.msra.mxu0 %v3720
    %4185 = vmatpush.bf16.msra.mxu0 %v3716
    %4186 = vmatmul.bf16.gmra.mxu0 %v2806
    %v4187 = vpop.f32.mrf.mxu0
    %v4188 = vadd.f32 %v4175, %v4187
    %v4189 = vpop.f32.mrf.mxu0
    %4190 = vdwg.mxu0
    %4191 = vmatpush.bf16.msra.mxu0 %v3776
    %4192 = vmatpush.bf16.msra.mxu0 %v3772
    %4193 = vmatpush.bf16.msra.mxu0 %v3768
    %4194 = vmatpush.bf16.msra.mxu0 %v3764
    %4195 = vmatpush.bf16.msra.mxu0 %v3760
    %4196 = vmatpush.bf16.msra.mxu0 %v3756
    %4197 = vmatpush.bf16.msra.mxu0 %v3752
    %4198 = vmatpush.bf16.msra.mxu0 %v3748
    %4199 = vmatmul.bf16.gmra.mxu0 %v2807
    %v4200 = vpop.f32.mrf.mxu0
    %v4201 = vadd.f32 %v4188, %v4200
    %v4202 = vpop.f32.mrf.mxu0
    %4203 = vdwg.mxu0
    %4204 = vmatpush.bf16.msra.mxu0 %v3617
    %4205 = vmatpush.bf16.msra.mxu0 %v3613
    %4206 = vmatpush.bf16.msra.mxu0 %v3609
    %4207 = vmatpush.bf16.msra.mxu0 %v3605
    %4208 = vmatpush.bf16.msra.mxu0 %v3601
    %4209 = vmatpush.bf16.msra.mxu0 %v3597
    %4210 = vmatpush.bf16.msra.mxu0 %v3593
    %4211 = vmatpush.bf16.msra.mxu0 %v3589
    %4212 = vmatmul.bf16.gmra.mxu0 %v2802
    %v4213 = vpop.f32.mrf.mxu0
    %v4214 = vadd.f32 %v3005, %v4213
    %v4215 = vpop.f32.mrf.mxu0
    %4216 = vdwg.mxu0
    %4217 = vmatpush.bf16.msra.mxu0 %v3649
    %4218 = vmatpush.bf16.msra.mxu0 %v3645
    %4219 = vmatpush.bf16.msra.mxu0 %v3641
    %4220 = vmatpush.bf16.msra.mxu0 %v3637
    %4221 = vmatpush.bf16.msra.mxu0 %v3633
    %4222 = vmatpush.bf16.msra.mxu0 %v3629
    %4223 = vmatpush.bf16.msra.mxu0 %v3625
    %4224 = vmatpush.bf16.msra.mxu0 %v3621
    %4225 = vmatmul.bf16.gmra.mxu0 %v2803
    %v4226 = vpop.f32.mrf.mxu0
    %v4227 = vadd.f32 %v4214, %v4226
    %v4228 = vpop.f32.mrf.mxu0
    %4229 = vdwg.mxu0
    %4230 = vmatpush.bf16.msra.mxu0 %v3681
    %4231 = vmatpush.bf16.msra.mxu0 %v3677
    %4232 = vmatpush.bf16.msra.mxu0 %v3673
    %4233 = vmatpush.bf16.msra.mxu0 %v3669
    %4234 = vmatpush.bf16.msra.mxu0 %v3665
    %4235 = vmatpush.bf16.msra.mxu0 %v3661
    %4236 = vmatpush.bf16.msra.mxu0 %v3657
    %4237 = vmatpush.bf16.msra.mxu0 %v3653
    %4238 = vmatmul.bf16.gmra.mxu0 %v2804
    %v4239 = vpop.f32.mrf.mxu0
    %v4240 = vadd.f32 %v4227, %v4239
    %v4241 = vpop.f32.mrf.mxu0
    %4242 = vdwg.mxu0
    %4243 = vmatpush.bf16.msra.mxu0 %v3713
    %4244 = vmatpush.bf16.msra.mxu0 %v3709
    %4245 = vmatpush.bf16.msra.mxu0 %v3705
    %4246 = vmatpush.bf16.msra.mxu0 %v3701
    %4247 = vmatpush.bf16.msra.mxu0 %v3697
    %4248 = vmatpush.bf16.msra.mxu0 %v3693
    %4249 = vmatpush.bf16.msra.mxu0 %v3689
    %4250 = vmatpush.bf16.msra.mxu0 %v3685
    %4251 = vmatmul.bf16.gmra.mxu0 %v2805
    %v4252 = vpop.f32.mrf.mxu0
    %v4253 = vadd.f32 %v4240, %v4252
    %v4254 = vpop.f32.mrf.mxu0
    %4255 = vdwg.mxu0
    %4256 = vmatpush.bf16.msra.mxu0 %v3745
    %4257 = vmatpush.bf16.msra.mxu0 %v3741
    %4258 = vmatpush.bf16.msra.mxu0 %v3737
    %4259 = vmatpush.bf16.msra.mxu0 %v3733
    %4260 = vmatpush.bf16.msra.mxu0 %v3729
    %4261 = vmatpush.bf16.msra.mxu0 %v3725
    %4262 = vmatpush.bf16.msra.mxu0 %v3721
    %4263 = vmatpush.bf16.msra.mxu0 %v3717
    %4264 = vmatmul.bf16.gmra.mxu0 %v2806
    %v4265 = vpop.f32.mrf.mxu0
    %v4266 = vadd.f32 %v4253, %v4265
    %v4267 = vpop.f32.mrf.mxu0
    %4268 = vdwg.mxu0
    %4269 = vmatpush.bf16.msra.mxu0 %v3777
    %4270 = vmatpush.bf16.msra.mxu0 %v3773
    %4271 = vmatpush.bf16.msra.mxu0 %v3769
    %4272 = vmatpush.bf16.msra.mxu0 %v3765
    %4273 = vmatpush.bf16.msra.mxu0 %v3761
    %4274 = vmatpush.bf16.msra.mxu0 %v3757
    %4275 = vmatpush.bf16.msra.mxu0 %v3753
    %4276 = vmatpush.bf16.msra.mxu0 %v3749
    %4277 = vmatmul.bf16.gmra.mxu0 %v2807
    %v4278 = vpop.f32.mrf.mxu0
    %v4279 = vadd.f32 %v4266, %v4278
    %v4280 = vpop.f32.mrf.mxu0
    %4281 = vdwg.mxu0
    %v4282 = vmax.f32 %v4045, 0.0
    %v4283 = vmax.f32 %v4123, 0.0
    %v4284 = vmax.f32 %v4201, 0.0
    %v4285 = vmax.f32 %v4279, 0.0
    %v4286 = vpack.c.bf16 %v4282, %v4282
    %v4287 = vpack.c.bf16 %v4283, %v4283
    %v4288 = vpack.c.bf16 %v4284, %v4284
    %v4289 = vpack.c.bf16 %v4285, %v4285
    %v4290 = vld [vmem:[#allocation16] sm:$0xff]
    %v4291 = vld [vmem:[#allocation16 + $0x8] sm:$0xff]
    %v4292 = vld [vmem:[#allocation16 + $0x10] sm:$0xff]
    %v4293 = vld [vmem:[#allocation16 + $0x18] sm:$0xff]
    %v4294 = vld [vmem:[#allocation16 + $0x20] sm:$0xff]
    %v4295 = vld [vmem:[#allocation16 + $0x28] sm:$0xff]
    %v4296 = vld [vmem:[#allocation16 + $0x30] sm:$0xff]
    %v4297 = vld [vmem:[#allocation16 + $0x38] sm:$0xff]
    %v4298 = vld [vmem:[#allocation16 + $0x40] sm:$0xff]
    %v4299 = vld [vmem:[#allocation16 + $0x48] sm:$0xff]
    %v4300 = vld [vmem:[#allocation16 + $0x50] sm:$0xff]
    %v4301 = vld [vmem:[#allocation16 + $0x58] sm:$0xff]
    %v4302 = vld [vmem:[#allocation16 + $0x60] sm:$0xff]
    %v4303 = vld [vmem:[#allocation16 + $0x68] sm:$0xff]
    %v4304 = vld [vmem:[#allocation16 + $0x70] sm:$0xff]
    %v4305 = vld [vmem:[#allocation16 + $0x78] sm:$0xff]
    %v4306 = vld [vmem:[#allocation16 + $0x80] sm:$0xff]
    %v4307 = vld [vmem:[#allocation16 + $0x88] sm:$0xff]
    %v4308 = vld [vmem:[#allocation16 + $0x90] sm:$0xff]
    %v4309 = vld [vmem:[#allocation16 + $0x98] sm:$0xff]
    %v4310 = vld [vmem:[#allocation16 + $0xa0] sm:$0xff]
    %v4311 = vld [vmem:[#allocation16 + $0xa8] sm:$0xff]
    %v4312 = vld [vmem:[#allocation16 + $0xb0] sm:$0xff]
    %v4313 = vld [vmem:[#allocation16 + $0xb8] sm:$0xff]
    %v4314 = vld [vmem:[#allocation16 + $0xc0] sm:$0xff]
    %v4315 = vld [vmem:[#allocation16 + $0xc8] sm:$0xff]
    %v4316 = vld [vmem:[#allocation16 + $0xd0] sm:$0xff]
    %v4317 = vld [vmem:[#allocation16 + $0xd8] sm:$0xff]
    %v4318 = vld [vmem:[#allocation16 + $0xe0] sm:$0xff]
    %v4319 = vld [vmem:[#allocation16 + $0xe8] sm:$0xff]
    %v4320 = vld [vmem:[#allocation16 + $0xf0] sm:$0xff]
    %v4321 = vld [vmem:[#allocation16 + $0xf8] sm:$0xff]
    %v4322 = vld [vmem:[#allocation16 + $0x100] sm:$0xff]
    %v4323 = vld [vmem:[#allocation16 + $0x108] sm:$0xff]
    %v4324 = vld [vmem:[#allocation16 + $0x110] sm:$0xff]
    %v4325 = vld [vmem:[#allocation16 + $0x118] sm:$0xff]
    %v4326 = vld [vmem:[#allocation16 + $0x120] sm:$0xff]
    %v4327 = vld [vmem:[#allocation16 + $0x128] sm:$0xff]
    %v4328 = vld [vmem:[#allocation16 + $0x130] sm:$0xff]
    %v4329 = vld [vmem:[#allocation16 + $0x138] sm:$0xff]
    %v4330 = vld [vmem:[#allocation16 + $0x140] sm:$0xff]
    %v4331 = vld [vmem:[#allocation16 + $0x148] sm:$0xff]
    %v4332 = vld [vmem:[#allocation16 + $0x150] sm:$0xff]
    %v4333 = vld [vmem:[#allocation16 + $0x158] sm:$0xff]
    %v4334 = vld [vmem:[#allocation16 + $0x160] sm:$0xff]
    %v4335 = vld [vmem:[#allocation16 + $0x168] sm:$0xff]
    %v4336 = vld [vmem:[#allocation16 + $0x170] sm:$0xff]
    %v4337 = vld [vmem:[#allocation16 + $0x178] sm:$0xff]
    %v4338 = vld [vmem:[#allocation16 + $0x180] sm:$0xff]
    %v4339 = vld [vmem:[#allocation16 + $0x188] sm:$0xff]
    %v4340 = vld [vmem:[#allocation16 + $0x190] sm:$0xff]
    %v4341 = vld [vmem:[#allocation16 + $0x198] sm:$0xff]
    %v4342 = vld [vmem:[#allocation16 + $0x1a0] sm:$0xff]
    %v4343 = vld [vmem:[#allocation16 + $0x1a8] sm:$0xff]
    %v4344 = vld [vmem:[#allocation16 + $0x1b0] sm:$0xff]
    %v4345 = vld [vmem:[#allocation16 + $0x1b8] sm:$0xff]
    %v4346 = vld [vmem:[#allocation16 + $0x1c0] sm:$0xff]
    %v4347 = vld [vmem:[#allocation16 + $0x1c8] sm:$0xff]
    %v4348 = vld [vmem:[#allocation16 + $0x1d0] sm:$0xff]
    %v4349 = vld [vmem:[#allocation16 + $0x1d8] sm:$0xff]
    %v4350 = vld [vmem:[#allocation16 + $0x1e0] sm:$0xff]
    %v4351 = vld [vmem:[#allocation16 + $0x1e8] sm:$0xff]
    %v4352 = vld [vmem:[#allocation16 + $0x1f0] sm:$0xff]
    %v4353 = vld [vmem:[#allocation16 + $0x1f8] sm:$0xff]
    %v4354 = vld [vmem:[#allocation16 + $0x200] sm:$0xff]
    %v4355 = vld [vmem:[#allocation16 + $0x208] sm:$0xff]
    %v4356 = vld [vmem:[#allocation16 + $0x210] sm:$0xff]
    %v4357 = vld [vmem:[#allocation16 + $0x218] sm:$0xff]
    %v4358 = vld [vmem:[#allocation16 + $0x220] sm:$0xff]
    %v4359 = vld [vmem:[#allocation16 + $0x228] sm:$0xff]
    %v4360 = vld [vmem:[#allocation16 + $0x230] sm:$0xff]
    %v4361 = vld [vmem:[#allocation16 + $0x238] sm:$0xff]
    %v4362 = vld [vmem:[#allocation16 + $0x240] sm:$0xff]
    %v4363 = vld [vmem:[#allocation16 + $0x248] sm:$0xff]
    %v4364 = vld [vmem:[#allocation16 + $0x250] sm:$0xff]
    %v4365 = vld [vmem:[#allocation16 + $0x258] sm:$0xff]
    %v4366 = vld [vmem:[#allocation16 + $0x260] sm:$0xff]
    %v4367 = vld [vmem:[#allocation16 + $0x268] sm:$0xff]
    %v4368 = vld [vmem:[#allocation16 + $0x270] sm:$0xff]
    %v4369 = vld [vmem:[#allocation16 + $0x278] sm:$0xff]
    %v4370 = vld [vmem:[#allocation16 + $0x280] sm:$0xff]
    %v4371 = vld [vmem:[#allocation16 + $0x288] sm:$0xff]
    %v4372 = vld [vmem:[#allocation16 + $0x290] sm:$0xff]
    %v4373 = vld [vmem:[#allocation16 + $0x298] sm:$0xff]
    %v4374 = vld [vmem:[#allocation16 + $0x2a0] sm:$0xff]
    %v4375 = vld [vmem:[#allocation16 + $0x2a8] sm:$0xff]
    %v4376 = vld [vmem:[#allocation16 + $0x2b0] sm:$0xff]
    %v4377 = vld [vmem:[#allocation16 + $0x2b8] sm:$0xff]
    %v4378 = vld [vmem:[#allocation16 + $0x2c0] sm:$0xff]
    %v4379 = vld [vmem:[#allocation16 + $0x2c8] sm:$0xff]
    %v4380 = vld [vmem:[#allocation16 + $0x2d0] sm:$0xff]
    %v4381 = vld [vmem:[#allocation16 + $0x2d8] sm:$0xff]
    %v4382 = vld [vmem:[#allocation16 + $0x2e0] sm:$0xff]
    %v4383 = vld [vmem:[#allocation16 + $0x2e8] sm:$0xff]
    %v4384 = vld [vmem:[#allocation16 + $0x2f0] sm:$0xff]
    %v4385 = vld [vmem:[#allocation16 + $0x2f8] sm:$0xff]
    %v4386 = vld [vmem:[#allocation16 + $0x300] sm:$0xff]
    %v4387 = vld [vmem:[#allocation16 + $0x308] sm:$0xff]
    %v4388 = vld [vmem:[#allocation16 + $0x310] sm:$0xff]
    %v4389 = vld [vmem:[#allocation16 + $0x318] sm:$0xff]
    %v4390 = vld [vmem:[#allocation16 + $0x320] sm:$0xff]
    %v4391 = vld [vmem:[#allocation16 + $0x328] sm:$0xff]
    %v4392 = vld [vmem:[#allocation16 + $0x330] sm:$0xff]
    %v4393 = vld [vmem:[#allocation16 + $0x338] sm:$0xff]
    %v4394 = vld [vmem:[#allocation16 + $0x340] sm:$0xff]
    %v4395 = vld [vmem:[#allocation16 + $0x348] sm:$0xff]
    %v4396 = vld [vmem:[#allocation16 + $0x350] sm:$0xff]
    %v4397 = vld [vmem:[#allocation16 + $0x358] sm:$0xff]
    %v4398 = vld [vmem:[#allocation16 + $0x360] sm:$0xff]
    %v4399 = vld [vmem:[#allocation16 + $0x368] sm:$0xff]
    %v4400 = vld [vmem:[#allocation16 + $0x370] sm:$0xff]
    %v4401 = vld [vmem:[#allocation16 + $0x378] sm:$0xff]
    %v4402 = vld [vmem:[#allocation16 + $0x380] sm:$0xff]
    %v4403 = vld [vmem:[#allocation16 + $0x388] sm:$0xff]
    %v4404 = vld [vmem:[#allocation16 + $0x390] sm:$0xff]
    %v4405 = vld [vmem:[#allocation16 + $0x398] sm:$0xff]
    %v4406 = vld [vmem:[#allocation16 + $0x3a0] sm:$0xff]
    %v4407 = vld [vmem:[#allocation16 + $0x3a8] sm:$0xff]
    %v4408 = vld [vmem:[#allocation16 + $0x3b0] sm:$0xff]
    %v4409 = vld [vmem:[#allocation16 + $0x3b8] sm:$0xff]
    %v4410 = vld [vmem:[#allocation16 + $0x3c0] sm:$0xff]
    %v4411 = vld [vmem:[#allocation16 + $0x3c8] sm:$0xff]
    %v4412 = vld [vmem:[#allocation16 + $0x3d0] sm:$0xff]
    %v4413 = vld [vmem:[#allocation16 + $0x3d8] sm:$0xff]
    %v4414 = vld [vmem:[#allocation16 + $0x3e0] sm:$0xff]
    %v4415 = vld [vmem:[#allocation16 + $0x3e8] sm:$0xff]
    %v4416 = vld [vmem:[#allocation16 + $0x3f0] sm:$0xff]
    %v4417 = vld [vmem:[#allocation16 + $0x3f8] sm:$0xff]
    %v4418 = vld [vmem:[%s21] sm:$0xf]
    %v4420 = vperm.slane %v4418, 0
    %v4421 = vperm.slane %v4418, 1
    %v4422 = vperm.slane %v4418, 2
    %v4423 = vperm.slane %v4418, 3
    %v4556 = vunpack.c.l.b16 %v4290
    %v4557 = vunpack.c.h.b16 %v4290
    %v4558 = vunpack.c.l.b16 %v4291
    %v4559 = vunpack.c.h.b16 %v4291
    %v4560 = vunpack.c.l.b16 %v4292
    %v4561 = vunpack.c.h.b16 %v4292
    %v4562 = vunpack.c.l.b16 %v4293
    %v4563 = vunpack.c.h.b16 %v4293
    %v4564 = vunpack.c.l.b16 %v4294
    %v4565 = vunpack.c.h.b16 %v4294
    %v4566 = vunpack.c.l.b16 %v4295
    %v4567 = vunpack.c.h.b16 %v4295
    %v4568 = vunpack.c.l.b16 %v4296
    %v4569 = vunpack.c.h.b16 %v4296
    %v4570 = vunpack.c.l.b16 %v4297
    %v4571 = vunpack.c.h.b16 %v4297
    %v4572 = vunpack.c.l.b16 %v4298
    %v4573 = vunpack.c.h.b16 %v4298
    %v4574 = vunpack.c.l.b16 %v4299
    %v4575 = vunpack.c.h.b16 %v4299
    %v4576 = vunpack.c.l.b16 %v4300
    %v4577 = vunpack.c.h.b16 %v4300
    %v4578 = vunpack.c.l.b16 %v4301
    %v4579 = vunpack.c.h.b16 %v4301
    %v4580 = vunpack.c.l.b16 %v4302
    %v4581 = vunpack.c.h.b16 %v4302
    %v4582 = vunpack.c.l.b16 %v4303
    %v4583 = vunpack.c.h.b16 %v4303
    %v4584 = vunpack.c.l.b16 %v4304
    %v4585 = vunpack.c.h.b16 %v4304
    %v4586 = vunpack.c.l.b16 %v4305
    %v4587 = vunpack.c.h.b16 %v4305
    %v4588 = vunpack.c.l.b16 %v4306
    %v4589 = vunpack.c.h.b16 %v4306
    %v4590 = vunpack.c.l.b16 %v4307
    %v4591 = vunpack.c.h.b16 %v4307
    %v4592 = vunpack.c.l.b16 %v4308
    %v4593 = vunpack.c.h.b16 %v4308
    %v4594 = vunpack.c.l.b16 %v4309
    %v4595 = vunpack.c.h.b16 %v4309
    %v4596 = vunpack.c.l.b16 %v4310
    %v4597 = vunpack.c.h.b16 %v4310
    %v4598 = vunpack.c.l.b16 %v4311
    %v4599 = vunpack.c.h.b16 %v4311
    %v4600 = vunpack.c.l.b16 %v4312
    %v4601 = vunpack.c.h.b16 %v4312
    %v4602 = vunpack.c.l.b16 %v4313
    %v4603 = vunpack.c.h.b16 %v4313
    %v4604 = vunpack.c.l.b16 %v4314
    %v4605 = vunpack.c.h.b16 %v4314
    %v4606 = vunpack.c.l.b16 %v4315
    %v4607 = vunpack.c.h.b16 %v4315
    %v4608 = vunpack.c.l.b16 %v4316
    %v4609 = vunpack.c.h.b16 %v4316
    %v4610 = vunpack.c.l.b16 %v4317
    %v4611 = vunpack.c.h.b16 %v4317
    %v4612 = vunpack.c.l.b16 %v4318
    %v4613 = vunpack.c.h.b16 %v4318
    %v4614 = vunpack.c.l.b16 %v4319
    %v4615 = vunpack.c.h.b16 %v4319
    %v4616 = vunpack.c.l.b16 %v4320
    %v4617 = vunpack.c.h.b16 %v4320
    %v4618 = vunpack.c.l.b16 %v4321
    %v4619 = vunpack.c.h.b16 %v4321
    %v4620 = vunpack.c.l.b16 %v4322
    %v4621 = vunpack.c.h.b16 %v4322
    %v4622 = vunpack.c.l.b16 %v4323
    %v4623 = vunpack.c.h.b16 %v4323
    %v4624 = vunpack.c.l.b16 %v4324
    %v4625 = vunpack.c.h.b16 %v4324
    %v4626 = vunpack.c.l.b16 %v4325
    %v4627 = vunpack.c.h.b16 %v4325
    %v4628 = vunpack.c.l.b16 %v4326
    %v4629 = vunpack.c.h.b16 %v4326
    %v4630 = vunpack.c.l.b16 %v4327
    %v4631 = vunpack.c.h.b16 %v4327
    %v4632 = vunpack.c.l.b16 %v4328
    %v4633 = vunpack.c.h.b16 %v4328
    %v4634 = vunpack.c.l.b16 %v4329
    %v4635 = vunpack.c.h.b16 %v4329
    %v4636 = vunpack.c.l.b16 %v4330
    %v4637 = vunpack.c.h.b16 %v4330
    %v4638 = vunpack.c.l.b16 %v4331
    %v4639 = vunpack.c.h.b16 %v4331
    %v4640 = vunpack.c.l.b16 %v4332
    %v4641 = vunpack.c.h.b16 %v4332
    %v4642 = vunpack.c.l.b16 %v4333
    %v4643 = vunpack.c.h.b16 %v4333
    %v4644 = vunpack.c.l.b16 %v4334
    %v4645 = vunpack.c.h.b16 %v4334
    %v4646 = vunpack.c.l.b16 %v4335
    %v4647 = vunpack.c.h.b16 %v4335
    %v4648 = vunpack.c.l.b16 %v4336
    %v4649 = vunpack.c.h.b16 %v4336
    %v4650 = vunpack.c.l.b16 %v4337
    %v4651 = vunpack.c.h.b16 %v4337
    %v4652 = vunpack.c.l.b16 %v4338
    %v4653 = vunpack.c.h.b16 %v4338
    %v4654 = vunpack.c.l.b16 %v4339
    %v4655 = vunpack.c.h.b16 %v4339
    %v4656 = vunpack.c.l.b16 %v4340
    %v4657 = vunpack.c.h.b16 %v4340
    %v4658 = vunpack.c.l.b16 %v4341
    %v4659 = vunpack.c.h.b16 %v4341
    %v4660 = vunpack.c.l.b16 %v4342
    %v4661 = vunpack.c.h.b16 %v4342
    %v4662 = vunpack.c.l.b16 %v4343
    %v4663 = vunpack.c.h.b16 %v4343
    %v4664 = vunpack.c.l.b16 %v4344
    %v4665 = vunpack.c.h.b16 %v4344
    %v4666 = vunpack.c.l.b16 %v4345
    %v4667 = vunpack.c.h.b16 %v4345
    %v4668 = vunpack.c.l.b16 %v4346
    %v4669 = vunpack.c.h.b16 %v4346
    %v4670 = vunpack.c.l.b16 %v4347
    %v4671 = vunpack.c.h.b16 %v4347
    %v4672 = vunpack.c.l.b16 %v4348
    %v4673 = vunpack.c.h.b16 %v4348
    %v4674 = vunpack.c.l.b16 %v4349
    %v4675 = vunpack.c.h.b16 %v4349
    %v4676 = vunpack.c.l.b16 %v4350
    %v4677 = vunpack.c.h.b16 %v4350
    %v4678 = vunpack.c.l.b16 %v4351
    %v4679 = vunpack.c.h.b16 %v4351
    %v4680 = vunpack.c.l.b16 %v4352
    %v4681 = vunpack.c.h.b16 %v4352
    %v4682 = vunpack.c.l.b16 %v4353
    %v4683 = vunpack.c.h.b16 %v4353
    %v4684 = vunpack.c.l.b16 %v4354
    %v4685 = vunpack.c.h.b16 %v4354
    %v4686 = vunpack.c.l.b16 %v4355
    %v4687 = vunpack.c.h.b16 %v4355
    %v4688 = vunpack.c.l.b16 %v4356
    %v4689 = vunpack.c.h.b16 %v4356
    %v4690 = vunpack.c.l.b16 %v4357
    %v4691 = vunpack.c.h.b16 %v4357
    %v4692 = vunpack.c.l.b16 %v4358
    %v4693 = vunpack.c.h.b16 %v4358
    %v4694 = vunpack.c.l.b16 %v4359
    %v4695 = vunpack.c.h.b16 %v4359
    %v4696 = vunpack.c.l.b16 %v4360
    %v4697 = vunpack.c.h.b16 %v4360
    %v4698 = vunpack.c.l.b16 %v4361
    %v4699 = vunpack.c.h.b16 %v4361
    %v4700 = vunpack.c.l.b16 %v4362
    %v4701 = vunpack.c.h.b16 %v4362
    %v4702 = vunpack.c.l.b16 %v4363
    %v4703 = vunpack.c.h.b16 %v4363
    %v4704 = vunpack.c.l.b16 %v4364
    %v4705 = vunpack.c.h.b16 %v4364
    %v4706 = vunpack.c.l.b16 %v4365
    %v4707 = vunpack.c.h.b16 %v4365
    %v4708 = vunpack.c.l.b16 %v4366
    %v4709 = vunpack.c.h.b16 %v4366
    %v4710 = vunpack.c.l.b16 %v4367
    %v4711 = vunpack.c.h.b16 %v4367
    %v4712 = vunpack.c.l.b16 %v4368
    %v4713 = vunpack.c.h.b16 %v4368
    %v4714 = vunpack.c.l.b16 %v4369
    %v4715 = vunpack.c.h.b16 %v4369
    %v4716 = vunpack.c.l.b16 %v4370
    %v4717 = vunpack.c.h.b16 %v4370
    %v4718 = vunpack.c.l.b16 %v4371
    %v4719 = vunpack.c.h.b16 %v4371
    %v4720 = vunpack.c.l.b16 %v4372
    %v4721 = vunpack.c.h.b16 %v4372
    %v4722 = vunpack.c.l.b16 %v4373
    %v4723 = vunpack.c.h.b16 %v4373
    %v4724 = vunpack.c.l.b16 %v4374
    %v4725 = vunpack.c.h.b16 %v4374
    %v4726 = vunpack.c.l.b16 %v4375
    %v4727 = vunpack.c.h.b16 %v4375
    %v4728 = vunpack.c.l.b16 %v4376
    %v4729 = vunpack.c.h.b16 %v4376
    %v4730 = vunpack.c.l.b16 %v4377
    %v4731 = vunpack.c.h.b16 %v4377
    %v4732 = vunpack.c.l.b16 %v4378
    %v4733 = vunpack.c.h.b16 %v4378
    %v4734 = vunpack.c.l.b16 %v4379
    %v4735 = vunpack.c.h.b16 %v4379
    %v4736 = vunpack.c.l.b16 %v4380
    %v4737 = vunpack.c.h.b16 %v4380
    %v4738 = vunpack.c.l.b16 %v4381
    %v4739 = vunpack.c.h.b16 %v4381
    %v4740 = vunpack.c.l.b16 %v4382
    %v4741 = vunpack.c.h.b16 %v4382
    %v4742 = vunpack.c.l.b16 %v4383
    %v4743 = vunpack.c.h.b16 %v4383
    %v4744 = vunpack.c.l.b16 %v4384
    %v4745 = vunpack.c.h.b16 %v4384
    %v4746 = vunpack.c.l.b16 %v4385
    %v4747 = vunpack.c.h.b16 %v4385
    %v4748 = vunpack.c.l.b16 %v4386
    %v4749 = vunpack.c.h.b16 %v4386
    %v4750 = vunpack.c.l.b16 %v4387
    %v4751 = vunpack.c.h.b16 %v4387
    %v4752 = vunpack.c.l.b16 %v4388
    %v4753 = vunpack.c.h.b16 %v4388
    %v4754 = vunpack.c.l.b16 %v4389
    %v4755 = vunpack.c.h.b16 %v4389
    %v4756 = vunpack.c.l.b16 %v4390
    %v4757 = vunpack.c.h.b16 %v4390
    %v4758 = vunpack.c.l.b16 %v4391
    %v4759 = vunpack.c.h.b16 %v4391
    %v4760 = vunpack.c.l.b16 %v4392
    %v4761 = vunpack.c.h.b16 %v4392
    %v4762 = vunpack.c.l.b16 %v4393
    %v4763 = vunpack.c.h.b16 %v4393
    %v4764 = vunpack.c.l.b16 %v4394
    %v4765 = vunpack.c.h.b16 %v4394
    %v4766 = vunpack.c.l.b16 %v4395
    %v4767 = vunpack.c.h.b16 %v4395
    %v4768 = vunpack.c.l.b16 %v4396
    %v4769 = vunpack.c.h.b16 %v4396
    %v4770 = vunpack.c.l.b16 %v4397
    %v4771 = vunpack.c.h.b16 %v4397
    %v4772 = vunpack.c.l.b16 %v4398
    %v4773 = vunpack.c.h.b16 %v4398
    %v4774 = vunpack.c.l.b16 %v4399
    %v4775 = vunpack.c.h.b16 %v4399
    %v4776 = vunpack.c.l.b16 %v4400
    %v4777 = vunpack.c.h.b16 %v4400
    %v4778 = vunpack.c.l.b16 %v4401
    %v4779 = vunpack.c.h.b16 %v4401
    %v4780 = vunpack.c.l.b16 %v4402
    %v4781 = vunpack.c.h.b16 %v4402
    %v4782 = vunpack.c.l.b16 %v4403
    %v4783 = vunpack.c.h.b16 %v4403
    %v4784 = vunpack.c.l.b16 %v4404
    %v4785 = vunpack.c.h.b16 %v4404
    %v4786 = vunpack.c.l.b16 %v4405
    %v4787 = vunpack.c.h.b16 %v4405
    %v4788 = vunpack.c.l.b16 %v4406
    %v4789 = vunpack.c.h.b16 %v4406
    %v4790 = vunpack.c.l.b16 %v4407
    %v4791 = vunpack.c.h.b16 %v4407
    %v4792 = vunpack.c.l.b16 %v4408
    %v4793 = vunpack.c.h.b16 %v4408
    %v4794 = vunpack.c.l.b16 %v4409
    %v4795 = vunpack.c.h.b16 %v4409
    %v4796 = vunpack.c.l.b16 %v4410
    %v4797 = vunpack.c.h.b16 %v4410
    %v4798 = vunpack.c.l.b16 %v4411
    %v4799 = vunpack.c.h.b16 %v4411
    %v4800 = vunpack.c.l.b16 %v4412
    %v4801 = vunpack.c.h.b16 %v4412
    %v4802 = vunpack.c.l.b16 %v4413
    %v4803 = vunpack.c.h.b16 %v4413
    %v4804 = vunpack.c.l.b16 %v4414
    %v4805 = vunpack.c.h.b16 %v4414
    %v4806 = vunpack.c.l.b16 %v4415
    %v4807 = vunpack.c.h.b16 %v4415
    %v4808 = vunpack.c.l.b16 %v4416
    %v4809 = vunpack.c.h.b16 %v4416
    %v4810 = vunpack.c.l.b16 %v4417
    %v4811 = vunpack.c.h.b16 %v4417
    %v4812 = vpack.c.b16 %v4560, %v4556
    %v4813 = vpack.c.b16 %v4561, %v4557
    %v4814 = vpack.c.b16 %v4562, %v4558
    %v4815 = vpack.c.b16 %v4563, %v4559
    %v4816 = vpack.c.b16 %v4568, %v4564
    %v4817 = vpack.c.b16 %v4569, %v4565
    %v4818 = vpack.c.b16 %v4570, %v4566
    %v4819 = vpack.c.b16 %v4571, %v4567
    %v4820 = vpack.c.b16 %v4576, %v4572
    %v4821 = vpack.c.b16 %v4577, %v4573
    %v4822 = vpack.c.b16 %v4578, %v4574
    %v4823 = vpack.c.b16 %v4579, %v4575
    %v4824 = vpack.c.b16 %v4584, %v4580
    %v4825 = vpack.c.b16 %v4585, %v4581
    %v4826 = vpack.c.b16 %v4586, %v4582
    %v4827 = vpack.c.b16 %v4587, %v4583
    %v4828 = vpack.c.b16 %v4592, %v4588
    %v4829 = vpack.c.b16 %v4593, %v4589
    %v4830 = vpack.c.b16 %v4594, %v4590
    %v4831 = vpack.c.b16 %v4595, %v4591
    %v4832 = vpack.c.b16 %v4600, %v4596
    %v4833 = vpack.c.b16 %v4601, %v4597
    %v4834 = vpack.c.b16 %v4602, %v4598
    %v4835 = vpack.c.b16 %v4603, %v4599
    %v4836 = vpack.c.b16 %v4608, %v4604
    %v4837 = vpack.c.b16 %v4609, %v4605
    %v4838 = vpack.c.b16 %v4610, %v4606
    %v4839 = vpack.c.b16 %v4611, %v4607
    %v4840 = vpack.c.b16 %v4616, %v4612
    %v4841 = vpack.c.b16 %v4617, %v4613
    %v4842 = vpack.c.b16 %v4618, %v4614
    %v4843 = vpack.c.b16 %v4619, %v4615
    %v4844 = vpack.c.b16 %v4624, %v4620
    %v4845 = vpack.c.b16 %v4625, %v4621
    %v4846 = vpack.c.b16 %v4626, %v4622
    %v4847 = vpack.c.b16 %v4627, %v4623
    %v4848 = vpack.c.b16 %v4632, %v4628
    %v4849 = vpack.c.b16 %v4633, %v4629
    %v4850 = vpack.c.b16 %v4634, %v4630
    %v4851 = vpack.c.b16 %v4635, %v4631
    %v4852 = vpack.c.b16 %v4640, %v4636
    %v4853 = vpack.c.b16 %v4641, %v4637
    %v4854 = vpack.c.b16 %v4642, %v4638
    %v4855 = vpack.c.b16 %v4643, %v4639
    %v4856 = vpack.c.b16 %v4648, %v4644
    %v4857 = vpack.c.b16 %v4649, %v4645
    %v4858 = vpack.c.b16 %v4650, %v4646
    %v4859 = vpack.c.b16 %v4651, %v4647
    %v4860 = vpack.c.b16 %v4656, %v4652
    %v4861 = vpack.c.b16 %v4657, %v4653
    %v4862 = vpack.c.b16 %v4658, %v4654
    %v4863 = vpack.c.b16 %v4659, %v4655
    %v4864 = vpack.c.b16 %v4664, %v4660
    %v4865 = vpack.c.b16 %v4665, %v4661
    %v4866 = vpack.c.b16 %v4666, %v4662
    %v4867 = vpack.c.b16 %v4667, %v4663
    %v4868 = vpack.c.b16 %v4672, %v4668
    %v4869 = vpack.c.b16 %v4673, %v4669
    %v4870 = vpack.c.b16 %v4674, %v4670
    %v4871 = vpack.c.b16 %v4675, %v4671
    %v4872 = vpack.c.b16 %v4680, %v4676
    %v4873 = vpack.c.b16 %v4681, %v4677
    %v4874 = vpack.c.b16 %v4682, %v4678
    %v4875 = vpack.c.b16 %v4683, %v4679
    %v4876 = vpack.c.b16 %v4688, %v4684
    %v4877 = vpack.c.b16 %v4689, %v4685
    %v4878 = vpack.c.b16 %v4690, %v4686
    %v4879 = vpack.c.b16 %v4691, %v4687
    %v4880 = vpack.c.b16 %v4696, %v4692
    %v4881 = vpack.c.b16 %v4697, %v4693
    %v4882 = vpack.c.b16 %v4698, %v4694
    %v4883 = vpack.c.b16 %v4699, %v4695
    %v4884 = vpack.c.b16 %v4704, %v4700
    %v4885 = vpack.c.b16 %v4705, %v4701
    %v4886 = vpack.c.b16 %v4706, %v4702
    %v4887 = vpack.c.b16 %v4707, %v4703
    %v4888 = vpack.c.b16 %v4712, %v4708
    %v4889 = vpack.c.b16 %v4713, %v4709
    %v4890 = vpack.c.b16 %v4714, %v4710
    %v4891 = vpack.c.b16 %v4715, %v4711
    %v4892 = vpack.c.b16 %v4720, %v4716
    %v4893 = vpack.c.b16 %v4721, %v4717
    %v4894 = vpack.c.b16 %v4722, %v4718
    %v4895 = vpack.c.b16 %v4723, %v4719
    %v4896 = vpack.c.b16 %v4728, %v4724
    %v4897 = vpack.c.b16 %v4729, %v4725
    %v4898 = vpack.c.b16 %v4730, %v4726
    %v4899 = vpack.c.b16 %v4731, %v4727
    %v4900 = vpack.c.b16 %v4736, %v4732
    %v4901 = vpack.c.b16 %v4737, %v4733
    %v4902 = vpack.c.b16 %v4738, %v4734
    %v4903 = vpack.c.b16 %v4739, %v4735
    %v4904 = vpack.c.b16 %v4744, %v4740
    %v4905 = vpack.c.b16 %v4745, %v4741
    %v4906 = vpack.c.b16 %v4746, %v4742
    %v4907 = vpack.c.b16 %v4747, %v4743
    %v4908 = vpack.c.b16 %v4752, %v4748
    %v4909 = vpack.c.b16 %v4753, %v4749
    %v4910 = vpack.c.b16 %v4754, %v4750
    %v4911 = vpack.c.b16 %v4755, %v4751
    %v4912 = vpack.c.b16 %v4760, %v4756
    %v4913 = vpack.c.b16 %v4761, %v4757
    %v4914 = vpack.c.b16 %v4762, %v4758
    %v4915 = vpack.c.b16 %v4763, %v4759
    %v4916 = vpack.c.b16 %v4768, %v4764
    %v4917 = vpack.c.b16 %v4769, %v4765
    %v4918 = vpack.c.b16 %v4770, %v4766
    %v4919 = vpack.c.b16 %v4771, %v4767
    %v4920 = vpack.c.b16 %v4776, %v4772
    %v4921 = vpack.c.b16 %v4777, %v4773
    %v4922 = vpack.c.b16 %v4778, %v4774
    %v4923 = vpack.c.b16 %v4779, %v4775
    %v4924 = vpack.c.b16 %v4784, %v4780
    %v4925 = vpack.c.b16 %v4785, %v4781
    %v4926 = vpack.c.b16 %v4786, %v4782
    %v4927 = vpack.c.b16 %v4787, %v4783
    %v4928 = vpack.c.b16 %v4792, %v4788
    %v4929 = vpack.c.b16 %v4793, %v4789
    %v4930 = vpack.c.b16 %v4794, %v4790
    %v4931 = vpack.c.b16 %v4795, %v4791
    %v4932 = vpack.c.b16 %v4800, %v4796
    %v4933 = vpack.c.b16 %v4801, %v4797
    %v4934 = vpack.c.b16 %v4802, %v4798
    %v4935 = vpack.c.b16 %v4803, %v4799
    %v4936 = vpack.c.b16 %v4808, %v4804
    %v4937 = vpack.c.b16 %v4809, %v4805
    %v4938 = vpack.c.b16 %v4810, %v4806
    %v4939 = vpack.c.b16 %v4811, %v4807
    %5068 = vmatpush.bf16.msra.mxu0 %v4840
    %5069 = vmatpush.bf16.msra.mxu0 %v4836
    %5070 = vmatpush.bf16.msra.mxu0 %v4832
    %5071 = vmatpush.bf16.msra.mxu0 %v4828
    %5072 = vmatpush.bf16.msra.mxu0 %v4824
    %5073 = vmatpush.bf16.msra.mxu0 %v4820
    %5074 = vmatpush.bf16.msra.mxu0 %v4816
    %5075 = vmatpush.bf16.msra.mxu0 %v4812
    %5076 = vmatmul.bf16.gmra.mxu0 %v4286
    %v5077 = vpop.f32.mrf.mxu0
    %v5078 = vadd.f32 %v4420, %v5077
    %v5079 = vpop.f32.mrf.mxu0
    %5080 = vdwg.mxu0
    %5081 = vmatpush.bf16.msra.mxu0 %v4872
    %5082 = vmatpush.bf16.msra.mxu0 %v4868
    %5083 = vmatpush.bf16.msra.mxu0 %v4864
    %5084 = vmatpush.bf16.msra.mxu0 %v4860
    %5085 = vmatpush.bf16.msra.mxu0 %v4856
    %5086 = vmatpush.bf16.msra.mxu0 %v4852
    %5087 = vmatpush.bf16.msra.mxu0 %v4848
    %5088 = vmatpush.bf16.msra.mxu0 %v4844
    %5089 = vmatmul.bf16.gmra.mxu0 %v4287
    %v5090 = vpop.f32.mrf.mxu0
    %v5091 = vadd.f32 %v5078, %v5090
    %v5092 = vpop.f32.mrf.mxu0
    %5093 = vdwg.mxu0
    %5094 = vmatpush.bf16.msra.mxu0 %v4904
    %5095 = vmatpush.bf16.msra.mxu0 %v4900
    %5096 = vmatpush.bf16.msra.mxu0 %v4896
    %5097 = vmatpush.bf16.msra.mxu0 %v4892
    %5098 = vmatpush.bf16.msra.mxu0 %v4888
    %5099 = vmatpush.bf16.msra.mxu0 %v4884
    %5100 = vmatpush.bf16.msra.mxu0 %v4880
    %5101 = vmatpush.bf16.msra.mxu0 %v4876
    %5102 = vmatmul.bf16.gmra.mxu0 %v4288
    %v5103 = vpop.f32.mrf.mxu0
    %v5104 = vadd.f32 %v5091, %v5103
    %v5105 = vpop.f32.mrf.mxu0
    %5106 = vdwg.mxu0
    %5107 = vmatpush.bf16.msra.mxu0 %v4936
    %5108 = vmatpush.bf16.msra.mxu0 %v4932
    %5109 = vmatpush.bf16.msra.mxu0 %v4928
    %5110 = vmatpush.bf16.msra.mxu0 %v4924
    %5111 = vmatpush.bf16.msra.mxu0 %v4920
    %5112 = vmatpush.bf16.msra.mxu0 %v4916
    %5113 = vmatpush.bf16.msra.mxu0 %v4912
    %5114 = vmatpush.bf16.msra.mxu0 %v4908
    %5115 = vmatmul.bf16.gmra.mxu0 %v4289
    %v5116 = vpop.f32.mrf.mxu0
    %v5117 = vadd.f32 %v5104, %v5116
    %v5118 = vpop.f32.mrf.mxu0
    %5119 = vdwg.mxu0
    %5120 = vmatpush.bf16.msra.mxu0 %v4841
    %5121 = vmatpush.bf16.msra.mxu0 %v4837
    %5122 = vmatpush.bf16.msra.mxu0 %v4833
    %5123 = vmatpush.bf16.msra.mxu0 %v4829
    %5124 = vmatpush.bf16.msra.mxu0 %v4825
    %5125 = vmatpush.bf16.msra.mxu0 %v4821
    %5126 = vmatpush.bf16.msra.mxu0 %v4817
    %5127 = vmatpush.bf16.msra.mxu0 %v4813
    %5128 = vmatmul.bf16.gmra.mxu0 %v4286
    %v5129 = vpop.f32.mrf.mxu0
    %v5130 = vadd.f32 %v4421, %v5129
    %v5131 = vpop.f32.mrf.mxu0
    %5132 = vdwg.mxu0
    %5133 = vmatpush.bf16.msra.mxu0 %v4873
    %5134 = vmatpush.bf16.msra.mxu0 %v4869
    %5135 = vmatpush.bf16.msra.mxu0 %v4865
    %5136 = vmatpush.bf16.msra.mxu0 %v4861
    %5137 = vmatpush.bf16.msra.mxu0 %v4857
    %5138 = vmatpush.bf16.msra.mxu0 %v4853
    %5139 = vmatpush.bf16.msra.mxu0 %v4849
    %5140 = vmatpush.bf16.msra.mxu0 %v4845
    %5141 = vmatmul.bf16.gmra.mxu0 %v4287
    %v5142 = vpop.f32.mrf.mxu0
    %v5143 = vadd.f32 %v5130, %v5142
    %v5144 = vpop.f32.mrf.mxu0
    %5145 = vdwg.mxu0
    %5146 = vmatpush.bf16.msra.mxu0 %v4905
    %5147 = vmatpush.bf16.msra.mxu0 %v4901
    %5148 = vmatpush.bf16.msra.mxu0 %v4897
    %5149 = vmatpush.bf16.msra.mxu0 %v4893
    %5150 = vmatpush.bf16.msra.mxu0 %v4889
    %5151 = vmatpush.bf16.msra.mxu0 %v4885
    %5152 = vmatpush.bf16.msra.mxu0 %v4881
    %5153 = vmatpush.bf16.msra.mxu0 %v4877
    %5154 = vmatmul.bf16.gmra.mxu0 %v4288
    %v5155 = vpop.f32.mrf.mxu0
    %v5156 = vadd.f32 %v5143, %v5155
    %v5157 = vpop.f32.mrf.mxu0
    %5158 = vdwg.mxu0
    %5159 = vmatpush.bf16.msra.mxu0 %v4937
    %5160 = vmatpush.bf16.msra.mxu0 %v4933
    %5161 = vmatpush.bf16.msra.mxu0 %v4929
    %5162 = vmatpush.bf16.msra.mxu0 %v4925
    %5163 = vmatpush.bf16.msra.mxu0 %v4921
    %5164 = vmatpush.bf16.msra.mxu0 %v4917
    %5165 = vmatpush.bf16.msra.mxu0 %v4913
    %5166 = vmatpush.bf16.msra.mxu0 %v4909
    %5167 = vmatmul.bf16.gmra.mxu0 %v4289
    %v5168 = vpop.f32.mrf.mxu0
    %v5169 = vadd.f32 %v5156, %v5168
    %v5170 = vpop.f32.mrf.mxu0
    %5171 = vdwg.mxu0
    %5172 = vmatpush.bf16.msra.mxu0 %v4842
    %5173 = vmatpush.bf16.msra.mxu0 %v4838
    %5174 = vmatpush.bf16.msra.mxu0 %v4834
    %5175 = vmatpush.bf16.msra.mxu0 %v4830
    %5176 = vmatpush.bf16.msra.mxu0 %v4826
    %5177 = vmatpush.bf16.msra.mxu0 %v4822
    %5178 = vmatpush.bf16.msra.mxu0 %v4818
    %5179 = vmatpush.bf16.msra.mxu0 %v4814
    %5180 = vmatmul.bf16.gmra.mxu0 %v4286
    %v5181 = vpop.f32.mrf.mxu0
    %v5182 = vadd.f32 %v4422, %v5181
    %v5183 = vpop.f32.mrf.mxu0
    %5184 = vdwg.mxu0
    %5185 = vmatpush.bf16.msra.mxu0 %v4874
    %5186 = vmatpush.bf16.msra.mxu0 %v4870
    %5187 = vmatpush.bf16.msra.mxu0 %v4866
    %5188 = vmatpush.bf16.msra.mxu0 %v4862
    %5189 = vmatpush.bf16.msra.mxu0 %v4858
    %5190 = vmatpush.bf16.msra.mxu0 %v4854
    %5191 = vmatpush.bf16.msra.mxu0 %v4850
    %5192 = vmatpush.bf16.msra.mxu0 %v4846
    %5193 = vmatmul.bf16.gmra.mxu0 %v4287
    %v5194 = vpop.f32.mrf.mxu0
    %v5195 = vadd.f32 %v5182, %v5194
    %v5196 = vpop.f32.mrf.mxu0
    %5197 = vdwg.mxu0
    %5198 = vmatpush.bf16.msra.mxu0 %v4906
    %5199 = vmatpush.bf16.msra.mxu0 %v4902
    %5200 = vmatpush.bf16.msra.mxu0 %v4898
    %5201 = vmatpush.bf16.msra.mxu0 %v4894
    %5202 = vmatpush.bf16.msra.mxu0 %v4890
    %5203 = vmatpush.bf16.msra.mxu0 %v4886
    %5204 = vmatpush.bf16.msra.mxu0 %v4882
    %5205 = vmatpush.bf16.msra.mxu0 %v4878
    %5206 = vmatmul.bf16.gmra.mxu0 %v4288
    %v5207 = vpop.f32.mrf.mxu0
    %v5208 = vadd.f32 %v5195, %v5207
    %v5209 = vpop.f32.mrf.mxu0
    %5210 = vdwg.mxu0
    %5211 = vmatpush.bf16.msra.mxu0 %v4938
    %5212 = vmatpush.bf16.msra.mxu0 %v4934
    %5213 = vmatpush.bf16.msra.mxu0 %v4930
    %5214 = vmatpush.bf16.msra.mxu0 %v4926
    %5215 = vmatpush.bf16.msra.mxu0 %v4922
    %5216 = vmatpush.bf16.msra.mxu0 %v4918
    %5217 = vmatpush.bf16.msra.mxu0 %v4914
    %5218 = vmatpush.bf16.msra.mxu0 %v4910
    %5219 = vmatmul.bf16.gmra.mxu0 %v4289
    %v5220 = vpop.f32.mrf.mxu0
    %v5221 = vadd.f32 %v5208, %v5220
    %v5222 = vpop.f32.mrf.mxu0
    %5223 = vdwg.mxu0
    %5224 = vmatpush.bf16.msra.mxu0 %v4843
    %5225 = vmatpush.bf16.msra.mxu0 %v4839
    %5226 = vmatpush.bf16.msra.mxu0 %v4835
    %5227 = vmatpush.bf16.msra.mxu0 %v4831
    %5228 = vmatpush.bf16.msra.mxu0 %v4827
    %5229 = vmatpush.bf16.msra.mxu0 %v4823
    %5230 = vmatpush.bf16.msra.mxu0 %v4819
    %5231 = vmatpush.bf16.msra.mxu0 %v4815
    %5232 = vmatmul.bf16.gmra.mxu0 %v4286
    %v5233 = vpop.f32.mrf.mxu0
    %v5234 = vadd.f32 %v4423, %v5233
    %v5235 = vpop.f32.mrf.mxu0
    %5236 = vdwg.mxu0
    %5237 = vmatpush.bf16.msra.mxu0 %v4875
    %5238 = vmatpush.bf16.msra.mxu0 %v4871
    %5239 = vmatpush.bf16.msra.mxu0 %v4867
    %5240 = vmatpush.bf16.msra.mxu0 %v4863
    %5241 = vmatpush.bf16.msra.mxu0 %v4859
    %5242 = vmatpush.bf16.msra.mxu0 %v4855
    %5243 = vmatpush.bf16.msra.mxu0 %v4851
    %5244 = vmatpush.bf16.msra.mxu0 %v4847
    %5245 = vmatmul.bf16.gmra.mxu0 %v4287
    %v5246 = vpop.f32.mrf.mxu0
    %v5247 = vadd.f32 %v5234, %v5246
    %v5248 = vpop.f32.mrf.mxu0
    %5249 = vdwg.mxu0
    %5250 = vmatpush.bf16.msra.mxu0 %v4907
    %5251 = vmatpush.bf16.msra.mxu0 %v4903
    %5252 = vmatpush.bf16.msra.mxu0 %v4899
    %5253 = vmatpush.bf16.msra.mxu0 %v4895
    %5254 = vmatpush.bf16.msra.mxu0 %v4891
    %5255 = vmatpush.bf16.msra.mxu0 %v4887
    %5256 = vmatpush.bf16.msra.mxu0 %v4883
    %5257 = vmatpush.bf16.msra.mxu0 %v4879
    %5258 = vmatmul.bf16.gmra.mxu0 %v4288
    %v5259 = vpop.f32.mrf.mxu0
    %v5260 = vadd.f32 %v5247, %v5259
    %v5261 = vpop.f32.mrf.mxu0
    %5262 = vdwg.mxu0
    %5263 = vmatpush.bf16.msra.mxu0 %v4939
    %5264 = vmatpush.bf16.msra.mxu0 %v4935
    %5265 = vmatpush.bf16.msra.mxu0 %v4931
    %5266 = vmatpush.bf16.msra.mxu0 %v4927
    %5267 = vmatpush.bf16.msra.mxu0 %v4923
    %5268 = vmatpush.bf16.msra.mxu0 %v4919
    %5269 = vmatpush.bf16.msra.mxu0 %v4915
    %5270 = vmatpush.bf16.msra.mxu0 %v4911
    %5271 = vmatmul.bf16.gmra.mxu0 %v4289
    %v5272 = vpop.f32.mrf.mxu0
    %v5273 = vadd.f32 %v5260, %v5272
    %v5274 = vpop.f32.mrf.mxu0
    %5275 = vdwg.mxu0
    %v5276 = vmax.f32 %v5117, 0.0
    %v5277 = vmax.f32 %v5169, 0.0
    %v5278 = vmax.f32 %v5221, 0.0
    %v5279 = vmax.f32 %v5273, 0.0
    %v5280 = vld [vmem:[#allocation17] sm:$0xff]
    %v5281 = vld [vmem:[#allocation17 + $0x8] sm:$0xff]
    %v5282 = vld [vmem:[#allocation17 + $0x10] sm:$0xff]
    %v5283 = vld [vmem:[#allocation17 + $0x18] sm:$0xff]
    %v5284 = vld [vmem:[#allocation17 + $0x20] sm:$0xff]
    %v5285 = vld [vmem:[#allocation17 + $0x28] sm:$0xff]
    %v5286 = vld [vmem:[#allocation17 + $0x30] sm:$0xff]
    %v5287 = vld [vmem:[#allocation17 + $0x38] sm:$0xff]
    %v5288 = vld [vmem:[#allocation17 + $0x40] sm:$0xff]
    %v5289 = vld [vmem:[#allocation17 + $0x48] sm:$0xff]
    %v5290 = vld [vmem:[#allocation17 + $0x50] sm:$0xff]
    %v5291 = vld [vmem:[#allocation17 + $0x58] sm:$0xff]
    %v5292 = vld [vmem:[#allocation17 + $0x60] sm:$0xff]
    %v5293 = vld [vmem:[#allocation17 + $0x68] sm:$0xff]
    %v5294 = vld [vmem:[#allocation17 + $0x70] sm:$0xff]
    %v5295 = vld [vmem:[#allocation17 + $0x78] sm:$0xff]
    %v5296 = vld [vmem:[#allocation17 + $0x80] sm:$0xff]
    %v5297 = vld [vmem:[#allocation17 + $0x88] sm:$0xff]
    %v5298 = vld [vmem:[#allocation17 + $0x90] sm:$0xff]
    %v5299 = vld [vmem:[#allocation17 + $0x98] sm:$0xff]
    %v5300 = vld [vmem:[#allocation17 + $0xa0] sm:$0xff]
    %v5301 = vld [vmem:[#allocation17 + $0xa8] sm:$0xff]
    %v5302 = vld [vmem:[#allocation17 + $0xb0] sm:$0xff]
    %v5303 = vld [vmem:[#allocation17 + $0xb8] sm:$0xff]
    %v5304 = vld [vmem:[#allocation17 + $0xc0] sm:$0xff]
    %v5305 = vld [vmem:[#allocation17 + $0xc8] sm:$0xff]
    %v5306 = vld [vmem:[#allocation17 + $0xd0] sm:$0xff]
    %v5307 = vld [vmem:[#allocation17 + $0xd8] sm:$0xff]
    %v5308 = vld [vmem:[#allocation17 + $0xe0] sm:$0xff]
    %v5309 = vld [vmem:[#allocation17 + $0xe8] sm:$0xff]
    %v5310 = vld [vmem:[#allocation17 + $0xf0] sm:$0xff]
    %v5311 = vld [vmem:[#allocation17 + $0xf8] sm:$0xff]
    %v5312 = vld [vmem:[#allocation17 + $0x100] sm:$0xff]
    %v5313 = vld [vmem:[#allocation17 + $0x108] sm:$0xff]
    %v5314 = vld [vmem:[#allocation17 + $0x110] sm:$0xff]
    %v5315 = vld [vmem:[#allocation17 + $0x118] sm:$0xff]
    %v5316 = vld [vmem:[#allocation17 + $0x120] sm:$0xff]
    %v5317 = vld [vmem:[#allocation17 + $0x128] sm:$0xff]
    %v5318 = vld [vmem:[#allocation17 + $0x130] sm:$0xff]
    %v5319 = vld [vmem:[#allocation17 + $0x138] sm:$0xff]
    %v5320 = vld [vmem:[#allocation17 + $0x140] sm:$0xff]
    %v5321 = vld [vmem:[#allocation17 + $0x148] sm:$0xff]
    %v5322 = vld [vmem:[#allocation17 + $0x150] sm:$0xff]
    %v5323 = vld [vmem:[#allocation17 + $0x158] sm:$0xff]
    %v5324 = vld [vmem:[#allocation17 + $0x160] sm:$0xff]
    %v5325 = vld [vmem:[#allocation17 + $0x168] sm:$0xff]
    %v5326 = vld [vmem:[#allocation17 + $0x170] sm:$0xff]
    %v5327 = vld [vmem:[#allocation17 + $0x178] sm:$0xff]
    %v5328 = vld [vmem:[#allocation17 + $0x180] sm:$0xff]
    %v5329 = vld [vmem:[#allocation17 + $0x188] sm:$0xff]
    %v5330 = vld [vmem:[#allocation17 + $0x190] sm:$0xff]
    %v5331 = vld [vmem:[#allocation17 + $0x198] sm:$0xff]
    %v5332 = vld [vmem:[#allocation17 + $0x1a0] sm:$0xff]
    %v5333 = vld [vmem:[#allocation17 + $0x1a8] sm:$0xff]
    %v5334 = vld [vmem:[#allocation17 + $0x1b0] sm:$0xff]
    %v5335 = vld [vmem:[#allocation17 + $0x1b8] sm:$0xff]
    %v5336 = vld [vmem:[#allocation17 + $0x1c0] sm:$0xff]
    %v5337 = vld [vmem:[#allocation17 + $0x1c8] sm:$0xff]
    %v5338 = vld [vmem:[#allocation17 + $0x1d0] sm:$0xff]
    %v5339 = vld [vmem:[#allocation17 + $0x1d8] sm:$0xff]
    %v5340 = vld [vmem:[#allocation17 + $0x1e0] sm:$0xff]
    %v5341 = vld [vmem:[#allocation17 + $0x1e8] sm:$0xff]
    %v5342 = vld [vmem:[#allocation17 + $0x1f0] sm:$0xff]
    %v5343 = vld [vmem:[#allocation17 + $0x1f8] sm:$0xff]
    %v5344 = vld [vmem:[#allocation17 + $0x200] sm:$0xff]
    %v5345 = vld [vmem:[#allocation17 + $0x208] sm:$0xff]
    %v5346 = vld [vmem:[#allocation17 + $0x210] sm:$0xff]
    %v5347 = vld [vmem:[#allocation17 + $0x218] sm:$0xff]
    %v5348 = vld [vmem:[#allocation17 + $0x220] sm:$0xff]
    %v5349 = vld [vmem:[#allocation17 + $0x228] sm:$0xff]
    %v5350 = vld [vmem:[#allocation17 + $0x230] sm:$0xff]
    %v5351 = vld [vmem:[#allocation17 + $0x238] sm:$0xff]
    %v5352 = vld [vmem:[#allocation17 + $0x240] sm:$0xff]
    %v5353 = vld [vmem:[#allocation17 + $0x248] sm:$0xff]
    %v5354 = vld [vmem:[#allocation17 + $0x250] sm:$0xff]
    %v5355 = vld [vmem:[#allocation17 + $0x258] sm:$0xff]
    %v5356 = vld [vmem:[#allocation17 + $0x260] sm:$0xff]
    %v5357 = vld [vmem:[#allocation17 + $0x268] sm:$0xff]
    %v5358 = vld [vmem:[#allocation17 + $0x270] sm:$0xff]
    %v5359 = vld [vmem:[#allocation17 + $0x278] sm:$0xff]
    %v5360 = vld [vmem:[#allocation17 + $0x280] sm:$0xff]
    %v5361 = vld [vmem:[#allocation17 + $0x288] sm:$0xff]
    %v5362 = vld [vmem:[#allocation17 + $0x290] sm:$0xff]
    %v5363 = vld [vmem:[#allocation17 + $0x298] sm:$0xff]
    %v5364 = vld [vmem:[#allocation17 + $0x2a0] sm:$0xff]
    %v5365 = vld [vmem:[#allocation17 + $0x2a8] sm:$0xff]
    %v5366 = vld [vmem:[#allocation17 + $0x2b0] sm:$0xff]
    %v5367 = vld [vmem:[#allocation17 + $0x2b8] sm:$0xff]
    %v5368 = vld [vmem:[#allocation17 + $0x2c0] sm:$0xff]
    %v5369 = vld [vmem:[#allocation17 + $0x2c8] sm:$0xff]
    %v5370 = vld [vmem:[#allocation17 + $0x2d0] sm:$0xff]
    %v5371 = vld [vmem:[#allocation17 + $0x2d8] sm:$0xff]
    %v5372 = vld [vmem:[#allocation17 + $0x2e0] sm:$0xff]
    %v5373 = vld [vmem:[#allocation17 + $0x2e8] sm:$0xff]
    %v5374 = vld [vmem:[#allocation17 + $0x2f0] sm:$0xff]
    %v5375 = vld [vmem:[#allocation17 + $0x2f8] sm:$0xff]
    %v5376 = vld [vmem:[#allocation17 + $0x300] sm:$0xff]
    %v5377 = vld [vmem:[#allocation17 + $0x308] sm:$0xff]
    %v5378 = vld [vmem:[#allocation17 + $0x310] sm:$0xff]
    %v5379 = vld [vmem:[#allocation17 + $0x318] sm:$0xff]
    %v5380 = vld [vmem:[#allocation17 + $0x320] sm:$0xff]
    %v5381 = vld [vmem:[#allocation17 + $0x328] sm:$0xff]
    %v5382 = vld [vmem:[#allocation17 + $0x330] sm:$0xff]
    %v5383 = vld [vmem:[#allocation17 + $0x338] sm:$0xff]
    %v5384 = vld [vmem:[#allocation17 + $0x340] sm:$0xff]
    %v5385 = vld [vmem:[#allocation17 + $0x348] sm:$0xff]
    %v5386 = vld [vmem:[#allocation17 + $0x350] sm:$0xff]
    %v5387 = vld [vmem:[#allocation17 + $0x358] sm:$0xff]
    %v5388 = vld [vmem:[#allocation17 + $0x360] sm:$0xff]
    %v5389 = vld [vmem:[#allocation17 + $0x368] sm:$0xff]
    %v5390 = vld [vmem:[#allocation17 + $0x370] sm:$0xff]
    %v5391 = vld [vmem:[#allocation17 + $0x378] sm:$0xff]
    %v5392 = vld [vmem:[#allocation17 + $0x380] sm:$0xff]
    %v5393 = vld [vmem:[#allocation17 + $0x388] sm:$0xff]
    %v5394 = vld [vmem:[#allocation17 + $0x390] sm:$0xff]
    %v5395 = vld [vmem:[#allocation17 + $0x398] sm:$0xff]
    %v5396 = vld [vmem:[#allocation17 + $0x3a0] sm:$0xff]
    %v5397 = vld [vmem:[#allocation17 + $0x3a8] sm:$0xff]
    %v5398 = vld [vmem:[#allocation17 + $0x3b0] sm:$0xff]
    %v5399 = vld [vmem:[#allocation17 + $0x3b8] sm:$0xff]
    %v5400 = vld [vmem:[#allocation17 + $0x3c0] sm:$0xff]
    %v5401 = vld [vmem:[#allocation17 + $0x3c8] sm:$0xff]
    %v5402 = vld [vmem:[#allocation17 + $0x3d0] sm:$0xff]
    %v5403 = vld [vmem:[#allocation17 + $0x3d8] sm:$0xff]
    %v5404 = vld [vmem:[#allocation17 + $0x3e0] sm:$0xff]
    %v5405 = vld [vmem:[#allocation17 + $0x3e8] sm:$0xff]
    %v5406 = vld [vmem:[#allocation17 + $0x3f0] sm:$0xff]
    %v5407 = vld [vmem:[#allocation17 + $0x3f8] sm:$0xff]
    %v5408 = vld [vmem:[#allocation17 + $0x400] sm:$0xff]
    %v5409 = vld [vmem:[#allocation17 + $0x408] sm:$0xff]
    %v5410 = vld [vmem:[#allocation17 + $0x410] sm:$0xff]
    %v5411 = vld [vmem:[#allocation17 + $0x418] sm:$0xff]
    %v5412 = vld [vmem:[#allocation17 + $0x420] sm:$0xff]
    %v5413 = vld [vmem:[#allocation17 + $0x428] sm:$0xff]
    %v5414 = vld [vmem:[#allocation17 + $0x430] sm:$0xff]
    %v5415 = vld [vmem:[#allocation17 + $0x438] sm:$0xff]
    %v5416 = vld [vmem:[#allocation17 + $0x440] sm:$0xff]
    %v5417 = vld [vmem:[#allocation17 + $0x448] sm:$0xff]
    %v5418 = vld [vmem:[#allocation17 + $0x450] sm:$0xff]
    %v5419 = vld [vmem:[#allocation17 + $0x458] sm:$0xff]
    %v5420 = vld [vmem:[#allocation17 + $0x460] sm:$0xff]
    %v5421 = vld [vmem:[#allocation17 + $0x468] sm:$0xff]
    %v5422 = vld [vmem:[#allocation17 + $0x470] sm:$0xff]
    %v5423 = vld [vmem:[#allocation17 + $0x478] sm:$0xff]
    %v5424 = vld [vmem:[#allocation17 + $0x480] sm:$0xff]
    %v5425 = vld [vmem:[#allocation17 + $0x488] sm:$0xff]
    %v5426 = vld [vmem:[#allocation17 + $0x490] sm:$0xff]
    %v5427 = vld [vmem:[#allocation17 + $0x498] sm:$0xff]
    %v5428 = vld [vmem:[#allocation17 + $0x4a0] sm:$0xff]
    %v5429 = vld [vmem:[#allocation17 + $0x4a8] sm:$0xff]
    %v5430 = vld [vmem:[#allocation17 + $0x4b0] sm:$0xff]
    %v5431 = vld [vmem:[#allocation17 + $0x4b8] sm:$0xff]
    %v5432 = vld [vmem:[#allocation17 + $0x4c0] sm:$0xff]
    %v5433 = vld [vmem:[#allocation17 + $0x4c8] sm:$0xff]
    %v5434 = vld [vmem:[#allocation17 + $0x4d0] sm:$0xff]
    %v5435 = vld [vmem:[#allocation17 + $0x4d8] sm:$0xff]
    %v5436 = vld [vmem:[#allocation17 + $0x4e0] sm:$0xff]
    %v5437 = vld [vmem:[#allocation17 + $0x4e8] sm:$0xff]
    %v5438 = vld [vmem:[#allocation17 + $0x4f0] sm:$0xff]
    %v5439 = vld [vmem:[#allocation17 + $0x4f8] sm:$0xff]
    %v5440 = vld [vmem:[#allocation17 + $0x500] sm:$0xff]
    %v5441 = vld [vmem:[#allocation17 + $0x508] sm:$0xff]
    %v5442 = vld [vmem:[#allocation17 + $0x510] sm:$0xff]
    %v5443 = vld [vmem:[#allocation17 + $0x518] sm:$0xff]
    %v5444 = vld [vmem:[#allocation17 + $0x520] sm:$0xff]
    %v5445 = vld [vmem:[#allocation17 + $0x528] sm:$0xff]
    %v5446 = vld [vmem:[#allocation17 + $0x530] sm:$0xff]
    %v5447 = vld [vmem:[#allocation17 + $0x538] sm:$0xff]
    %v5448 = vld [vmem:[#allocation17 + $0x540] sm:$0xff]
    %v5449 = vld [vmem:[#allocation17 + $0x548] sm:$0xff]
    %v5450 = vld [vmem:[#allocation17 + $0x550] sm:$0xff]
    %v5451 = vld [vmem:[#allocation17 + $0x558] sm:$0xff]
    %v5452 = vld [vmem:[#allocation17 + $0x560] sm:$0xff]
    %v5453 = vld [vmem:[#allocation17 + $0x568] sm:$0xff]
    %v5454 = vld [vmem:[#allocation17 + $0x570] sm:$0xff]
    %v5455 = vld [vmem:[#allocation17 + $0x578] sm:$0xff]
    %v5456 = vld [vmem:[#allocation17 + $0x580] sm:$0xff]
    %v5457 = vld [vmem:[#allocation17 + $0x588] sm:$0xff]
    %v5458 = vld [vmem:[#allocation17 + $0x590] sm:$0xff]
    %v5459 = vld [vmem:[#allocation17 + $0x598] sm:$0xff]
    %v5460 = vld [vmem:[#allocation17 + $0x5a0] sm:$0xff]
    %v5461 = vld [vmem:[#allocation17 + $0x5a8] sm:$0xff]
    %v5462 = vld [vmem:[#allocation17 + $0x5b0] sm:$0xff]
    %v5463 = vld [vmem:[#allocation17 + $0x5b8] sm:$0xff]
    %v5464 = vld [vmem:[#allocation17 + $0x5c0] sm:$0xff]
    %v5465 = vld [vmem:[#allocation17 + $0x5c8] sm:$0xff]
    %v5466 = vld [vmem:[#allocation17 + $0x5d0] sm:$0xff]
    %v5467 = vld [vmem:[#allocation17 + $0x5d8] sm:$0xff]
    %v5468 = vld [vmem:[#allocation17 + $0x5e0] sm:$0xff]
    %v5469 = vld [vmem:[#allocation17 + $0x5e8] sm:$0xff]
    %v5470 = vld [vmem:[#allocation17 + $0x5f0] sm:$0xff]
    %v5471 = vld [vmem:[#allocation17 + $0x5f8] sm:$0xff]
    %v5472 = vld [vmem:[#allocation19] sm:$0xf]
    %v5474 = vperm.slane %v5472, 0
    %v5475 = vperm.slane %v5472, 1
    %v5476 = vperm.slane %v5472, 2
    %v5477 = vperm.slane %v5472, 3
    %v5674 = vunpack.c.l.b16 %v5280
    %v5675 = vunpack.c.h.b16 %v5280
    %v5676 = vunpack.c.l.b16 %v5281
    %v5677 = vunpack.c.h.b16 %v5281
    %v5678 = vunpack.c.l.b16 %v5282
    %v5679 = vunpack.c.h.b16 %v5282
    %v5680 = vunpack.c.l.b16 %v5283
    %v5681 = vunpack.c.h.b16 %v5283
    %v5682 = vunpack.c.l.b16 %v5284
    %v5683 = vunpack.c.h.b16 %v5284
    %v5684 = vunpack.c.l.b16 %v5285
    %v5685 = vunpack.c.h.b16 %v5285
    %v5686 = vunpack.c.l.b16 %v5286
    %v5687 = vunpack.c.h.b16 %v5286
    %v5688 = vunpack.c.l.b16 %v5287
    %v5689 = vunpack.c.h.b16 %v5287
    %v5690 = vunpack.c.l.b16 %v5288
    %v5691 = vunpack.c.h.b16 %v5288
    %v5692 = vunpack.c.l.b16 %v5289
    %v5693 = vunpack.c.h.b16 %v5289
    %v5694 = vunpack.c.l.b16 %v5290
    %v5695 = vunpack.c.h.b16 %v5290
    %v5696 = vunpack.c.l.b16 %v5291
    %v5697 = vunpack.c.h.b16 %v5291
    %v5698 = vunpack.c.l.b16 %v5292
    %v5699 = vunpack.c.h.b16 %v5292
    %v5700 = vunpack.c.l.b16 %v5293
    %v5701 = vunpack.c.h.b16 %v5293
    %v5702 = vunpack.c.l.b16 %v5294
    %v5703 = vunpack.c.h.b16 %v5294
    %v5704 = vunpack.c.l.b16 %v5295
    %v5705 = vunpack.c.h.b16 %v5295
    %v5706 = vunpack.c.l.b16 %v5296
    %v5707 = vunpack.c.h.b16 %v5296
    %v5708 = vunpack.c.l.b16 %v5297
    %v5709 = vunpack.c.h.b16 %v5297
    %v5710 = vunpack.c.l.b16 %v5298
    %v5711 = vunpack.c.h.b16 %v5298
    %v5712 = vunpack.c.l.b16 %v5299
    %v5713 = vunpack.c.h.b16 %v5299
    %v5714 = vunpack.c.l.b16 %v5300
    %v5715 = vunpack.c.h.b16 %v5300
    %v5716 = vunpack.c.l.b16 %v5301
    %v5717 = vunpack.c.h.b16 %v5301
    %v5718 = vunpack.c.l.b16 %v5302
    %v5719 = vunpack.c.h.b16 %v5302
    %v5720 = vunpack.c.l.b16 %v5303
    %v5721 = vunpack.c.h.b16 %v5303
    %v5722 = vunpack.c.l.b16 %v5304
    %v5723 = vunpack.c.h.b16 %v5304
    %v5724 = vunpack.c.l.b16 %v5305
    %v5725 = vunpack.c.h.b16 %v5305
    %v5726 = vunpack.c.l.b16 %v5306
    %v5727 = vunpack.c.h.b16 %v5306
    %v5728 = vunpack.c.l.b16 %v5307
    %v5729 = vunpack.c.h.b16 %v5307
    %v5730 = vunpack.c.l.b16 %v5308
    %v5731 = vunpack.c.h.b16 %v5308
    %v5732 = vunpack.c.l.b16 %v5309
    %v5733 = vunpack.c.h.b16 %v5309
    %v5734 = vunpack.c.l.b16 %v5310
    %v5735 = vunpack.c.h.b16 %v5310
    %v5736 = vunpack.c.l.b16 %v5311
    %v5737 = vunpack.c.h.b16 %v5311
    %v5738 = vunpack.c.l.b16 %v5312
    %v5739 = vunpack.c.h.b16 %v5312
    %v5740 = vunpack.c.l.b16 %v5313
    %v5741 = vunpack.c.h.b16 %v5313
    %v5742 = vunpack.c.l.b16 %v5314
    %v5743 = vunpack.c.h.b16 %v5314
    %v5744 = vunpack.c.l.b16 %v5315
    %v5745 = vunpack.c.h.b16 %v5315
    %v5746 = vunpack.c.l.b16 %v5316
    %v5747 = vunpack.c.h.b16 %v5316
    %v5748 = vunpack.c.l.b16 %v5317
    %v5749 = vunpack.c.h.b16 %v5317
    %v5750 = vunpack.c.l.b16 %v5318
    %v5751 = vunpack.c.h.b16 %v5318
    %v5752 = vunpack.c.l.b16 %v5319
    %v5753 = vunpack.c.h.b16 %v5319
    %v5754 = vunpack.c.l.b16 %v5320
    %v5755 = vunpack.c.h.b16 %v5320
    %v5756 = vunpack.c.l.b16 %v5321
    %v5757 = vunpack.c.h.b16 %v5321
    %v5758 = vunpack.c.l.b16 %v5322
    %v5759 = vunpack.c.h.b16 %v5322
    %v5760 = vunpack.c.l.b16 %v5323
    %v5761 = vunpack.c.h.b16 %v5323
    %v5762 = vunpack.c.l.b16 %v5324
    %v5763 = vunpack.c.h.b16 %v5324
    %v5764 = vunpack.c.l.b16 %v5325
    %v5765 = vunpack.c.h.b16 %v5325
    %v5766 = vunpack.c.l.b16 %v5326
    %v5767 = vunpack.c.h.b16 %v5326
    %v5768 = vunpack.c.l.b16 %v5327
    %v5769 = vunpack.c.h.b16 %v5327
    %v5770 = vunpack.c.l.b16 %v5328
    %v5771 = vunpack.c.h.b16 %v5328
    %v5772 = vunpack.c.l.b16 %v5329
    %v5773 = vunpack.c.h.b16 %v5329
    %v5774 = vunpack.c.l.b16 %v5330
    %v5775 = vunpack.c.h.b16 %v5330
    %v5776 = vunpack.c.l.b16 %v5331
    %v5777 = vunpack.c.h.b16 %v5331
    %v5778 = vunpack.c.l.b16 %v5332
    %v5779 = vunpack.c.h.b16 %v5332
    %v5780 = vunpack.c.l.b16 %v5333
    %v5781 = vunpack.c.h.b16 %v5333
    %v5782 = vunpack.c.l.b16 %v5334
    %v5783 = vunpack.c.h.b16 %v5334
    %v5784 = vunpack.c.l.b16 %v5335
    %v5785 = vunpack.c.h.b16 %v5335
    %v5786 = vunpack.c.l.b16 %v5336
    %v5787 = vunpack.c.h.b16 %v5336
    %v5788 = vunpack.c.l.b16 %v5337
    %v5789 = vunpack.c.h.b16 %v5337
    %v5790 = vunpack.c.l.b16 %v5338
    %v5791 = vunpack.c.h.b16 %v5338
    %v5792 = vunpack.c.l.b16 %v5339
    %v5793 = vunpack.c.h.b16 %v5339
    %v5794 = vunpack.c.l.b16 %v5340
    %v5795 = vunpack.c.h.b16 %v5340
    %v5796 = vunpack.c.l.b16 %v5341
    %v5797 = vunpack.c.h.b16 %v5341
    %v5798 = vunpack.c.l.b16 %v5342
    %v5799 = vunpack.c.h.b16 %v5342
    %v5800 = vunpack.c.l.b16 %v5343
    %v5801 = vunpack.c.h.b16 %v5343
    %v5802 = vunpack.c.l.b16 %v5344
    %v5803 = vunpack.c.h.b16 %v5344
    %v5804 = vunpack.c.l.b16 %v5345
    %v5805 = vunpack.c.h.b16 %v5345
    %v5806 = vunpack.c.l.b16 %v5346
    %v5807 = vunpack.c.h.b16 %v5346
    %v5808 = vunpack.c.l.b16 %v5347
    %v5809 = vunpack.c.h.b16 %v5347
    %v5810 = vunpack.c.l.b16 %v5348
    %v5811 = vunpack.c.h.b16 %v5348
    %v5812 = vunpack.c.l.b16 %v5349
    %v5813 = vunpack.c.h.b16 %v5349
    %v5814 = vunpack.c.l.b16 %v5350
    %v5815 = vunpack.c.h.b16 %v5350
    %v5816 = vunpack.c.l.b16 %v5351
    %v5817 = vunpack.c.h.b16 %v5351
    %v5818 = vunpack.c.l.b16 %v5352
    %v5819 = vunpack.c.h.b16 %v5352
    %v5820 = vunpack.c.l.b16 %v5353
    %v5821 = vunpack.c.h.b16 %v5353
    %v5822 = vunpack.c.l.b16 %v5354
    %v5823 = vunpack.c.h.b16 %v5354
    %v5824 = vunpack.c.l.b16 %v5355
    %v5825 = vunpack.c.h.b16 %v5355
    %v5826 = vunpack.c.l.b16 %v5356
    %v5827 = vunpack.c.h.b16 %v5356
    %v5828 = vunpack.c.l.b16 %v5357
    %v5829 = vunpack.c.h.b16 %v5357
    %v5830 = vunpack.c.l.b16 %v5358
    %v5831 = vunpack.c.h.b16 %v5358
    %v5832 = vunpack.c.l.b16 %v5359
    %v5833 = vunpack.c.h.b16 %v5359
    %v5834 = vunpack.c.l.b16 %v5360
    %v5835 = vunpack.c.h.b16 %v5360
    %v5836 = vunpack.c.l.b16 %v5361
    %v5837 = vunpack.c.h.b16 %v5361
    %v5838 = vunpack.c.l.b16 %v5362
    %v5839 = vunpack.c.h.b16 %v5362
    %v5840 = vunpack.c.l.b16 %v5363
    %v5841 = vunpack.c.h.b16 %v5363
    %v5842 = vunpack.c.l.b16 %v5364
    %v5843 = vunpack.c.h.b16 %v5364
    %v5844 = vunpack.c.l.b16 %v5365
    %v5845 = vunpack.c.h.b16 %v5365
    %v5846 = vunpack.c.l.b16 %v5366
    %v5847 = vunpack.c.h.b16 %v5366
    %v5848 = vunpack.c.l.b16 %v5367
    %v5849 = vunpack.c.h.b16 %v5367
    %v5850 = vunpack.c.l.b16 %v5368
    %v5851 = vunpack.c.h.b16 %v5368
    %v5852 = vunpack.c.l.b16 %v5369
    %v5853 = vunpack.c.h.b16 %v5369
    %v5854 = vunpack.c.l.b16 %v5370
    %v5855 = vunpack.c.h.b16 %v5370
    %v5856 = vunpack.c.l.b16 %v5371
    %v5857 = vunpack.c.h.b16 %v5371
    %v5858 = vunpack.c.l.b16 %v5372
    %v5859 = vunpack.c.h.b16 %v5372
    %v5860 = vunpack.c.l.b16 %v5373
    %v5861 = vunpack.c.h.b16 %v5373
    %v5862 = vunpack.c.l.b16 %v5374
    %v5863 = vunpack.c.h.b16 %v5374
    %v5864 = vunpack.c.l.b16 %v5375
    %v5865 = vunpack.c.h.b16 %v5375
    %v5866 = vunpack.c.l.b16 %v5376
    %v5867 = vunpack.c.h.b16 %v5376
    %v5868 = vunpack.c.l.b16 %v5377
    %v5869 = vunpack.c.h.b16 %v5377
    %v5870 = vunpack.c.l.b16 %v5378
    %v5871 = vunpack.c.h.b16 %v5378
    %v5872 = vunpack.c.l.b16 %v5379
    %v5873 = vunpack.c.h.b16 %v5379
    %v5874 = vunpack.c.l.b16 %v5380
    %v5875 = vunpack.c.h.b16 %v5380
    %v5876 = vunpack.c.l.b16 %v5381
    %v5877 = vunpack.c.h.b16 %v5381
    %v5878 = vunpack.c.l.b16 %v5382
    %v5879 = vunpack.c.h.b16 %v5382
    %v5880 = vunpack.c.l.b16 %v5383
    %v5881 = vunpack.c.h.b16 %v5383
    %v5882 = vunpack.c.l.b16 %v5384
    %v5883 = vunpack.c.h.b16 %v5384
    %v5884 = vunpack.c.l.b16 %v5385
    %v5885 = vunpack.c.h.b16 %v5385
    %v5886 = vunpack.c.l.b16 %v5386
    %v5887 = vunpack.c.h.b16 %v5386
    %v5888 = vunpack.c.l.b16 %v5387
    %v5889 = vunpack.c.h.b16 %v5387
    %v5890 = vunpack.c.l.b16 %v5388
    %v5891 = vunpack.c.h.b16 %v5388
    %v5892 = vunpack.c.l.b16 %v5389
    %v5893 = vunpack.c.h.b16 %v5389
    %v5894 = vunpack.c.l.b16 %v5390
    %v5895 = vunpack.c.h.b16 %v5390
    %v5896 = vunpack.c.l.b16 %v5391
    %v5897 = vunpack.c.h.b16 %v5391
    %v5898 = vunpack.c.l.b16 %v5392
    %v5899 = vunpack.c.h.b16 %v5392
    %v5900 = vunpack.c.l.b16 %v5393
    %v5901 = vunpack.c.h.b16 %v5393
    %v5902 = vunpack.c.l.b16 %v5394
    %v5903 = vunpack.c.h.b16 %v5394
    %v5904 = vunpack.c.l.b16 %v5395
    %v5905 = vunpack.c.h.b16 %v5395
    %v5906 = vunpack.c.l.b16 %v5396
    %v5907 = vunpack.c.h.b16 %v5396
    %v5908 = vunpack.c.l.b16 %v5397
    %v5909 = vunpack.c.h.b16 %v5397
    %v5910 = vunpack.c.l.b16 %v5398
    %v5911 = vunpack.c.h.b16 %v5398
    %v5912 = vunpack.c.l.b16 %v5399
    %v5913 = vunpack.c.h.b16 %v5399
    %v5914 = vunpack.c.l.b16 %v5400
    %v5915 = vunpack.c.h.b16 %v5400
    %v5916 = vunpack.c.l.b16 %v5401
    %v5917 = vunpack.c.h.b16 %v5401
    %v5918 = vunpack.c.l.b16 %v5402
    %v5919 = vunpack.c.h.b16 %v5402
    %v5920 = vunpack.c.l.b16 %v5403
    %v5921 = vunpack.c.h.b16 %v5403
    %v5922 = vunpack.c.l.b16 %v5404
    %v5923 = vunpack.c.h.b16 %v5404
    %v5924 = vunpack.c.l.b16 %v5405
    %v5925 = vunpack.c.h.b16 %v5405
    %v5926 = vunpack.c.l.b16 %v5406
    %v5927 = vunpack.c.h.b16 %v5406
    %v5928 = vunpack.c.l.b16 %v5407
    %v5929 = vunpack.c.h.b16 %v5407
    %v5930 = vunpack.c.l.b16 %v5408
    %v5931 = vunpack.c.h.b16 %v5408
    %v5932 = vunpack.c.l.b16 %v5409
    %v5933 = vunpack.c.h.b16 %v5409
    %v5934 = vunpack.c.l.b16 %v5410
    %v5935 = vunpack.c.h.b16 %v5410
    %v5936 = vunpack.c.l.b16 %v5411
    %v5937 = vunpack.c.h.b16 %v5411
    %v5938 = vunpack.c.l.b16 %v5412
    %v5939 = vunpack.c.h.b16 %v5412
    %v5940 = vunpack.c.l.b16 %v5413
    %v5941 = vunpack.c.h.b16 %v5413
    %v5942 = vunpack.c.l.b16 %v5414
    %v5943 = vunpack.c.h.b16 %v5414
    %v5944 = vunpack.c.l.b16 %v5415
    %v5945 = vunpack.c.h.b16 %v5415
    %v5946 = vunpack.c.l.b16 %v5416
    %v5947 = vunpack.c.h.b16 %v5416
    %v5948 = vunpack.c.l.b16 %v5417
    %v5949 = vunpack.c.h.b16 %v5417
    %v5950 = vunpack.c.l.b16 %v5418
    %v5951 = vunpack.c.h.b16 %v5418
    %v5952 = vunpack.c.l.b16 %v5419
    %v5953 = vunpack.c.h.b16 %v5419
    %v5954 = vunpack.c.l.b16 %v5420
    %v5955 = vunpack.c.h.b16 %v5420
    %v5956 = vunpack.c.l.b16 %v5421
    %v5957 = vunpack.c.h.b16 %v5421
    %v5958 = vunpack.c.l.b16 %v5422
    %v5959 = vunpack.c.h.b16 %v5422
    %v5960 = vunpack.c.l.b16 %v5423
    %v5961 = vunpack.c.h.b16 %v5423
    %v5962 = vunpack.c.l.b16 %v5424
    %v5963 = vunpack.c.h.b16 %v5424
    %v5964 = vunpack.c.l.b16 %v5425
    %v5965 = vunpack.c.h.b16 %v5425
    %v5966 = vunpack.c.l.b16 %v5426
    %v5967 = vunpack.c.h.b16 %v5426
    %v5968 = vunpack.c.l.b16 %v5427
    %v5969 = vunpack.c.h.b16 %v5427
    %v5970 = vunpack.c.l.b16 %v5428
    %v5971 = vunpack.c.h.b16 %v5428
    %v5972 = vunpack.c.l.b16 %v5429
    %v5973 = vunpack.c.h.b16 %v5429
    %v5974 = vunpack.c.l.b16 %v5430
    %v5975 = vunpack.c.h.b16 %v5430
    %v5976 = vunpack.c.l.b16 %v5431
    %v5977 = vunpack.c.h.b16 %v5431
    %v5978 = vunpack.c.l.b16 %v5432
    %v5979 = vunpack.c.h.b16 %v5432
    %v5980 = vunpack.c.l.b16 %v5433
    %v5981 = vunpack.c.h.b16 %v5433
    %v5982 = vunpack.c.l.b16 %v5434
    %v5983 = vunpack.c.h.b16 %v5434
    %v5984 = vunpack.c.l.b16 %v5435
    %v5985 = vunpack.c.h.b16 %v5435
    %v5986 = vunpack.c.l.b16 %v5436
    %v5987 = vunpack.c.h.b16 %v5436
    %v5988 = vunpack.c.l.b16 %v5437
    %v5989 = vunpack.c.h.b16 %v5437
    %v5990 = vunpack.c.l.b16 %v5438
    %v5991 = vunpack.c.h.b16 %v5438
    %v5992 = vunpack.c.l.b16 %v5439
    %v5993 = vunpack.c.h.b16 %v5439
    %v5994 = vunpack.c.l.b16 %v5440
    %v5995 = vunpack.c.h.b16 %v5440
    %v5996 = vunpack.c.l.b16 %v5441
    %v5997 = vunpack.c.h.b16 %v5441
    %v5998 = vunpack.c.l.b16 %v5442
    %v5999 = vunpack.c.h.b16 %v5442
    %v6000 = vunpack.c.l.b16 %v5443
    %v6001 = vunpack.c.h.b16 %v5443
    %v6002 = vunpack.c.l.b16 %v5444
    %v6003 = vunpack.c.h.b16 %v5444
    %v6004 = vunpack.c.l.b16 %v5445
    %v6005 = vunpack.c.h.b16 %v5445
    %v6006 = vunpack.c.l.b16 %v5446
    %v6007 = vunpack.c.h.b16 %v5446
    %v6008 = vunpack.c.l.b16 %v5447
    %v6009 = vunpack.c.h.b16 %v5447
    %v6010 = vunpack.c.l.b16 %v5448
    %v6011 = vunpack.c.h.b16 %v5448
    %v6012 = vunpack.c.l.b16 %v5449
    %v6013 = vunpack.c.h.b16 %v5449
    %v6014 = vunpack.c.l.b16 %v5450
    %v6015 = vunpack.c.h.b16 %v5450
    %v6016 = vunpack.c.l.b16 %v5451
    %v6017 = vunpack.c.h.b16 %v5451
    %v6018 = vunpack.c.l.b16 %v5452
    %v6019 = vunpack.c.h.b16 %v5452
    %v6020 = vunpack.c.l.b16 %v5453
    %v6021 = vunpack.c.h.b16 %v5453
    %v6022 = vunpack.c.l.b16 %v5454
    %v6023 = vunpack.c.h.b16 %v5454
    %v6024 = vunpack.c.l.b16 %v5455
    %v6025 = vunpack.c.h.b16 %v5455
    %v6026 = vunpack.c.l.b16 %v5456
    %v6027 = vunpack.c.h.b16 %v5456
    %v6028 = vunpack.c.l.b16 %v5457
    %v6029 = vunpack.c.h.b16 %v5457
    %v6030 = vunpack.c.l.b16 %v5458
    %v6031 = vunpack.c.h.b16 %v5458
    %v6032 = vunpack.c.l.b16 %v5459
    %v6033 = vunpack.c.h.b16 %v5459
    %v6034 = vunpack.c.l.b16 %v5460
    %v6035 = vunpack.c.h.b16 %v5460
    %v6036 = vunpack.c.l.b16 %v5461
    %v6037 = vunpack.c.h.b16 %v5461
    %v6038 = vunpack.c.l.b16 %v5462
    %v6039 = vunpack.c.h.b16 %v5462
    %v6040 = vunpack.c.l.b16 %v5463
    %v6041 = vunpack.c.h.b16 %v5463
    %v6042 = vunpack.c.l.b16 %v5464
    %v6043 = vunpack.c.h.b16 %v5464
    %v6044 = vunpack.c.l.b16 %v5465
    %v6045 = vunpack.c.h.b16 %v5465
    %v6046 = vunpack.c.l.b16 %v5466
    %v6047 = vunpack.c.h.b16 %v5466
    %v6048 = vunpack.c.l.b16 %v5467
    %v6049 = vunpack.c.h.b16 %v5467
    %v6050 = vunpack.c.l.b16 %v5468
    %v6051 = vunpack.c.h.b16 %v5468
    %v6052 = vunpack.c.l.b16 %v5469
    %v6053 = vunpack.c.h.b16 %v5469
    %v6054 = vunpack.c.l.b16 %v5470
    %v6055 = vunpack.c.h.b16 %v5470
    %v6056 = vunpack.c.l.b16 %v5471
    %v6057 = vunpack.c.h.b16 %v5471
    %v6058 = vpack.c.b16 %v5678, %v5674
    %v6059 = vpack.c.b16 %v5679, %v5675
    %v6060 = vpack.c.b16 %v5680, %v5676
    %v6061 = vpack.c.b16 %v5681, %v5677
    %v6062 = vpack.c.b16 %v5686, %v5682
    %v6063 = vpack.c.b16 %v5687, %v5683
    %v6064 = vpack.c.b16 %v5688, %v5684
    %v6065 = vpack.c.b16 %v5689, %v5685
    %v6066 = vpack.c.b16 %v5694, %v5690
    %v6067 = vpack.c.b16 %v5695, %v5691
    %v6068 = vpack.c.b16 %v5696, %v5692
    %v6069 = vpack.c.b16 %v5697, %v5693
    %v6070 = vpack.c.b16 %v5702, %v5698
    %v6071 = vpack.c.b16 %v5703, %v5699
    %v6072 = vpack.c.b16 %v5704, %v5700
    %v6073 = vpack.c.b16 %v5705, %v5701
    %v6074 = vpack.c.b16 %v5710, %v5706
    %v6075 = vpack.c.b16 %v5711, %v5707
    %v6076 = vpack.c.b16 %v5712, %v5708
    %v6077 = vpack.c.b16 %v5713, %v5709
    %v6078 = vpack.c.b16 %v5718, %v5714
    %v6079 = vpack.c.b16 %v5719, %v5715
    %v6080 = vpack.c.b16 %v5720, %v5716
    %v6081 = vpack.c.b16 %v5721, %v5717
    %v6082 = vpack.c.b16 %v5726, %v5722
    %v6083 = vpack.c.b16 %v5727, %v5723
    %v6084 = vpack.c.b16 %v5728, %v5724
    %v6085 = vpack.c.b16 %v5729, %v5725
    %v6086 = vpack.c.b16 %v5734, %v5730
    %v6087 = vpack.c.b16 %v5735, %v5731
    %v6088 = vpack.c.b16 %v5736, %v5732
    %v6089 = vpack.c.b16 %v5737, %v5733
    %v6090 = vpack.c.b16 %v5742, %v5738
    %v6091 = vpack.c.b16 %v5743, %v5739
    %v6092 = vpack.c.b16 %v5744, %v5740
    %v6093 = vpack.c.b16 %v5745, %v5741
    %v6094 = vpack.c.b16 %v5750, %v5746
    %v6095 = vpack.c.b16 %v5751, %v5747
    %v6096 = vpack.c.b16 %v5752, %v5748
    %v6097 = vpack.c.b16 %v5753, %v5749
    %v6098 = vpack.c.b16 %v5758, %v5754
    %v6099 = vpack.c.b16 %v5759, %v5755
    %v6100 = vpack.c.b16 %v5760, %v5756
    %v6101 = vpack.c.b16 %v5761, %v5757
    %v6102 = vpack.c.b16 %v5766, %v5762
    %v6103 = vpack.c.b16 %v5767, %v5763
    %v6104 = vpack.c.b16 %v5768, %v5764
    %v6105 = vpack.c.b16 %v5769, %v5765
    %v6106 = vpack.c.b16 %v5774, %v5770
    %v6107 = vpack.c.b16 %v5775, %v5771
    %v6108 = vpack.c.b16 %v5776, %v5772
    %v6109 = vpack.c.b16 %v5777, %v5773
    %v6110 = vpack.c.b16 %v5782, %v5778
    %v6111 = vpack.c.b16 %v5783, %v5779
    %v6112 = vpack.c.b16 %v5784, %v5780
    %v6113 = vpack.c.b16 %v5785, %v5781
    %v6114 = vpack.c.b16 %v5790, %v5786
    %v6115 = vpack.c.b16 %v5791, %v5787
    %v6116 = vpack.c.b16 %v5792, %v5788
    %v6117 = vpack.c.b16 %v5793, %v5789
    %v6118 = vpack.c.b16 %v5798, %v5794
    %v6119 = vpack.c.b16 %v5799, %v5795
    %v6120 = vpack.c.b16 %v5800, %v5796
    %v6121 = vpack.c.b16 %v5801, %v5797
    %v6122 = vpack.c.b16 %v5806, %v5802
    %v6123 = vpack.c.b16 %v5807, %v5803
    %v6124 = vpack.c.b16 %v5808, %v5804
    %v6125 = vpack.c.b16 %v5809, %v5805
    %v6126 = vpack.c.b16 %v5814, %v5810
    %v6127 = vpack.c.b16 %v5815, %v5811
    %v6128 = vpack.c.b16 %v5816, %v5812
    %v6129 = vpack.c.b16 %v5817, %v5813
    %v6130 = vpack.c.b16 %v5822, %v5818
    %v6131 = vpack.c.b16 %v5823, %v5819
    %v6132 = vpack.c.b16 %v5824, %v5820
    %v6133 = vpack.c.b16 %v5825, %v5821
    %v6134 = vpack.c.b16 %v5830, %v5826
    %v6135 = vpack.c.b16 %v5831, %v5827
    %v6136 = vpack.c.b16 %v5832, %v5828
    %v6137 = vpack.c.b16 %v5833, %v5829
    %v6138 = vpack.c.b16 %v5838, %v5834
    %v6139 = vpack.c.b16 %v5839, %v5835
    %v6140 = vpack.c.b16 %v5840, %v5836
    %v6141 = vpack.c.b16 %v5841, %v5837
    %v6142 = vpack.c.b16 %v5846, %v5842
    %v6143 = vpack.c.b16 %v5847, %v5843
    %v6144 = vpack.c.b16 %v5848, %v5844
    %v6145 = vpack.c.b16 %v5849, %v5845
    %v6146 = vpack.c.b16 %v5854, %v5850
    %v6147 = vpack.c.b16 %v5855, %v5851
    %v6148 = vpack.c.b16 %v5856, %v5852
    %v6149 = vpack.c.b16 %v5857, %v5853
    %v6150 = vpack.c.b16 %v5862, %v5858
    %v6151 = vpack.c.b16 %v5863, %v5859
    %v6152 = vpack.c.b16 %v5864, %v5860
    %v6153 = vpack.c.b16 %v5865, %v5861
    %v6154 = vpack.c.b16 %v5870, %v5866
    %v6155 = vpack.c.b16 %v5871, %v5867
    %v6156 = vpack.c.b16 %v5872, %v5868
    %v6157 = vpack.c.b16 %v5873, %v5869
    %v6158 = vpack.c.b16 %v5878, %v5874
    %v6159 = vpack.c.b16 %v5879, %v5875
    %v6160 = vpack.c.b16 %v5880, %v5876
    %v6161 = vpack.c.b16 %v5881, %v5877
    %v6162 = vpack.c.b16 %v5886, %v5882
    %v6163 = vpack.c.b16 %v5887, %v5883
    %v6164 = vpack.c.b16 %v5888, %v5884
    %v6165 = vpack.c.b16 %v5889, %v5885
    %v6166 = vpack.c.b16 %v5894, %v5890
    %v6167 = vpack.c.b16 %v5895, %v5891
    %v6168 = vpack.c.b16 %v5896, %v5892
    %v6169 = vpack.c.b16 %v5897, %v5893
    %v6170 = vpack.c.b16 %v5902, %v5898
    %v6171 = vpack.c.b16 %v5903, %v5899
    %v6172 = vpack.c.b16 %v5904, %v5900
    %v6173 = vpack.c.b16 %v5905, %v5901
    %v6174 = vpack.c.b16 %v5910, %v5906
    %v6175 = vpack.c.b16 %v5911, %v5907
    %v6176 = vpack.c.b16 %v5912, %v5908
    %v6177 = vpack.c.b16 %v5913, %v5909
    %v6178 = vpack.c.b16 %v5918, %v5914
    %v6179 = vpack.c.b16 %v5919, %v5915
    %v6180 = vpack.c.b16 %v5920, %v5916
    %v6181 = vpack.c.b16 %v5921, %v5917
    %v6182 = vpack.c.b16 %v5926, %v5922
    %v6183 = vpack.c.b16 %v5927, %v5923
    %v6184 = vpack.c.b16 %v5928, %v5924
    %v6185 = vpack.c.b16 %v5929, %v5925
    %v6186 = vpack.c.b16 %v5934, %v5930
    %v6187 = vpack.c.b16 %v5935, %v5931
    %v6188 = vpack.c.b16 %v5936, %v5932
    %v6189 = vpack.c.b16 %v5937, %v5933
    %v6190 = vpack.c.b16 %v5942, %v5938
    %v6191 = vpack.c.b16 %v5943, %v5939
    %v6192 = vpack.c.b16 %v5944, %v5940
    %v6193 = vpack.c.b16 %v5945, %v5941
    %v6194 = vpack.c.b16 %v5950, %v5946
    %v6195 = vpack.c.b16 %v5951, %v5947
    %v6196 = vpack.c.b16 %v5952, %v5948
    %v6197 = vpack.c.b16 %v5953, %v5949
    %v6198 = vpack.c.b16 %v5958, %v5954
    %v6199 = vpack.c.b16 %v5959, %v5955
    %v6200 = vpack.c.b16 %v5960, %v5956
    %v6201 = vpack.c.b16 %v5961, %v5957
    %v6202 = vpack.c.b16 %v5966, %v5962
    %v6203 = vpack.c.b16 %v5967, %v5963
    %v6204 = vpack.c.b16 %v5968, %v5964
    %v6205 = vpack.c.b16 %v5969, %v5965
    %v6206 = vpack.c.b16 %v5974, %v5970
    %v6207 = vpack.c.b16 %v5975, %v5971
    %v6208 = vpack.c.b16 %v5976, %v5972
    %v6209 = vpack.c.b16 %v5977, %v5973
    %v6210 = vpack.c.b16 %v5982, %v5978
    %v6211 = vpack.c.b16 %v5983, %v5979
    %v6212 = vpack.c.b16 %v5984, %v5980
    %v6213 = vpack.c.b16 %v5985, %v5981
    %v6214 = vpack.c.b16 %v5990, %v5986
    %v6215 = vpack.c.b16 %v5991, %v5987
    %v6216 = vpack.c.b16 %v5992, %v5988
    %v6217 = vpack.c.b16 %v5993, %v5989
    %v6218 = vpack.c.b16 %v5998, %v5994
    %v6219 = vpack.c.b16 %v5999, %v5995
    %v6220 = vpack.c.b16 %v6000, %v5996
    %v6221 = vpack.c.b16 %v6001, %v5997
    %v6222 = vpack.c.b16 %v6006, %v6002
    %v6223 = vpack.c.b16 %v6007, %v6003
    %v6224 = vpack.c.b16 %v6008, %v6004
    %v6225 = vpack.c.b16 %v6009, %v6005
    %v6226 = vpack.c.b16 %v6014, %v6010
    %v6227 = vpack.c.b16 %v6015, %v6011
    %v6228 = vpack.c.b16 %v6016, %v6012
    %v6229 = vpack.c.b16 %v6017, %v6013
    %v6230 = vpack.c.b16 %v6022, %v6018
    %v6231 = vpack.c.b16 %v6023, %v6019
    %v6232 = vpack.c.b16 %v6024, %v6020
    %v6233 = vpack.c.b16 %v6025, %v6021
    %v6234 = vpack.c.b16 %v6030, %v6026
    %v6235 = vpack.c.b16 %v6031, %v6027
    %v6236 = vpack.c.b16 %v6032, %v6028
    %v6237 = vpack.c.b16 %v6033, %v6029
    %v6238 = vpack.c.b16 %v6038, %v6034
    %v6239 = vpack.c.b16 %v6039, %v6035
    %v6240 = vpack.c.b16 %v6040, %v6036
    %v6241 = vpack.c.b16 %v6041, %v6037
    %v6242 = vpack.c.b16 %v6046, %v6042
    %v6243 = vpack.c.b16 %v6047, %v6043
    %v6244 = vpack.c.b16 %v6048, %v6044
    %v6245 = vpack.c.b16 %v6049, %v6045
    %v6246 = vpack.c.b16 %v6054, %v6050
    %v6247 = vpack.c.b16 %v6055, %v6051
    %v6248 = vpack.c.b16 %v6056, %v6052
    %v6249 = vpack.c.b16 %v6057, %v6053
    %6442 = vmatpush.bf16.msra.mxu0 %v6086
    %6443 = vmatpush.bf16.msra.mxu0 %v6082
    %6444 = vmatpush.bf16.msra.mxu0 %v6078
    %6445 = vmatpush.bf16.msra.mxu0 %v6074
    %6446 = vmatpush.bf16.msra.mxu0 %v6070
    %6447 = vmatpush.bf16.msra.mxu0 %v6066
    %6448 = vmatpush.bf16.msra.mxu0 %v6062
    %6449 = vmatpush.bf16.msra.mxu0 %v6058
    %6450 = vmatmul.bf16.gmra.mxu0 %v2802
    %v6451 = vpop.f32.mrf.mxu0
    %v6452 = vadd.f32 %v5474, %v6451
    %v6453 = vpop.f32.mrf.mxu0
    %6454 = vdwg.mxu0
    %6455 = vmatpush.bf16.msra.mxu0 %v6118
    %6456 = vmatpush.bf16.msra.mxu0 %v6114
    %6457 = vmatpush.bf16.msra.mxu0 %v6110
    %6458 = vmatpush.bf16.msra.mxu0 %v6106
    %6459 = vmatpush.bf16.msra.mxu0 %v6102
    %6460 = vmatpush.bf16.msra.mxu0 %v6098
    %6461 = vmatpush.bf16.msra.mxu0 %v6094
    %6462 = vmatpush.bf16.msra.mxu0 %v6090
    %6463 = vmatmul.bf16.gmra.mxu0 %v2803
    %v6464 = vpop.f32.mrf.mxu0
    %v6465 = vadd.f32 %v6452, %v6464
    %v6466 = vpop.f32.mrf.mxu0
    %6467 = vdwg.mxu0
    %6468 = vmatpush.bf16.msra.mxu0 %v6150
    %6469 = vmatpush.bf16.msra.mxu0 %v6146
    %6470 = vmatpush.bf16.msra.mxu0 %v6142
    %6471 = vmatpush.bf16.msra.mxu0 %v6138
    %6472 = vmatpush.bf16.msra.mxu0 %v6134
    %6473 = vmatpush.bf16.msra.mxu0 %v6130
    %6474 = vmatpush.bf16.msra.mxu0 %v6126
    %6475 = vmatpush.bf16.msra.mxu0 %v6122
    %6476 = vmatmul.bf16.gmra.mxu0 %v2804
    %v6477 = vpop.f32.mrf.mxu0
    %v6478 = vadd.f32 %v6465, %v6477
    %v6479 = vpop.f32.mrf.mxu0
    %6480 = vdwg.mxu0
    %6481 = vmatpush.bf16.msra.mxu0 %v6182
    %6482 = vmatpush.bf16.msra.mxu0 %v6178
    %6483 = vmatpush.bf16.msra.mxu0 %v6174
    %6484 = vmatpush.bf16.msra.mxu0 %v6170
    %6485 = vmatpush.bf16.msra.mxu0 %v6166
    %6486 = vmatpush.bf16.msra.mxu0 %v6162
    %6487 = vmatpush.bf16.msra.mxu0 %v6158
    %6488 = vmatpush.bf16.msra.mxu0 %v6154
    %6489 = vmatmul.bf16.gmra.mxu0 %v2805
    %v6490 = vpop.f32.mrf.mxu0
    %v6491 = vadd.f32 %v6478, %v6490
    %v6492 = vpop.f32.mrf.mxu0
    %6493 = vdwg.mxu0
    %6494 = vmatpush.bf16.msra.mxu0 %v6214
    %6495 = vmatpush.bf16.msra.mxu0 %v6210
    %6496 = vmatpush.bf16.msra.mxu0 %v6206
    %6497 = vmatpush.bf16.msra.mxu0 %v6202
    %6498 = vmatpush.bf16.msra.mxu0 %v6198
    %6499 = vmatpush.bf16.msra.mxu0 %v6194
    %6500 = vmatpush.bf16.msra.mxu0 %v6190
    %6501 = vmatpush.bf16.msra.mxu0 %v6186
    %6502 = vmatmul.bf16.gmra.mxu0 %v2806
    %v6503 = vpop.f32.mrf.mxu0
    %v6504 = vadd.f32 %v6491, %v6503
    %v6505 = vpop.f32.mrf.mxu0
    %6506 = vdwg.mxu0
    %6507 = vmatpush.bf16.msra.mxu0 %v6246
    %6508 = vmatpush.bf16.msra.mxu0 %v6242
    %6509 = vmatpush.bf16.msra.mxu0 %v6238
    %6510 = vmatpush.bf16.msra.mxu0 %v6234
    %6511 = vmatpush.bf16.msra.mxu0 %v6230
    %6512 = vmatpush.bf16.msra.mxu0 %v6226
    %6513 = vmatpush.bf16.msra.mxu0 %v6222
    %6514 = vmatpush.bf16.msra.mxu0 %v6218
    %6515 = vmatmul.bf16.gmra.mxu0 %v2807
    %v6516 = vpop.f32.mrf.mxu0
    %v6517 = vadd.f32 %v6504, %v6516
    %v6518 = vpop.f32.mrf.mxu0
    %6519 = vdwg.mxu0
    %6520 = vmatpush.bf16.msra.mxu0 %v6087
    %6521 = vmatpush.bf16.msra.mxu0 %v6083
    %6522 = vmatpush.bf16.msra.mxu0 %v6079
    %6523 = vmatpush.bf16.msra.mxu0 %v6075
    %6524 = vmatpush.bf16.msra.mxu0 %v6071
    %6525 = vmatpush.bf16.msra.mxu0 %v6067
    %6526 = vmatpush.bf16.msra.mxu0 %v6063
    %6527 = vmatpush.bf16.msra.mxu0 %v6059
    %6528 = vmatmul.bf16.gmra.mxu0 %v2802
    %v6529 = vpop.f32.mrf.mxu0
    %v6530 = vadd.f32 %v5475, %v6529
    %v6531 = vpop.f32.mrf.mxu0
    %6532 = vdwg.mxu0
    %6533 = vmatpush.bf16.msra.mxu0 %v6119
    %6534 = vmatpush.bf16.msra.mxu0 %v6115
    %6535 = vmatpush.bf16.msra.mxu0 %v6111
    %6536 = vmatpush.bf16.msra.mxu0 %v6107
    %6537 = vmatpush.bf16.msra.mxu0 %v6103
    %6538 = vmatpush.bf16.msra.mxu0 %v6099
    %6539 = vmatpush.bf16.msra.mxu0 %v6095
    %6540 = vmatpush.bf16.msra.mxu0 %v6091
    %6541 = vmatmul.bf16.gmra.mxu0 %v2803
    %v6542 = vpop.f32.mrf.mxu0
    %v6543 = vadd.f32 %v6530, %v6542
    %v6544 = vpop.f32.mrf.mxu0
    %6545 = vdwg.mxu0
    %6546 = vmatpush.bf16.msra.mxu0 %v6151
    %6547 = vmatpush.bf16.msra.mxu0 %v6147
    %6548 = vmatpush.bf16.msra.mxu0 %v6143
    %6549 = vmatpush.bf16.msra.mxu0 %v6139
    %6550 = vmatpush.bf16.msra.mxu0 %v6135
    %6551 = vmatpush.bf16.msra.mxu0 %v6131
    %6552 = vmatpush.bf16.msra.mxu0 %v6127
    %6553 = vmatpush.bf16.msra.mxu0 %v6123
    %6554 = vmatmul.bf16.gmra.mxu0 %v2804
    %v6555 = vpop.f32.mrf.mxu0
    %v6556 = vadd.f32 %v6543, %v6555
    %v6557 = vpop.f32.mrf.mxu0
    %6558 = vdwg.mxu0
    %6559 = vmatpush.bf16.msra.mxu0 %v6183
    %6560 = vmatpush.bf16.msra.mxu0 %v6179
    %6561 = vmatpush.bf16.msra.mxu0 %v6175
    %6562 = vmatpush.bf16.msra.mxu0 %v6171
    %6563 = vmatpush.bf16.msra.mxu0 %v6167
    %6564 = vmatpush.bf16.msra.mxu0 %v6163
    %6565 = vmatpush.bf16.msra.mxu0 %v6159
    %6566 = vmatpush.bf16.msra.mxu0 %v6155
    %6567 = vmatmul.bf16.gmra.mxu0 %v2805
    %v6568 = vpop.f32.mrf.mxu0
    %v6569 = vadd.f32 %v6556, %v6568
    %v6570 = vpop.f32.mrf.mxu0
    %6571 = vdwg.mxu0
    %6572 = vmatpush.bf16.msra.mxu0 %v6215
    %6573 = vmatpush.bf16.msra.mxu0 %v6211
    %6574 = vmatpush.bf16.msra.mxu0 %v6207
    %6575 = vmatpush.bf16.msra.mxu0 %v6203
    %6576 = vmatpush.bf16.msra.mxu0 %v6199
    %6577 = vmatpush.bf16.msra.mxu0 %v6195
    %6578 = vmatpush.bf16.msra.mxu0 %v6191
    %6579 = vmatpush.bf16.msra.mxu0 %v6187
    %6580 = vmatmul.bf16.gmra.mxu0 %v2806
    %v6581 = vpop.f32.mrf.mxu0
    %v6582 = vadd.f32 %v6569, %v6581
    %v6583 = vpop.f32.mrf.mxu0
    %6584 = vdwg.mxu0
    %6585 = vmatpush.bf16.msra.mxu0 %v6247
    %6586 = vmatpush.bf16.msra.mxu0 %v6243
    %6587 = vmatpush.bf16.msra.mxu0 %v6239
    %6588 = vmatpush.bf16.msra.mxu0 %v6235
    %6589 = vmatpush.bf16.msra.mxu0 %v6231
    %6590 = vmatpush.bf16.msra.mxu0 %v6227
    %6591 = vmatpush.bf16.msra.mxu0 %v6223
    %6592 = vmatpush.bf16.msra.mxu0 %v6219
    %6593 = vmatmul.bf16.gmra.mxu0 %v2807
    %v6594 = vpop.f32.mrf.mxu0
    %v6595 = vadd.f32 %v6582, %v6594
    %v6596 = vpop.f32.mrf.mxu0
    %6597 = vdwg.mxu0
    %6598 = vmatpush.bf16.msra.mxu0 %v6088
    %6599 = vmatpush.bf16.msra.mxu0 %v6084
    %6600 = vmatpush.bf16.msra.mxu0 %v6080
    %6601 = vmatpush.bf16.msra.mxu0 %v6076
    %6602 = vmatpush.bf16.msra.mxu0 %v6072
    %6603 = vmatpush.bf16.msra.mxu0 %v6068
    %6604 = vmatpush.bf16.msra.mxu0 %v6064
    %6605 = vmatpush.bf16.msra.mxu0 %v6060
    %6606 = vmatmul.bf16.gmra.mxu0 %v2802
    %v6607 = vpop.f32.mrf.mxu0
    %v6608 = vadd.f32 %v5476, %v6607
    %v6609 = vpop.f32.mrf.mxu0
    %6610 = vdwg.mxu0
    %6611 = vmatpush.bf16.msra.mxu0 %v6120
    %6612 = vmatpush.bf16.msra.mxu0 %v6116
    %6613 = vmatpush.bf16.msra.mxu0 %v6112
    %6614 = vmatpush.bf16.msra.mxu0 %v6108
    %6615 = vmatpush.bf16.msra.mxu0 %v6104
    %6616 = vmatpush.bf16.msra.mxu0 %v6100
    %6617 = vmatpush.bf16.msra.mxu0 %v6096
    %6618 = vmatpush.bf16.msra.mxu0 %v6092
    %6619 = vmatmul.bf16.gmra.mxu0 %v2803
    %v6620 = vpop.f32.mrf.mxu0
    %v6621 = vadd.f32 %v6608, %v6620
    %v6622 = vpop.f32.mrf.mxu0
    %6623 = vdwg.mxu0
    %6624 = vmatpush.bf16.msra.mxu0 %v6152
    %6625 = vmatpush.bf16.msra.mxu0 %v6148
    %6626 = vmatpush.bf16.msra.mxu0 %v6144
    %6627 = vmatpush.bf16.msra.mxu0 %v6140
    %6628 = vmatpush.bf16.msra.mxu0 %v6136
    %6629 = vmatpush.bf16.msra.mxu0 %v6132
    %6630 = vmatpush.bf16.msra.mxu0 %v6128
    %6631 = vmatpush.bf16.msra.mxu0 %v6124
    %6632 = vmatmul.bf16.gmra.mxu0 %v2804
    %v6633 = vpop.f32.mrf.mxu0
    %v6634 = vadd.f32 %v6621, %v6633
    %v6635 = vpop.f32.mrf.mxu0
    %6636 = vdwg.mxu0
    %6637 = vmatpush.bf16.msra.mxu0 %v6184
    %6638 = vmatpush.bf16.msra.mxu0 %v6180
    %6639 = vmatpush.bf16.msra.mxu0 %v6176
    %6640 = vmatpush.bf16.msra.mxu0 %v6172
    %6641 = vmatpush.bf16.msra.mxu0 %v6168
    %6642 = vmatpush.bf16.msra.mxu0 %v6164
    %6643 = vmatpush.bf16.msra.mxu0 %v6160
    %6644 = vmatpush.bf16.msra.mxu0 %v6156
    %6645 = vmatmul.bf16.gmra.mxu0 %v2805
    %v6646 = vpop.f32.mrf.mxu0
    %v6647 = vadd.f32 %v6634, %v6646
    %v6648 = vpop.f32.mrf.mxu0
    %6649 = vdwg.mxu0
    %6650 = vmatpush.bf16.msra.mxu0 %v6216
    %6651 = vmatpush.bf16.msra.mxu0 %v6212
    %6652 = vmatpush.bf16.msra.mxu0 %v6208
    %6653 = vmatpush.bf16.msra.mxu0 %v6204
    %6654 = vmatpush.bf16.msra.mxu0 %v6200
    %6655 = vmatpush.bf16.msra.mxu0 %v6196
    %6656 = vmatpush.bf16.msra.mxu0 %v6192
    %6657 = vmatpush.bf16.msra.mxu0 %v6188
    %6658 = vmatmul.bf16.gmra.mxu0 %v2806
    %v6659 = vpop.f32.mrf.mxu0
    %v6660 = vadd.f32 %v6647, %v6659
    %v6661 = vpop.f32.mrf.mxu0
    %6662 = vdwg.mxu0
    %6663 = vmatpush.bf16.msra.mxu0 %v6248
    %6664 = vmatpush.bf16.msra.mxu0 %v6244
    %6665 = vmatpush.bf16.msra.mxu0 %v6240
    %6666 = vmatpush.bf16.msra.mxu0 %v6236
    %6667 = vmatpush.bf16.msra.mxu0 %v6232
    %6668 = vmatpush.bf16.msra.mxu0 %v6228
    %6669 = vmatpush.bf16.msra.mxu0 %v6224
    %6670 = vmatpush.bf16.msra.mxu0 %v6220
    %6671 = vmatmul.bf16.gmra.mxu0 %v2807
    %v6672 = vpop.f32.mrf.mxu0
    %v6673 = vadd.f32 %v6660, %v6672
    %v6674 = vpop.f32.mrf.mxu0
    %6675 = vdwg.mxu0
    %6676 = vmatpush.bf16.msra.mxu0 %v6089
    %6677 = vmatpush.bf16.msra.mxu0 %v6085
    %6678 = vmatpush.bf16.msra.mxu0 %v6081
    %6679 = vmatpush.bf16.msra.mxu0 %v6077
    %6680 = vmatpush.bf16.msra.mxu0 %v6073
    %6681 = vmatpush.bf16.msra.mxu0 %v6069
    %6682 = vmatpush.bf16.msra.mxu0 %v6065
    %6683 = vmatpush.bf16.msra.mxu0 %v6061
    %6684 = vmatmul.bf16.gmra.mxu0 %v2802
    %v6685 = vpop.f32.mrf.mxu0
    %v6686 = vadd.f32 %v5477, %v6685
    %v6687 = vpop.f32.mrf.mxu0
    %6688 = vdwg.mxu0
    %6689 = vmatpush.bf16.msra.mxu0 %v6121
    %6690 = vmatpush.bf16.msra.mxu0 %v6117
    %6691 = vmatpush.bf16.msra.mxu0 %v6113
    %6692 = vmatpush.bf16.msra.mxu0 %v6109
    %6693 = vmatpush.bf16.msra.mxu0 %v6105
    %6694 = vmatpush.bf16.msra.mxu0 %v6101
    %6695 = vmatpush.bf16.msra.mxu0 %v6097
    %6696 = vmatpush.bf16.msra.mxu0 %v6093
    %6697 = vmatmul.bf16.gmra.mxu0 %v2803
    %v6698 = vpop.f32.mrf.mxu0
    %v6699 = vadd.f32 %v6686, %v6698
    %v6700 = vpop.f32.mrf.mxu0
    %6701 = vdwg.mxu0
    %6702 = vmatpush.bf16.msra.mxu0 %v6153
    %6703 = vmatpush.bf16.msra.mxu0 %v6149
    %6704 = vmatpush.bf16.msra.mxu0 %v6145
    %6705 = vmatpush.bf16.msra.mxu0 %v6141
    %6706 = vmatpush.bf16.msra.mxu0 %v6137
    %6707 = vmatpush.bf16.msra.mxu0 %v6133
    %6708 = vmatpush.bf16.msra.mxu0 %v6129
    %6709 = vmatpush.bf16.msra.mxu0 %v6125
    %6710 = vmatmul.bf16.gmra.mxu0 %v2804
    %v6711 = vpop.f32.mrf.mxu0
    %v6712 = vadd.f32 %v6699, %v6711
    %v6713 = vpop.f32.mrf.mxu0
    %6714 = vdwg.mxu0
    %6715 = vmatpush.bf16.msra.mxu0 %v6185
    %6716 = vmatpush.bf16.msra.mxu0 %v6181
    %6717 = vmatpush.bf16.msra.mxu0 %v6177
    %6718 = vmatpush.bf16.msra.mxu0 %v6173
    %6719 = vmatpush.bf16.msra.mxu0 %v6169
    %6720 = vmatpush.bf16.msra.mxu0 %v6165
    %6721 = vmatpush.bf16.msra.mxu0 %v6161
    %6722 = vmatpush.bf16.msra.mxu0 %v6157
    %6723 = vmatmul.bf16.gmra.mxu0 %v2805
    %v6724 = vpop.f32.mrf.mxu0
    %v6725 = vadd.f32 %v6712, %v6724
    %v6726 = vpop.f32.mrf.mxu0
    %6727 = vdwg.mxu0
    %6728 = vmatpush.bf16.msra.mxu0 %v6217
    %6729 = vmatpush.bf16.msra.mxu0 %v6213
    %6730 = vmatpush.bf16.msra.mxu0 %v6209
    %6731 = vmatpush.bf16.msra.mxu0 %v6205
    %6732 = vmatpush.bf16.msra.mxu0 %v6201
    %6733 = vmatpush.bf16.msra.mxu0 %v6197
    %6734 = vmatpush.bf16.msra.mxu0 %v6193
    %6735 = vmatpush.bf16.msra.mxu0 %v6189
    %6736 = vmatmul.bf16.gmra.mxu0 %v2806
    %v6737 = vpop.f32.mrf.mxu0
    %v6738 = vadd.f32 %v6725, %v6737
    %v6739 = vpop.f32.mrf.mxu0
    %6740 = vdwg.mxu0
    %6741 = vmatpush.bf16.msra.mxu0 %v6249
    %6742 = vmatpush.bf16.msra.mxu0 %v6245
    %6743 = vmatpush.bf16.msra.mxu0 %v6241
    %6744 = vmatpush.bf16.msra.mxu0 %v6237
    %6745 = vmatpush.bf16.msra.mxu0 %v6233
    %6746 = vmatpush.bf16.msra.mxu0 %v6229
    %6747 = vmatpush.bf16.msra.mxu0 %v6225
    %6748 = vmatpush.bf16.msra.mxu0 %v6221
    %6749 = vmatmul.bf16.gmra.mxu0 %v2807
    %v6750 = vpop.f32.mrf.mxu0
    %v6751 = vadd.f32 %v6738, %v6750
    %v6752 = vpop.f32.mrf.mxu0
    %6753 = vdwg.mxu0
    %v6754 = vadd.f32 %v5276, %v6517
    %v6755 = vadd.f32 %v5277, %v6595
    %v6756 = vadd.f32 %v5278, %v6673
    %v6757 = vadd.f32 %v5279, %v6751
    %v6758 = vpack.c.bf16 %v6754, %v6754
    %v6759 = vpack.c.bf16 %v6755, %v6755
    %v6760 = vpack.c.bf16 %v6756, %v6756
    %v6761 = vpack.c.bf16 %v6757, %v6757
    %v6762 = vld [vmem:[#allocation20] sm:$0xff]
    %v6763 = vld [vmem:[#allocation20 + $0x8] sm:$0xff]
    %v6764 = vld [vmem:[#allocation20 + $0x10] sm:$0xff]
    %v6765 = vld [vmem:[#allocation20 + $0x18] sm:$0xff]
    %v6766 = vld [vmem:[#allocation20 + $0x20] sm:$0xff]
    %v6767 = vld [vmem:[#allocation20 + $0x28] sm:$0xff]
    %v6768 = vld [vmem:[#allocation20 + $0x30] sm:$0xff]
    %v6769 = vld [vmem:[#allocation20 + $0x38] sm:$0xff]
    %v6770 = vld [vmem:[#allocation20 + $0x40] sm:$0xff]
    %v6771 = vld [vmem:[#allocation20 + $0x48] sm:$0xff]
    %v6772 = vld [vmem:[#allocation20 + $0x50] sm:$0xff]
    %v6773 = vld [vmem:[#allocation20 + $0x58] sm:$0xff]
    %v6774 = vld [vmem:[#allocation20 + $0x60] sm:$0xff]
    %v6775 = vld [vmem:[#allocation20 + $0x68] sm:$0xff]
    %v6776 = vld [vmem:[#allocation20 + $0x70] sm:$0xff]
    %v6777 = vld [vmem:[#allocation20 + $0x78] sm:$0xff]
    %v6778 = vld [vmem:[#allocation20 + $0x80] sm:$0xff]
    %v6779 = vld [vmem:[#allocation20 + $0x88] sm:$0xff]
    %v6780 = vld [vmem:[#allocation20 + $0x90] sm:$0xff]
    %v6781 = vld [vmem:[#allocation20 + $0x98] sm:$0xff]
    %v6782 = vld [vmem:[#allocation20 + $0xa0] sm:$0xff]
    %v6783 = vld [vmem:[#allocation20 + $0xa8] sm:$0xff]
    %v6784 = vld [vmem:[#allocation20 + $0xb0] sm:$0xff]
    %v6785 = vld [vmem:[#allocation20 + $0xb8] sm:$0xff]
    %v6786 = vld [vmem:[#allocation20 + $0xc0] sm:$0xff]
    %v6787 = vld [vmem:[#allocation20 + $0xc8] sm:$0xff]
    %v6788 = vld [vmem:[#allocation20 + $0xd0] sm:$0xff]
    %v6789 = vld [vmem:[#allocation20 + $0xd8] sm:$0xff]
    %v6790 = vld [vmem:[#allocation20 + $0xe0] sm:$0xff]
    %v6791 = vld [vmem:[#allocation20 + $0xe8] sm:$0xff]
    %v6792 = vld [vmem:[#allocation20 + $0xf0] sm:$0xff]
    %v6793 = vld [vmem:[#allocation20 + $0xf8] sm:$0xff]
    %v6794 = vld [vmem:[#allocation20 + $0x100] sm:$0xff]
    %v6795 = vld [vmem:[#allocation20 + $0x108] sm:$0xff]
    %v6796 = vld [vmem:[#allocation20 + $0x110] sm:$0xff]
    %v6797 = vld [vmem:[#allocation20 + $0x118] sm:$0xff]
    %v6798 = vld [vmem:[#allocation20 + $0x120] sm:$0xff]
    %v6799 = vld [vmem:[#allocation20 + $0x128] sm:$0xff]
    %v6800 = vld [vmem:[#allocation20 + $0x130] sm:$0xff]
    %v6801 = vld [vmem:[#allocation20 + $0x138] sm:$0xff]
    %v6802 = vld [vmem:[#allocation20 + $0x140] sm:$0xff]
    %v6803 = vld [vmem:[#allocation20 + $0x148] sm:$0xff]
    %v6804 = vld [vmem:[#allocation20 + $0x150] sm:$0xff]
    %v6805 = vld [vmem:[#allocation20 + $0x158] sm:$0xff]
    %v6806 = vld [vmem:[#allocation20 + $0x160] sm:$0xff]
    %v6807 = vld [vmem:[#allocation20 + $0x168] sm:$0xff]
    %v6808 = vld [vmem:[#allocation20 + $0x170] sm:$0xff]
    %v6809 = vld [vmem:[#allocation20 + $0x178] sm:$0xff]
    %v6810 = vld [vmem:[#allocation20 + $0x180] sm:$0xff]
    %v6811 = vld [vmem:[#allocation20 + $0x188] sm:$0xff]
    %v6812 = vld [vmem:[#allocation20 + $0x190] sm:$0xff]
    %v6813 = vld [vmem:[#allocation20 + $0x198] sm:$0xff]
    %v6814 = vld [vmem:[#allocation20 + $0x1a0] sm:$0xff]
    %v6815 = vld [vmem:[#allocation20 + $0x1a8] sm:$0xff]
    %v6816 = vld [vmem:[#allocation20 + $0x1b0] sm:$0xff]
    %v6817 = vld [vmem:[#allocation20 + $0x1b8] sm:$0xff]
    %v6818 = vld [vmem:[#allocation20 + $0x1c0] sm:$0xff]
    %v6819 = vld [vmem:[#allocation20 + $0x1c8] sm:$0xff]
    %v6820 = vld [vmem:[#allocation20 + $0x1d0] sm:$0xff]
    %v6821 = vld [vmem:[#allocation20 + $0x1d8] sm:$0xff]
    %v6822 = vld [vmem:[#allocation20 + $0x1e0] sm:$0xff]
    %v6823 = vld [vmem:[#allocation20 + $0x1e8] sm:$0xff]
    %v6824 = vld [vmem:[#allocation20 + $0x1f0] sm:$0xff]
    %v6825 = vld [vmem:[#allocation20 + $0x1f8] sm:$0xff]
    %v6826 = vld [vmem:[%s29] sm:$0x3]
    %v6828 = vperm.slane %v6826, 0
    %v6829 = vperm.slane %v6826, 1
    %v6896 = vunpack.c.l.b16 %v6762
    %v6897 = vunpack.c.h.b16 %v6762
    %v6898 = vunpack.c.l.b16 %v6763
    %v6899 = vunpack.c.h.b16 %v6763
    %v6900 = vunpack.c.l.b16 %v6764
    %v6901 = vunpack.c.h.b16 %v6764
    %v6902 = vunpack.c.l.b16 %v6765
    %v6903 = vunpack.c.h.b16 %v6765
    %v6904 = vunpack.c.l.b16 %v6766
    %v6905 = vunpack.c.h.b16 %v6766
    %v6906 = vunpack.c.l.b16 %v6767
    %v6907 = vunpack.c.h.b16 %v6767
    %v6908 = vunpack.c.l.b16 %v6768
    %v6909 = vunpack.c.h.b16 %v6768
    %v6910 = vunpack.c.l.b16 %v6769
    %v6911 = vunpack.c.h.b16 %v6769
    %v6912 = vunpack.c.l.b16 %v6770
    %v6913 = vunpack.c.h.b16 %v6770
    %v6914 = vunpack.c.l.b16 %v6771
    %v6915 = vunpack.c.h.b16 %v6771
    %v6916 = vunpack.c.l.b16 %v6772
    %v6917 = vunpack.c.h.b16 %v6772
    %v6918 = vunpack.c.l.b16 %v6773
    %v6919 = vunpack.c.h.b16 %v6773
    %v6920 = vunpack.c.l.b16 %v6774
    %v6921 = vunpack.c.h.b16 %v6774
    %v6922 = vunpack.c.l.b16 %v6775
    %v6923 = vunpack.c.h.b16 %v6775
    %v6924 = vunpack.c.l.b16 %v6776
    %v6925 = vunpack.c.h.b16 %v6776
    %v6926 = vunpack.c.l.b16 %v6777
    %v6927 = vunpack.c.h.b16 %v6777
    %v6928 = vunpack.c.l.b16 %v6778
    %v6929 = vunpack.c.h.b16 %v6778
    %v6930 = vunpack.c.l.b16 %v6779
    %v6931 = vunpack.c.h.b16 %v6779
    %v6932 = vunpack.c.l.b16 %v6780
    %v6933 = vunpack.c.h.b16 %v6780
    %v6934 = vunpack.c.l.b16 %v6781
    %v6935 = vunpack.c.h.b16 %v6781
    %v6936 = vunpack.c.l.b16 %v6782
    %v6937 = vunpack.c.h.b16 %v6782
    %v6938 = vunpack.c.l.b16 %v6783
    %v6939 = vunpack.c.h.b16 %v6783
    %v6940 = vunpack.c.l.b16 %v6784
    %v6941 = vunpack.c.h.b16 %v6784
    %v6942 = vunpack.c.l.b16 %v6785
    %v6943 = vunpack.c.h.b16 %v6785
    %v6944 = vunpack.c.l.b16 %v6786
    %v6945 = vunpack.c.h.b16 %v6786
    %v6946 = vunpack.c.l.b16 %v6787
    %v6947 = vunpack.c.h.b16 %v6787
    %v6948 = vunpack.c.l.b16 %v6788
    %v6949 = vunpack.c.h.b16 %v6788
    %v6950 = vunpack.c.l.b16 %v6789
    %v6951 = vunpack.c.h.b16 %v6789
    %v6952 = vunpack.c.l.b16 %v6790
    %v6953 = vunpack.c.h.b16 %v6790
    %v6954 = vunpack.c.l.b16 %v6791
    %v6955 = vunpack.c.h.b16 %v6791
    %v6956 = vunpack.c.l.b16 %v6792
    %v6957 = vunpack.c.h.b16 %v6792
    %v6958 = vunpack.c.l.b16 %v6793
    %v6959 = vunpack.c.h.b16 %v6793
    %v6960 = vunpack.c.l.b16 %v6794
    %v6961 = vunpack.c.h.b16 %v6794
    %v6962 = vunpack.c.l.b16 %v6795
    %v6963 = vunpack.c.h.b16 %v6795
    %v6964 = vunpack.c.l.b16 %v6796
    %v6965 = vunpack.c.h.b16 %v6796
    %v6966 = vunpack.c.l.b16 %v6797
    %v6967 = vunpack.c.h.b16 %v6797
    %v6968 = vunpack.c.l.b16 %v6798
    %v6969 = vunpack.c.h.b16 %v6798
    %v6970 = vunpack.c.l.b16 %v6799
    %v6971 = vunpack.c.h.b16 %v6799
    %v6972 = vunpack.c.l.b16 %v6800
    %v6973 = vunpack.c.h.b16 %v6800
    %v6974 = vunpack.c.l.b16 %v6801
    %v6975 = vunpack.c.h.b16 %v6801
    %v6976 = vunpack.c.l.b16 %v6802
    %v6977 = vunpack.c.h.b16 %v6802
    %v6978 = vunpack.c.l.b16 %v6803
    %v6979 = vunpack.c.h.b16 %v6803
    %v6980 = vunpack.c.l.b16 %v6804
    %v6981 = vunpack.c.h.b16 %v6804
    %v6982 = vunpack.c.l.b16 %v6805
    %v6983 = vunpack.c.h.b16 %v6805
    %v6984 = vunpack.c.l.b16 %v6806
    %v6985 = vunpack.c.h.b16 %v6806
    %v6986 = vunpack.c.l.b16 %v6807
    %v6987 = vunpack.c.h.b16 %v6807
    %v6988 = vunpack.c.l.b16 %v6808
    %v6989 = vunpack.c.h.b16 %v6808
    %v6990 = vunpack.c.l.b16 %v6809
    %v6991 = vunpack.c.h.b16 %v6809
    %v6992 = vunpack.c.l.b16 %v6810
    %v6993 = vunpack.c.h.b16 %v6810
    %v6994 = vunpack.c.l.b16 %v6811
    %v6995 = vunpack.c.h.b16 %v6811
    %v6996 = vunpack.c.l.b16 %v6812
    %v6997 = vunpack.c.h.b16 %v6812
    %v6998 = vunpack.c.l.b16 %v6813
    %v6999 = vunpack.c.h.b16 %v6813
    %v7000 = vunpack.c.l.b16 %v6814
    %v7001 = vunpack.c.h.b16 %v6814
    %v7002 = vunpack.c.l.b16 %v6815
    %v7003 = vunpack.c.h.b16 %v6815
    %v7004 = vunpack.c.l.b16 %v6816
    %v7005 = vunpack.c.h.b16 %v6816
    %v7006 = vunpack.c.l.b16 %v6817
    %v7007 = vunpack.c.h.b16 %v6817
    %v7008 = vunpack.c.l.b16 %v6818
    %v7009 = vunpack.c.h.b16 %v6818
    %v7010 = vunpack.c.l.b16 %v6819
    %v7011 = vunpack.c.h.b16 %v6819
    %v7012 = vunpack.c.l.b16 %v6820
    %v7013 = vunpack.c.h.b16 %v6820
    %v7014 = vunpack.c.l.b16 %v6821
    %v7015 = vunpack.c.h.b16 %v6821
    %v7016 = vunpack.c.l.b16 %v6822
    %v7017 = vunpack.c.h.b16 %v6822
    %v7018 = vunpack.c.l.b16 %v6823
    %v7019 = vunpack.c.h.b16 %v6823
    %v7020 = vunpack.c.l.b16 %v6824
    %v7021 = vunpack.c.h.b16 %v6824
    %v7022 = vunpack.c.l.b16 %v6825
    %v7023 = vunpack.c.h.b16 %v6825
    %v7024 = vpack.c.b16 %v6898, %v6896
    %v7025 = vpack.c.b16 %v6899, %v6897
    %v7026 = vpack.c.b16 %v6902, %v6900
    %v7027 = vpack.c.b16 %v6903, %v6901
    %v7028 = vpack.c.b16 %v6906, %v6904
    %v7029 = vpack.c.b16 %v6907, %v6905
    %v7030 = vpack.c.b16 %v6910, %v6908
    %v7031 = vpack.c.b16 %v6911, %v6909
    %v7032 = vpack.c.b16 %v6914, %v6912
    %v7033 = vpack.c.b16 %v6915, %v6913
    %v7034 = vpack.c.b16 %v6918, %v6916
    %v7035 = vpack.c.b16 %v6919, %v6917
    %v7036 = vpack.c.b16 %v6922, %v6920
    %v7037 = vpack.c.b16 %v6923, %v6921
    %v7038 = vpack.c.b16 %v6926, %v6924
    %v7039 = vpack.c.b16 %v6927, %v6925
    %v7040 = vpack.c.b16 %v6930, %v6928
    %v7041 = vpack.c.b16 %v6931, %v6929
    %v7042 = vpack.c.b16 %v6934, %v6932
    %v7043 = vpack.c.b16 %v6935, %v6933
    %v7044 = vpack.c.b16 %v6938, %v6936
    %v7045 = vpack.c.b16 %v6939, %v6937
    %v7046 = vpack.c.b16 %v6942, %v6940
    %v7047 = vpack.c.b16 %v6943, %v6941
    %v7048 = vpack.c.b16 %v6946, %v6944
    %v7049 = vpack.c.b16 %v6947, %v6945
    %v7050 = vpack.c.b16 %v6950, %v6948
    %v7051 = vpack.c.b16 %v6951, %v6949
    %v7052 = vpack.c.b16 %v6954, %v6952
    %v7053 = vpack.c.b16 %v6955, %v6953
    %v7054 = vpack.c.b16 %v6958, %v6956
    %v7055 = vpack.c.b16 %v6959, %v6957
    %v7056 = vpack.c.b16 %v6962, %v6960
    %v7057 = vpack.c.b16 %v6963, %v6961
    %v7058 = vpack.c.b16 %v6966, %v6964
    %v7059 = vpack.c.b16 %v6967, %v6965
    %v7060 = vpack.c.b16 %v6970, %v6968
    %v7061 = vpack.c.b16 %v6971, %v6969
    %v7062 = vpack.c.b16 %v6974, %v6972
    %v7063 = vpack.c.b16 %v6975, %v6973
    %v7064 = vpack.c.b16 %v6978, %v6976
    %v7065 = vpack.c.b16 %v6979, %v6977
    %v7066 = vpack.c.b16 %v6982, %v6980
    %v7067 = vpack.c.b16 %v6983, %v6981
    %v7068 = vpack.c.b16 %v6986, %v6984
    %v7069 = vpack.c.b16 %v6987, %v6985
    %v7070 = vpack.c.b16 %v6990, %v6988
    %v7071 = vpack.c.b16 %v6991, %v6989
    %v7072 = vpack.c.b16 %v6994, %v6992
    %v7073 = vpack.c.b16 %v6995, %v6993
    %v7074 = vpack.c.b16 %v6998, %v6996
    %v7075 = vpack.c.b16 %v6999, %v6997
    %v7076 = vpack.c.b16 %v7002, %v7000
    %v7077 = vpack.c.b16 %v7003, %v7001
    %v7078 = vpack.c.b16 %v7006, %v7004
    %v7079 = vpack.c.b16 %v7007, %v7005
    %v7080 = vpack.c.b16 %v7010, %v7008
    %v7081 = vpack.c.b16 %v7011, %v7009
    %v7082 = vpack.c.b16 %v7014, %v7012
    %v7083 = vpack.c.b16 %v7015, %v7013
    %v7084 = vpack.c.b16 %v7018, %v7016
    %v7085 = vpack.c.b16 %v7019, %v7017
    %v7086 = vpack.c.b16 %v7022, %v7020
    %v7087 = vpack.c.b16 %v7023, %v7021
    %7152 = vmatpush.bf16.msra.mxu0 %v7038
    %7153 = vmatpush.bf16.msra.mxu0 %v7036
    %7154 = vmatpush.bf16.msra.mxu0 %v7034
    %7155 = vmatpush.bf16.msra.mxu0 %v7032
    %7156 = vmatpush.bf16.msra.mxu0 %v7030
    %7157 = vmatpush.bf16.msra.mxu0 %v7028
    %7158 = vmatpush.bf16.msra.mxu0 %v7026
    %7159 = vmatpush.bf16.msra.mxu0 %v7024
    %7160 = vmatmul.bf16.gmra.mxu0 %v6758
    %v7161 = vpop.f32.mrf.mxu0
    %v7162 = vadd.f32 %v6828, %v7161
    %v7163 = vpop.f32.mrf.mxu0
    %7164 = vdwg.mxu0
    %7165 = vmatpush.bf16.msra.mxu0 %v7054
    %7166 = vmatpush.bf16.msra.mxu0 %v7052
    %7167 = vmatpush.bf16.msra.mxu0 %v7050
    %7168 = vmatpush.bf16.msra.mxu0 %v7048
    %7169 = vmatpush.bf16.msra.mxu0 %v7046
    %7170 = vmatpush.bf16.msra.mxu0 %v7044
    %7171 = vmatpush.bf16.msra.mxu0 %v7042
    %7172 = vmatpush.bf16.msra.mxu0 %v7040
    %7173 = vmatmul.bf16.gmra.mxu0 %v6759
    %v7174 = vpop.f32.mrf.mxu0
    %v7175 = vadd.f32 %v7162, %v7174
    %v7176 = vpop.f32.mrf.mxu0
    %7177 = vdwg.mxu0
    %7178 = vmatpush.bf16.msra.mxu0 %v7070
    %7179 = vmatpush.bf16.msra.mxu0 %v7068
    %7180 = vmatpush.bf16.msra.mxu0 %v7066
    %7181 = vmatpush.bf16.msra.mxu0 %v7064
    %7182 = vmatpush.bf16.msra.mxu0 %v7062
    %7183 = vmatpush.bf16.msra.mxu0 %v7060
    %7184 = vmatpush.bf16.msra.mxu0 %v7058
    %7185 = vmatpush.bf16.msra.mxu0 %v7056
    %7186 = vmatmul.bf16.gmra.mxu0 %v6760
    %v7187 = vpop.f32.mrf.mxu0
    %v7188 = vadd.f32 %v7175, %v7187
    %v7189 = vpop.f32.mrf.mxu0
    %7190 = vdwg.mxu0
    %7191 = vmatpush.bf16.msra.mxu0 %v7086
    %7192 = vmatpush.bf16.msra.mxu0 %v7084
    %7193 = vmatpush.bf16.msra.mxu0 %v7082
    %7194 = vmatpush.bf16.msra.mxu0 %v7080
    %7195 = vmatpush.bf16.msra.mxu0 %v7078
    %7196 = vmatpush.bf16.msra.mxu0 %v7076
    %7197 = vmatpush.bf16.msra.mxu0 %v7074
    %7198 = vmatpush.bf16.msra.mxu0 %v7072
    %7199 = vmatmul.bf16.gmra.mxu0 %v6761
    %v7200 = vpop.f32.mrf.mxu0
    %v7201 = vadd.f32 %v7188, %v7200
    %v7202 = vpop.f32.mrf.mxu0
    %7203 = vdwg.mxu0
    %7204 = vmatpush.bf16.msra.mxu0 %v7039
    %7205 = vmatpush.bf16.msra.mxu0 %v7037
    %7206 = vmatpush.bf16.msra.mxu0 %v7035
    %7207 = vmatpush.bf16.msra.mxu0 %v7033
    %7208 = vmatpush.bf16.msra.mxu0 %v7031
    %7209 = vmatpush.bf16.msra.mxu0 %v7029
    %7210 = vmatpush.bf16.msra.mxu0 %v7027
    %7211 = vmatpush.bf16.msra.mxu0 %v7025
    %7212 = vmatmul.bf16.gmra.mxu0 %v6758
    %v7213 = vpop.f32.mrf.mxu0
    %v7214 = vadd.f32 %v6829, %v7213
    %v7215 = vpop.f32.mrf.mxu0
    %7216 = vdwg.mxu0
    %7217 = vmatpush.bf16.msra.mxu0 %v7055
    %7218 = vmatpush.bf16.msra.mxu0 %v7053
    %7219 = vmatpush.bf16.msra.mxu0 %v7051
    %7220 = vmatpush.bf16.msra.mxu0 %v7049
    %7221 = vmatpush.bf16.msra.mxu0 %v7047
    %7222 = vmatpush.bf16.msra.mxu0 %v7045
    %7223 = vmatpush.bf16.msra.mxu0 %v7043
    %7224 = vmatpush.bf16.msra.mxu0 %v7041
    %7225 = vmatmul.bf16.gmra.mxu0 %v6759
    %v7226 = vpop.f32.mrf.mxu0
    %v7227 = vadd.f32 %v7214, %v7226
    %v7228 = vpop.f32.mrf.mxu0
    %7229 = vdwg.mxu0
    %7230 = vmatpush.bf16.msra.mxu0 %v7071
    %7231 = vmatpush.bf16.msra.mxu0 %v7069
    %7232 = vmatpush.bf16.msra.mxu0 %v7067
    %7233 = vmatpush.bf16.msra.mxu0 %v7065
    %7234 = vmatpush.bf16.msra.mxu0 %v7063
    %7235 = vmatpush.bf16.msra.mxu0 %v7061
    %7236 = vmatpush.bf16.msra.mxu0 %v7059
    %7237 = vmatpush.bf16.msra.mxu0 %v7057
    %7238 = vmatmul.bf16.gmra.mxu0 %v6760
    %v7239 = vpop.f32.mrf.mxu0
    %v7240 = vadd.f32 %v7227, %v7239
    %v7241 = vpop.f32.mrf.mxu0
    %7242 = vdwg.mxu0
    %7243 = vmatpush.bf16.msra.mxu0 %v7087
    %7244 = vmatpush.bf16.msra.mxu0 %v7085
    %7245 = vmatpush.bf16.msra.mxu0 %v7083
    %7246 = vmatpush.bf16.msra.mxu0 %v7081
    %7247 = vmatpush.bf16.msra.mxu0 %v7079
    %7248 = vmatpush.bf16.msra.mxu0 %v7077
    %7249 = vmatpush.bf16.msra.mxu0 %v7075
    %7250 = vmatpush.bf16.msra.mxu0 %v7073
    %7251 = vmatmul.bf16.gmra.mxu0 %v6761
    %v7252 = vpop.f32.mrf.mxu0
    %v7253 = vadd.f32 %v7240, %v7252
    %v7254 = vpop.f32.mrf.mxu0
    %7255 = vdwg.mxu0
    %v7256 = vmax.f32 %v7201, 0.0
    %v7257 = vmax.f32 %v7253, 0.0
    %v7258 = vpack.c.bf16 %v7256, %v7256
    %v7259 = vpack.c.bf16 %v7257, %v7257
    %v7260 = vld [vmem:[#allocation22] sm:$0xff]
    %v7261 = vld [vmem:[#allocation22 + $0x8] sm:$0xff]
    %v7262 = vld [vmem:[#allocation22 + $0x10] sm:$0xff]
    %v7263 = vld [vmem:[#allocation22 + $0x18] sm:$0xff]
    %v7264 = vld [vmem:[#allocation22 + $0x20] sm:$0xff]
    %v7265 = vld [vmem:[#allocation22 + $0x28] sm:$0xff]
    %v7266 = vld [vmem:[#allocation22 + $0x30] sm:$0xff]
    %v7267 = vld [vmem:[#allocation22 + $0x38] sm:$0xff]
    %v7268 = vld [vmem:[#allocation22 + $0x40] sm:$0xff]
    %v7269 = vld [vmem:[#allocation22 + $0x48] sm:$0xff]
    %v7270 = vld [vmem:[#allocation22 + $0x50] sm:$0xff]
    %v7271 = vld [vmem:[#allocation22 + $0x58] sm:$0xff]
    %v7272 = vld [vmem:[#allocation22 + $0x60] sm:$0xff]
    %v7273 = vld [vmem:[#allocation22 + $0x68] sm:$0xff]
    %v7274 = vld [vmem:[#allocation22 + $0x70] sm:$0xff]
    %v7275 = vld [vmem:[#allocation22 + $0x78] sm:$0xff]
    %v7276 = vld [vmem:[#allocation22 + $0x80] sm:$0xff]
    %v7277 = vld [vmem:[#allocation22 + $0x88] sm:$0xff]
    %v7278 = vld [vmem:[#allocation22 + $0x90] sm:$0xff]
    %v7279 = vld [vmem:[#allocation22 + $0x98] sm:$0xff]
    %v7280 = vld [vmem:[#allocation22 + $0xa0] sm:$0xff]
    %v7281 = vld [vmem:[#allocation22 + $0xa8] sm:$0xff]
    %v7282 = vld [vmem:[#allocation22 + $0xb0] sm:$0xff]
    %v7283 = vld [vmem:[#allocation22 + $0xb8] sm:$0xff]
    %v7284 = vld [vmem:[#allocation22 + $0xc0] sm:$0xff]
    %v7285 = vld [vmem:[#allocation22 + $0xc8] sm:$0xff]
    %v7286 = vld [vmem:[#allocation22 + $0xd0] sm:$0xff]
    %v7287 = vld [vmem:[#allocation22 + $0xd8] sm:$0xff]
    %v7288 = vld [vmem:[#allocation22 + $0xe0] sm:$0xff]
    %v7289 = vld [vmem:[#allocation22 + $0xe8] sm:$0xff]
    %v7290 = vld [vmem:[#allocation22 + $0xf0] sm:$0xff]
    %v7291 = vld [vmem:[#allocation22 + $0xf8] sm:$0xff]
    %v7292 = vld [vmem:[%s33] sm:$0x3]
    %v7294 = vperm.slane %v7292, 0
    %v7295 = vperm.slane %v7292, 1
    %v7330 = vunpack.c.l.b16 %v7260
    %v7331 = vunpack.c.h.b16 %v7260
    %v7332 = vunpack.c.l.b16 %v7261
    %v7333 = vunpack.c.h.b16 %v7261
    %v7334 = vunpack.c.l.b16 %v7262
    %v7335 = vunpack.c.h.b16 %v7262
    %v7336 = vunpack.c.l.b16 %v7263
    %v7337 = vunpack.c.h.b16 %v7263
    %v7338 = vunpack.c.l.b16 %v7264
    %v7339 = vunpack.c.h.b16 %v7264
    %v7340 = vunpack.c.l.b16 %v7265
    %v7341 = vunpack.c.h.b16 %v7265
    %v7342 = vunpack.c.l.b16 %v7266
    %v7343 = vunpack.c.h.b16 %v7266
    %v7344 = vunpack.c.l.b16 %v7267
    %v7345 = vunpack.c.h.b16 %v7267
    %v7346 = vunpack.c.l.b16 %v7268
    %v7347 = vunpack.c.h.b16 %v7268
    %v7348 = vunpack.c.l.b16 %v7269
    %v7349 = vunpack.c.h.b16 %v7269
    %v7350 = vunpack.c.l.b16 %v7270
    %v7351 = vunpack.c.h.b16 %v7270
    %v7352 = vunpack.c.l.b16 %v7271
    %v7353 = vunpack.c.h.b16 %v7271
    %v7354 = vunpack.c.l.b16 %v7272
    %v7355 = vunpack.c.h.b16 %v7272
    %v7356 = vunpack.c.l.b16 %v7273
    %v7357 = vunpack.c.h.b16 %v7273
    %v7358 = vunpack.c.l.b16 %v7274
    %v7359 = vunpack.c.h.b16 %v7274
    %v7360 = vunpack.c.l.b16 %v7275
    %v7361 = vunpack.c.h.b16 %v7275
    %v7362 = vunpack.c.l.b16 %v7276
    %v7363 = vunpack.c.h.b16 %v7276
    %v7364 = vunpack.c.l.b16 %v7277
    %v7365 = vunpack.c.h.b16 %v7277
    %v7366 = vunpack.c.l.b16 %v7278
    %v7367 = vunpack.c.h.b16 %v7278
    %v7368 = vunpack.c.l.b16 %v7279
    %v7369 = vunpack.c.h.b16 %v7279
    %v7370 = vunpack.c.l.b16 %v7280
    %v7371 = vunpack.c.h.b16 %v7280
    %v7372 = vunpack.c.l.b16 %v7281
    %v7373 = vunpack.c.h.b16 %v7281
    %v7374 = vunpack.c.l.b16 %v7282
    %v7375 = vunpack.c.h.b16 %v7282
    %v7376 = vunpack.c.l.b16 %v7283
    %v7377 = vunpack.c.h.b16 %v7283
    %v7378 = vunpack.c.l.b16 %v7284
    %v7379 = vunpack.c.h.b16 %v7284
    %v7380 = vunpack.c.l.b16 %v7285
    %v7381 = vunpack.c.h.b16 %v7285
    %v7382 = vunpack.c.l.b16 %v7286
    %v7383 = vunpack.c.h.b16 %v7286
    %v7384 = vunpack.c.l.b16 %v7287
    %v7385 = vunpack.c.h.b16 %v7287
    %v7386 = vunpack.c.l.b16 %v7288
    %v7387 = vunpack.c.h.b16 %v7288
    %v7388 = vunpack.c.l.b16 %v7289
    %v7389 = vunpack.c.h.b16 %v7289
    %v7390 = vunpack.c.l.b16 %v7290
    %v7391 = vunpack.c.h.b16 %v7290
    %v7392 = vunpack.c.l.b16 %v7291
    %v7393 = vunpack.c.h.b16 %v7291
    %v7394 = vpack.c.b16 %v7332, %v7330
    %v7395 = vpack.c.b16 %v7333, %v7331
    %v7396 = vpack.c.b16 %v7336, %v7334
    %v7397 = vpack.c.b16 %v7337, %v7335
    %v7398 = vpack.c.b16 %v7340, %v7338
    %v7399 = vpack.c.b16 %v7341, %v7339
    %v7400 = vpack.c.b16 %v7344, %v7342
    %v7401 = vpack.c.b16 %v7345, %v7343
    %v7402 = vpack.c.b16 %v7348, %v7346
    %v7403 = vpack.c.b16 %v7349, %v7347
    %v7404 = vpack.c.b16 %v7352, %v7350
    %v7405 = vpack.c.b16 %v7353, %v7351
    %v7406 = vpack.c.b16 %v7356, %v7354
    %v7407 = vpack.c.b16 %v7357, %v7355
    %v7408 = vpack.c.b16 %v7360, %v7358
    %v7409 = vpack.c.b16 %v7361, %v7359
    %v7410 = vpack.c.b16 %v7364, %v7362
    %v7411 = vpack.c.b16 %v7365, %v7363
    %v7412 = vpack.c.b16 %v7368, %v7366
    %v7413 = vpack.c.b16 %v7369, %v7367
    %v7414 = vpack.c.b16 %v7372, %v7370
    %v7415 = vpack.c.b16 %v7373, %v7371
    %v7416 = vpack.c.b16 %v7376, %v7374
    %v7417 = vpack.c.b16 %v7377, %v7375
    %v7418 = vpack.c.b16 %v7380, %v7378
    %v7419 = vpack.c.b16 %v7381, %v7379
    %v7420 = vpack.c.b16 %v7384, %v7382
    %v7421 = vpack.c.b16 %v7385, %v7383
    %v7422 = vpack.c.b16 %v7388, %v7386
    %v7423 = vpack.c.b16 %v7389, %v7387
    %v7424 = vpack.c.b16 %v7392, %v7390
    %v7425 = vpack.c.b16 %v7393, %v7391
    %7458 = vmatpush.bf16.msra.mxu0 %v7408
    %7459 = vmatpush.bf16.msra.mxu0 %v7406
    %7460 = vmatpush.bf16.msra.mxu0 %v7404
    %7461 = vmatpush.bf16.msra.mxu0 %v7402
    %7462 = vmatpush.bf16.msra.mxu0 %v7400
    %7463 = vmatpush.bf16.msra.mxu0 %v7398
    %7464 = vmatpush.bf16.msra.mxu0 %v7396
    %7465 = vmatpush.bf16.msra.mxu0 %v7394
    %7466 = vmatmul.bf16.gmra.mxu0 %v7258
    %v7467 = vpop.f32.mrf.mxu0
    %v7468 = vadd.f32 %v7294, %v7467
    %v7469 = vpop.f32.mrf.mxu0
    %7470 = vdwg.mxu0
    %7471 = vmatpush.bf16.msra.mxu0 %v7424
    %7472 = vmatpush.bf16.msra.mxu0 %v7422
    %7473 = vmatpush.bf16.msra.mxu0 %v7420
    %7474 = vmatpush.bf16.msra.mxu0 %v7418
    %7475 = vmatpush.bf16.msra.mxu0 %v7416
    %7476 = vmatpush.bf16.msra.mxu0 %v7414
    %7477 = vmatpush.bf16.msra.mxu0 %v7412
    %7478 = vmatpush.bf16.msra.mxu0 %v7410
    %7479 = vmatmul.bf16.gmra.mxu0 %v7259
    %v7480 = vpop.f32.mrf.mxu0
    %v7481 = vadd.f32 %v7468, %v7480
    %v7482 = vpop.f32.mrf.mxu0
    %7483 = vdwg.mxu0
    %7484 = vmatpush.bf16.msra.mxu0 %v7409
    %7485 = vmatpush.bf16.msra.mxu0 %v7407
    %7486 = vmatpush.bf16.msra.mxu0 %v7405
    %7487 = vmatpush.bf16.msra.mxu0 %v7403
    %7488 = vmatpush.bf16.msra.mxu0 %v7401
    %7489 = vmatpush.bf16.msra.mxu0 %v7399
    %7490 = vmatpush.bf16.msra.mxu0 %v7397
    %7491 = vmatpush.bf16.msra.mxu0 %v7395
    %7492 = vmatmul.bf16.gmra.mxu0 %v7258
    %v7493 = vpop.f32.mrf.mxu0
    %v7494 = vadd.f32 %v7295, %v7493
    %v7495 = vpop.f32.mrf.mxu0
    %7496 = vdwg.mxu0
    %7497 = vmatpush.bf16.msra.mxu0 %v7425
    %7498 = vmatpush.bf16.msra.mxu0 %v7423
    %7499 = vmatpush.bf16.msra.mxu0 %v7421
    %7500 = vmatpush.bf16.msra.mxu0 %v7419
    %7501 = vmatpush.bf16.msra.mxu0 %v7417
    %7502 = vmatpush.bf16.msra.mxu0 %v7415
    %7503 = vmatpush.bf16.msra.mxu0 %v7413
    %7504 = vmatpush.bf16.msra.mxu0 %v7411
    %7505 = vmatmul.bf16.gmra.mxu0 %v7259
    %v7506 = vpop.f32.mrf.mxu0
    %v7507 = vadd.f32 %v7494, %v7506
    %v7508 = vpop.f32.mrf.mxu0
    %7509 = vdwg.mxu0
    %v7510 = vmax.f32 %v7481, 0.0
    %v7511 = vmax.f32 %v7507, 0.0
    %v7512 = vld [vmem:[#allocation23] sm:$0xff]
    %v7513 = vld [vmem:[#allocation23 + $0x8] sm:$0xff]
    %v7514 = vld [vmem:[#allocation23 + $0x10] sm:$0xff]
    %v7515 = vld [vmem:[#allocation23 + $0x18] sm:$0xff]
    %v7516 = vld [vmem:[#allocation23 + $0x20] sm:$0xff]
    %v7517 = vld [vmem:[#allocation23 + $0x28] sm:$0xff]
    %v7518 = vld [vmem:[#allocation23 + $0x30] sm:$0xff]
    %v7519 = vld [vmem:[#allocation23 + $0x38] sm:$0xff]
    %v7520 = vld [vmem:[#allocation23 + $0x40] sm:$0xff]
    %v7521 = vld [vmem:[#allocation23 + $0x48] sm:$0xff]
    %v7522 = vld [vmem:[#allocation23 + $0x50] sm:$0xff]
    %v7523 = vld [vmem:[#allocation23 + $0x58] sm:$0xff]
    %v7524 = vld [vmem:[#allocation23 + $0x60] sm:$0xff]
    %v7525 = vld [vmem:[#allocation23 + $0x68] sm:$0xff]
    %v7526 = vld [vmem:[#allocation23 + $0x70] sm:$0xff]
    %v7527 = vld [vmem:[#allocation23 + $0x78] sm:$0xff]
    %v7528 = vld [vmem:[#allocation23 + $0x80] sm:$0xff]
    %v7529 = vld [vmem:[#allocation23 + $0x88] sm:$0xff]
    %v7530 = vld [vmem:[#allocation23 + $0x90] sm:$0xff]
    %v7531 = vld [vmem:[#allocation23 + $0x98] sm:$0xff]
    %v7532 = vld [vmem:[#allocation23 + $0xa0] sm:$0xff]
    %v7533 = vld [vmem:[#allocation23 + $0xa8] sm:$0xff]
    %v7534 = vld [vmem:[#allocation23 + $0xb0] sm:$0xff]
    %v7535 = vld [vmem:[#allocation23 + $0xb8] sm:$0xff]
    %v7536 = vld [vmem:[#allocation23 + $0xc0] sm:$0xff]
    %v7537 = vld [vmem:[#allocation23 + $0xc8] sm:$0xff]
    %v7538 = vld [vmem:[#allocation23 + $0xd0] sm:$0xff]
    %v7539 = vld [vmem:[#allocation23 + $0xd8] sm:$0xff]
    %v7540 = vld [vmem:[#allocation23 + $0xe0] sm:$0xff]
    %v7541 = vld [vmem:[#allocation23 + $0xe8] sm:$0xff]
    %v7542 = vld [vmem:[#allocation23 + $0xf0] sm:$0xff]
    %v7543 = vld [vmem:[#allocation23 + $0xf8] sm:$0xff]
    %v7544 = vld [vmem:[#allocation23 + $0x100] sm:$0xff]
    %v7545 = vld [vmem:[#allocation23 + $0x108] sm:$0xff]
    %v7546 = vld [vmem:[#allocation23 + $0x110] sm:$0xff]
    %v7547 = vld [vmem:[#allocation23 + $0x118] sm:$0xff]
    %v7548 = vld [vmem:[#allocation23 + $0x120] sm:$0xff]
    %v7549 = vld [vmem:[#allocation23 + $0x128] sm:$0xff]
    %v7550 = vld [vmem:[#allocation23 + $0x130] sm:$0xff]
    %v7551 = vld [vmem:[#allocation23 + $0x138] sm:$0xff]
    %v7552 = vld [vmem:[#allocation23 + $0x140] sm:$0xff]
    %v7553 = vld [vmem:[#allocation23 + $0x148] sm:$0xff]
    %v7554 = vld [vmem:[#allocation23 + $0x150] sm:$0xff]
    %v7555 = vld [vmem:[#allocation23 + $0x158] sm:$0xff]
    %v7556 = vld [vmem:[#allocation23 + $0x160] sm:$0xff]
    %v7557 = vld [vmem:[#allocation23 + $0x168] sm:$0xff]
    %v7558 = vld [vmem:[#allocation23 + $0x170] sm:$0xff]
    %v7559 = vld [vmem:[#allocation23 + $0x178] sm:$0xff]
    %v7560 = vld [vmem:[#allocation23 + $0x180] sm:$0xff]
    %v7561 = vld [vmem:[#allocation23 + $0x188] sm:$0xff]
    %v7562 = vld [vmem:[#allocation23 + $0x190] sm:$0xff]
    %v7563 = vld [vmem:[#allocation23 + $0x198] sm:$0xff]
    %v7564 = vld [vmem:[#allocation23 + $0x1a0] sm:$0xff]
    %v7565 = vld [vmem:[#allocation23 + $0x1a8] sm:$0xff]
    %v7566 = vld [vmem:[#allocation23 + $0x1b0] sm:$0xff]
    %v7567 = vld [vmem:[#allocation23 + $0x1b8] sm:$0xff]
    %v7568 = vld [vmem:[#allocation23 + $0x1c0] sm:$0xff]
    %v7569 = vld [vmem:[#allocation23 + $0x1c8] sm:$0xff]
    %v7570 = vld [vmem:[#allocation23 + $0x1d0] sm:$0xff]
    %v7571 = vld [vmem:[#allocation23 + $0x1d8] sm:$0xff]
    %v7572 = vld [vmem:[#allocation23 + $0x1e0] sm:$0xff]
    %v7573 = vld [vmem:[#allocation23 + $0x1e8] sm:$0xff]
    %v7574 = vld [vmem:[#allocation23 + $0x1f0] sm:$0xff]
    %v7575 = vld [vmem:[#allocation23 + $0x1f8] sm:$0xff]
    %v7576 = vld [vmem:[%s37] sm:$0x3]
    %v7578 = vperm.slane %v7576, 0
    %v7579 = vperm.slane %v7576, 1
    %v7646 = vunpack.c.l.b16 %v7512
    %v7647 = vunpack.c.h.b16 %v7512
    %v7648 = vunpack.c.l.b16 %v7513
    %v7649 = vunpack.c.h.b16 %v7513
    %v7650 = vunpack.c.l.b16 %v7514
    %v7651 = vunpack.c.h.b16 %v7514
    %v7652 = vunpack.c.l.b16 %v7515
    %v7653 = vunpack.c.h.b16 %v7515
    %v7654 = vunpack.c.l.b16 %v7516
    %v7655 = vunpack.c.h.b16 %v7516
    %v7656 = vunpack.c.l.b16 %v7517
    %v7657 = vunpack.c.h.b16 %v7517
    %v7658 = vunpack.c.l.b16 %v7518
    %v7659 = vunpack.c.h.b16 %v7518
    %v7660 = vunpack.c.l.b16 %v7519
    %v7661 = vunpack.c.h.b16 %v7519
    %v7662 = vunpack.c.l.b16 %v7520
    %v7663 = vunpack.c.h.b16 %v7520
    %v7664 = vunpack.c.l.b16 %v7521
    %v7665 = vunpack.c.h.b16 %v7521
    %v7666 = vunpack.c.l.b16 %v7522
    %v7667 = vunpack.c.h.b16 %v7522
    %v7668 = vunpack.c.l.b16 %v7523
    %v7669 = vunpack.c.h.b16 %v7523
    %v7670 = vunpack.c.l.b16 %v7524
    %v7671 = vunpack.c.h.b16 %v7524
    %v7672 = vunpack.c.l.b16 %v7525
    %v7673 = vunpack.c.h.b16 %v7525
    %v7674 = vunpack.c.l.b16 %v7526
    %v7675 = vunpack.c.h.b16 %v7526
    %v7676 = vunpack.c.l.b16 %v7527
    %v7677 = vunpack.c.h.b16 %v7527
    %v7678 = vunpack.c.l.b16 %v7528
    %v7679 = vunpack.c.h.b16 %v7528
    %v7680 = vunpack.c.l.b16 %v7529
    %v7681 = vunpack.c.h.b16 %v7529
    %v7682 = vunpack.c.l.b16 %v7530
    %v7683 = vunpack.c.h.b16 %v7530
    %v7684 = vunpack.c.l.b16 %v7531
    %v7685 = vunpack.c.h.b16 %v7531
    %v7686 = vunpack.c.l.b16 %v7532
    %v7687 = vunpack.c.h.b16 %v7532
    %v7688 = vunpack.c.l.b16 %v7533
    %v7689 = vunpack.c.h.b16 %v7533
    %v7690 = vunpack.c.l.b16 %v7534
    %v7691 = vunpack.c.h.b16 %v7534
    %v7692 = vunpack.c.l.b16 %v7535
    %v7693 = vunpack.c.h.b16 %v7535
    %v7694 = vunpack.c.l.b16 %v7536
    %v7695 = vunpack.c.h.b16 %v7536
    %v7696 = vunpack.c.l.b16 %v7537
    %v7697 = vunpack.c.h.b16 %v7537
    %v7698 = vunpack.c.l.b16 %v7538
    %v7699 = vunpack.c.h.b16 %v7538
    %v7700 = vunpack.c.l.b16 %v7539
    %v7701 = vunpack.c.h.b16 %v7539
    %v7702 = vunpack.c.l.b16 %v7540
    %v7703 = vunpack.c.h.b16 %v7540
    %v7704 = vunpack.c.l.b16 %v7541
    %v7705 = vunpack.c.h.b16 %v7541
    %v7706 = vunpack.c.l.b16 %v7542
    %v7707 = vunpack.c.h.b16 %v7542
    %v7708 = vunpack.c.l.b16 %v7543
    %v7709 = vunpack.c.h.b16 %v7543
    %v7710 = vunpack.c.l.b16 %v7544
    %v7711 = vunpack.c.h.b16 %v7544
    %v7712 = vunpack.c.l.b16 %v7545
    %v7713 = vunpack.c.h.b16 %v7545
    %v7714 = vunpack.c.l.b16 %v7546
    %v7715 = vunpack.c.h.b16 %v7546
    %v7716 = vunpack.c.l.b16 %v7547
    %v7717 = vunpack.c.h.b16 %v7547
    %v7718 = vunpack.c.l.b16 %v7548
    %v7719 = vunpack.c.h.b16 %v7548
    %v7720 = vunpack.c.l.b16 %v7549
    %v7721 = vunpack.c.h.b16 %v7549
    %v7722 = vunpack.c.l.b16 %v7550
    %v7723 = vunpack.c.h.b16 %v7550
    %v7724 = vunpack.c.l.b16 %v7551
    %v7725 = vunpack.c.h.b16 %v7551
    %v7726 = vunpack.c.l.b16 %v7552
    %v7727 = vunpack.c.h.b16 %v7552
    %v7728 = vunpack.c.l.b16 %v7553
    %v7729 = vunpack.c.h.b16 %v7553
    %v7730 = vunpack.c.l.b16 %v7554
    %v7731 = vunpack.c.h.b16 %v7554
    %v7732 = vunpack.c.l.b16 %v7555
    %v7733 = vunpack.c.h.b16 %v7555
    %v7734 = vunpack.c.l.b16 %v7556
    %v7735 = vunpack.c.h.b16 %v7556
    %v7736 = vunpack.c.l.b16 %v7557
    %v7737 = vunpack.c.h.b16 %v7557
    %v7738 = vunpack.c.l.b16 %v7558
    %v7739 = vunpack.c.h.b16 %v7558
    %v7740 = vunpack.c.l.b16 %v7559
    %v7741 = vunpack.c.h.b16 %v7559
    %v7742 = vunpack.c.l.b16 %v7560
    %v7743 = vunpack.c.h.b16 %v7560
    %v7744 = vunpack.c.l.b16 %v7561
    %v7745 = vunpack.c.h.b16 %v7561
    %v7746 = vunpack.c.l.b16 %v7562
    %v7747 = vunpack.c.h.b16 %v7562
    %v7748 = vunpack.c.l.b16 %v7563
    %v7749 = vunpack.c.h.b16 %v7563
    %v7750 = vunpack.c.l.b16 %v7564
    %v7751 = vunpack.c.h.b16 %v7564
    %v7752 = vunpack.c.l.b16 %v7565
    %v7753 = vunpack.c.h.b16 %v7565
    %v7754 = vunpack.c.l.b16 %v7566
    %v7755 = vunpack.c.h.b16 %v7566
    %v7756 = vunpack.c.l.b16 %v7567
    %v7757 = vunpack.c.h.b16 %v7567
    %v7758 = vunpack.c.l.b16 %v7568
    %v7759 = vunpack.c.h.b16 %v7568
    %v7760 = vunpack.c.l.b16 %v7569
    %v7761 = vunpack.c.h.b16 %v7569
    %v7762 = vunpack.c.l.b16 %v7570
    %v7763 = vunpack.c.h.b16 %v7570
    %v7764 = vunpack.c.l.b16 %v7571
    %v7765 = vunpack.c.h.b16 %v7571
    %v7766 = vunpack.c.l.b16 %v7572
    %v7767 = vunpack.c.h.b16 %v7572
    %v7768 = vunpack.c.l.b16 %v7573
    %v7769 = vunpack.c.h.b16 %v7573
    %v7770 = vunpack.c.l.b16 %v7574
    %v7771 = vunpack.c.h.b16 %v7574
    %v7772 = vunpack.c.l.b16 %v7575
    %v7773 = vunpack.c.h.b16 %v7575
    %v7774 = vpack.c.b16 %v7648, %v7646
    %v7775 = vpack.c.b16 %v7649, %v7647
    %v7776 = vpack.c.b16 %v7652, %v7650
    %v7777 = vpack.c.b16 %v7653, %v7651
    %v7778 = vpack.c.b16 %v7656, %v7654
    %v7779 = vpack.c.b16 %v7657, %v7655
    %v7780 = vpack.c.b16 %v7660, %v7658
    %v7781 = vpack.c.b16 %v7661, %v7659
    %v7782 = vpack.c.b16 %v7664, %v7662
    %v7783 = vpack.c.b16 %v7665, %v7663
    %v7784 = vpack.c.b16 %v7668, %v7666
    %v7785 = vpack.c.b16 %v7669, %v7667
    %v7786 = vpack.c.b16 %v7672, %v7670
    %v7787 = vpack.c.b16 %v7673, %v7671
    %v7788 = vpack.c.b16 %v7676, %v7674
    %v7789 = vpack.c.b16 %v7677, %v7675
    %v7790 = vpack.c.b16 %v7680, %v7678
    %v7791 = vpack.c.b16 %v7681, %v7679
    %v7792 = vpack.c.b16 %v7684, %v7682
    %v7793 = vpack.c.b16 %v7685, %v7683
    %v7794 = vpack.c.b16 %v7688, %v7686
    %v7795 = vpack.c.b16 %v7689, %v7687
    %v7796 = vpack.c.b16 %v7692, %v7690
    %v7797 = vpack.c.b16 %v7693, %v7691
    %v7798 = vpack.c.b16 %v7696, %v7694
    %v7799 = vpack.c.b16 %v7697, %v7695
    %v7800 = vpack.c.b16 %v7700, %v7698
    %v7801 = vpack.c.b16 %v7701, %v7699
    %v7802 = vpack.c.b16 %v7704, %v7702
    %v7803 = vpack.c.b16 %v7705, %v7703
    %v7804 = vpack.c.b16 %v7708, %v7706
    %v7805 = vpack.c.b16 %v7709, %v7707
    %v7806 = vpack.c.b16 %v7712, %v7710
    %v7807 = vpack.c.b16 %v7713, %v7711
    %v7808 = vpack.c.b16 %v7716, %v7714
    %v7809 = vpack.c.b16 %v7717, %v7715
    %v7810 = vpack.c.b16 %v7720, %v7718
    %v7811 = vpack.c.b16 %v7721, %v7719
    %v7812 = vpack.c.b16 %v7724, %v7722
    %v7813 = vpack.c.b16 %v7725, %v7723
    %v7814 = vpack.c.b16 %v7728, %v7726
    %v7815 = vpack.c.b16 %v7729, %v7727
    %v7816 = vpack.c.b16 %v7732, %v7730
    %v7817 = vpack.c.b16 %v7733, %v7731
    %v7818 = vpack.c.b16 %v7736, %v7734
    %v7819 = vpack.c.b16 %v7737, %v7735
    %v7820 = vpack.c.b16 %v7740, %v7738
    %v7821 = vpack.c.b16 %v7741, %v7739
    %v7822 = vpack.c.b16 %v7744, %v7742
    %v7823 = vpack.c.b16 %v7745, %v7743
    %v7824 = vpack.c.b16 %v7748, %v7746
    %v7825 = vpack.c.b16 %v7749, %v7747
    %v7826 = vpack.c.b16 %v7752, %v7750
    %v7827 = vpack.c.b16 %v7753, %v7751
    %v7828 = vpack.c.b16 %v7756, %v7754
    %v7829 = vpack.c.b16 %v7757, %v7755
    %v7830 = vpack.c.b16 %v7760, %v7758
    %v7831 = vpack.c.b16 %v7761, %v7759
    %v7832 = vpack.c.b16 %v7764, %v7762
    %v7833 = vpack.c.b16 %v7765, %v7763
    %v7834 = vpack.c.b16 %v7768, %v7766
    %v7835 = vpack.c.b16 %v7769, %v7767
    %v7836 = vpack.c.b16 %v7772, %v7770
    %v7837 = vpack.c.b16 %v7773, %v7771
    %7902 = vmatpush.bf16.msra.mxu0 %v7788
    %7903 = vmatpush.bf16.msra.mxu0 %v7786
    %7904 = vmatpush.bf16.msra.mxu0 %v7784
    %7905 = vmatpush.bf16.msra.mxu0 %v7782
    %7906 = vmatpush.bf16.msra.mxu0 %v7780
    %7907 = vmatpush.bf16.msra.mxu0 %v7778
    %7908 = vmatpush.bf16.msra.mxu0 %v7776
    %7909 = vmatpush.bf16.msra.mxu0 %v7774
    %7910 = vmatmul.bf16.gmra.mxu0 %v6758
    %v7911 = vpop.f32.mrf.mxu0
    %v7912 = vadd.f32 %v7578, %v7911
    %v7913 = vpop.f32.mrf.mxu0
    %7914 = vdwg.mxu0
    %7915 = vmatpush.bf16.msra.mxu0 %v7804
    %7916 = vmatpush.bf16.msra.mxu0 %v7802
    %7917 = vmatpush.bf16.msra.mxu0 %v7800
    %7918 = vmatpush.bf16.msra.mxu0 %v7798
    %7919 = vmatpush.bf16.msra.mxu0 %v7796
    %7920 = vmatpush.bf16.msra.mxu0 %v7794
    %7921 = vmatpush.bf16.msra.mxu0 %v7792
    %7922 = vmatpush.bf16.msra.mxu0 %v7790
    %7923 = vmatmul.bf16.gmra.mxu0 %v6759
    %v7924 = vpop.f32.mrf.mxu0
    %v7925 = vadd.f32 %v7912, %v7924
    %v7926 = vpop.f32.mrf.mxu0
    %7927 = vdwg.mxu0
    %7928 = vmatpush.bf16.msra.mxu0 %v7820
    %7929 = vmatpush.bf16.msra.mxu0 %v7818
    %7930 = vmatpush.bf16.msra.mxu0 %v7816
    %7931 = vmatpush.bf16.msra.mxu0 %v7814
    %7932 = vmatpush.bf16.msra.mxu0 %v7812
    %7933 = vmatpush.bf16.msra.mxu0 %v7810
    %7934 = vmatpush.bf16.msra.mxu0 %v7808
    %7935 = vmatpush.bf16.msra.mxu0 %v7806
    %7936 = vmatmul.bf16.gmra.mxu0 %v6760
    %v7937 = vpop.f32.mrf.mxu0
    %v7938 = vadd.f32 %v7925, %v7937
    %v7939 = vpop.f32.mrf.mxu0
    %7940 = vdwg.mxu0
    %7941 = vmatpush.bf16.msra.mxu0 %v7836
    %7942 = vmatpush.bf16.msra.mxu0 %v7834
    %7943 = vmatpush.bf16.msra.mxu0 %v7832
    %7944 = vmatpush.bf16.msra.mxu0 %v7830
    %7945 = vmatpush.bf16.msra.mxu0 %v7828
    %7946 = vmatpush.bf16.msra.mxu0 %v7826
    %7947 = vmatpush.bf16.msra.mxu0 %v7824
    %7948 = vmatpush.bf16.msra.mxu0 %v7822
    %7949 = vmatmul.bf16.gmra.mxu0 %v6761
    %v7950 = vpop.f32.mrf.mxu0
    %v7951 = vadd.f32 %v7938, %v7950
    %v7952 = vpop.f32.mrf.mxu0
    %7953 = vdwg.mxu0
    %7954 = vmatpush.bf16.msra.mxu0 %v7789
    %7955 = vmatpush.bf16.msra.mxu0 %v7787
    %7956 = vmatpush.bf16.msra.mxu0 %v7785
    %7957 = vmatpush.bf16.msra.mxu0 %v7783
    %7958 = vmatpush.bf16.msra.mxu0 %v7781
    %7959 = vmatpush.bf16.msra.mxu0 %v7779
    %7960 = vmatpush.bf16.msra.mxu0 %v7777
    %7961 = vmatpush.bf16.msra.mxu0 %v7775
    %7962 = vmatmul.bf16.gmra.mxu0 %v6758
    %v7963 = vpop.f32.mrf.mxu0
    %v7964 = vadd.f32 %v7579, %v7963
    %v7965 = vpop.f32.mrf.mxu0
    %7966 = vdwg.mxu0
    %7967 = vmatpush.bf16.msra.mxu0 %v7805
    %7968 = vmatpush.bf16.msra.mxu0 %v7803
    %7969 = vmatpush.bf16.msra.mxu0 %v7801
    %7970 = vmatpush.bf16.msra.mxu0 %v7799
    %7971 = vmatpush.bf16.msra.mxu0 %v7797
    %7972 = vmatpush.bf16.msra.mxu0 %v7795
    %7973 = vmatpush.bf16.msra.mxu0 %v7793
    %7974 = vmatpush.bf16.msra.mxu0 %v7791
    %7975 = vmatmul.bf16.gmra.mxu0 %v6759
    %v7976 = vpop.f32.mrf.mxu0
    %v7977 = vadd.f32 %v7964, %v7976
    %v7978 = vpop.f32.mrf.mxu0
    %7979 = vdwg.mxu0
    %7980 = vmatpush.bf16.msra.mxu0 %v7821
    %7981 = vmatpush.bf16.msra.mxu0 %v7819
    %7982 = vmatpush.bf16.msra.mxu0 %v7817
    %7983 = vmatpush.bf16.msra.mxu0 %v7815
    %7984 = vmatpush.bf16.msra.mxu0 %v7813
    %7985 = vmatpush.bf16.msra.mxu0 %v7811
    %7986 = vmatpush.bf16.msra.mxu0 %v7809
    %7987 = vmatpush.bf16.msra.mxu0 %v7807
    %7988 = vmatmul.bf16.gmra.mxu0 %v6760
    %v7989 = vpop.f32.mrf.mxu0
    %v7990 = vadd.f32 %v7977, %v7989
    %v7991 = vpop.f32.mrf.mxu0
    %7992 = vdwg.mxu0
    %7993 = vmatpush.bf16.msra.mxu0 %v7837
    %7994 = vmatpush.bf16.msra.mxu0 %v7835
    %7995 = vmatpush.bf16.msra.mxu0 %v7833
    %7996 = vmatpush.bf16.msra.mxu0 %v7831
    %7997 = vmatpush.bf16.msra.mxu0 %v7829
    %7998 = vmatpush.bf16.msra.mxu0 %v7827
    %7999 = vmatpush.bf16.msra.mxu0 %v7825
    %8000 = vmatpush.bf16.msra.mxu0 %v7823
    %8001 = vmatmul.bf16.gmra.mxu0 %v6761
    %v8002 = vpop.f32.mrf.mxu0
    %v8003 = vadd.f32 %v7990, %v8002
    %v8004 = vpop.f32.mrf.mxu0
    %8005 = vdwg.mxu0
    %v8006 = vadd.f32 %v7510, %v7951
    %v8007 = vadd.f32 %v7511, %v8003
    %v8008 = vpack.c.bf16 %v8006, %v8006
    %v8009 = vpack.c.bf16 %v8007, %v8007
    %v8010 = vld [vmem:[%s39] sm:$0xf]
    %v8011 = vld [vmem:[%s39 + $0x4] sm:$0xf]
    %v8012 = vld [vmem:[%s39 + $0x8] sm:$0xf]
    %v8013 = vld [vmem:[%s39 + $0xc] sm:$0xf]
    %v8014 = vld [vmem:[%s39 + $0x10] sm:$0xf]
    %v8015 = vld [vmem:[%s39 + $0x14] sm:$0xf]
    %v8016 = vld [vmem:[%s39 + $0x18] sm:$0xf]
    %v8017 = vld [vmem:[%s39 + $0x1c] sm:$0xf]
    %v8018 = vld [vmem:[%s39 + $0x20] sm:$0xf]
    %v8019 = vld [vmem:[%s39 + $0x24] sm:$0xf]
    %v8020 = vld [vmem:[%s39 + $0x28] sm:$0xf]
    %v8021 = vld [vmem:[%s39 + $0x2c] sm:$0xf]
    %v8022 = vld [vmem:[%s39 + $0x30] sm:$0xf]
    %v8023 = vld [vmem:[%s39 + $0x34] sm:$0xf]
    %v8024 = vld [vmem:[%s39 + $0x38] sm:$0xf]
    %v8025 = vld [vmem:[%s39 + $0x3c] sm:$0xf]
    %v8026 = vld [vmem:[%s39 + $0x40] sm:$0xf]
    %v8027 = vld [vmem:[%s39 + $0x44] sm:$0xf]
    %v8028 = vld [vmem:[%s39 + $0x48] sm:$0xf]
    %v8029 = vld [vmem:[%s39 + $0x4c] sm:$0xf]
    %v8030 = vld [vmem:[%s39 + $0x50] sm:$0xf]
    %v8031 = vld [vmem:[%s39 + $0x54] sm:$0xf]
    %v8032 = vld [vmem:[%s39 + $0x58] sm:$0xf]
    %v8033 = vld [vmem:[%s39 + $0x5c] sm:$0xf]
    %v8034 = vld [vmem:[%s39 + $0x60] sm:$0xf]
    %v8035 = vld [vmem:[%s39 + $0x64] sm:$0xf]
    %v8036 = vld [vmem:[%s39 + $0x68] sm:$0xf]
    %v8037 = vld [vmem:[%s39 + $0x6c] sm:$0xf]
    %v8038 = vld [vmem:[%s39 + $0x70] sm:$0xf]
    %v8039 = vld [vmem:[%s39 + $0x74] sm:$0xf]
    %v8040 = vld [vmem:[%s39 + $0x78] sm:$0xf]
    %v8041 = vld [vmem:[%s39 + $0x7c] sm:$0xf]
    %v8042 = vld [vmem:[%s41] sm:$0x1]
    %v8044 = vperm.slane %v8042, 0
    %v8078 = vunpack.c.l.b16 %v8010
    %v8079 = vunpack.c.l.b16 %v8011
    %v8080 = vunpack.c.l.b16 %v8012
    %v8081 = vunpack.c.l.b16 %v8013
    %v8082 = vunpack.c.l.b16 %v8014
    %v8083 = vunpack.c.l.b16 %v8015
    %v8084 = vunpack.c.l.b16 %v8016
    %v8085 = vunpack.c.l.b16 %v8017
    %v8086 = vunpack.c.l.b16 %v8018
    %v8087 = vunpack.c.l.b16 %v8019
    %v8088 = vunpack.c.l.b16 %v8020
    %v8089 = vunpack.c.l.b16 %v8021
    %v8090 = vunpack.c.l.b16 %v8022
    %v8091 = vunpack.c.l.b16 %v8023
    %v8092 = vunpack.c.l.b16 %v8024
    %v8093 = vunpack.c.l.b16 %v8025
    %v8094 = vunpack.c.l.b16 %v8026
    %v8095 = vunpack.c.l.b16 %v8027
    %v8096 = vunpack.c.l.b16 %v8028
    %v8097 = vunpack.c.l.b16 %v8029
    %v8098 = vunpack.c.l.b16 %v8030
    %v8099 = vunpack.c.l.b16 %v8031
    %v8100 = vunpack.c.l.b16 %v8032
    %v8101 = vunpack.c.l.b16 %v8033
    %v8102 = vunpack.c.l.b16 %v8034
    %v8103 = vunpack.c.l.b16 %v8035
    %v8104 = vunpack.c.l.b16 %v8036
    %v8105 = vunpack.c.l.b16 %v8037
    %v8106 = vunpack.c.l.b16 %v8038
    %v8107 = vunpack.c.l.b16 %v8039
    %v8108 = vunpack.c.l.b16 %v8040
    %v8109 = vunpack.c.l.b16 %v8041
    %v8110 = vpack.c.b16 %v8079, %v8078
    %v8111 = vpack.c.b16 %v8081, %v8080
    %v8112 = vpack.c.b16 %v8083, %v8082
    %v8113 = vpack.c.b16 %v8085, %v8084
    %v8114 = vpack.c.b16 %v8087, %v8086
    %v8115 = vpack.c.b16 %v8089, %v8088
    %v8116 = vpack.c.b16 %v8091, %v8090
    %v8117 = vpack.c.b16 %v8093, %v8092
    %v8118 = vpack.c.b16 %v8095, %v8094
    %v8119 = vpack.c.b16 %v8097, %v8096
    %v8120 = vpack.c.b16 %v8099, %v8098
    %v8121 = vpack.c.b16 %v8101, %v8100
    %v8122 = vpack.c.b16 %v8103, %v8102
    %v8123 = vpack.c.b16 %v8105, %v8104
    %v8124 = vpack.c.b16 %v8107, %v8106
    %v8125 = vpack.c.b16 %v8109, %v8108
    %8142 = vmatpush.bf16.msra.mxu0 %v8117
    %8143 = vmatpush.bf16.msra.mxu0 %v8116
    %8144 = vmatpush.bf16.msra.mxu0 %v8115
    %8145 = vmatpush.bf16.msra.mxu0 %v8114
    %8146 = vmatpush.bf16.msra.mxu0 %v8113
    %8147 = vmatpush.bf16.msra.mxu0 %v8112
    %8148 = vmatpush.bf16.msra.mxu0 %v8111
    %8149 = vmatpush.bf16.msra.mxu0 %v8110
    %8150 = vmatmul.bf16.gmra.mxu0 %v8008
    %v8151 = vpop.f32.mrf.mxu0
    %v8152 = vadd.f32 %v8044, %v8151
    %v8153 = vpop.f32.mrf.mxu0
    %8154 = vdwg.mxu0
    %8155 = vmatpush.bf16.msra.mxu0 %v8125
    %8156 = vmatpush.bf16.msra.mxu0 %v8124
    %8157 = vmatpush.bf16.msra.mxu0 %v8123
    %8158 = vmatpush.bf16.msra.mxu0 %v8122
    %8159 = vmatpush.bf16.msra.mxu0 %v8121
    %8160 = vmatpush.bf16.msra.mxu0 %v8120
    %8161 = vmatpush.bf16.msra.mxu0 %v8119
    %8162 = vmatpush.bf16.msra.mxu0 %v8118
    %8163 = vmatmul.bf16.gmra.mxu0 %v8009
    %v8164 = vpop.f32.mrf.mxu0
    %v8165 = vadd.f32 %v8152, %v8164
    %v8166 = vpop.f32.mrf.mxu0
    %8167 = vdwg.mxu0
    %v8168 = vmax.f32 %v8165, 0.0
    %v8169 = vpack.c.bf16 %v8168, %v8168
    %v8170 = vld [vmem:[#allocation25] sm:$0xf]
    %v8171 = vld [vmem:[#allocation25 + $0x4] sm:$0xf]
    %v8172 = vld [vmem:[#allocation25 + $0x8] sm:$0xf]
    %v8173 = vld [vmem:[#allocation25 + $0xc] sm:$0xf]
    %v8174 = vld [vmem:[#allocation25 + $0x10] sm:$0xf]
    %v8175 = vld [vmem:[#allocation25 + $0x14] sm:$0xf]
    %v8176 = vld [vmem:[#allocation25 + $0x18] sm:$0xf]
    %v8177 = vld [vmem:[#allocation25 + $0x1c] sm:$0xf]
    %v8178 = vld [vmem:[#allocation25 + $0x20] sm:$0xf]
    %v8179 = vld [vmem:[#allocation25 + $0x24] sm:$0xf]
    %v8180 = vld [vmem:[#allocation25 + $0x28] sm:$0xf]
    %v8181 = vld [vmem:[#allocation25 + $0x2c] sm:$0xf]
    %v8182 = vld [vmem:[#allocation25 + $0x30] sm:$0xf]
    %v8183 = vld [vmem:[#allocation25 + $0x34] sm:$0xf]
    %v8184 = vld [vmem:[#allocation25 + $0x38] sm:$0xf]
    %v8185 = vld [vmem:[#allocation25 + $0x3c] sm:$0xf]
    %v8186 = vld [vmem:[%s45] sm:$0x1]
    %v8188 = vperm.slane %v8186, 0
    %v8206 = vunpack.c.l.b16 %v8170
    %v8207 = vunpack.c.l.b16 %v8171
    %v8208 = vunpack.c.l.b16 %v8172
    %v8209 = vunpack.c.l.b16 %v8173
    %v8210 = vunpack.c.l.b16 %v8174
    %v8211 = vunpack.c.l.b16 %v8175
    %v8212 = vunpack.c.l.b16 %v8176
    %v8213 = vunpack.c.l.b16 %v8177
    %v8214 = vunpack.c.l.b16 %v8178
    %v8215 = vunpack.c.l.b16 %v8179
    %v8216 = vunpack.c.l.b16 %v8180
    %v8217 = vunpack.c.l.b16 %v8181
    %v8218 = vunpack.c.l.b16 %v8182
    %v8219 = vunpack.c.l.b16 %v8183
    %v8220 = vunpack.c.l.b16 %v8184
    %v8221 = vunpack.c.l.b16 %v8185
    %v8222 = vpack.c.b16 %v8207, %v8206
    %v8223 = vpack.c.b16 %v8209, %v8208
    %v8224 = vpack.c.b16 %v8211, %v8210
    %v8225 = vpack.c.b16 %v8213, %v8212
    %v8226 = vpack.c.b16 %v8215, %v8214
    %v8227 = vpack.c.b16 %v8217, %v8216
    %v8228 = vpack.c.b16 %v8219, %v8218
    %v8229 = vpack.c.b16 %v8221, %v8220
    %8238 = vmatpush.bf16.msra.mxu0 %v8229
    %8239 = vmatpush.bf16.msra.mxu0 %v8228
    %8240 = vmatpush.bf16.msra.mxu0 %v8227
    %8241 = vmatpush.bf16.msra.mxu0 %v8226
    %8242 = vmatpush.bf16.msra.mxu0 %v8225
    %8243 = vmatpush.bf16.msra.mxu0 %v8224
    %8244 = vmatpush.bf16.msra.mxu0 %v8223
    %8245 = vmatpush.bf16.msra.mxu0 %v8222
    %8246 = vmatmul.bf16.gmra.mxu0 %v8169
    %v8247 = vpop.f32.mrf.mxu0
    %v8248 = vadd.f32 %v8188, %v8247
    %v8249 = vpop.f32.mrf.mxu0
    %8250 = vdwg.mxu0
    %v8251 = vmax.f32 %v8248, 0.0
    %v8252 = vld [vmem:[#allocation26] sm:$0xf]
    %v8253 = vld [vmem:[#allocation26 + $0x4] sm:$0xf]
    %v8254 = vld [vmem:[#allocation26 + $0x8] sm:$0xf]
    %v8255 = vld [vmem:[#allocation26 + $0xc] sm:$0xf]
    %v8256 = vld [vmem:[#allocation26 + $0x10] sm:$0xf]
    %v8257 = vld [vmem:[#allocation26 + $0x14] sm:$0xf]
    %v8258 = vld [vmem:[#allocation26 + $0x18] sm:$0xf]
    %v8259 = vld [vmem:[#allocation26 + $0x1c] sm:$0xf]
    %v8260 = vld [vmem:[#allocation26 + $0x20] sm:$0xf]
    %v8261 = vld [vmem:[#allocation26 + $0x24] sm:$0xf]
    %v8262 = vld [vmem:[#allocation26 + $0x28] sm:$0xf]
    %v8263 = vld [vmem:[#allocation26 + $0x2c] sm:$0xf]
    %v8264 = vld [vmem:[#allocation26 + $0x30] sm:$0xf]
    %v8265 = vld [vmem:[#allocation26 + $0x34] sm:$0xf]
    %v8266 = vld [vmem:[#allocation26 + $0x38] sm:$0xf]
    %v8267 = vld [vmem:[#allocation26 + $0x3c] sm:$0xf]
    %v8268 = vld [vmem:[#allocation26 + $0x40] sm:$0xf]
    %v8269 = vld [vmem:[#allocation26 + $0x44] sm:$0xf]
    %v8270 = vld [vmem:[#allocation26 + $0x48] sm:$0xf]
    %v8271 = vld [vmem:[#allocation26 + $0x4c] sm:$0xf]
    %v8272 = vld [vmem:[#allocation26 + $0x50] sm:$0xf]
    %v8273 = vld [vmem:[#allocation26 + $0x54] sm:$0xf]
    %v8274 = vld [vmem:[#allocation26 + $0x58] sm:$0xf]
    %v8275 = vld [vmem:[#allocation26 + $0x5c] sm:$0xf]
    %v8276 = vld [vmem:[#allocation26 + $0x60] sm:$0xf]
    %v8277 = vld [vmem:[#allocation26 + $0x64] sm:$0xf]
    %v8278 = vld [vmem:[#allocation26 + $0x68] sm:$0xf]
    %v8279 = vld [vmem:[#allocation26 + $0x6c] sm:$0xf]
    %v8280 = vld [vmem:[#allocation26 + $0x70] sm:$0xf]
    %v8281 = vld [vmem:[#allocation26 + $0x74] sm:$0xf]
    %v8282 = vld [vmem:[#allocation26 + $0x78] sm:$0xf]
    %v8283 = vld [vmem:[#allocation26 + $0x7c] sm:$0xf]
    %v8284 = vld [vmem:[%s49] sm:$0x1]
    %v8286 = vperm.slane %v8284, 0
    %v8320 = vunpack.c.l.b16 %v8252
    %v8321 = vunpack.c.l.b16 %v8253
    %v8322 = vunpack.c.l.b16 %v8254
    %v8323 = vunpack.c.l.b16 %v8255
    %v8324 = vunpack.c.l.b16 %v8256
    %v8325 = vunpack.c.l.b16 %v8257
    %v8326 = vunpack.c.l.b16 %v8258
    %v8327 = vunpack.c.l.b16 %v8259
    %v8328 = vunpack.c.l.b16 %v8260
    %v8329 = vunpack.c.l.b16 %v8261
    %v8330 = vunpack.c.l.b16 %v8262
    %v8331 = vunpack.c.l.b16 %v8263
    %v8332 = vunpack.c.l.b16 %v8264
    %v8333 = vunpack.c.l.b16 %v8265
    %v8334 = vunpack.c.l.b16 %v8266
    %v8335 = vunpack.c.l.b16 %v8267
    %v8336 = vunpack.c.l.b16 %v8268
    %v8337 = vunpack.c.l.b16 %v8269
    %v8338 = vunpack.c.l.b16 %v8270
    %v8339 = vunpack.c.l.b16 %v8271
    %v8340 = vunpack.c.l.b16 %v8272
    %v8341 = vunpack.c.l.b16 %v8273
    %v8342 = vunpack.c.l.b16 %v8274
    %v8343 = vunpack.c.l.b16 %v8275
    %v8344 = vunpack.c.l.b16 %v8276
    %v8345 = vunpack.c.l.b16 %v8277
    %v8346 = vunpack.c.l.b16 %v8278
    %v8347 = vunpack.c.l.b16 %v8279
    %v8348 = vunpack.c.l.b16 %v8280
    %v8349 = vunpack.c.l.b16 %v8281
    %v8350 = vunpack.c.l.b16 %v8282
    %v8351 = vunpack.c.l.b16 %v8283
    %v8352 = vpack.c.b16 %v8321, %v8320
    %v8353 = vpack.c.b16 %v8323, %v8322
    %v8354 = vpack.c.b16 %v8325, %v8324
    %v8355 = vpack.c.b16 %v8327, %v8326
    %v8356 = vpack.c.b16 %v8329, %v8328
    %v8357 = vpack.c.b16 %v8331, %v8330
    %v8358 = vpack.c.b16 %v8333, %v8332
    %v8359 = vpack.c.b16 %v8335, %v8334
    %v8360 = vpack.c.b16 %v8337, %v8336
    %v8361 = vpack.c.b16 %v8339, %v8338
    %v8362 = vpack.c.b16 %v8341, %v8340
    %v8363 = vpack.c.b16 %v8343, %v8342
    %v8364 = vpack.c.b16 %v8345, %v8344
    %v8365 = vpack.c.b16 %v8347, %v8346
    %v8366 = vpack.c.b16 %v8349, %v8348
    %v8367 = vpack.c.b16 %v8351, %v8350
    %8384 = vmatpush.bf16.msra.mxu0 %v8359
    %8385 = vmatpush.bf16.msra.mxu0 %v8358
    %8386 = vmatpush.bf16.msra.mxu0 %v8357
    %8387 = vmatpush.bf16.msra.mxu0 %v8356
    %8388 = vmatpush.bf16.msra.mxu0 %v8355
    %8389 = vmatpush.bf16.msra.mxu0 %v8354
    %8390 = vmatpush.bf16.msra.mxu0 %v8353
    %8391 = vmatpush.bf16.msra.mxu0 %v8352
    %8392 = vmatmul.bf16.gmra.mxu0 %v8008
    %v8393 = vpop.f32.mrf.mxu0
    %v8394 = vadd.f32 %v8286, %v8393
    %v8395 = vpop.f32.mrf.mxu0
    %8396 = vdwg.mxu0
    %8397 = vmatpush.bf16.msra.mxu0 %v8367
    %8398 = vmatpush.bf16.msra.mxu0 %v8366
    %8399 = vmatpush.bf16.msra.mxu0 %v8365
    %8400 = vmatpush.bf16.msra.mxu0 %v8364
    %8401 = vmatpush.bf16.msra.mxu0 %v8363
    %8402 = vmatpush.bf16.msra.mxu0 %v8362
    %8403 = vmatpush.bf16.msra.mxu0 %v8361
    %8404 = vmatpush.bf16.msra.mxu0 %v8360
    %8405 = vmatmul.bf16.gmra.mxu0 %v8009
    %v8406 = vpop.f32.mrf.mxu0
    %v8407 = vadd.f32 %v8394, %v8406
    %v8408 = vpop.f32.mrf.mxu0
    %8409 = vdwg.mxu0
    %v8410 = vadd.f32 %v8251, %v8407
    %v8411 = vpack.c.bf16 %v8410, %v8410
    %v8412 = vld [vmem:[%s51] sm:$0xf]
    %v8413 = vld [vmem:[%s51 + $0x4] sm:$0xf]
    %v8414 = vld [vmem:[%s51 + $0x8] sm:$0xf]
    %v8415 = vld [vmem:[%s51 + $0xc] sm:$0xf]
    %v8416 = vld [vmem:[%s51 + $0x10] sm:$0xf]
    %v8417 = vld [vmem:[%s51 + $0x14] sm:$0xf]
    %v8418 = vld [vmem:[%s51 + $0x18] sm:$0xf]
    %v8419 = vld [vmem:[%s51 + $0x1c] sm:$0xf]
    %v8420 = vld [vmem:[%s51 + $0x20] sm:$0xf]
    %v8421 = vld [vmem:[%s51 + $0x24] sm:$0xf]
    %v8422 = vld [vmem:[%s51 + $0x28] sm:$0xf]
    %v8423 = vld [vmem:[%s51 + $0x2c] sm:$0xf]
    %v8424 = vld [vmem:[%s51 + $0x30] sm:$0xf]
    %v8425 = vld [vmem:[%s51 + $0x34] sm:$0xf]
    %v8426 = vld [vmem:[%s51 + $0x38] sm:$0xf]
    %v8427 = vld [vmem:[%s51 + $0x3c] sm:$0xf]
    %v8428 = vld [vmem:[%s53] sm:$0x1]
    %v8430 = vperm.slane %v8428, 0
    %v8448 = vunpack.c.l.b16 %v8412
    %v8449 = vunpack.c.l.b16 %v8413
    %v8450 = vunpack.c.l.b16 %v8414
    %v8451 = vunpack.c.l.b16 %v8415
    %v8452 = vunpack.c.l.b16 %v8416
    %v8453 = vunpack.c.l.b16 %v8417
    %v8454 = vunpack.c.l.b16 %v8418
    %v8455 = vunpack.c.l.b16 %v8419
    %v8456 = vunpack.c.l.b16 %v8420
    %v8457 = vunpack.c.l.b16 %v8421
    %v8458 = vunpack.c.l.b16 %v8422
    %v8459 = vunpack.c.l.b16 %v8423
    %v8460 = vunpack.c.l.b16 %v8424
    %v8461 = vunpack.c.l.b16 %v8425
    %v8462 = vunpack.c.l.b16 %v8426
    %v8463 = vunpack.c.l.b16 %v8427
    %v8464 = vpack.c.b16 %v8449, %v8448
    %v8465 = vpack.c.b16 %v8451, %v8450
    %v8466 = vpack.c.b16 %v8453, %v8452
    %v8467 = vpack.c.b16 %v8455, %v8454
    %v8468 = vpack.c.b16 %v8457, %v8456
    %v8469 = vpack.c.b16 %v8459, %v8458
    %v8470 = vpack.c.b16 %v8461, %v8460
    %v8471 = vpack.c.b16 %v8463, %v8462
    %8480 = vmatpush.bf16.msra.mxu0 %v8471
    %8481 = vmatpush.bf16.msra.mxu0 %v8470
    %8482 = vmatpush.bf16.msra.mxu0 %v8469
    %8483 = vmatpush.bf16.msra.mxu0 %v8468
    %8484 = vmatpush.bf16.msra.mxu0 %v8467
    %8485 = vmatpush.bf16.msra.mxu0 %v8466
    %8486 = vmatpush.bf16.msra.mxu0 %v8465
    %8487 = vmatpush.bf16.msra.mxu0 %v8464
    %8488 = vmatmul.bf16.gmra.mxu0 %v8411
    %v8489 = vpop.f32.mrf.mxu0
    %v8490 = vadd.f32 %v8430, %v8489
    %v8491 = vpop.f32.mrf.mxu0
    %8492 = vdwg.mxu0
    %v8493 = vmax.f32 %v8490, 0.0
    %v8494 = vpack.c.bf16 %v8493, %v8493
    %v8495 = vld [vmem:[%s55] sm:$0xf]
    %v8496 = vld [vmem:[%s55 + $0x4] sm:$0xf]
    %v8497 = vld [vmem:[%s55 + $0x8] sm:$0xf]
    %v8498 = vld [vmem:[%s55 + $0xc] sm:$0xf]
    %v8499 = vld [vmem:[%s55 + $0x10] sm:$0xf]
    %v8500 = vld [vmem:[%s55 + $0x14] sm:$0xf]
    %v8501 = vld [vmem:[%s55 + $0x18] sm:$0xf]
    %v8502 = vld [vmem:[%s55 + $0x1c] sm:$0xf]
    %v8503 = vld [vmem:[%s57] sm:$0x1]
    %v8505 = vperm.slane %v8503, 0
    %v8515 = vunpack.c.l.b16 %v8495
    %v8516 = vunpack.c.l.b16 %v8496
    %v8517 = vunpack.c.l.b16 %v8497
    %v8518 = vunpack.c.l.b16 %v8498
    %v8519 = vunpack.c.l.b16 %v8499
    %v8520 = vunpack.c.l.b16 %v8500
    %v8521 = vunpack.c.l.b16 %v8501
    %v8522 = vunpack.c.l.b16 %v8502
    %v8523 = vpack.c.b16 %v8516, %v8515
    %v8524 = vpack.c.b16 %v8518, %v8517
    %v8525 = vpack.c.b16 %v8520, %v8519
    %v8526 = vpack.c.b16 %v8522, %v8521
    %vm8531 = vcmask 523264
    %v8533 = vsel %vm8531, %v8494, 0
    %8535 = vmatpush.bf16.msra.mxu0 0
    %8536 = vmatpush.bf16.msra.mxu0 0
    %8537 = vmatpush.bf16.msra.mxu0 0
    %8538 = vmatpush.bf16.msra.mxu0 0
    %8539 = vmatpush.bf16.msra.mxu0 %v8526
    %8540 = vmatpush.bf16.msra.mxu0 %v8525
    %8541 = vmatpush.bf16.msra.mxu0 %v8524
    %8542 = vmatpush.bf16.msra.mxu0 %v8523
    %8543 = vmatmul.bf16.gmra.mxu0 %v8533
    %v8544 = vpop.f32.mrf.mxu0
    %v8545 = vadd.f32 %v8505, %v8544
    %v8546 = vpop.f32.mrf.mxu0
    %8547 = vdwg.mxu0
    %v8548 = vmax.f32 %v8545, 0.0
    %v8549 = vld [vmem:[%s59] sm:$0xf]
    %v8550 = vld [vmem:[%s59 + $0x4] sm:$0xf]
    %v8551 = vld [vmem:[%s59 + $0x8] sm:$0xf]
    %v8552 = vld [vmem:[%s59 + $0xc] sm:$0xf]
    %v8553 = vld [vmem:[%s59 + $0x10] sm:$0xf]
    %v8554 = vld [vmem:[%s59 + $0x14] sm:$0xf]
    %v8555 = vld [vmem:[%s59 + $0x18] sm:$0xf]
    %v8556 = vld [vmem:[%s59 + $0x1c] sm:$0xf]
    %v8557 = vld [vmem:[%s59 + $0x20] sm:$0xf]
    %v8558 = vld [vmem:[%s59 + $0x24] sm:$0xf]
    %v8559 = vld [vmem:[%s59 + $0x28] sm:$0xf]
    %v8560 = vld [vmem:[%s59 + $0x2c] sm:$0xf]
    %v8561 = vld [vmem:[%s59 + $0x30] sm:$0xf]
    %v8562 = vld [vmem:[%s59 + $0x34] sm:$0xf]
    %v8563 = vld [vmem:[%s59 + $0x38] sm:$0xf]
    %v8564 = vld [vmem:[%s59 + $0x3c] sm:$0xf]
    %v8565 = vld [vmem:[%s61] sm:$0x1]
    %v8567 = vperm.slane %v8565, 0
    %v8585 = vunpack.c.l.b16 %v8549
    %v8586 = vunpack.c.l.b16 %v8550
    %v8587 = vunpack.c.l.b16 %v8551
    %v8588 = vunpack.c.l.b16 %v8552
    %v8589 = vunpack.c.l.b16 %v8553
    %v8590 = vunpack.c.l.b16 %v8554
    %v8591 = vunpack.c.l.b16 %v8555
    %v8592 = vunpack.c.l.b16 %v8556
    %v8593 = vunpack.c.l.b16 %v8557
    %v8594 = vunpack.c.l.b16 %v8558
    %v8595 = vunpack.c.l.b16 %v8559
    %v8596 = vunpack.c.l.b16 %v8560
    %v8597 = vunpack.c.l.b16 %v8561
    %v8598 = vunpack.c.l.b16 %v8562
    %v8599 = vunpack.c.l.b16 %v8563
    %v8600 = vunpack.c.l.b16 %v8564
    %v8601 = vpack.c.b16 %v8586, %v8585
    %v8602 = vpack.c.b16 %v8588, %v8587
    %v8603 = vpack.c.b16 %v8590, %v8589
    %v8604 = vpack.c.b16 %v8592, %v8591
    %v8605 = vpack.c.b16 %v8594, %v8593
    %v8606 = vpack.c.b16 %v8596, %v8595
    %v8607 = vpack.c.b16 %v8598, %v8597
    %v8608 = vpack.c.b16 %v8600, %v8599
    %8617 = vmatpush.bf16.msra.mxu0 %v8608
    %8618 = vmatpush.bf16.msra.mxu0 %v8607
    %8619 = vmatpush.bf16.msra.mxu0 %v8606
    %8620 = vmatpush.bf16.msra.mxu0 %v8605
    %8621 = vmatpush.bf16.msra.mxu0 %v8604
    %8622 = vmatpush.bf16.msra.mxu0 %v8603
    %8623 = vmatpush.bf16.msra.mxu0 %v8602
    %8624 = vmatpush.bf16.msra.mxu0 %v8601
    %8625 = vmatmul.bf16.gmra.mxu0 %v8411
    %v8626 = vpop.f32.mrf.mxu0
    %v8627 = vadd.f32 %v8567, %v8626
    %v8628 = vpop.f32.mrf.mxu0
    %8629 = vdwg.mxu0
    %v8630 = vadd.f32 %v8548, %v8627
    %v8631 = vpack.c.bf16 %v8630, %v8630
    %v8632 = vld [vmem:[#allocation28] sm:$0xf]
    %v8633 = vld [vmem:[#allocation28 + $0x4] sm:$0xf]
    %v8634 = vld [vmem:[#allocation28 + $0x8] sm:$0xf]
    %v8635 = vld [vmem:[#allocation28 + $0xc] sm:$0xf]
    %v8636 = vld [vmem:[#allocation28 + $0x10] sm:$0xf]
    %v8637 = vld [vmem:[#allocation28 + $0x14] sm:$0xf]
    %v8638 = vld [vmem:[#allocation28 + $0x18] sm:$0xf]
    %v8639 = vld [vmem:[#allocation28 + $0x1c] sm:$0xf]
    %v8640 = vld [vmem:[%s65] sm:$0x1]
    %v8642 = vperm.slane %v8640, 0
    %v8652 = vunpack.c.l.b16 %v8632
    %v8653 = vunpack.c.l.b16 %v8633
    %v8654 = vunpack.c.l.b16 %v8634
    %v8655 = vunpack.c.l.b16 %v8635
    %v8656 = vunpack.c.l.b16 %v8636
    %v8657 = vunpack.c.l.b16 %v8637
    %v8658 = vunpack.c.l.b16 %v8638
    %v8659 = vunpack.c.l.b16 %v8639
    %v8660 = vpack.c.b16 %v8653, %v8652
    %v8661 = vpack.c.b16 %v8655, %v8654
    %v8662 = vpack.c.b16 %v8657, %v8656
    %v8663 = vpack.c.b16 %v8659, %v8658
    %v8669 = vsel %vm8531, %v8631, 0
    %8671 = vmatpush.bf16.msra.mxu0 0
    %8672 = vmatpush.bf16.msra.mxu0 0
    %8673 = vmatpush.bf16.msra.mxu0 0
    %8674 = vmatpush.bf16.msra.mxu0 0
    %8675 = vmatpush.bf16.msra.mxu0 %v8663
    %8676 = vmatpush.bf16.msra.mxu0 %v8662
    %8677 = vmatpush.bf16.msra.mxu0 %v8661
    %8678 = vmatpush.bf16.msra.mxu0 %v8660
    %8679 = vmatmul.bf16.gmra.mxu0 %v8669
    %v8680 = vpop.f32.mrf.mxu0
    %v8681 = vadd.f32 %v8642, %v8680
    %v8682 = vpop.f32.mrf.mxu0
    %8683 = vdwg.mxu0
    %8684 = vst [vmem:[#allocation29] sm:$0xff] %v8681
    // Predicated region
    $region202: #{tpu_custom_call.1} parent=1 // pred_check
      _
    $region203: #{tpu_custom_call.1} parent=1 // pred_check_branch
      %8686 = sbr.rel (0) target = $region205
    $region204: #{tpu_custom_call.1} parent=1 // pred_region
      %8688 = vsyncadd [#allocation4], 0
      %s8690 = sshll.u32 [#allocation29], 4
      %s8691 = int_to_ptr.vmem [resolvable:$true] %s8690
      %s8692 = sshll.u32 %s67, 4
      %s8693 = int_to_ptr.hbm [resolvable:$true] %s8692
      %8695 = dma.vmem_to_hbm [thread:$0]  %s8691, 128, %s8693, [#allocation4]
    $region205: #{tpu_custom_call.1} parent=1 // pred_fallthru
      _
    // Predicated region
    $region206: #{tpu_custom_call.1} parent=1 // pred_check
      _
    $region207: #{tpu_custom_call.1} parent=1 // pred_check_branch
      %8697 = sbr.rel (0) target = $region209
    $region208: #{tpu_custom_call.1} parent=1 // pred_region
      %8699 = dma.done [#allocation4], 128
    $region209: #{tpu_custom_call.1} parent=1 // pred_fallthru
      _
    %8700 = vsyncpa [#allocation3], 1
    %8701 = vsyncpa [#allocation6], 1
    %8702 = vsyncpa [#allocation9], 1
    %8703 = vsyncpa [#allocation12], 1
    %8704 = vsyncpa [#allocation15], 1
    %8705 = vsyncpa [#allocation18], 1
    %8706 = vsyncpa [#allocation21], 1
    %8707 = vsyncpa [#allocation24], 1
    %8708 = vsyncpa [#allocation27], 1
    %8709 = vsyncpa [#allocation4], 1

</llo_original>
